<compile_context>
chip_gen: v7x
topology: tpu7x:2x2x1
jax: 0.10.0
libtpu: 0.0.40
codegen_flags: <defaults>
</compile_context>

<pallas_src>
import jax
import jax.numpy as jnp
from jax.experimental import pallas as pl
from jax.experimental.pallas import tpu as pltpu

NC = 3
NDF = 64
NEG_SLOPE = 0.2
BN_EPS = 1e-5
# Worst-case resident footprint of any kernel here is < 3 MiB; 16 MiB leaves
# scoped-VMEM headroom for the surrounding XLA im2col fusions on v5e/v6e/v7x.
VMEM_LIMIT = 16 * 1024 * 1024


# ---------------------------------------------------------------------------
# Pallas kernels
# ---------------------------------------------------------------------------
def _conv1_lrelu_kernel(x_ref, w_ref, o_ref):
    """(paired patches) @ (block-diagonal weight) with fused LeakyReLU.

    Two consecutive output pixels are packed along lanes, so the effective
    output width is 128 lanes and every store is a full, unmasked row.
    """
    y = jnp.dot(x_ref[...], w_ref[...], preferred_element_type=jnp.float32)
    o_ref[...] = jnp.where(y > 0, y, NEG_SLOPE * y).astype(o_ref.dtype)


def _conv_bn_lrelu_kernel(x_ref, w_ref, g_ref, b_ref, o_ref, acc_ref):
    """K-tiled matmul; BN (two-pass batch stats) + LeakyReLU epilogue on last k."""
    k = pl.program_id(1)

    @pl.when(k == 0)
    def _():
        acc_ref[...] = jnp.zeros_like(acc_ref)

    acc_ref[...] += jnp.dot(x_ref[...], w_ref[...],
                            preferred_element_type=jnp.float32)

    @pl.when(k == pl.num_programs(1) - 1)
    def _():
        y = acc_ref[...]                                   # (M, toc) f32
        inv_m = 1.0 / y.shape[0]
        mean = jnp.sum(y, axis=0, keepdims=True) * inv_m
        d = y - mean
        var = jnp.sum(d * d, axis=0, keepdims=True) * inv_m   # two-pass variance
        z = d * (jax.lax.rsqrt(var + BN_EPS) * g_ref[...]) + b_ref[...]
        o_ref[...] = jnp.where(z > 0, z, NEG_SLOPE * z).astype(o_ref.dtype)


def _head_kernel(x_ref, w_ref, g_ref, b_ref, w5_ref, o_ref, acc_ref):
    """conv4 (K-tiled) + BN + LeakyReLU + conv5(k4,s1,p0) + sigmoid, fused."""
    k = pl.program_id(0)

    @pl.when(k == 0)
    def _():
        acc_ref[...] = jnp.zeros_like(acc_ref)

    acc_ref[...] += jnp.dot(x_ref[...], w_ref[...],
                            preferred_element_type=jnp.float32)

    @pl.when(k == pl.num_programs(0) - 1)
    def _():
        y = acc_ref[...]                                   # (N*16, C4) f32
        m_rows, c4 = y.shape
        n = m_rows // 16
        inv_m = 1.0 / m_rows
        mean = jnp.sum(y, axis=0, keepdims=True) * inv_m
        d = y - mean
        var = jnp.sum(d * d, axis=0, keepdims=True) * inv_m
        z = d * (jax.lax.rsqrt(var + BN_EPS) * g_ref[...]) + b_ref[...]
        a = jnp.where(z > 0, z, NEG_SLOPE * z)             # (N*16, C4) f32

        # conv5: for a 4x4 spatial input, each image's im2col row is its
        # flattened conv4 activation, so conv5 is an elementwise mul with the
        # (16, C4) weight plus a per-image reduction.  The leading-dim reshape
        # (N*16, C4) -> (N, 16, C4) is relayout-free (16 is a multiple of 8).
        a3 = a.reshape(n, 16, c4)
        w5b = w5_ref[...].reshape(1, 16, c4)
        logit = jnp.sum(jnp.sum(a3 * w5b, axis=2), axis=1, keepdims=True)  # (N,1)

        # Exact, numerically stable sigmoid (no approximate reciprocal).
        e = jnp.exp(-jnp.abs(logit))
        num = jnp.where(logit >= 0, 1.0, e)
        o_ref[...] = (num / (1.0 + e)).astype(o_ref.dtype)


# ---------------------------------------------------------------------------
# Pallas wrappers
# ---------------------------------------------------------------------------
def _block_diag(wm, pairs):
    """(K, OC) -> (K*pairs, OC*pairs) block-diagonal weight."""
    zeros = jnp.zeros_like(wm)
    cols = []
    for j in range(pairs):
        rows = [wm if i == j else zeros for i in range(pairs)]
        cols.append(jnp.concatenate(rows, axis=0))
    return jnp.concatenate(cols, axis=1)


def conv1_lrelu(patches, w1_mat):
    """conv1: patches (M, K) bf16 @ w (K, OC) -> (M, OC) bf16, LeakyReLU fused.

    OC = 64 (< 128 lanes), so `pairs` consecutive output pixels are computed
    side by side against a block-diagonal weight: kernel stores are fully
    lane-dense and the unpack outside is a free row-major reshape.
    """
    M, K = patches.shape
    OC = w1_mat.shape[1]
    pairs = (128 // OC) if (OC < 128 and 128 % OC == 0) else 1
    while pairs > 1 and M % pairs != 0:
        pairs //= 2
    M2 = M // pairs
    p2 = patches.reshape(M2, K * pairs)
    wbd = _block_diag(w1_mat, pairs)                       # (K*pairs, OC*pairs)

    # Big M tiles (amortize per-step overhead), but >= 2 steps when the batch
    # allows so the "parallel" axis can split across v7x's two TensorCores.
    tm = min(4096, (M2 + 1) // 2) if M2 >= 1024 else M2
    tm = max(8, ((tm + 7) // 8) * 8)
    grid_m = pl.cdiv(M2, tm)
    M2p = grid_m * tm
    if M2p != M2:
        p2 = jnp.pad(p2, ((0, M2p - M2), (0, 0)))

    out = pl.pallas_call(
        _conv1_lrelu_kernel,
        out_shape=jax.ShapeDtypeStruct((M2p, OC * pairs), jnp.bfloat16),
        grid_spec=pltpu.PrefetchScalarGridSpec(
            num_scalar_prefetch=0,
            grid=(grid_m,),
            in_specs=[
                pl.BlockSpec((tm, K * pairs), lambda i: (i, 0)),
                pl.BlockSpec((K * pairs, OC * pairs), lambda i: (0, 0)),
            ],
            out_specs=pl.BlockSpec((tm, OC * pairs), lambda i: (i, 0)),
        ),
        compiler_params=pltpu.CompilerParams(
            dimension_semantics=("parallel",),
            vmem_limit_bytes=VMEM_LIMIT),
    )(p2, wbd)
    return out[:M2].reshape(M, OC)


def conv_bn_lrelu(patches, w, gamma, beta, *, tk=512, toc=128):
    """conv + BatchNorm(batch stats) + LeakyReLU; K-tiled (and OC-tiled) grid."""
    M, K = patches.shape
    OC = w.shape[1]
    if K % tk != 0:
        tk = K
    if OC % toc != 0:
        toc = OC
    grid = (OC // toc, K // tk)        # OC axis "parallel" (v7x megacore), K last
    return pl.pallas_call(
        _conv_bn_lrelu_kernel,
        out_shape=jax.ShapeDtypeStruct((M, OC), jnp.bfloat16),
        grid_spec=pltpu.PrefetchScalarGridSpec(
            num_scalar_prefetch=0,
            grid=grid,
            in_specs=[
                pl.BlockSpec((M, tk), lambda j, k: (0, k)),
                pl.BlockSpec((tk, toc), lambda j, k: (k, j)),
                pl.BlockSpec((1, toc), lambda j, k: (0, j)),
                pl.BlockSpec((1, toc), lambda j, k: (0, j)),
            ],
            out_specs=pl.BlockSpec((M, toc), lambda j, k: (0, j)),
            scratch_shapes=[pltpu.VMEM((M, toc), jnp.float32)],
        ),
        compiler_params=pltpu.CompilerParams(
            dimension_semantics=("parallel", "arbitrary"),
            vmem_limit_bytes=VMEM_LIMIT),
    )(patches, w,
      gamma.reshape(1, OC).astype(jnp.float32),
      beta.reshape(1, OC).astype(jnp.float32))


def conv_bn_lrelu_head(patches, w4, gamma, beta, w5_flat, n_batch, *, tk=1024):
    """Fused conv4 + BN + LeakyReLU + conv5 + sigmoid -> (n_batch, 1) f32.

    K-tiled so the 4 MiB bf16 w4 streams in tk-chunks double-buffered behind
    the matmul; M (= n_batch*16) stays whole per weight chunk (max reuse).
    """
    M4, K4 = patches.shape
    C4 = w4.shape[1]
    if K4 % tk != 0:
        tk = K4
    return pl.pallas_call(
        _head_kernel,
        out_shape=jax.ShapeDtypeStruct((n_batch, 1), jnp.float32),
        grid_spec=pltpu.PrefetchScalarGridSpec(
            num_scalar_prefetch=0,
            grid=(K4 // tk,),
            in_specs=[
                pl.BlockSpec((M4, tk), lambda k: (0, k)),
                pl.BlockSpec((tk, C4), lambda k: (k, 0)),
                pl.BlockSpec((1, C4), lambda k: (0, 0)),
                pl.BlockSpec((1, C4), lambda k: (0, 0)),
                pl.BlockSpec((16, C4), lambda k: (0, 0)),
            ],
            out_specs=pl.BlockSpec((n_batch, 1), lambda k: (0, 0)),
            scratch_shapes=[pltpu.VMEM((M4, C4), jnp.float32)],
        ),
        compiler_params=pltpu.CompilerParams(
            dimension_semantics=("arbitrary",),
            vmem_limit_bytes=VMEM_LIMIT),
    )(patches, w4,
      gamma.reshape(1, C4).astype(jnp.float32),
      beta.reshape(1, C4).astype(jnp.float32),
      w5_flat)


# ---------------------------------------------------------------------------
# Plain-JAX glue: im2col patch extraction (layout plumbing, not the hot path)
# ---------------------------------------------------------------------------
def im2col(x_nhwc, ksize, stride, pad):
    N, H, W, C = x_nhwc.shape
    if pad:
        x_nhwc = jnp.pad(x_nhwc, ((0, 0), (pad, pad), (pad, pad), (0, 0)))
    OH = (H + 2 * pad - ksize) // stride + 1
    OW = (W + 2 * pad - ksize) // stride + 1
    cols = []
    for kh in range(ksize):
        for kw in range(ksize):
            cols.append(
                x_nhwc[:, kh:kh + stride * OH:stride,
                       kw:kw + stride * OW:stride, :])
    patches = jnp.concatenate(cols, axis=-1)         # (N, OH, OW, k*k*C)
    return patches.reshape(N * OH * OW, ksize * ksize * C), N, OH, OW


# ---------------------------------------------------------------------------
# Parameters (deterministic, DCGAN-style init) and forward pass
# ---------------------------------------------------------------------------
def init_params(key):
    ks = jax.random.split(key, 11)
    def conv_w(k, ic, oc):
        return 0.02 * jax.random.normal(k, (4, 4, ic, oc), jnp.float32)
    return {
        "w1": conv_w(ks[0], NC, NDF),
        "w2": conv_w(ks[1], NDF, NDF * 2),
        "g2": 1.0 + 0.02 * jax.random.normal(ks[2], (NDF * 2,), jnp.float32),
        "b2": 0.02 * jax.random.normal(ks[3], (NDF * 2,), jnp.float32),
        "w3": conv_w(ks[4], NDF * 2, NDF * 4),
        "g3": 1.0 + 0.02 * jax.random.normal(ks[5], (NDF * 4,), jnp.float32),
        "b3": 0.02 * jax.random.normal(ks[6], (NDF * 4,), jnp.float32),
        "w4": conv_w(ks[7], NDF * 4, NDF * 8),
        "g4": 1.0 + 0.02 * jax.random.normal(ks[8], (NDF * 8,), jnp.float32),
        "b4": 0.02 * jax.random.normal(ks[9], (NDF * 8,), jnp.float32),
        "w5": conv_w(ks[10], NDF * 8, 1),
    }


def discriminator_forward(params, x_nchw):
    # NHWC, bf16 operands for the MXU (f32 accumulation inside every kernel).
    x = jnp.transpose(x_nchw, (0, 2, 3, 1)).astype(jnp.bfloat16)

    def wmat(w):   # (4,4,IC,OC) -> (16*IC, OC), matching im2col (kh,kw,c) order
        return w.reshape(-1, w.shape[-1]).astype(jnp.bfloat16)

    # TODO(synk): the remaining structural lever from the review (one fully
    # fused kernel with VMEM-resident activations / in-kernel im2col) is not
    # applied; patch extraction stays in XLA and each conv stage is a single
    # K-tiled, pipelined pallas_call with its epilogue fused.

    # conv1 (3->64, k4 s2 p1) + LeakyReLU (lane-dense packed output)
    p, N, OH, OW = im2col(x, 4, 2, 1)
    x = conv1_lrelu(p, wmat(params["w1"])).reshape(N, OH, OW, NDF)
    # conv2 (64->128) + BN + LeakyReLU (K-tiled, pipelined)
    p, N, OH, OW = im2col(x, 4, 2, 1)
    x = conv_bn_lrelu(p, wmat(params["w2"]), params["g2"], params["b2"],
                      tk=512).reshape(N, OH, OW, NDF * 2)
    # conv3 (128->256) + BN + LeakyReLU (K-tiled + OC split across cores)
    p, N, OH, OW = im2col(x, 4, 2, 1)
    x = conv_bn_lrelu(p, wmat(params["w3"]), params["g3"], params["b3"],
                      tk=512).reshape(N, OH, OW, NDF * 4)
    # conv4 (256->512) + BN + LeakyReLU + conv5 (512->1) + Sigmoid (one kernel)
    p, N, OH, OW = im2col(x, 4, 2, 1)
    w5_flat = params["w5"].reshape(16, NDF * 8).astype(jnp.float32)
    probs = conv_bn_lrelu_head(p, wmat(params["w4"]), params["g4"],
                               params["b4"], w5_flat, N, tk=1024)  # (N, 1)
    return probs.reshape(N, 1, 1, 1)                 # matches PyTorch (N,1,1,1)


# ---------------------------------------------------------------------------
# Pure-JAX reference (same bf16-operand / f32-accumulate numerics)
# ---------------------------------------------------------------------------
def ref_forward(params, x_nchw):
    x = jnp.transpose(x_nchw, (0, 2, 3, 1)).astype(jnp.bfloat16)

    def conv(x, w, stride, pad, precision=None):
        return jax.lax.conv_general_dilated(
            x, w, (stride, stride), [(pad, pad), (pad, pad)],
            dimension_numbers=("NHWC", "HWIO", "NHWC"),
            preferred_element_type=jnp.float32, precision=precision)

    def bn_lrelu(y, g, b):
        mean = jnp.mean(y, axis=(0, 1, 2), keepdims=True)
        var = jnp.mean(jnp.square(y - mean), axis=(0, 1, 2), keepdims=True)
        z = (y - mean) * jax.lax.rsqrt(var + BN_EPS) * g + b
        return jnp.where(z > 0, z, NEG_SLOPE * z)

    def bf16(w):
        return w.astype(jnp.bfloat16)

    y = conv(x, bf16(params["w1"]), 2, 1)
    x = jnp.where(y > 0, y, NEG_SLOPE * y).astype(jnp.bfloat16)
    x = bn_lrelu(conv(x, bf16(params["w2"]), 2, 1),
                 params["g2"], params["b2"]).astype(jnp.bfloat16)
    x = bn_lrelu(conv(x, bf16(params["w3"]), 2, 1),
                 params["g3"], params["b3"]).astype(jnp.bfloat16)
    x = bn_lrelu(conv(x, bf16(params["w4"]), 2, 1),
                 params["g4"], params["b4"])              # keep f32 for conv5
    y = conv(x, params["w5"], 1, 0, precision=jax.lax.Precision.HIGHEST)
    y = jax.nn.sigmoid(y)
    return jnp.transpose(y, (0, 3, 1, 2))


if __name__ == "__main__":
    key = jax.random.PRNGKey(0)
    pkey, xkey = jax.random.split(key)
    params = init_params(pkey)
    # Spatial size must be 64 so the final k4/s1/p0 conv produces 1x1.
    x = jax.random.normal(xkey, (2, NC, 64, 64), jnp.float32)

    out = jax.block_until_ready(jax.jit(discriminator_forward)(params, x))
    ref = jax.block_until_ready(jax.jit(ref_forward)(params, x))

    assert out.shape == (2, 1, 1, 1), out.shape
    assert bool(jnp.all(jnp.isfinite(out)))
    assert jnp.allclose(out, ref, rtol=5e-3, atol=5e-3), (out, ref)
    print("KERNEL_OK")
</pallas_src>

<mosaic_0001>
module attributes {stable_mosaic.version = 11 : i64} {
  func.func @_conv1_lrelu_kernel(%arg0: i32, %arg1: memref<512x96xbf16, #tpu.memory_space<vmem>>, %arg2: memref<96x128xbf16, #tpu.memory_space<vmem>>, %arg3: memref<512x128xbf16, #tpu.memory_space<vmem>>) attributes {dimension_semantics = [#tpu.dimension_semantics<parallel>], iteration_bounds = array<i64: 2>, scalar_prefetch = 0 : i64, scratch_operands = 0 : i64, tpu.core_type = #tpu.core_type<tc>, window_params = [{transform_indices = @transform_0, window_bounds = array<i64: 512, 96>}, {pipeline_mode = #tpu.pipeline_mode<synchronous>, transform_indices = @transform_1, window_bounds = array<i64: 96, 128>}, {transform_indices = @transform_2, window_bounds = array<i64: 512, 128>}]} {
    %c0 = arith.constant 0 : index
    %c0_0 = arith.constant 0 : index
    %0 = vector.load %arg1[%c0, %c0_0] : memref<512x96xbf16, #tpu.memory_space<vmem>>, vector<512x96xbf16>
    %c0_1 = arith.constant 0 : index
    %c0_2 = arith.constant 0 : index
    %1 = vector.load %arg2[%c0_1, %c0_2] : memref<96x128xbf16, #tpu.memory_space<vmem>>, vector<96x128xbf16>
    %cst = arith.constant dense<0.000000e+00> : vector<512x128xf32>
    %2 = tpu.matmul %0, %1, %cst {dimension_numbers = #tpu.dot_dimension_numbers<[1], [0], [0], [1], [0, 0, 1, 1], [], []>} : vector<512x96xbf16>, vector<96x128xbf16>, vector<512x128xf32> -> vector<512x128xf32>
    %cst_3 = arith.constant 0.000000e+00 : f32
    %3 = vector.broadcast %cst_3 : f32 to vector<512x128xf32>
    %4 = arith.cmpf ogt, %2, %3 : vector<512x128xf32>
    %cst_4 = arith.constant 2.000000e-01 : f32
    %5 = vector.broadcast %cst_4 : f32 to vector<512x128xf32>
    %6 = arith.mulf %5, %2 : vector<512x128xf32>
    %7 = arith.select %4, %2, %6 : vector<512x128xi1>, vector<512x128xf32>
    %8 = arith.truncf %7 : vector<512x128xf32> to vector<512x128xbf16>
    %c0_5 = arith.constant 0 : index
    %c0_6 = arith.constant 0 : index
    %9 = vector.load %arg3[%c0_5, %c0_6] : memref<512x128xbf16, #tpu.memory_space<vmem>>, vector<512x128xbf16>
    tpu.vector_store %arg3[%c0_5, %c0_6], %8 {strides = array<i32>} : memref<512x128xbf16, #tpu.memory_space<vmem>>, vector<512x128xbf16>,
    return
  }
  func.func @transform_0(%arg0: i32) -> (i32, i32) {
    %c0_i32 = arith.constant 0 : i32
    %c0_i32_0 = arith.constant 0 : i32
    return %arg0, %c0_i32 : i32, i32
  }
  func.func @transform_1(%arg0: i32) -> (i32, i32) {
    %c0_i32 = arith.constant 0 : i32
    %c0_i32_0 = arith.constant 0 : i32
    %c0_i32_1 = arith.constant 0 : i32
    return %c0_i32, %c0_i32_0 : i32, i32
  }
  func.func @transform_2(%arg0: i32) -> (i32, i32) {
    %c0_i32 = arith.constant 0 : i32
    %c0_i32_0 = arith.constant 0 : i32
    return %arg0, %c0_i32 : i32, i32
  }
}

module attributes {stable_mosaic.version = 11 : i64} {
  func.func @_conv_bn_lrelu_kernel(%arg0: i32, %arg1: i32, %arg2: memref<512x512xbf16, #tpu.memory_space<vmem>>, %arg3: memref<512x128xbf16, #tpu.memory_space<vmem>>, %arg4: memref<1x128xf32, #tpu.memory_space<vmem>>, %arg5: memref<1x128xf32, #tpu.memory_space<vmem>>, %arg6: memref<512x128xbf16, #tpu.memory_space<vmem>>, %arg7: memref<512x128xf32, #tpu.memory_space<vmem>>) attributes {dimension_semantics = [#tpu.dimension_semantics<parallel>, #tpu.dimension_semantics<arbitrary>], iteration_bounds = array<i64: 1, 2>, scalar_prefetch = 0 : i64, scratch_operands = 1 : i64, tpu.core_type = #tpu.core_type<tc>, window_params = [{transform_indices = @transform_0, window_bounds = array<i64: 512, 512>}, {transform_indices = @transform_1, window_bounds = array<i64: 512, 128>}, {transform_indices = @transform_2, window_bounds = array<i64: 1, 128>}, {transform_indices = @transform_3, window_bounds = array<i64: 1, 128>}, {transform_indices = @transform_4, window_bounds = array<i64: 512, 128>}]} {
    %c0_i32 = arith.constant 0 : i32
    %0 = arith.cmpi eq, %arg1, %c0_i32 : i32
    %1 = arith.extui %0 : i1 to i32
    %c0_i32_0 = arith.constant 0 : i32
    %2 = arith.cmpi ne, %1, %c0_i32_0 : i32
    scf.if %2 {
      %cst_9 = arith.constant 0.000000e+00 : f32
      %12 = vector.broadcast %cst_9 : f32 to vector<512x128xf32>
      %c0_10 = arith.constant 0 : index
      %c0_11 = arith.constant 0 : index
      %13 = vector.load %arg7[%c0_10, %c0_11] : memref<512x128xf32, #tpu.memory_space<vmem>>, vector<512x128xf32>
      tpu.vector_store %arg7[%c0_10, %c0_11], %12 {strides = array<i32>} : memref<512x128xf32, #tpu.memory_space<vmem>>, vector<512x128xf32>,
    } else {
    }
    %c0 = arith.constant 0 : index
    %c0_1 = arith.constant 0 : index
    %3 = vector.load %arg7[%c0, %c0_1] : memref<512x128xf32, #tpu.memory_space<vmem>>, vector<512x128xf32>
    %c0_2 = arith.constant 0 : index
    %c0_3 = arith.constant 0 : index
    %4 = vector.load %arg2[%c0_2, %c0_3] : memref<512x512xbf16, #tpu.memory_space<vmem>>, vector<512x512xbf16>
    %c0_4 = arith.constant 0 : index
    %c0_5 = arith.constant 0 : index
    %5 = vector.load %arg3[%c0_4, %c0_5] : memref<512x128xbf16, #tpu.memory_space<vmem>>, vector<512x128xbf16>
    %cst = arith.constant dense<0.000000e+00> : vector<512x128xf32>
    %6 = tpu.matmul %4, %5, %cst {dimension_numbers = #tpu.dot_dimension_numbers<[1], [0], [0], [1], [0, 0, 1, 1], [], []>} : vector<512x512xbf16>, vector<512x128xbf16>, vector<512x128xf32> -> vector<512x128xf32>
    %7 = arith.addf %3, %6 : vector<512x128xf32>
    %c0_6 = arith.constant 0 : index
    %c0_7 = arith.constant 0 : index
    %8 = vector.load %arg7[%c0_6, %c0_7] : memref<512x128xf32, #tpu.memory_space<vmem>>, vector<512x128xf32>
    tpu.vector_store %arg7[%c0_6, %c0_7], %7 {strides = array<i32>} : memref<512x128xf32, #tpu.memory_space<vmem>>, vector<512x128xf32>,
    %c1_i32 = arith.constant 1 : i32
    %9 = arith.cmpi eq, %arg1, %c1_i32 : i32
    %10 = arith.extui %9 : i1 to i32
    %c0_i32_8 = arith.constant 0 : i32
    %11 = arith.cmpi ne, %10, %c0_i32_8 : i32
    scf.if %11 {
      %c0_9 = arith.constant 0 : index
      %c0_10 = arith.constant 0 : index
      %12 = vector.load %arg7[%c0_9, %c0_10] : memref<512x128xf32, #tpu.memory_space<vmem>>, vector<512x128xf32>
      %cst_11 = arith.constant dense<0.000000e+00> : vector<128xf32>
      %13 = vector.multi_reduction <add>, %12, %cst_11 [0] : vector<512x128xf32> to vector<128xf32>
      %14 = vector.shape_cast %13 : vector<128xf32> to vector<1x128xf32>
      %cst_12 = arith.constant 0.001953125 : f32
      %15 = vector.broadcast %cst_12 : f32 to vector<1x128xf32>
      %16 = arith.mulf %14, %15 : vector<1x128xf32>
      %17 = vector.broadcast %16 : vector<1x128xf32> to vector<512x128xf32>
      %18 = arith.subf %12, %17 : vector<512x128xf32>
      %19 = arith.mulf %18, %18 : vector<512x128xf32>
      %cst_13 = arith.constant dense<0.000000e+00> : vector<128xf32>
      %20 = vector.multi_reduction <add>, %19, %cst_13 [0] : vector<512x128xf32> to vector<128xf32>
      %21 = vector.shape_cast %20 : vector<128xf32> to vector<1x128xf32>
      %cst_14 = arith.constant 0.001953125 : f32
      %22 = vector.broadcast %cst_14 : f32 to vector<1x128xf32>
      %23 = arith.mulf %21, %22 : vector<1x128xf32>
      %cst_15 = arith.constant 9.99999974E-6 : f32
      %24 = vector.broadcast %cst_15 : f32 to vector<1x128xf32>
      %25 = arith.addf %23, %24 : vector<1x128xf32>
      %26 = math.rsqrt %25 : vector<1x128xf32>
      %c0_16 = arith.constant 0 : index
      %c0_17 = arith.constant 0 : index
      %27 = vector.load %arg4[%c0_16, %c0_17] : memref<1x128xf32, #tpu.memory_space<vmem>>, vector<1x128xf32>
      %28 = arith.mulf %26, %27 : vector<1x128xf32>
      %29 = vector.broadcast %28 : vector<1x128xf32> to vector<512x128xf32>
      %30 = arith.mulf %18, %29 : vector<512x128xf32>
      %c0_18 = arith.constant 0 : index
      %c0_19 = arith.constant 0 : index
      %31 = vector.load %arg5[%c0_18, %c0_19] : memref<1x128xf32, #tpu.memory_space<vmem>>, vector<1x128xf32>
      %32 = vector.broadcast %31 : vector<1x128xf32> to vector<512x128xf32>
      %33 = arith.addf %30, %32 : vector<512x128xf32>
      %cst_20 = arith.constant 0.000000e+00 : f32
      %34 = vector.broadcast %cst_20 : f32 to vector<512x128xf32>
      %35 = arith.cmpf ogt, %33, %34 : vector<512x128xf32>
      %cst_21 = arith.constant 2.000000e-01 : f32
      %36 = vector.broadcast %cst_21 : f32 to vector<512x128xf32>
      %37 = arith.mulf %36, %33 : vector<512x128xf32>
      %38 = arith.select %35, %33, %37 : vector<512x128xi1>, vector<512x128xf32>
      %39 = arith.truncf %38 : vector<512x128xf32> to vector<512x128xbf16>
      %c0_22 = arith.constant 0 : index
      %c0_23 = arith.constant 0 : index
      %40 = vector.load %arg6[%c0_22, %c0_23] : memref<512x128xbf16, #tpu.memory_space<vmem>>, vector<512x128xbf16>
      tpu.vector_store %arg6[%c0_22, %c0_23], %39 {strides = array<i32>} : memref<512x128xbf16, #tpu.memory_space<vmem>>, vector<512x128xbf16>,
    } else {
    }
    return
  }
  func.func @transform_0(%arg0: i32, %arg1: i32) -> (i32, i32) {
    %c0_i32 = arith.constant 0 : i32
    %c0_i32_0 = arith.constant 0 : i32
    return %c0_i32, %arg1 : i32, i32
  }
  func.func @transform_1(%arg0: i32, %arg1: i32) -> (i32, i32) {
    %c0_i32 = arith.constant 0 : i32
    return %arg1, %arg0 : i32, i32
  }
  func.func @transform_2(%arg0: i32, %arg1: i32) -> (i32, i32) {
    %c0_i32 = arith.constant 0 : i32
    %c0_i32_0 = arith.constant 0 : i32
    return %c0_i32, %arg0 : i32, i32
  }
  func.func @transform_3(%arg0: i32, %arg1: i32) -> (i32, i32) {
    %c0_i32 = arith.constant 0 : i32
    %c0_i32_0 = arith.constant 0 : i32
    return %c0_i32, %arg0 : i32, i32
  }
  func.func @transform_4(%arg0: i32, %arg1: i32) -> (i32, i32) {
    %c0_i32 = arith.constant 0 : i32
    %c0_i32_0 = arith.constant 0 : i32
    return %c0_i32, %arg0 : i32, i32
  }
}

module attributes {stable_mosaic.version = 11 : i64} {
  func.func @_conv_bn_lrelu_kernel(%arg0: i32, %arg1: i32, %arg2: memref<128x512xbf16, #tpu.memory_space<vmem>>, %arg3: memref<512x128xbf16, #tpu.memory_space<vmem>>, %arg4: memref<1x128xf32, #tpu.memory_space<vmem>>, %arg5: memref<1x128xf32, #tpu.memory_space<vmem>>, %arg6: memref<128x128xbf16, #tpu.memory_space<vmem>>, %arg7: memref<128x128xf32, #tpu.memory_space<vmem>>) attributes {dimension_semantics = [#tpu.dimension_semantics<parallel>, #tpu.dimension_semantics<arbitrary>], iteration_bounds = array<i64: 2, 4>, scalar_prefetch = 0 : i64, scratch_operands = 1 : i64, tpu.core_type = #tpu.core_type<tc>, window_params = [{transform_indices = @transform_0, window_bounds = array<i64: 128, 512>}, {transform_indices = @transform_1, window_bounds = array<i64: 512, 128>}, {transform_indices = @transform_2, window_bounds = array<i64: 1, 128>}, {transform_indices = @transform_3, window_bounds = array<i64: 1, 128>}, {transform_indices = @transform_4, window_bounds = array<i64: 128, 128>}]} {
    %c0_i32 = arith.constant 0 : i32
    %0 = arith.cmpi eq, %arg1, %c0_i32 : i32
    %1 = arith.extui %0 : i1 to i32
    %c0_i32_0 = arith.constant 0 : i32
    %2 = arith.cmpi ne, %1, %c0_i32_0 : i32
    scf.if %2 {
      %cst_9 = arith.constant 0.000000e+00 : f32
      %12 = vector.broadcast %cst_9 : f32 to vector<128x128xf32>
      %c0_10 = arith.constant 0 : index
      %c0_11 = arith.constant 0 : index
      %13 = vector.load %arg7[%c0_10, %c0_11] : memref<128x128xf32, #tpu.memory_space<vmem>>, vector<128x128xf32>
      tpu.vector_store %arg7[%c0_10, %c0_11], %12 {strides = array<i32>} : memref<128x128xf32, #tpu.memory_space<vmem>>, vector<128x128xf32>,
    } else {
    }
    %c0 = arith.constant 0 : index
    %c0_1 = arith.constant 0 : index
    %3 = vector.load %arg7[%c0, %c0_1] : memref<128x128xf32, #tpu.memory_space<vmem>>, vector<128x128xf32>
    %c0_2 = arith.constant 0 : index
    %c0_3 = arith.constant 0 : index
    %4 = vector.load %arg2[%c0_2, %c0_3] : memref<128x512xbf16, #tpu.memory_space<vmem>>, vector<128x512xbf16>
    %c0_4 = arith.constant 0 : index
    %c0_5 = arith.constant 0 : index
    %5 = vector.load %arg3[%c0_4, %c0_5] : memref<512x128xbf16, #tpu.memory_space<vmem>>, vector<512x128xbf16>
    %cst = arith.constant dense<0.000000e+00> : vector<128x128xf32>
    %6 = tpu.matmul %4, %5, %cst {dimension_numbers = #tpu.dot_dimension_numbers<[1], [0], [0], [1], [0, 0, 1, 1], [], []>} : vector<128x512xbf16>, vector<512x128xbf16>, vector<128x128xf32> -> vector<128x128xf32>
    %7 = arith.addf %3, %6 : vector<128x128xf32>
    %c0_6 = arith.constant 0 : index
    %c0_7 = arith.constant 0 : index
    %8 = vector.load %arg7[%c0_6, %c0_7] : memref<128x128xf32, #tpu.memory_space<vmem>>, vector<128x128xf32>
    tpu.vector_store %arg7[%c0_6, %c0_7], %7 {strides = array<i32>} : memref<128x128xf32, #tpu.memory_space<vmem>>, vector<128x128xf32>,
    %c3_i32 = arith.constant 3 : i32
    %9 = arith.cmpi eq, %arg1, %c3_i32 : i32
    %10 = arith.extui %9 : i1 to i32
    %c0_i32_8 = arith.constant 0 : i32
    %11 = arith.cmpi ne, %10, %c0_i32_8 : i32
    scf.if %11 {
      %c0_9 = arith.constant 0 : index
      %c0_10 = arith.constant 0 : index
      %12 = vector.load %arg7[%c0_9, %c0_10] : memref<128x128xf32, #tpu.memory_space<vmem>>, vector<128x128xf32>
      %cst_11 = arith.constant dense<0.000000e+00> : vector<128xf32>
      %13 = vector.multi_reduction <add>, %12, %cst_11 [0] : vector<128x128xf32> to vector<128xf32>
      %14 = vector.shape_cast %13 : vector<128xf32> to vector<1x128xf32>
      %cst_12 = arith.constant 7.812500e-03 : f32
      %15 = vector.broadcast %cst_12 : f32 to vector<1x128xf32>
      %16 = arith.mulf %14, %15 : vector<1x128xf32>
      %17 = vector.broadcast %16 : vector<1x128xf32> to vector<128x128xf32>
      %18 = arith.subf %12, %17 : vector<128x128xf32>
      %19 = arith.mulf %18, %18 : vector<128x128xf32>
      %cst_13 = arith.constant dense<0.000000e+00> : vector<128xf32>
      %20 = vector.multi_reduction <add>, %19, %cst_13 [0] : vector<128x128xf32> to vector<128xf32>
      %21 = vector.shape_cast %20 : vector<128xf32> to vector<1x128xf32>
      %cst_14 = arith.constant 7.812500e-03 : f32
      %22 = vector.broadcast %cst_14 : f32 to vector<1x128xf32>
      %23 = arith.mulf %21, %22 : vector<1x128xf32>
      %cst_15 = arith.constant 9.99999974E-6 : f32
      %24 = vector.broadcast %cst_15 : f32 to vector<1x128xf32>
      %25 = arith.addf %23, %24 : vector<1x128xf32>
      %26 = math.rsqrt %25 : vector<1x128xf32>
      %c0_16 = arith.constant 0 : index
      %c0_17 = arith.constant 0 : index
      %27 = vector.load %arg4[%c0_16, %c0_17] : memref<1x128xf32, #tpu.memory_space<vmem>>, vector<1x128xf32>
      %28 = arith.mulf %26, %27 : vector<1x128xf32>
      %29 = vector.broadcast %28 : vector<1x128xf32> to vector<128x128xf32>
      %30 = arith.mulf %18, %29 : vector<128x128xf32>
      %c0_18 = arith.constant 0 : index
      %c0_19 = arith.constant 0 : index
      %31 = vector.load %arg5[%c0_18, %c0_19] : memref<1x128xf32, #tpu.memory_space<vmem>>, vector<1x128xf32>
      %32 = vector.broadcast %31 : vector<1x128xf32> to vector<128x128xf32>
      %33 = arith.addf %30, %32 : vector<128x128xf32>
      %cst_20 = arith.constant 0.000000e+00 : f32
      %34 = vector.broadcast %cst_20 : f32 to vector<128x128xf32>
      %35 = arith.cmpf ogt, %33, %34 : vector<128x128xf32>
      %cst_21 = arith.constant 2.000000e-01 : f32
      %36 = vector.broadcast %cst_21 : f32 to vector<128x128xf32>
      %37 = arith.mulf %36, %33 : vector<128x128xf32>
      %38 = arith.select %35, %33, %37 : vector<128x128xi1>, vector<128x128xf32>
      %39 = arith.truncf %38 : vector<128x128xf32> to vector<128x128xbf16>
      %c0_22 = arith.constant 0 : index
      %c0_23 = arith.constant 0 : index
      %40 = vector.load %arg6[%c0_22, %c0_23] : memref<128x128xbf16, #tpu.memory_space<vmem>>, vector<128x128xbf16>
      tpu.vector_store %arg6[%c0_22, %c0_23], %39 {strides = array<i32>} : memref<128x128xbf16, #tpu.memory_space<vmem>>, vector<128x128xbf16>,
    } else {
    }
    return
  }
  func.func @transform_0(%arg0: i32, %arg1: i32) -> (i32, i32) {
    %c0_i32 = arith.constant 0 : i32
    %c0_i32_0 = arith.constant 0 : i32
    return %c0_i32, %arg1 : i32, i32
  }
  func.func @transform_1(%arg0: i32, %arg1: i32) -> (i32, i32) {
    %c0_i32 = arith.constant 0 : i32
    return %arg1, %arg0 : i32, i32
  }
  func.func @transform_2(%arg0: i32, %arg1: i32) -> (i32, i32) {
    %c0_i32 = arith.constant 0 : i32
    %c0_i32_0 = arith.constant 0 : i32
    return %c0_i32, %arg0 : i32, i32
  }
  func.func @transform_3(%arg0: i32, %arg1: i32) -> (i32, i32) {
    %c0_i32 = arith.constant 0 : i32
    %c0_i32_0 = arith.constant 0 : i32
    return %c0_i32, %arg0 : i32, i32
  }
  func.func @transform_4(%arg0: i32, %arg1: i32) -> (i32, i32) {
    %c0_i32 = arith.constant 0 : i32
    %c0_i32_0 = arith.constant 0 : i32
    return %c0_i32, %arg0 : i32, i32
  }
}

module attributes {stable_mosaic.version = 11 : i64} {
  func.func @_head_kernel(%arg0: i32, %arg1: memref<32x1024xbf16, #tpu.memory_space<vmem>>, %arg2: memref<1024x512xbf16, #tpu.memory_space<vmem>>, %arg3: memref<1x512xf32, #tpu.memory_space<vmem>>, %arg4: memref<1x512xf32, #tpu.memory_space<vmem>>, %arg5: memref<16x512xf32, #tpu.memory_space<vmem>>, %arg6: memref<2x1xf32, #tpu.memory_space<vmem>>, %arg7: memref<32x512xf32, #tpu.memory_space<vmem>>) attributes {dimension_semantics = [#tpu.dimension_semantics<arbitrary>], iteration_bounds = array<i64: 4>, scalar_prefetch = 0 : i64, scratch_operands = 1 : i64, tpu.core_type = #tpu.core_type<tc>, window_params = [{transform_indices = @transform_0, window_bounds = array<i64: 32, 1024>}, {transform_indices = @transform_1, window_bounds = array<i64: 1024, 512>}, {pipeline_mode = #tpu.pipeline_mode<synchronous>, transform_indices = @transform_2, window_bounds = array<i64: 1, 512>}, {pipeline_mode = #tpu.pipeline_mode<synchronous>, transform_indices = @transform_3, window_bounds = array<i64: 1, 512>}, {pipeline_mode = #tpu.pipeline_mode<synchronous>, transform_indices = @transform_4, window_bounds = array<i64: 16, 512>}, {pipeline_mode = #tpu.pipeline_mode<synchronous>, transform_indices = @transform_5, window_bounds = array<i64: 2, 1>}]} {
    %c0_i32 = arith.constant 0 : i32
    %0 = arith.cmpi eq, %arg0, %c0_i32 : i32
    %1 = arith.extui %0 : i1 to i32
    %c0_i32_0 = arith.constant 0 : i32
    %2 = arith.cmpi ne, %1, %c0_i32_0 : i32
    scf.if %2 {
      %cst_9 = arith.constant 0.000000e+00 : f32
      %12 = vector.broadcast %cst_9 : f32 to vector<32x512xf32>
      %c0_10 = arith.constant 0 : index
      %c0_11 = arith.constant 0 : index
      %13 = vector.load %arg7[%c0_10, %c0_11] : memref<32x512xf32, #tpu.memory_space<vmem>>, vector<32x512xf32>
      tpu.vector_store %arg7[%c0_10, %c0_11], %12 {strides = array<i32>} : memref<32x512xf32, #tpu.memory_space<vmem>>, vector<32x512xf32>,
    } else {
    }
    %c0 = arith.constant 0 : index
    %c0_1 = arith.constant 0 : index
    %3 = vector.load %arg7[%c0, %c0_1] : memref<32x512xf32, #tpu.memory_space<vmem>>, vector<32x512xf32>
    %c0_2 = arith.constant 0 : index
    %c0_3 = arith.constant 0 : index
    %4 = vector.load %arg1[%c0_2, %c0_3] : memref<32x1024xbf16, #tpu.memory_space<vmem>>, vector<32x1024xbf16>
    %c0_4 = arith.constant 0 : index
    %c0_5 = arith.constant 0 : index
    %5 = vector.load %arg2[%c0_4, %c0_5] : memref<1024x512xbf16, #tpu.memory_space<vmem>>, vector<1024x512xbf16>
    %cst = arith.constant dense<0.000000e+00> : vector<32x512xf32>
    %6 = tpu.matmul %4, %5, %cst {dimension_numbers = #tpu.dot_dimension_numbers<[1], [0], [0], [1], [0, 0, 1, 1], [], []>} : vector<32x1024xbf16>, vector<1024x512xbf16>, vector<32x512xf32> -> vector<32x512xf32>
    %7 = arith.addf %3, %6 : vector<32x512xf32>
    %c0_6 = arith.constant 0 : index
    %c0_7 = arith.constant 0 : index
    %8 = vector.load %arg7[%c0_6, %c0_7] : memref<32x512xf32, #tpu.memory_space<vmem>>, vector<32x512xf32>
    tpu.vector_store %arg7[%c0_6, %c0_7], %7 {strides = array<i32>} : memref<32x512xf32, #tpu.memory_space<vmem>>, vector<32x512xf32>,
    %c3_i32 = arith.constant 3 : i32
    %9 = arith.cmpi eq, %arg0, %c3_i32 : i32
    %10 = arith.extui %9 : i1 to i32
    %c0_i32_8 = arith.constant 0 : i32
    %11 = arith.cmpi ne, %10, %c0_i32_8 : i32
    scf.if %11 {
      %c0_9 = arith.constant 0 : index
      %c0_10 = arith.constant 0 : index
      %12 = vector.load %arg7[%c0_9, %c0_10] : memref<32x512xf32, #tpu.memory_space<vmem>>, vector<32x512xf32>
      %cst_11 = arith.constant dense<0.000000e+00> : vector<512xf32>
      %13 = vector.multi_reduction <add>, %12, %cst_11 [0] : vector<32x512xf32> to vector<512xf32>
      %14 = vector.shape_cast %13 : vector<512xf32> to vector<1x512xf32>
      %cst_12 = arith.constant 3.125000e-02 : f32
      %15 = vector.broadcast %cst_12 : f32 to vector<1x512xf32>
      %16 = arith.mulf %14, %15 : vector<1x512xf32>
      %17 = vector.broadcast %16 : vector<1x512xf32> to vector<32x512xf32>
      %18 = arith.subf %12, %17 : vector<32x512xf32>
      %19 = arith.mulf %18, %18 : vector<32x512xf32>
      %cst_13 = arith.constant dense<0.000000e+00> : vector<512xf32>
      %20 = vector.multi_reduction <add>, %19, %cst_13 [0] : vector<32x512xf32> to vector<512xf32>
      %21 = vector.shape_cast %20 : vector<512xf32> to vector<1x512xf32>
      %cst_14 = arith.constant 3.125000e-02 : f32
      %22 = vector.broadcast %cst_14 : f32 to vector<1x512xf32>
      %23 = arith.mulf %21, %22 : vector<1x512xf32>
      %cst_15 = arith.constant 9.99999974E-6 : f32
      %24 = vector.broadcast %cst_15 : f32 to vector<1x512xf32>
      %25 = arith.addf %23, %24 : vector<1x512xf32>
      %26 = math.rsqrt %25 : vector<1x512xf32>
      %c0_16 = arith.constant 0 : index
      %c0_17 = arith.constant 0 : index
      %27 = vector.load %arg3[%c0_16, %c0_17] : memref<1x512xf32, #tpu.memory_space<vmem>>, vector<1x512xf32>
      %28 = arith.mulf %26, %27 : vector<1x512xf32>
      %29 = vector.broadcast %28 : vector<1x512xf32> to vector<32x512xf32>
      %30 = arith.mulf %18, %29 : vector<32x512xf32>
      %c0_18 = arith.constant 0 : index
      %c0_19 = arith.constant 0 : index
      %31 = vector.load %arg4[%c0_18, %c0_19] : memref<1x512xf32, #tpu.memory_space<vmem>>, vector<1x512xf32>
      %32 = vector.broadcast %31 : vector<1x512xf32> to vector<32x512xf32>
      %33 = arith.addf %30, %32 : vector<32x512xf32>
      %cst_20 = arith.constant 0.000000e+00 : f32
      %34 = vector.broadcast %cst_20 : f32 to vector<32x512xf32>
      %35 = arith.cmpf ogt, %33, %34 : vector<32x512xf32>
      %cst_21 = arith.constant 2.000000e-01 : f32
      %36 = vector.broadcast %cst_21 : f32 to vector<32x512xf32>
      %37 = arith.mulf %36, %33 : vector<32x512xf32>
      %38 = arith.select %35, %33, %37 : vector<32x512xi1>, vector<32x512xf32>
      %39 = vector.shape_cast %38 : vector<32x512xf32> to vector<2x16x512xf32>
      %c0_22 = arith.constant 0 : index
      %c0_23 = arith.constant 0 : index
      %40 = vector.load %arg5[%c0_22, %c0_23] : memref<16x512xf32, #tpu.memory_space<vmem>>, vector<16x512xf32>
      %41 = vector.shape_cast %40 : vector<16x512xf32> to vector<1x16x512xf32>
      %42 = vector.broadcast %41 : vector<1x16x512xf32> to vector<2x16x512xf32>
      %43 = arith.mulf %39, %42 : vector<2x16x512xf32>
      %cst_24 = arith.constant dense<0.000000e+00> : vector<2x16xf32>
      %44 = vector.multi_reduction <add>, %43, %cst_24 [2] : vector<2x16x512xf32> to vector<2x16xf32>
      %cst_25 = arith.constant dense<0.000000e+00> : vector<2xf32>
      %45 = vector.multi_reduction <add>, %44, %cst_25 [1] : vector<2x16xf32> to vector<2xf32>
      %46 = vector.shape_cast %45 : vector<2xf32> to vector<2x1xf32>
      %47 = math.absf %46 : vector<2x1xf32>
      %cst_26 = arith.constant 0.000000e+00 : f32
      %48 = vector.broadcast %cst_26 : f32 to vector<2x1xf32>
      %49 = arith.subf %48, %47 : vector<2x1xf32>
      %50 = math.exp %49 : vector<2x1xf32>
      %cst_27 = arith.constant 0.000000e+00 : f32
      %51 = vector.broadcast %cst_27 : f32 to vector<2x1xf32>
      %52 = arith.cmpf oge, %46, %51 : vector<2x1xf32>
      %cst_28 = arith.constant 1.000000e+00 : f32
      %53 = vector.broadcast %cst_28 : f32 to vector<2x1xf32>
      %54 = arith.select %52, %53, %50 : vector<2x1xi1>, vector<2x1xf32>
      %cst_29 = arith.constant 1.000000e+00 : f32
      %55 = vector.broadcast %cst_29 : f32 to vector<2x1xf32>
      %56 = arith.addf %55, %50 : vector<2x1xf32>
      %57 = arith.divf %54, %56 : vector<2x1xf32>
      %c0_30 = arith.constant 0 : index
      %c0_31 = arith.constant 0 : index
      %58 = vector.load %arg6[%c0_30, %c0_31] : memref<2x1xf32, #tpu.memory_space<vmem>>, vector<2x1xf32>
      tpu.vector_store %arg6[%c0_30, %c0_31], %57 {strides = array<i32>} : memref<2x1xf32, #tpu.memory_space<vmem>>, vector<2x1xf32>,
    } else {
    }
    return
  }
  func.func @transform_0(%arg0: i32) -> (i32, i32) {
    %c0_i32 = arith.constant 0 : i32
    %c0_i32_0 = arith.constant 0 : i32
    return %c0_i32, %arg0 : i32, i32
  }
  func.func @transform_1(%arg0: i32) -> (i32, i32) {
    %c0_i32 = arith.constant 0 : i32
    %c0_i32_0 = arith.constant 0 : i32
    return %arg0, %c0_i32 : i32, i32
  }
  func.func @transform_2(%arg0: i32) -> (i32, i32) {
    %c0_i32 = arith.constant 0 : i32
    %c0_i32_0 = arith.constant 0 : i32
    %c0_i32_1 = arith.constant 0 : i32
    return %c0_i32, %c0_i32_0 : i32, i32
  }
  func.func @transform_3(%arg0: i32) -> (i32, i32) {
    %c0_i32 = arith.constant 0 : i32
    %c0_i32_0 = arith.constant 0 : i32
    %c0_i32_1 = arith.constant 0 : i32
    return %c0_i32, %c0_i32_0 : i32, i32
  }
  func.func @transform_4(%arg0: i32) -> (i32, i32) {
    %c0_i32 = arith.constant 0 : i32
    %c0_i32_0 = arith.constant 0 : i32
    %c0_i32_1 = arith.constant 0 : i32
    return %c0_i32, %c0_i32_0 : i32, i32
  }
  func.func @transform_5(%arg0: i32) -> (i32, i32) {
    %c0_i32 = arith.constant 0 : i32
    %c0_i32_0 = arith.constant 0 : i32
    %c0_i32_1 = arith.constant 0 : i32
    return %c0_i32, %c0_i32_0 : i32, i32
  }
}

</mosaic_0001>

<llo_original>
// kernel: discriminator_forward.4
$region0: #{discriminator_forward.4}
  #allocation0 [shape = 'u32[]', space=smem, size = 0x4, offset = 0x4, fixed_abs, tag = 'smem constant byte address 0x4 - core index']
  #allocation1 [shape = 'u32[144,128]{1,0:T(1,128)}', space=vmem, size = 0x12000, scoped, tag = 'internal scratch']
  %s0 = inlined_call_operand.vmem [shape: bf16[1024,96], index: 0, kind: input, shape index: {}]
  %s1 = inlined_call_operand.vmem [shape: bf16[96,128], index: 1, kind: input, shape index: {}]
  %s2 = inlined_call_operand.vmem [shape: bf16[1024,128], index: 2, kind: output, shape index: {}]
  %s3 = sld [smem:[#allocation0]]
  $region41: #{discriminator_forward.4} parent=0
    _
  %s5 = ssub.s32 1, %s3
  %s6 = scalar_select 0, %s5, %s3
  loop: start=0, step=1, limit=4
  $region2: #{discriminator_forward.4} parent=0 // loop_pre_header
    _
  $region3: #{discriminator_forward.4} parent=0 // loop_header
    %s8 = sphi 0, %s12
    %p9 = scmp.ge.s32.totalorder %s8, 4
    %s18 = sphi 0, %s20
    %s21 = sphi 0, %s18
    %s22 = sphi 0, %s21
    %s38 = sphi 0, %s22
    %s42 = sphi 0, %s42
    %s44 = sphi 0, %s42
    %s45 = sphi 0, %s44
    %s59 = sphi 0, %s45
    %s65 = sphi 0, %s67
    %s68 = sphi 0, %s65
    %s69 = sphi 0, %s68
    %s85 = sphi 0, %s69
  $region4: #{discriminator_forward.4} parent=0 // loop_header_branch
    %11 = sbr.rel (%p9) target = $region8
  $region5: #{discriminator_forward.4} parent=0 // loop_body
    %s13 = ssub.s32 %s8, 1
    %s14 = ssub.s32 %s8, 2
    %s15 = sadd.s32 %s8, 1
    %s16 = ssub.s32 %s8, %s15
    %p17 = scmp.eq.s32.totalorder %s16, 0
    %s19 = sadd.s32 %s18, 1
    %s20 = scalar_select %p17, %s18, %s19
    %p23 = pneg %p17
    %p24 = scmp.eq.s32.totalorder %s8, 1
    %p25 = por %p23, %p24
    %p26 = scmp.ne.s32.totalorder %s18, %s21
    %p27 = scmp.eq.s32.totalorder %s8, 0
    %p28 = por %p26, %p27
    %p29 = scmp.ne.s32.totalorder %s18, %s21
    %p30 = scmp.eq.s32.totalorder %s13, 1
    %p31 = por %p29, %p30
    %p32 = scmp.ne.s32.totalorder %s21, %s22
    %p33 = scmp.eq.s32.totalorder %s13, 0
    %p34 = por %p32, %p33
    %p35 = scmp.ne.s32.totalorder %s21, %s22
    %p36 = scmp.eq.s32.totalorder %s14, 1
    %p37 = por %p35, %p36
    %p39 = scmp.ne.s32.totalorder %s22, %s38
    %p40 = scmp.eq.s32.totalorder %s14, 0
    %p41 = por %p39, %p40
    %s43 = sadd.s32 %s42, 1
    %p46 = scmp.eq.s32.totalorder %s8, 1
    %p47 = scmp.ne.s32.totalorder %s42, %s44
    %p48 = scmp.eq.s32.totalorder %s8, 0
    %p49 = por %p47, %p48
    %p50 = scmp.ne.s32.totalorder %s42, %s44
    %p51 = scmp.eq.s32.totalorder %s13, 1
    %p52 = por %p50, %p51
    %p53 = scmp.ne.s32.totalorder %s44, %s45
    %p54 = scmp.eq.s32.totalorder %s13, 0
    %p55 = por %p53, %p54
    %p56 = scmp.ne.s32.totalorder %s44, %s45
    %p57 = scmp.eq.s32.totalorder %s14, 1
    %p58 = por %p56, %p57
    %p60 = scmp.ne.s32.totalorder %s45, %s59
    %p61 = scmp.eq.s32.totalorder %s14, 0
    %p62 = por %p60, %p61
    %s63 = ssub.s32 %s8, %s15
    %p64 = scmp.eq.s32.totalorder %s63, 0
    %s66 = sadd.s32 %s65, 1
    %s67 = scalar_select %p64, %s65, %s66
    %p70 = pneg %p64
    %p71 = scmp.eq.s32.totalorder %s8, 1
    %p72 = por %p70, %p71
    %p73 = scmp.ne.s32.totalorder %s65, %s68
    %p74 = scmp.eq.s32.totalorder %s8, 0
    %p75 = por %p73, %p74
    %p76 = scmp.ne.s32.totalorder %s65, %s68
    %p77 = scmp.eq.s32.totalorder %s13, 1
    %p78 = por %p76, %p77
    %p79 = scmp.ne.s32.totalorder %s68, %s69
    %p80 = scmp.eq.s32.totalorder %s13, 0
    %p81 = por %p79, %p80
    %p82 = scmp.ne.s32.totalorder %s68, %s69
    %p83 = scmp.eq.s32.totalorder %s14, 1
    %p84 = por %p82, %p83
    %p86 = scmp.ne.s32.totalorder %s69, %s85
    %p87 = scmp.eq.s32.totalorder %s14, 0
    %p88 = por %p86, %p87
    %p89 = scmp.le.s32.totalorder 1, %s8
    %p90 = scmp.lt.s32.totalorder %s8, 3
    %p91 = pnand %p89, %p90
    %p92 = pneg %p91
    // Predicated region
    $region9: #{discriminator_forward.4} parent=5 // pred_check
      _
    $region10: #{discriminator_forward.4} parent=5 // pred_check_branch
      %94 = sbr.rel (%p91) target = $region12
    $region11: #{discriminator_forward.4} parent=5 // pred_region
      %s95 = ssub.s32 %s8, 1
      // Predicated region
      $region13: #{discriminator_forward.4} parent=11 // pred_check
        %p96 = pneg %p55
      $region14: #{discriminator_forward.4} parent=11 // pred_check_branch
        %98 = sbr.rel (%p96) target = $region16
      $region15: #{discriminator_forward.4} parent=11 // pred_region
        _
      $region16: #{discriminator_forward.4} parent=11 // pred_fallthru
        _
    $region12: #{discriminator_forward.4} parent=5 // pred_fallthru
      _
    %p99 = scmp.lt.s32.totalorder %s8, 2
    // Predicated region
    $region17: #{discriminator_forward.4} parent=5 // pred_check
      %p100 = pneg %p99
    $region18: #{discriminator_forward.4} parent=5 // pred_check_branch
      %102 = sbr.rel (%p100) target = $region20
    $region19: #{discriminator_forward.4} parent=5 // pred_region
      // Predicated region
      $region21: #{discriminator_forward.4} parent=19 // pred_check
        %p103 = pneg %p28
      $region22: #{discriminator_forward.4} parent=19 // pred_check_branch
        %105 = sbr.rel (%p103) target = $region24
      $region23: #{discriminator_forward.4} parent=19 // pred_region
        %s106 = smul.u32 64, %s8
        %p107 = scmp.lt.s32.totalorder %s106, 127
        %s108 = scalar_select %p107, %s106, 127
        %s109 = smul.addr %s108, 4
        %s110 = scalar_lea.vmem %s0, %s109
        %s111 = smul.u32 64, %s8
      $region24: #{discriminator_forward.4} parent=19 // pred_fallthru
        _
    $region20: #{discriminator_forward.4} parent=5 // pred_fallthru
      _
    %p112 = scmp.le.s32.totalorder 1, %s8
    %p113 = scmp.lt.s32.totalorder %s8, 3
    %p114 = pnand %p112, %p113
    %p115 = pneg %p114
    // Predicated region
    $region25: #{discriminator_forward.4} parent=5 // pred_check
      _
    $region26: #{discriminator_forward.4} parent=5 // pred_check_branch
      %117 = sbr.rel (%p114) target = $region28
    $region27: #{discriminator_forward.4} parent=5 // pred_region
      %s118 = ssub.s32 %s8, 1
      %s119 = smul.u32 64, %s13
      %p120 = scmp.lt.s32.totalorder %s119, 127
      %s121 = scalar_select %p120, %s119, 127
      %s122 = smul.addr %s121, 4
      %s123 = scalar_lea.vmem %s0, %s122
      %p124 = pneg %p34
      %p125 = pneg %p31
      %p126 = pneg %p55
      %p127 = pneg %p52
      %p128 = pneg %p81
      %p129 = pneg %p78
      %s130 = smul.u32 64, %s13
      %p131 = scmp.lt.s32.totalorder %s130, 127
      %s132 = scalar_select %p131, %s130, 127
      %s133 = smul.addr %s132, 4
      %s134 = scalar_lea.vmem %s2, %s133
      %s135 = smul.u32 64, %s13
      %p136 = scmp.lt.s32.totalorder %s135, 127
      %s137 = scalar_select %p136, %s135, 127
      %s138 = smul.addr %s137, 4
      %s139 = scalar_lea.vmem %s0, %s138
      %s140 = smul.u32 64, %s13
      %s141 = smul.u32 64, %s13
      %p142 = scmp.lt.s32.totalorder %s141, 127
      %s143 = scalar_select %p142, %s141, 127
      %s144 = smul.addr %s143, 4
      %s145 = scalar_lea.vmem %s2, %s144
      %s146 = smul.u32 64, %s13
      %v148 = vld [vmem:[%s139] sm:$0xf]
      %v149 = vld [vmem:[%s139 + $0x4] sm:$0xf]
      %v150 = vld [vmem:[%s139 + $0x8] sm:$0xf]
      %v151 = vld [vmem:[%s139 + $0xc] sm:$0xf]
      %v152 = vld [vmem:[%s139 + $0x10] sm:$0xf]
      %v153 = vld [vmem:[%s139 + $0x14] sm:$0xf]
      %v154 = vld [vmem:[%s139 + $0x18] sm:$0xf]
      %v155 = vld [vmem:[%s139 + $0x1c] sm:$0xf]
      %v156 = vld [vmem:[%s139 + $0x20] sm:$0xf]
      %v157 = vld [vmem:[%s139 + $0x24] sm:$0xf]
      %v158 = vld [vmem:[%s139 + $0x28] sm:$0xf]
      %v159 = vld [vmem:[%s139 + $0x2c] sm:$0xf]
      %v160 = vld [vmem:[%s139 + $0x30] sm:$0xf]
      %v161 = vld [vmem:[%s139 + $0x34] sm:$0xf]
      %v162 = vld [vmem:[%s139 + $0x38] sm:$0xf]
      %v163 = vld [vmem:[%s139 + $0x3c] sm:$0xf]
      %v164 = vld [vmem:[%s139 + $0x40] sm:$0xf]
      %v165 = vld [vmem:[%s139 + $0x44] sm:$0xf]
      %v166 = vld [vmem:[%s139 + $0x48] sm:$0xf]
      %v167 = vld [vmem:[%s139 + $0x4c] sm:$0xf]
      %v168 = vld [vmem:[%s139 + $0x50] sm:$0xf]
      %v169 = vld [vmem:[%s139 + $0x54] sm:$0xf]
      %v170 = vld [vmem:[%s139 + $0x58] sm:$0xf]
      %v171 = vld [vmem:[%s139 + $0x5c] sm:$0xf]
      %v172 = vld [vmem:[%s139 + $0x60] sm:$0xf]
      %v173 = vld [vmem:[%s139 + $0x64] sm:$0xf]
      %v174 = vld [vmem:[%s139 + $0x68] sm:$0xf]
      %v175 = vld [vmem:[%s139 + $0x6c] sm:$0xf]
      %v176 = vld [vmem:[%s139 + $0x70] sm:$0xf]
      %v177 = vld [vmem:[%s139 + $0x74] sm:$0xf]
      %v178 = vld [vmem:[%s139 + $0x78] sm:$0xf]
      %v179 = vld [vmem:[%s139 + $0x7c] sm:$0xf]
      %v180 = vld [vmem:[%s139 + $0x80] sm:$0xf]
      %v181 = vld [vmem:[%s139 + $0x84] sm:$0xf]
      %v182 = vld [vmem:[%s139 + $0x88] sm:$0xf]
      %v183 = vld [vmem:[%s139 + $0x8c] sm:$0xf]
      %v184 = vld [vmem:[%s139 + $0x90] sm:$0xf]
      %v185 = vld [vmem:[%s139 + $0x94] sm:$0xf]
      %v186 = vld [vmem:[%s139 + $0x98] sm:$0xf]
      %v187 = vld [vmem:[%s139 + $0x9c] sm:$0xf]
      %v188 = vld [vmem:[%s139 + $0xa0] sm:$0xf]
      %v189 = vld [vmem:[%s139 + $0xa4] sm:$0xf]
      %v190 = vld [vmem:[%s139 + $0xa8] sm:$0xf]
      %v191 = vld [vmem:[%s139 + $0xac] sm:$0xf]
      %v192 = vld [vmem:[%s139 + $0xb0] sm:$0xf]
      %v193 = vld [vmem:[%s139 + $0xb4] sm:$0xf]
      %v194 = vld [vmem:[%s139 + $0xb8] sm:$0xf]
      %v195 = vld [vmem:[%s139 + $0xbc] sm:$0xf]
      %v196 = vld [vmem:[%s139 + $0xc0] sm:$0xf]
      %v197 = vld [vmem:[%s139 + $0xc4] sm:$0xf]
      %v198 = vld [vmem:[%s139 + $0xc8] sm:$0xf]
      %v199 = vld [vmem:[%s139 + $0xcc] sm:$0xf]
      %v200 = vld [vmem:[%s139 + $0xd0] sm:$0xf]
      %v201 = vld [vmem:[%s139 + $0xd4] sm:$0xf]
      %v202 = vld [vmem:[%s139 + $0xd8] sm:$0xf]
      %v203 = vld [vmem:[%s139 + $0xdc] sm:$0xf]
      %v204 = vld [vmem:[%s139 + $0xe0] sm:$0xf]
      %v205 = vld [vmem:[%s139 + $0xe4] sm:$0xf]
      %v206 = vld [vmem:[%s139 + $0xe8] sm:$0xf]
      %v207 = vld [vmem:[%s139 + $0xec] sm:$0xf]
      %v208 = vld [vmem:[%s139 + $0xf0] sm:$0xf]
      %v209 = vld [vmem:[%s139 + $0xf4] sm:$0xf]
      %v210 = vld [vmem:[%s139 + $0xf8] sm:$0xf]
      %v211 = vld [vmem:[%s139 + $0xfc] sm:$0xf]
      %v212 = vld [vmem:[%s1] sm:$0xf]
      %v213 = vld [vmem:[%s1 + $0x4] sm:$0xf]
      %v214 = vld [vmem:[%s1 + $0x8] sm:$0xf]
      %v215 = vld [vmem:[%s1 + $0xc] sm:$0xf]
      %v216 = vld [vmem:[%s1 + $0x10] sm:$0xf]
      %v217 = vld [vmem:[%s1 + $0x14] sm:$0xf]
      %v218 = vld [vmem:[%s1 + $0x18] sm:$0xf]
      %v219 = vld [vmem:[%s1 + $0x1c] sm:$0xf]
      %v220 = vld [vmem:[%s1 + $0x20] sm:$0xf]
      %v221 = vld [vmem:[%s1 + $0x24] sm:$0xf]
      %v222 = vld [vmem:[%s1 + $0x28] sm:$0xf]
      %v223 = vld [vmem:[%s1 + $0x2c] sm:$0xf]
      %v288 = vunpack.c.l.b16 %v148
      %v289 = vunpack.c.l.b16 %v149
      %v290 = vunpack.c.l.b16 %v150
      %v291 = vunpack.c.l.b16 %v151
      %v292 = vunpack.c.l.b16 %v152
      %v293 = vunpack.c.l.b16 %v153
      %v294 = vunpack.c.l.b16 %v154
      %v295 = vunpack.c.l.b16 %v155
      %v296 = vunpack.c.l.b16 %v156
      %v297 = vunpack.c.l.b16 %v157
      %v298 = vunpack.c.l.b16 %v158
      %v299 = vunpack.c.l.b16 %v159
      %v300 = vunpack.c.l.b16 %v160
      %v301 = vunpack.c.l.b16 %v161
      %v302 = vunpack.c.l.b16 %v162
      %v303 = vunpack.c.l.b16 %v163
      %v304 = vunpack.c.l.b16 %v164
      %v305 = vunpack.c.l.b16 %v165
      %v306 = vunpack.c.l.b16 %v166
      %v307 = vunpack.c.l.b16 %v167
      %v308 = vunpack.c.l.b16 %v168
      %v309 = vunpack.c.l.b16 %v169
      %v310 = vunpack.c.l.b16 %v170
      %v311 = vunpack.c.l.b16 %v171
      %v312 = vunpack.c.l.b16 %v172
      %v313 = vunpack.c.l.b16 %v173
      %v314 = vunpack.c.l.b16 %v174
      %v315 = vunpack.c.l.b16 %v175
      %v316 = vunpack.c.l.b16 %v176
      %v317 = vunpack.c.l.b16 %v177
      %v318 = vunpack.c.l.b16 %v178
      %v319 = vunpack.c.l.b16 %v179
      %v320 = vunpack.c.l.b16 %v180
      %v321 = vunpack.c.l.b16 %v181
      %v322 = vunpack.c.l.b16 %v182
      %v323 = vunpack.c.l.b16 %v183
      %v324 = vunpack.c.l.b16 %v184
      %v325 = vunpack.c.l.b16 %v185
      %v326 = vunpack.c.l.b16 %v186
      %v327 = vunpack.c.l.b16 %v187
      %v328 = vunpack.c.l.b16 %v188
      %v329 = vunpack.c.l.b16 %v189
      %v330 = vunpack.c.l.b16 %v190
      %v331 = vunpack.c.l.b16 %v191
      %v332 = vunpack.c.l.b16 %v192
      %v333 = vunpack.c.l.b16 %v193
      %v334 = vunpack.c.l.b16 %v194
      %v335 = vunpack.c.l.b16 %v195
      %v336 = vunpack.c.l.b16 %v196
      %v337 = vunpack.c.l.b16 %v197
      %v338 = vunpack.c.l.b16 %v198
      %v339 = vunpack.c.l.b16 %v199
      %v340 = vunpack.c.l.b16 %v200
      %v341 = vunpack.c.l.b16 %v201
      %v342 = vunpack.c.l.b16 %v202
      %v343 = vunpack.c.l.b16 %v203
      %v344 = vunpack.c.l.b16 %v204
      %v345 = vunpack.c.l.b16 %v205
      %v346 = vunpack.c.l.b16 %v206
      %v347 = vunpack.c.l.b16 %v207
      %v348 = vunpack.c.l.b16 %v208
      %v349 = vunpack.c.l.b16 %v209
      %v350 = vunpack.c.l.b16 %v210
      %v351 = vunpack.c.l.b16 %v211
      %v352 = vpack.c.b16 %v289, %v288
      %v353 = vpack.c.b16 %v291, %v290
      %v354 = vpack.c.b16 %v293, %v292
      %v355 = vpack.c.b16 %v295, %v294
      %v356 = vpack.c.b16 %v297, %v296
      %v357 = vpack.c.b16 %v299, %v298
      %v358 = vpack.c.b16 %v301, %v300
      %v359 = vpack.c.b16 %v303, %v302
      %v360 = vpack.c.b16 %v305, %v304
      %v361 = vpack.c.b16 %v307, %v306
      %v362 = vpack.c.b16 %v309, %v308
      %v363 = vpack.c.b16 %v311, %v310
      %v364 = vpack.c.b16 %v313, %v312
      %v365 = vpack.c.b16 %v315, %v314
      %v366 = vpack.c.b16 %v317, %v316
      %v367 = vpack.c.b16 %v319, %v318
      %v368 = vpack.c.b16 %v321, %v320
      %v369 = vpack.c.b16 %v323, %v322
      %v370 = vpack.c.b16 %v325, %v324
      %v371 = vpack.c.b16 %v327, %v326
      %v372 = vpack.c.b16 %v329, %v328
      %v373 = vpack.c.b16 %v331, %v330
      %v374 = vpack.c.b16 %v333, %v332
      %v375 = vpack.c.b16 %v335, %v334
      %v376 = vpack.c.b16 %v337, %v336
      %v377 = vpack.c.b16 %v339, %v338
      %v378 = vpack.c.b16 %v341, %v340
      %v379 = vpack.c.b16 %v343, %v342
      %v380 = vpack.c.b16 %v345, %v344
      %v381 = vpack.c.b16 %v347, %v346
      %v382 = vpack.c.b16 %v349, %v348
      %v383 = vpack.c.b16 %v351, %v350
      %v396 = vunpack.c.l.b16 %v212
      %v397 = vunpack.c.l.b16 %v213
      %v398 = vunpack.c.l.b16 %v214
      %v399 = vunpack.c.l.b16 %v215
      %v400 = vunpack.c.l.b16 %v216
      %v401 = vunpack.c.l.b16 %v217
      %v402 = vunpack.c.l.b16 %v218
      %v403 = vunpack.c.l.b16 %v219
      %v404 = vunpack.c.l.b16 %v220
      %v405 = vunpack.c.l.b16 %v221
      %v406 = vunpack.c.l.b16 %v222
      %v407 = vunpack.c.l.b16 %v223
      %v408 = vpack.c.b16 %v397, %v396
      %v409 = vpack.c.b16 %v399, %v398
      %v410 = vpack.c.b16 %v401, %v400
      %v411 = vpack.c.b16 %v403, %v402
      %v412 = vpack.c.b16 %v405, %v404
      %v413 = vpack.c.b16 %v407, %v406
      %vm420 = vcmask 785408
      %v422 = vsel %vm420, %v352, 0
      %v425 = vsel %vm420, %v353, 0
      %v428 = vsel %vm420, %v354, 0
      %v431 = vsel %vm420, %v355, 0
      %v434 = vsel %vm420, %v356, 0
      %v437 = vsel %vm420, %v357, 0
      %v440 = vsel %vm420, %v358, 0
      %v443 = vsel %vm420, %v359, 0
      %v446 = vsel %vm420, %v360, 0
      %v449 = vsel %vm420, %v361, 0
      %v452 = vsel %vm420, %v362, 0
      %v455 = vsel %vm420, %v363, 0
      %v458 = vsel %vm420, %v364, 0
      %v461 = vsel %vm420, %v365, 0
      %v464 = vsel %vm420, %v366, 0
      %v467 = vsel %vm420, %v367, 0
      %v470 = vsel %vm420, %v368, 0
      %v473 = vsel %vm420, %v369, 0
      %v476 = vsel %vm420, %v370, 0
      %v479 = vsel %vm420, %v371, 0
      %v482 = vsel %vm420, %v372, 0
      %v485 = vsel %vm420, %v373, 0
      %v488 = vsel %vm420, %v374, 0
      %v491 = vsel %vm420, %v375, 0
      %v494 = vsel %vm420, %v376, 0
      %v497 = vsel %vm420, %v377, 0
      %v500 = vsel %vm420, %v378, 0
      %v503 = vsel %vm420, %v379, 0
      %v506 = vsel %vm420, %v380, 0
      %v509 = vsel %vm420, %v381, 0
      %v512 = vsel %vm420, %v382, 0
      %v515 = vsel %vm420, %v383, 0
      %517 = vmatprep.subr.bf16.mxu0 0
      %518 = vmatpush1.bf16.msra.mxu0 %v408
      %519 = vmatprep.subr.bf16.mxu0 0
      %520 = vmatpush1.bf16.msra.mxu0 %v409
      %521 = vmatprep.subr.bf16.mxu0 0
      %522 = vmatpush1.bf16.msra.mxu0 %v410
      %523 = vmatprep.subr.bf16.mxu0 0
      %524 = vmatpush1.bf16.msra.mxu0 %v411
      %525 = vmatprep.subr.bf16.mxu0 0
      %526 = vmatpush1.bf16.msra.mxu0 %v412
      %527 = vmatprep.subr.bf16.mxu0 0
      %528 = vmatpush1.bf16.msra.mxu0 %v413
      %529 = vmatprep.subr.bf16.mxu0 0
      %530 = vmatpush1.bf16.msra.mxu0 0
      %531 = vmatprep.subr.bf16.mxu0 0
      %532 = vmatpush1.bf16.msra.mxu0 0
      %533 = vmatprep.subr.bf16.mxu0 0
      %534 = vmatpush1.bf16.msra.mxu0 0
      %535 = vmatprep.subr.bf16.mxu0 0
      %536 = vmatpush1.bf16.msra.mxu0 0
      %537 = vmatprep.subr.bf16.mxu0 0
      %538 = vmatpush1.bf16.msra.mxu0 0
      %539 = vmatprep.subr.bf16.mxu0 0
      %540 = vmatpush1.bf16.msra.mxu0 0
      %541 = vmatprep.subr.bf16.mxu0 0
      %542 = vmatpush1.bf16.msra.mxu0 0
      %543 = vmatprep.subr.bf16.mxu0 0
      %544 = vmatpush1.bf16.msra.mxu0 0
      %545 = vmatprep.subr.bf16.mxu0 0
      %546 = vmatpush1.bf16.msra.mxu0 0
      %547 = vmatprep.subr.bf16.mxu0 0
      %548 = vmatpush1.bf16.msra.mxu0 0
      %549 = vmatprep.mubr.bf16.mxu0 0
      %550 = vmatmul.mubr.bf16.gmra.mrb[0].mxu0 %v422
      %v551 = vpop.f32.mrb[0].mxu0
      %v552 = vadd.f32 0.0, %v551
      %v553 = vpop.f32.mrb[0].mxu0
      %v554 = vpop.f32.mrb[0].mxu0
      %v555 = vadd.f32 0.0, %v554
      %v556 = vpop.f32.mrb[0].mxu0
      %557 = vmatprep.mubr.bf16.mxu0 0
      %558 = vmatmul.mubr.bf16.gmra.mrb[0].mxu0 %v425
      %v559 = vpop.f32.mrb[0].mxu0
      %v560 = vadd.f32 0.0, %v559
      %v561 = vpop.f32.mrb[0].mxu0
      %v562 = vpop.f32.mrb[0].mxu0
      %v563 = vadd.f32 0.0, %v562
      %v564 = vpop.f32.mrb[0].mxu0
      %565 = vmatprep.mubr.bf16.mxu0 0
      %566 = vmatmul.mubr.bf16.gmra.mrb[0].mxu0 %v428
      %v567 = vpop.f32.mrb[0].mxu0
      %v568 = vadd.f32 0.0, %v567
      %v569 = vpop.f32.mrb[0].mxu0
      %v570 = vpop.f32.mrb[0].mxu0
      %v571 = vadd.f32 0.0, %v570
      %v572 = vpop.f32.mrb[0].mxu0
      %573 = vmatprep.mubr.bf16.mxu0 0
      %574 = vmatmul.mubr.bf16.gmra.mrb[0].mxu0 %v431
      %v575 = vpop.f32.mrb[0].mxu0
      %v576 = vadd.f32 0.0, %v575
      %v577 = vpop.f32.mrb[0].mxu0
      %v578 = vpop.f32.mrb[0].mxu0
      %v579 = vadd.f32 0.0, %v578
      %v580 = vpop.f32.mrb[0].mxu0
      %581 = vmatprep.mubr.bf16.mxu0 0
      %582 = vmatmul.mubr.bf16.gmra.mrb[0].mxu0 %v434
      %v583 = vpop.f32.mrb[0].mxu0
      %v584 = vadd.f32 0.0, %v583
      %v585 = vpop.f32.mrb[0].mxu0
      %v586 = vpop.f32.mrb[0].mxu0
      %v587 = vadd.f32 0.0, %v586
      %v588 = vpop.f32.mrb[0].mxu0
      %589 = vmatprep.mubr.bf16.mxu0 0
      %590 = vmatmul.mubr.bf16.gmra.mrb[0].mxu0 %v437
      %v591 = vpop.f32.mrb[0].mxu0
      %v592 = vadd.f32 0.0, %v591
      %v593 = vpop.f32.mrb[0].mxu0
      %v594 = vpop.f32.mrb[0].mxu0
      %v595 = vadd.f32 0.0, %v594
      %v596 = vpop.f32.mrb[0].mxu0
      %597 = vmatprep.mubr.bf16.mxu0 0
      %598 = vmatmul.mubr.bf16.gmra.mrb[0].mxu0 %v440
      %v599 = vpop.f32.mrb[0].mxu0
      %v600 = vadd.f32 0.0, %v599
      %v601 = vpop.f32.mrb[0].mxu0
      %v602 = vpop.f32.mrb[0].mxu0
      %v603 = vadd.f32 0.0, %v602
      %v604 = vpop.f32.mrb[0].mxu0
      %605 = vmatprep.mubr.bf16.mxu0 0
      %606 = vmatmul.mubr.bf16.gmra.mrb[0].mxu0 %v443
      %v607 = vpop.f32.mrb[0].mxu0
      %v608 = vadd.f32 0.0, %v607
      %v609 = vpop.f32.mrb[0].mxu0
      %v610 = vpop.f32.mrb[0].mxu0
      %v611 = vadd.f32 0.0, %v610
      %v612 = vpop.f32.mrb[0].mxu0
      %613 = vmatprep.mubr.bf16.mxu0 0
      %614 = vmatmul.mubr.bf16.gmra.mrb[0].mxu0 %v446
      %v615 = vpop.f32.mrb[0].mxu0
      %v616 = vadd.f32 0.0, %v615
      %v617 = vpop.f32.mrb[0].mxu0
      %v618 = vpop.f32.mrb[0].mxu0
      %v619 = vadd.f32 0.0, %v618
      %v620 = vpop.f32.mrb[0].mxu0
      %621 = vmatprep.mubr.bf16.mxu0 0
      %622 = vmatmul.mubr.bf16.gmra.mrb[0].mxu0 %v449
      %v623 = vpop.f32.mrb[0].mxu0
      %v624 = vadd.f32 0.0, %v623
      %v625 = vpop.f32.mrb[0].mxu0
      %v626 = vpop.f32.mrb[0].mxu0
      %v627 = vadd.f32 0.0, %v626
      %v628 = vpop.f32.mrb[0].mxu0
      %629 = vmatprep.mubr.bf16.mxu0 0
      %630 = vmatmul.mubr.bf16.gmra.mrb[0].mxu0 %v452
      %v631 = vpop.f32.mrb[0].mxu0
      %v632 = vadd.f32 0.0, %v631
      %v633 = vpop.f32.mrb[0].mxu0
      %v634 = vpop.f32.mrb[0].mxu0
      %v635 = vadd.f32 0.0, %v634
      %v636 = vpop.f32.mrb[0].mxu0
      %637 = vmatprep.mubr.bf16.mxu0 0
      %638 = vmatmul.mubr.bf16.gmra.mrb[0].mxu0 %v455
      %v639 = vpop.f32.mrb[0].mxu0
      %v640 = vadd.f32 0.0, %v639
      %v641 = vpop.f32.mrb[0].mxu0
      %v642 = vpop.f32.mrb[0].mxu0
      %v643 = vadd.f32 0.0, %v642
      %v644 = vpop.f32.mrb[0].mxu0
      %645 = vmatprep.mubr.bf16.mxu0 0
      %646 = vmatmul.mubr.bf16.gmra.mrb[0].mxu0 %v458
      %v647 = vpop.f32.mrb[0].mxu0
      %v648 = vadd.f32 0.0, %v647
      %v649 = vpop.f32.mrb[0].mxu0
      %v650 = vpop.f32.mrb[0].mxu0
      %v651 = vadd.f32 0.0, %v650
      %v652 = vpop.f32.mrb[0].mxu0
      %653 = vmatprep.mubr.bf16.mxu0 0
      %654 = vmatmul.mubr.bf16.gmra.mrb[0].mxu0 %v461
      %v655 = vpop.f32.mrb[0].mxu0
      %v656 = vadd.f32 0.0, %v655
      %v657 = vpop.f32.mrb[0].mxu0
      %v658 = vpop.f32.mrb[0].mxu0
      %v659 = vadd.f32 0.0, %v658
      %v660 = vpop.f32.mrb[0].mxu0
      %661 = vmatprep.mubr.bf16.mxu0 0
      %662 = vmatmul.mubr.bf16.gmra.mrb[0].mxu0 %v464
      %v663 = vpop.f32.mrb[0].mxu0
      %v664 = vadd.f32 0.0, %v663
      %v665 = vpop.f32.mrb[0].mxu0
      %v666 = vpop.f32.mrb[0].mxu0
      %v667 = vadd.f32 0.0, %v666
      %v668 = vpop.f32.mrb[0].mxu0
      %669 = vmatprep.mubr.bf16.mxu0 0
      %670 = vmatmul.mubr.bf16.gmra.mrb[0].mxu0 %v467
      %v671 = vpop.f32.mrb[0].mxu0
      %v672 = vadd.f32 0.0, %v671
      %v673 = vpop.f32.mrb[0].mxu0
      %v674 = vpop.f32.mrb[0].mxu0
      %v675 = vadd.f32 0.0, %v674
      %v676 = vpop.f32.mrb[0].mxu0
      %677 = vmatprep.mubr.bf16.mxu0 0
      %678 = vmatmul.mubr.bf16.gmra.mrb[0].mxu0 %v470
      %v679 = vpop.f32.mrb[0].mxu0
      %v680 = vadd.f32 0.0, %v679
      %v681 = vpop.f32.mrb[0].mxu0
      %v682 = vpop.f32.mrb[0].mxu0
      %v683 = vadd.f32 0.0, %v682
      %v684 = vpop.f32.mrb[0].mxu0
      %685 = vmatprep.mubr.bf16.mxu0 0
      %686 = vmatmul.mubr.bf16.gmra.mrb[0].mxu0 %v473
      %v687 = vpop.f32.mrb[0].mxu0
      %v688 = vadd.f32 0.0, %v687
      %v689 = vpop.f32.mrb[0].mxu0
      %v690 = vpop.f32.mrb[0].mxu0
      %v691 = vadd.f32 0.0, %v690
      %v692 = vpop.f32.mrb[0].mxu0
      %693 = vmatprep.mubr.bf16.mxu0 0
      %694 = vmatmul.mubr.bf16.gmra.mrb[0].mxu0 %v476
      %v695 = vpop.f32.mrb[0].mxu0
      %v696 = vadd.f32 0.0, %v695
      %v697 = vpop.f32.mrb[0].mxu0
      %v698 = vpop.f32.mrb[0].mxu0
      %v699 = vadd.f32 0.0, %v698
      %v700 = vpop.f32.mrb[0].mxu0
      %701 = vmatprep.mubr.bf16.mxu0 0
      %702 = vmatmul.mubr.bf16.gmra.mrb[0].mxu0 %v479
      %v703 = vpop.f32.mrb[0].mxu0
      %v704 = vadd.f32 0.0, %v703
      %v705 = vpop.f32.mrb[0].mxu0
      %v706 = vpop.f32.mrb[0].mxu0
      %v707 = vadd.f32 0.0, %v706
      %v708 = vpop.f32.mrb[0].mxu0
      %709 = vmatprep.mubr.bf16.mxu0 0
      %710 = vmatmul.mubr.bf16.gmra.mrb[0].mxu0 %v482
      %v711 = vpop.f32.mrb[0].mxu0
      %v712 = vadd.f32 0.0, %v711
      %v713 = vpop.f32.mrb[0].mxu0
      %v714 = vpop.f32.mrb[0].mxu0
      %v715 = vadd.f32 0.0, %v714
      %v716 = vpop.f32.mrb[0].mxu0
      %717 = vmatprep.mubr.bf16.mxu0 0
      %718 = vmatmul.mubr.bf16.gmra.mrb[0].mxu0 %v485
      %v719 = vpop.f32.mrb[0].mxu0
      %v720 = vadd.f32 0.0, %v719
      %v721 = vpop.f32.mrb[0].mxu0
      %v722 = vpop.f32.mrb[0].mxu0
      %v723 = vadd.f32 0.0, %v722
      %v724 = vpop.f32.mrb[0].mxu0
      %725 = vmatprep.mubr.bf16.mxu0 0
      %726 = vmatmul.mubr.bf16.gmra.mrb[0].mxu0 %v488
      %v727 = vpop.f32.mrb[0].mxu0
      %v728 = vadd.f32 0.0, %v727
      %v729 = vpop.f32.mrb[0].mxu0
      %v730 = vpop.f32.mrb[0].mxu0
      %v731 = vadd.f32 0.0, %v730
      %v732 = vpop.f32.mrb[0].mxu0
      %733 = vmatprep.mubr.bf16.mxu0 0
      %734 = vmatmul.mubr.bf16.gmra.mrb[0].mxu0 %v491
      %v735 = vpop.f32.mrb[0].mxu0
      %v736 = vadd.f32 0.0, %v735
      %v737 = vpop.f32.mrb[0].mxu0
      %v738 = vpop.f32.mrb[0].mxu0
      %v739 = vadd.f32 0.0, %v738
      %v740 = vpop.f32.mrb[0].mxu0
      %741 = vmatprep.mubr.bf16.mxu0 0
      %742 = vmatmul.mubr.bf16.gmra.mrb[0].mxu0 %v494
      %v743 = vpop.f32.mrb[0].mxu0
      %v744 = vadd.f32 0.0, %v743
      %v745 = vpop.f32.mrb[0].mxu0
      %v746 = vpop.f32.mrb[0].mxu0
      %v747 = vadd.f32 0.0, %v746
      %v748 = vpop.f32.mrb[0].mxu0
      %749 = vmatprep.mubr.bf16.mxu0 0
      %750 = vmatmul.mubr.bf16.gmra.mrb[0].mxu0 %v497
      %v751 = vpop.f32.mrb[0].mxu0
      %v752 = vadd.f32 0.0, %v751
      %v753 = vpop.f32.mrb[0].mxu0
      %v754 = vpop.f32.mrb[0].mxu0
      %v755 = vadd.f32 0.0, %v754
      %v756 = vpop.f32.mrb[0].mxu0
      %757 = vmatprep.mubr.bf16.mxu0 0
      %758 = vmatmul.mubr.bf16.gmra.mrb[0].mxu0 %v500
      %v759 = vpop.f32.mrb[0].mxu0
      %v760 = vadd.f32 0.0, %v759
      %v761 = vpop.f32.mrb[0].mxu0
      %v762 = vpop.f32.mrb[0].mxu0
      %v763 = vadd.f32 0.0, %v762
      %v764 = vpop.f32.mrb[0].mxu0
      %765 = vmatprep.mubr.bf16.mxu0 0
      %766 = vmatmul.mubr.bf16.gmra.mrb[0].mxu0 %v503
      %v767 = vpop.f32.mrb[0].mxu0
      %v768 = vadd.f32 0.0, %v767
      %v769 = vpop.f32.mrb[0].mxu0
      %v770 = vpop.f32.mrb[0].mxu0
      %v771 = vadd.f32 0.0, %v770
      %v772 = vpop.f32.mrb[0].mxu0
      %773 = vmatprep.mubr.bf16.mxu0 0
      %774 = vmatmul.mubr.bf16.gmra.mrb[0].mxu0 %v506
      %v775 = vpop.f32.mrb[0].mxu0
      %v776 = vadd.f32 0.0, %v775
      %v777 = vpop.f32.mrb[0].mxu0
      %v778 = vpop.f32.mrb[0].mxu0
      %v779 = vadd.f32 0.0, %v778
      %v780 = vpop.f32.mrb[0].mxu0
      %781 = vmatprep.mubr.bf16.mxu0 0
      %782 = vmatmul.mubr.bf16.gmra.mrb[0].mxu0 %v509
      %v783 = vpop.f32.mrb[0].mxu0
      %v784 = vadd.f32 0.0, %v783
      %v785 = vpop.f32.mrb[0].mxu0
      %v786 = vpop.f32.mrb[0].mxu0
      %v787 = vadd.f32 0.0, %v786
      %v788 = vpop.f32.mrb[0].mxu0
      %789 = vmatprep.mubr.bf16.mxu0 0
      %790 = vmatmul.mubr.bf16.gmra.mrb[0].mxu0 %v512
      %v791 = vpop.f32.mrb[0].mxu0
      %v792 = vadd.f32 0.0, %v791
      %v793 = vpop.f32.mrb[0].mxu0
      %v794 = vpop.f32.mrb[0].mxu0
      %v795 = vadd.f32 0.0, %v794
      %v796 = vpop.f32.mrb[0].mxu0
      %797 = vmatprep.mubr.bf16.mxu0 0
      %798 = vmatmul.mubr.bf16.gmra.mrb[0].mxu0 %v515
      %v799 = vpop.f32.mrb[0].mxu0
      %v800 = vadd.f32 0.0, %v799
      %v801 = vpop.f32.mrb[0].mxu0
      %v802 = vpop.f32.mrb[0].mxu0
      %v803 = vadd.f32 0.0, %v802
      %v804 = vpop.f32.mrb[0].mxu0
      %805 = vdwg.mxu0
      %vm806 = vcmp.gt.f32.partialorder %v552, 0.0
      %vm807 = vcmp.gt.f32.partialorder %v555, 0.0
      %vm808 = vcmp.gt.f32.partialorder %v560, 0.0
      %vm809 = vcmp.gt.f32.partialorder %v563, 0.0
      %vm810 = vcmp.gt.f32.partialorder %v568, 0.0
      %vm811 = vcmp.gt.f32.partialorder %v571, 0.0
      %vm812 = vcmp.gt.f32.partialorder %v576, 0.0
      %vm813 = vcmp.gt.f32.partialorder %v579, 0.0
      %vm814 = vcmp.gt.f32.partialorder %v584, 0.0
      %vm815 = vcmp.gt.f32.partialorder %v587, 0.0
      %vm816 = vcmp.gt.f32.partialorder %v592, 0.0
      %vm817 = vcmp.gt.f32.partialorder %v595, 0.0
      %vm818 = vcmp.gt.f32.partialorder %v600, 0.0
      %vm819 = vcmp.gt.f32.partialorder %v603, 0.0
      %vm820 = vcmp.gt.f32.partialorder %v608, 0.0
      %vm821 = vcmp.gt.f32.partialorder %v611, 0.0
      %vm822 = vcmp.gt.f32.partialorder %v616, 0.0
      %vm823 = vcmp.gt.f32.partialorder %v619, 0.0
      %vm824 = vcmp.gt.f32.partialorder %v624, 0.0
      %vm825 = vcmp.gt.f32.partialorder %v627, 0.0
      %vm826 = vcmp.gt.f32.partialorder %v632, 0.0
      %vm827 = vcmp.gt.f32.partialorder %v635, 0.0
      %vm828 = vcmp.gt.f32.partialorder %v640, 0.0
      %vm829 = vcmp.gt.f32.partialorder %v643, 0.0
      %vm830 = vcmp.gt.f32.partialorder %v648, 0.0
      %vm831 = vcmp.gt.f32.partialorder %v651, 0.0
      %vm832 = vcmp.gt.f32.partialorder %v656, 0.0
      %vm833 = vcmp.gt.f32.partialorder %v659, 0.0
      %vm834 = vcmp.gt.f32.partialorder %v664, 0.0
      %vm835 = vcmp.gt.f32.partialorder %v667, 0.0
      %vm836 = vcmp.gt.f32.partialorder %v672, 0.0
      %vm837 = vcmp.gt.f32.partialorder %v675, 0.0
      %vm838 = vcmp.gt.f32.partialorder %v680, 0.0
      %vm839 = vcmp.gt.f32.partialorder %v683, 0.0
      %vm840 = vcmp.gt.f32.partialorder %v688, 0.0
      %vm841 = vcmp.gt.f32.partialorder %v691, 0.0
      %vm842 = vcmp.gt.f32.partialorder %v696, 0.0
      %vm843 = vcmp.gt.f32.partialorder %v699, 0.0
      %vm844 = vcmp.gt.f32.partialorder %v704, 0.0
      %vm845 = vcmp.gt.f32.partialorder %v707, 0.0
      %vm846 = vcmp.gt.f32.partialorder %v712, 0.0
      %vm847 = vcmp.gt.f32.partialorder %v715, 0.0
      %vm848 = vcmp.gt.f32.partialorder %v720, 0.0
      %vm849 = vcmp.gt.f32.partialorder %v723, 0.0
      %vm850 = vcmp.gt.f32.partialorder %v728, 0.0
      %vm851 = vcmp.gt.f32.partialorder %v731, 0.0
      %vm852 = vcmp.gt.f32.partialorder %v736, 0.0
      %vm853 = vcmp.gt.f32.partialorder %v739, 0.0
      %vm854 = vcmp.gt.f32.partialorder %v744, 0.0
      %vm855 = vcmp.gt.f32.partialorder %v747, 0.0
      %vm856 = vcmp.gt.f32.partialorder %v752, 0.0
      %vm857 = vcmp.gt.f32.partialorder %v755, 0.0
      %vm858 = vcmp.gt.f32.partialorder %v760, 0.0
      %vm859 = vcmp.gt.f32.partialorder %v763, 0.0
      %vm860 = vcmp.gt.f32.partialorder %v768, 0.0
      %vm861 = vcmp.gt.f32.partialorder %v771, 0.0
      %vm862 = vcmp.gt.f32.partialorder %v776, 0.0
      %vm863 = vcmp.gt.f32.partialorder %v779, 0.0
      %vm864 = vcmp.gt.f32.partialorder %v784, 0.0
      %vm865 = vcmp.gt.f32.partialorder %v787, 0.0
      %vm866 = vcmp.gt.f32.partialorder %v792, 0.0
      %vm867 = vcmp.gt.f32.partialorder %v795, 0.0
      %vm868 = vcmp.gt.f32.partialorder %v800, 0.0
      %vm869 = vcmp.gt.f32.partialorder %v803, 0.0
      %v870 = vmul.f32 %v552, 0.2
      %v871 = vmul.f32 %v555, 0.2
      %v872 = vmul.f32 %v560, 0.2
      %v873 = vmul.f32 %v563, 0.2
      %v874 = vmul.f32 %v568, 0.2
      %v875 = vmul.f32 %v571, 0.2
      %v876 = vmul.f32 %v576, 0.2
      %v877 = vmul.f32 %v579, 0.2
      %v878 = vmul.f32 %v584, 0.2
      %v879 = vmul.f32 %v587, 0.2
      %v880 = vmul.f32 %v592, 0.2
      %v881 = vmul.f32 %v595, 0.2
      %v882 = vmul.f32 %v600, 0.2
      %v883 = vmul.f32 %v603, 0.2
      %v884 = vmul.f32 %v608, 0.2
      %v885 = vmul.f32 %v611, 0.2
      %v886 = vmul.f32 %v616, 0.2
      %v887 = vmul.f32 %v619, 0.2
      %v888 = vmul.f32 %v624, 0.2
      %v889 = vmul.f32 %v627, 0.2
      %v890 = vmul.f32 %v632, 0.2
      %v891 = vmul.f32 %v635, 0.2
      %v892 = vmul.f32 %v640, 0.2
      %v893 = vmul.f32 %v643, 0.2
      %v894 = vmul.f32 %v648, 0.2
      %v895 = vmul.f32 %v651, 0.2
      %v896 = vmul.f32 %v656, 0.2
      %v897 = vmul.f32 %v659, 0.2
      %v898 = vmul.f32 %v664, 0.2
      %v899 = vmul.f32 %v667, 0.2
      %v900 = vmul.f32 %v672, 0.2
      %v901 = vmul.f32 %v675, 0.2
      %v902 = vmul.f32 %v680, 0.2
      %v903 = vmul.f32 %v683, 0.2
      %v904 = vmul.f32 %v688, 0.2
      %v905 = vmul.f32 %v691, 0.2
      %v906 = vmul.f32 %v696, 0.2
      %v907 = vmul.f32 %v699, 0.2
      %v908 = vmul.f32 %v704, 0.2
      %v909 = vmul.f32 %v707, 0.2
      %v910 = vmul.f32 %v712, 0.2
      %v911 = vmul.f32 %v715, 0.2
      %v912 = vmul.f32 %v720, 0.2
      %v913 = vmul.f32 %v723, 0.2
      %v914 = vmul.f32 %v728, 0.2
      %v915 = vmul.f32 %v731, 0.2
      %v916 = vmul.f32 %v736, 0.2
      %v917 = vmul.f32 %v739, 0.2
      %v918 = vmul.f32 %v744, 0.2
      %v919 = vmul.f32 %v747, 0.2
      %v920 = vmul.f32 %v752, 0.2
      %v921 = vmul.f32 %v755, 0.2
      %v922 = vmul.f32 %v760, 0.2
      %v923 = vmul.f32 %v763, 0.2
      %v924 = vmul.f32 %v768, 0.2
      %v925 = vmul.f32 %v771, 0.2
      %v926 = vmul.f32 %v776, 0.2
      %v927 = vmul.f32 %v779, 0.2
      %v928 = vmul.f32 %v784, 0.2
      %v929 = vmul.f32 %v787, 0.2
      %v930 = vmul.f32 %v792, 0.2
      %v931 = vmul.f32 %v795, 0.2
      %v932 = vmul.f32 %v800, 0.2
      %v933 = vmul.f32 %v803, 0.2
      %v934 = vsel %vm806, %v552, %v870
      %v935 = vsel %vm807, %v555, %v871
      %v936 = vsel %vm808, %v560, %v872
      %v937 = vsel %vm809, %v563, %v873
      %v938 = vsel %vm810, %v568, %v874
      %v939 = vsel %vm811, %v571, %v875
      %v940 = vsel %vm812, %v576, %v876
      %v941 = vsel %vm813, %v579, %v877
      %v942 = vsel %vm814, %v584, %v878
      %v943 = vsel %vm815, %v587, %v879
      %v944 = vsel %vm816, %v592, %v880
      %v945 = vsel %vm817, %v595, %v881
      %v946 = vsel %vm818, %v600, %v882
      %v947 = vsel %vm819, %v603, %v883
      %v948 = vsel %vm820, %v608, %v884
      %v949 = vsel %vm821, %v611, %v885
      %v950 = vsel %vm822, %v616, %v886
      %v951 = vsel %vm823, %v619, %v887
      %v952 = vsel %vm824, %v624, %v888
      %v953 = vsel %vm825, %v627, %v889
      %v954 = vsel %vm826, %v632, %v890
      %v955 = vsel %vm827, %v635, %v891
      %v956 = vsel %vm828, %v640, %v892
      %v957 = vsel %vm829, %v643, %v893
      %v958 = vsel %vm830, %v648, %v894
      %v959 = vsel %vm831, %v651, %v895
      %v960 = vsel %vm832, %v656, %v896
      %v961 = vsel %vm833, %v659, %v897
      %v962 = vsel %vm834, %v664, %v898
      %v963 = vsel %vm835, %v667, %v899
      %v964 = vsel %vm836, %v672, %v900
      %v965 = vsel %vm837, %v675, %v901
      %v966 = vsel %vm838, %v680, %v902
      %v967 = vsel %vm839, %v683, %v903
      %v968 = vsel %vm840, %v688, %v904
      %v969 = vsel %vm841, %v691, %v905
      %v970 = vsel %vm842, %v696, %v906
      %v971 = vsel %vm843, %v699, %v907
      %v972 = vsel %vm844, %v704, %v908
      %v973 = vsel %vm845, %v707, %v909
      %v974 = vsel %vm846, %v712, %v910
      %v975 = vsel %vm847, %v715, %v911
      %v976 = vsel %vm848, %v720, %v912
      %v977 = vsel %vm849, %v723, %v913
      %v978 = vsel %vm850, %v728, %v914
      %v979 = vsel %vm851, %v731, %v915
      %v980 = vsel %vm852, %v736, %v916
      %v981 = vsel %vm853, %v739, %v917
      %v982 = vsel %vm854, %v744, %v918
      %v983 = vsel %vm855, %v747, %v919
      %v984 = vsel %vm856, %v752, %v920
      %v985 = vsel %vm857, %v755, %v921
      %v986 = vsel %vm858, %v760, %v922
      %v987 = vsel %vm859, %v763, %v923
      %v988 = vsel %vm860, %v768, %v924
      %v989 = vsel %vm861, %v771, %v925
      %v990 = vsel %vm862, %v776, %v926
      %v991 = vsel %vm863, %v779, %v927
      %v992 = vsel %vm864, %v784, %v928
      %v993 = vsel %vm865, %v787, %v929
      %v994 = vsel %vm866, %v792, %v930
      %v995 = vsel %vm867, %v795, %v931
      %v996 = vsel %vm868, %v800, %v932
      %v997 = vsel %vm869, %v803, %v933
      %v998 = vpack.c.bf16 %v935, %v934
      %v999 = vpack.c.bf16 %v937, %v936
      %v1000 = vpack.c.bf16 %v939, %v938
      %v1001 = vpack.c.bf16 %v941, %v940
      %v1002 = vpack.c.bf16 %v943, %v942
      %v1003 = vpack.c.bf16 %v945, %v944
      %v1004 = vpack.c.bf16 %v947, %v946
      %v1005 = vpack.c.bf16 %v949, %v948
      %v1006 = vpack.c.bf16 %v951, %v950
      %v1007 = vpack.c.bf16 %v953, %v952
      %v1008 = vpack.c.bf16 %v955, %v954
      %v1009 = vpack.c.bf16 %v957, %v956
      %v1010 = vpack.c.bf16 %v959, %v958
      %v1011 = vpack.c.bf16 %v961, %v960
      %v1012 = vpack.c.bf16 %v963, %v962
      %v1013 = vpack.c.bf16 %v965, %v964
      %v1014 = vpack.c.bf16 %v967, %v966
      %v1015 = vpack.c.bf16 %v969, %v968
      %v1016 = vpack.c.bf16 %v971, %v970
      %v1017 = vpack.c.bf16 %v973, %v972
      %v1018 = vpack.c.bf16 %v975, %v974
      %v1019 = vpack.c.bf16 %v977, %v976
      %v1020 = vpack.c.bf16 %v979, %v978
      %v1021 = vpack.c.bf16 %v981, %v980
      %v1022 = vpack.c.bf16 %v983, %v982
      %v1023 = vpack.c.bf16 %v985, %v984
      %v1024 = vpack.c.bf16 %v987, %v986
      %v1025 = vpack.c.bf16 %v989, %v988
      %v1026 = vpack.c.bf16 %v991, %v990
      %v1027 = vpack.c.bf16 %v993, %v992
      %v1028 = vpack.c.bf16 %v995, %v994
      %v1029 = vpack.c.bf16 %v997, %v996
      %v1062 = vunpack.c.l.b16 %v998
      %v1063 = vunpack.c.h.b16 %v998
      %v1064 = vunpack.c.l.b16 %v999
      %v1065 = vunpack.c.h.b16 %v999
      %v1066 = vunpack.c.l.b16 %v1000
      %v1067 = vunpack.c.h.b16 %v1000
      %v1068 = vunpack.c.l.b16 %v1001
      %v1069 = vunpack.c.h.b16 %v1001
      %v1070 = vunpack.c.l.b16 %v1002
      %v1071 = vunpack.c.h.b16 %v1002
      %v1072 = vunpack.c.l.b16 %v1003
      %v1073 = vunpack.c.h.b16 %v1003
      %v1074 = vunpack.c.l.b16 %v1004
      %v1075 = vunpack.c.h.b16 %v1004
      %v1076 = vunpack.c.l.b16 %v1005
      %v1077 = vunpack.c.h.b16 %v1005
      %v1078 = vunpack.c.l.b16 %v1006
      %v1079 = vunpack.c.h.b16 %v1006
      %v1080 = vunpack.c.l.b16 %v1007
      %v1081 = vunpack.c.h.b16 %v1007
      %v1082 = vunpack.c.l.b16 %v1008
      %v1083 = vunpack.c.h.b16 %v1008
      %v1084 = vunpack.c.l.b16 %v1009
      %v1085 = vunpack.c.h.b16 %v1009
      %v1086 = vunpack.c.l.b16 %v1010
      %v1087 = vunpack.c.h.b16 %v1010
      %v1088 = vunpack.c.l.b16 %v1011
      %v1089 = vunpack.c.h.b16 %v1011
      %v1090 = vunpack.c.l.b16 %v1012
      %v1091 = vunpack.c.h.b16 %v1012
      %v1092 = vunpack.c.l.b16 %v1013
      %v1093 = vunpack.c.h.b16 %v1013
      %v1094 = vunpack.c.l.b16 %v1014
      %v1095 = vunpack.c.h.b16 %v1014
      %v1096 = vunpack.c.l.b16 %v1015
      %v1097 = vunpack.c.h.b16 %v1015
      %v1098 = vunpack.c.l.b16 %v1016
      %v1099 = vunpack.c.h.b16 %v1016
      %v1100 = vunpack.c.l.b16 %v1017
      %v1101 = vunpack.c.h.b16 %v1017
      %v1102 = vunpack.c.l.b16 %v1018
      %v1103 = vunpack.c.h.b16 %v1018
      %v1104 = vunpack.c.l.b16 %v1019
      %v1105 = vunpack.c.h.b16 %v1019
      %v1106 = vunpack.c.l.b16 %v1020
      %v1107 = vunpack.c.h.b16 %v1020
      %v1108 = vunpack.c.l.b16 %v1021
      %v1109 = vunpack.c.h.b16 %v1021
      %v1110 = vunpack.c.l.b16 %v1022
      %v1111 = vunpack.c.h.b16 %v1022
      %v1112 = vunpack.c.l.b16 %v1023
      %v1113 = vunpack.c.h.b16 %v1023
      %v1114 = vunpack.c.l.b16 %v1024
      %v1115 = vunpack.c.h.b16 %v1024
      %v1116 = vunpack.c.l.b16 %v1025
      %v1117 = vunpack.c.h.b16 %v1025
      %v1118 = vunpack.c.l.b16 %v1026
      %v1119 = vunpack.c.h.b16 %v1026
      %v1120 = vunpack.c.l.b16 %v1027
      %v1121 = vunpack.c.h.b16 %v1027
      %v1122 = vunpack.c.l.b16 %v1028
      %v1123 = vunpack.c.h.b16 %v1028
      %v1124 = vunpack.c.l.b16 %v1029
      %v1125 = vunpack.c.h.b16 %v1029
      %v1126 = vpack.c.b16 %v1062, %v1062
      %v1127 = vpack.c.b16 %v1063, %v1063
      %v1128 = vpack.c.b16 %v1064, %v1064
      %v1129 = vpack.c.b16 %v1065, %v1065
      %v1130 = vpack.c.b16 %v1066, %v1066
      %v1131 = vpack.c.b16 %v1067, %v1067
      %v1132 = vpack.c.b16 %v1068, %v1068
      %v1133 = vpack.c.b16 %v1069, %v1069
      %v1134 = vpack.c.b16 %v1070, %v1070
      %v1135 = vpack.c.b16 %v1071, %v1071
      %v1136 = vpack.c.b16 %v1072, %v1072
      %v1137 = vpack.c.b16 %v1073, %v1073
      %v1138 = vpack.c.b16 %v1074, %v1074
      %v1139 = vpack.c.b16 %v1075, %v1075
      %v1140 = vpack.c.b16 %v1076, %v1076
      %v1141 = vpack.c.b16 %v1077, %v1077
      %v1142 = vpack.c.b16 %v1078, %v1078
      %v1143 = vpack.c.b16 %v1079, %v1079
      %v1144 = vpack.c.b16 %v1080, %v1080
      %v1145 = vpack.c.b16 %v1081, %v1081
      %v1146 = vpack.c.b16 %v1082, %v1082
      %v1147 = vpack.c.b16 %v1083, %v1083
      %v1148 = vpack.c.b16 %v1084, %v1084
      %v1149 = vpack.c.b16 %v1085, %v1085
      %v1150 = vpack.c.b16 %v1086, %v1086
      %v1151 = vpack.c.b16 %v1087, %v1087
      %v1152 = vpack.c.b16 %v1088, %v1088
      %v1153 = vpack.c.b16 %v1089, %v1089
      %v1154 = vpack.c.b16 %v1090, %v1090
      %v1155 = vpack.c.b16 %v1091, %v1091
      %v1156 = vpack.c.b16 %v1092, %v1092
      %v1157 = vpack.c.b16 %v1093, %v1093
      %v1158 = vpack.c.b16 %v1094, %v1094
      %v1159 = vpack.c.b16 %v1095, %v1095
      %v1160 = vpack.c.b16 %v1096, %v1096
      %v1161 = vpack.c.b16 %v1097, %v1097
      %v1162 = vpack.c.b16 %v1098, %v1098
      %v1163 = vpack.c.b16 %v1099, %v1099
      %v1164 = vpack.c.b16 %v1100, %v1100
      %v1165 = vpack.c.b16 %v1101, %v1101
      %v1166 = vpack.c.b16 %v1102, %v1102
      %v1167 = vpack.c.b16 %v1103, %v1103
      %v1168 = vpack.c.b16 %v1104, %v1104
      %v1169 = vpack.c.b16 %v1105, %v1105
      %v1170 = vpack.c.b16 %v1106, %v1106
      %v1171 = vpack.c.b16 %v1107, %v1107
      %v1172 = vpack.c.b16 %v1108, %v1108
      %v1173 = vpack.c.b16 %v1109, %v1109
      %v1174 = vpack.c.b16 %v1110, %v1110
      %v1175 = vpack.c.b16 %v1111, %v1111
      %v1176 = vpack.c.b16 %v1112, %v1112
      %v1177 = vpack.c.b16 %v1113, %v1113
      %v1178 = vpack.c.b16 %v1114, %v1114
      %v1179 = vpack.c.b16 %v1115, %v1115
      %v1180 = vpack.c.b16 %v1116, %v1116
      %v1181 = vpack.c.b16 %v1117, %v1117
      %v1182 = vpack.c.b16 %v1118, %v1118
      %v1183 = vpack.c.b16 %v1119, %v1119
      %v1184 = vpack.c.b16 %v1120, %v1120
      %v1185 = vpack.c.b16 %v1121, %v1121
      %v1186 = vpack.c.b16 %v1122, %v1122
      %v1187 = vpack.c.b16 %v1123, %v1123
      %v1188 = vpack.c.b16 %v1124, %v1124
      %v1189 = vpack.c.b16 %v1125, %v1125
      %1254 = vst [vmem:[%s145] sm:$0xf] %v1126
      %1255 = vst [vmem:[%s145 + $0x4] sm:$0xf] %v1127
      %1256 = vst [vmem:[%s145 + $0x8] sm:$0xf] %v1128
      %1257 = vst [vmem:[%s145 + $0xc] sm:$0xf] %v1129
      %1258 = vst [vmem:[%s145 + $0x10] sm:$0xf] %v1130
      %1259 = vst [vmem:[%s145 + $0x14] sm:$0xf] %v1131
      %1260 = vst [vmem:[%s145 + $0x18] sm:$0xf] %v1132
      %1261 = vst [vmem:[%s145 + $0x1c] sm:$0xf] %v1133
      %1262 = vst [vmem:[%s145 + $0x20] sm:$0xf] %v1134
      %1263 = vst [vmem:[%s145 + $0x24] sm:$0xf] %v1135
      %1264 = vst [vmem:[%s145 + $0x28] sm:$0xf] %v1136
      %1265 = vst [vmem:[%s145 + $0x2c] sm:$0xf] %v1137
      %1266 = vst [vmem:[%s145 + $0x30] sm:$0xf] %v1138
      %1267 = vst [vmem:[%s145 + $0x34] sm:$0xf] %v1139
      %1268 = vst [vmem:[%s145 + $0x38] sm:$0xf] %v1140
      %1269 = vst [vmem:[%s145 + $0x3c] sm:$0xf] %v1141
      %1270 = vst [vmem:[%s145 + $0x40] sm:$0xf] %v1142
      %1271 = vst [vmem:[%s145 + $0x44] sm:$0xf] %v1143
      %1272 = vst [vmem:[%s145 + $0x48] sm:$0xf] %v1144
      %1273 = vst [vmem:[%s145 + $0x4c] sm:$0xf] %v1145
      %1274 = vst [vmem:[%s145 + $0x50] sm:$0xf] %v1146
      %1275 = vst [vmem:[%s145 + $0x54] sm:$0xf] %v1147
      %1276 = vst [vmem:[%s145 + $0x58] sm:$0xf] %v1148
      %1277 = vst [vmem:[%s145 + $0x5c] sm:$0xf] %v1149
      %1278 = vst [vmem:[%s145 + $0x60] sm:$0xf] %v1150
      %1279 = vst [vmem:[%s145 + $0x64] sm:$0xf] %v1151
      %1280 = vst [vmem:[%s145 + $0x68] sm:$0xf] %v1152
      %1281 = vst [vmem:[%s145 + $0x6c] sm:$0xf] %v1153
      %1282 = vst [vmem:[%s145 + $0x70] sm:$0xf] %v1154
      %1283 = vst [vmem:[%s145 + $0x74] sm:$0xf] %v1155
      %1284 = vst [vmem:[%s145 + $0x78] sm:$0xf] %v1156
      %1285 = vst [vmem:[%s145 + $0x7c] sm:$0xf] %v1157
      %1286 = vst [vmem:[%s145 + $0x80] sm:$0xf] %v1158
      %1287 = vst [vmem:[%s145 + $0x84] sm:$0xf] %v1159
      %1288 = vst [vmem:[%s145 + $0x88] sm:$0xf] %v1160
      %1289 = vst [vmem:[%s145 + $0x8c] sm:$0xf] %v1161
      %1290 = vst [vmem:[%s145 + $0x90] sm:$0xf] %v1162
      %1291 = vst [vmem:[%s145 + $0x94] sm:$0xf] %v1163
      %1292 = vst [vmem:[%s145 + $0x98] sm:$0xf] %v1164
      %1293 = vst [vmem:[%s145 + $0x9c] sm:$0xf] %v1165
      %1294 = vst [vmem:[%s145 + $0xa0] sm:$0xf] %v1166
      %1295 = vst [vmem:[%s145 + $0xa4] sm:$0xf] %v1167
      %1296 = vst [vmem:[%s145 + $0xa8] sm:$0xf] %v1168
      %1297 = vst [vmem:[%s145 + $0xac] sm:$0xf] %v1169
      %1298 = vst [vmem:[%s145 + $0xb0] sm:$0xf] %v1170
      %1299 = vst [vmem:[%s145 + $0xb4] sm:$0xf] %v1171
      %1300 = vst [vmem:[%s145 + $0xb8] sm:$0xf] %v1172
      %1301 = vst [vmem:[%s145 + $0xbc] sm:$0xf] %v1173
      %1302 = vst [vmem:[%s145 + $0xc0] sm:$0xf] %v1174
      %1303 = vst [vmem:[%s145 + $0xc4] sm:$0xf] %v1175
      %1304 = vst [vmem:[%s145 + $0xc8] sm:$0xf] %v1176
      %1305 = vst [vmem:[%s145 + $0xcc] sm:$0xf] %v1177
      %1306 = vst [vmem:[%s145 + $0xd0] sm:$0xf] %v1178
      %1307 = vst [vmem:[%s145 + $0xd4] sm:$0xf] %v1179
      %1308 = vst [vmem:[%s145 + $0xd8] sm:$0xf] %v1180
      %1309 = vst [vmem:[%s145 + $0xdc] sm:$0xf] %v1181
      %1310 = vst [vmem:[%s145 + $0xe0] sm:$0xf] %v1182
      %1311 = vst [vmem:[%s145 + $0xe4] sm:$0xf] %v1183
      %1312 = vst [vmem:[%s145 + $0xe8] sm:$0xf] %v1184
      %1313 = vst [vmem:[%s145 + $0xec] sm:$0xf] %v1185
      %1314 = vst [vmem:[%s145 + $0xf0] sm:$0xf] %v1186
      %1315 = vst [vmem:[%s145 + $0xf4] sm:$0xf] %v1187
      %1316 = vst [vmem:[%s145 + $0xf8] sm:$0xf] %v1188
      %1317 = vst [vmem:[%s145 + $0xfc] sm:$0xf] %v1189
      %s1318 = smul.u32 64, %s13
      %p1319 = scmp.lt.s32.totalorder %s1318, 127
      %s1320 = scalar_select %p1319, %s1318, 127
      %s1321 = smul.addr %s1320, 4
      %s1322 = scalar_lea.vmem %s2, %s1321
      // Predicated region
      $region29: #{discriminator_forward.4} parent=27 // pred_check
        %p1323 = pneg %p78
      $region30: #{discriminator_forward.4} parent=27 // pred_check_branch
        %1325 = sbr.rel (%p1323) target = $region32
      $region31: #{discriminator_forward.4} parent=27 // pred_region
        %s1326 = smul.u32 64, %s13
      $region32: #{discriminator_forward.4} parent=27 // pred_fallthru
        _
    $region28: #{discriminator_forward.4} parent=5 // pred_fallthru
      _
    %p1327 = scmp.le.s32.totalorder 2, %s8
    // Predicated region
    $region33: #{discriminator_forward.4} parent=5 // pred_check
      %p1328 = pneg %p1327
    $region34: #{discriminator_forward.4} parent=5 // pred_check_branch
      %1330 = sbr.rel (%p1328) target = $region36
    $region35: #{discriminator_forward.4} parent=5 // pred_region
      %s1331 = ssub.s32 %s8, 2
      // Predicated region
      $region37: #{discriminator_forward.4} parent=35 // pred_check
        %p1332 = pneg %p84
      $region38: #{discriminator_forward.4} parent=35 // pred_check_branch
        %1334 = sbr.rel (%p1332) target = $region40
      $region39: #{discriminator_forward.4} parent=35 // pred_region
        %s1335 = smul.u32 64, %s14
        %p1336 = scmp.lt.s32.totalorder %s1335, 127
        %s1337 = scalar_select %p1336, %s1335, 127
        %s1338 = smul.addr %s1337, 4
        %s1339 = scalar_lea.vmem %s2, %s1338
      $region40: #{discriminator_forward.4} parent=35 // pred_fallthru
        _
    $region36: #{discriminator_forward.4} parent=5 // pred_fallthru
      _
  $region6: #{discriminator_forward.4} parent=0 // loop_footer
    %s12 = sadd.s32 1, %s8
  $region7: #{discriminator_forward.4} parent=0 // loop_footer_branch
    %7 = sbr.rel target = $region3
  $region8: #{discriminator_forward.4} parent=0 // loop_exit
    _

// kernel: discriminator_forward.5
$region0: #{discriminator_forward.5}
  #allocation0 [shape = 'u32[]', space=smem, size = 0x4, offset = 0x4, fixed_abs, tag = 'smem constant byte address 0x4 - core index']
  #allocation1 [shape = 'u32[144,128]{1,0:T(1,128)}', space=vmem, size = 0x12000, scoped, tag = 'internal scratch']
  #allocation2 [shape = 'f32[512,128]{1,0:T(8,128)}', space=vmem, size = 0x40000, scoped, tag = 'scratch operand']
  %s0 = inlined_call_operand.vmem [shape: bf16[512,1024], index: 0, kind: input, shape index: {}]
  %s1 = inlined_call_operand.vmem [shape: bf16[1024,128], index: 1, kind: input, shape index: {}]
  %s2 = inlined_call_operand.vmem [shape: f32[1,128], index: 2, kind: input, shape index: {}]
  %s3 = inlined_call_operand.vmem [shape: f32[1,128], index: 3, kind: input, shape index: {}]
  %s4 = inlined_call_operand.vmem [shape: bf16[512,128], index: 4, kind: output, shape index: {}]
  %s5 = sld [smem:[#allocation0]]
  $region80: #{discriminator_forward.5} parent=0
    _
  %s7 = ssub.s32 1, %s5
  %s8 = scalar_select 0, %s7, %s5
  $region1: #{discriminator_forward.5} parent=0
    #allocation3 [shape = 'u8[1048576]{0}', space=vmem, size = 0x100000, scoped, tag = 'input window, operand 0']
    loop: start=0, step=1, limit=4
    $region2: #{discriminator_forward.5} parent=1 // loop_pre_header
      _
    $region3: #{discriminator_forward.5} parent=1 // loop_header
      %s10 = sphi 0, %s14
      %p11 = scmp.ge.s32.totalorder %s10, 4
      %s17 = sphi 0, %s29
      %s18 = sphi 0, %s25
      %s19 = sphi 0, %s17
      %s20 = sphi 0, %s18
      %s21 = sphi 0, %s19
      %s22 = sphi 0, %s20
      %s32 = sphi 0, %s34
      %s35 = sphi 0, %s32
      %s36 = sphi 0, %s35
      %s52 = sphi 0, %s36
      %s60 = sphi 0, %s62
      %s63 = sphi 0, %s60
      %s64 = sphi 0, %s63
      %s80 = sphi 0, %s64
      %s86 = sphi 0, %s88
      %s89 = sphi 0, %s86
      %s90 = sphi 0, %s89
      %s106 = sphi 0, %s90
      %s112 = sphi 0, %s114
      %s115 = sphi 0, %s112
      %s116 = sphi 0, %s115
      %s132 = sphi 0, %s116
      %s138 = sphi 0, %s140
      %s141 = sphi 0, %s138
      %s142 = sphi 0, %s141
      %s158 = sphi 0, %s142
    $region4: #{discriminator_forward.5} parent=1 // loop_header_branch
      %13 = sbr.rel (%p11) target = $region8
    $region5: #{discriminator_forward.5} parent=1 // loop_body
      %s15 = ssub.s32 %s10, 1
      %s16 = ssub.s32 %s10, 2
      %s23 = sadd.s32 1, %s18
      %p24 = scmp.ge.s32.totalorder %s23, 2
      %s25 = scalar_select %p24, 0, %s23
      %s26 = sadd.s32 1, %s17
      %s27 = scalar_select %p24, %s26, %s17
      %p28 = scmp.ge.s32.totalorder %s27, 1
      %s29 = scalar_select %p28, 0, %s27
      %s30 = ssub.s32 %s18, %s25
      %p31 = scmp.eq.s32.totalorder %s30, 0
      %s33 = sadd.s32 %s32, 1
      %s34 = scalar_select %p31, %s32, %s33
      %p37 = pneg %p31
      %p38 = scmp.eq.s32.totalorder %s10, 1
      %p39 = por %p37, %p38
      %p40 = scmp.ne.s32.totalorder %s32, %s35
      %p41 = scmp.eq.s32.totalorder %s10, 0
      %p42 = por %p40, %p41
      %p43 = scmp.ne.s32.totalorder %s32, %s35
      %p44 = scmp.eq.s32.totalorder %s15, 1
      %p45 = por %p43, %p44
      %p46 = scmp.ne.s32.totalorder %s35, %s36
      %p47 = scmp.eq.s32.totalorder %s15, 0
      %p48 = por %p46, %p47
      %p49 = scmp.ne.s32.totalorder %s35, %s36
      %p50 = scmp.eq.s32.totalorder %s16, 1
      %p51 = por %p49, %p50
      %p53 = scmp.ne.s32.totalorder %s36, %s52
      %p54 = scmp.eq.s32.totalorder %s16, 0
      %p55 = por %p53, %p54
      %s56 = ssub.s32 %s18, %s25
      %s57 = ssub.s32 %s17, %s29
      %s58 = sor.u32 %s56, %s57
      %p59 = scmp.eq.s32.totalorder %s58, 0
      %s61 = sadd.s32 %s60, 1
      %s62 = scalar_select %p59, %s60, %s61
      %p65 = pneg %p59
      %p66 = scmp.eq.s32.totalorder %s10, 1
      %p67 = por %p65, %p66
      %p68 = scmp.ne.s32.totalorder %s60, %s63
      %p69 = scmp.eq.s32.totalorder %s10, 0
      %p70 = por %p68, %p69
      %p71 = scmp.ne.s32.totalorder %s60, %s63
      %p72 = scmp.eq.s32.totalorder %s15, 1
      %p73 = por %p71, %p72
      %p74 = scmp.ne.s32.totalorder %s63, %s64
      %p75 = scmp.eq.s32.totalorder %s15, 0
      %p76 = por %p74, %p75
      %p77 = scmp.ne.s32.totalorder %s63, %s64
      %p78 = scmp.eq.s32.totalorder %s16, 1
      %p79 = por %p77, %p78
      %p81 = scmp.ne.s32.totalorder %s64, %s80
      %p82 = scmp.eq.s32.totalorder %s16, 0
      %p83 = por %p81, %p82
      %s84 = ssub.s32 %s17, %s29
      %p85 = scmp.eq.s32.totalorder %s84, 0
      %s87 = sadd.s32 %s86, 1
      %s88 = scalar_select %p85, %s86, %s87
      %p91 = pneg %p85
      %p92 = scmp.eq.s32.totalorder %s10, 1
      %p93 = por %p91, %p92
      %p94 = scmp.ne.s32.totalorder %s86, %s89
      %p95 = scmp.eq.s32.totalorder %s10, 0
      %p96 = por %p94, %p95
      %p97 = scmp.ne.s32.totalorder %s86, %s89
      %p98 = scmp.eq.s32.totalorder %s15, 1
      %p99 = por %p97, %p98
      %p100 = scmp.ne.s32.totalorder %s89, %s90
      %p101 = scmp.eq.s32.totalorder %s15, 0
      %p102 = por %p100, %p101
      %p103 = scmp.ne.s32.totalorder %s89, %s90
      %p104 = scmp.eq.s32.totalorder %s16, 1
      %p105 = por %p103, %p104
      %p107 = scmp.ne.s32.totalorder %s90, %s106
      %p108 = scmp.eq.s32.totalorder %s16, 0
      %p109 = por %p107, %p108
      %s110 = ssub.s32 %s17, %s29
      %p111 = scmp.eq.s32.totalorder %s110, 0
      %s113 = sadd.s32 %s112, 1
      %s114 = scalar_select %p111, %s112, %s113
      %p117 = pneg %p111
      %p118 = scmp.eq.s32.totalorder %s10, 1
      %p119 = por %p117, %p118
      %p120 = scmp.ne.s32.totalorder %s112, %s115
      %p121 = scmp.eq.s32.totalorder %s10, 0
      %p122 = por %p120, %p121
      %p123 = scmp.ne.s32.totalorder %s112, %s115
      %p124 = scmp.eq.s32.totalorder %s15, 1
      %p125 = por %p123, %p124
      %p126 = scmp.ne.s32.totalorder %s115, %s116
      %p127 = scmp.eq.s32.totalorder %s15, 0
      %p128 = por %p126, %p127
      %p129 = scmp.ne.s32.totalorder %s115, %s116
      %p130 = scmp.eq.s32.totalorder %s16, 1
      %p131 = por %p129, %p130
      %p133 = scmp.ne.s32.totalorder %s116, %s132
      %p134 = scmp.eq.s32.totalorder %s16, 0
      %p135 = por %p133, %p134
      %s136 = ssub.s32 %s17, %s29
      %p137 = scmp.eq.s32.totalorder %s136, 0
      %s139 = sadd.s32 %s138, 1
      %s140 = scalar_select %p137, %s138, %s139
      %p143 = pneg %p137
      %p144 = scmp.eq.s32.totalorder %s10, 1
      %p145 = por %p143, %p144
      %p146 = scmp.ne.s32.totalorder %s138, %s141
      %p147 = scmp.eq.s32.totalorder %s10, 0
      %p148 = por %p146, %p147
      %p149 = scmp.ne.s32.totalorder %s138, %s141
      %p150 = scmp.eq.s32.totalorder %s15, 1
      %p151 = por %p149, %p150
      %p152 = scmp.ne.s32.totalorder %s141, %s142
      %p153 = scmp.eq.s32.totalorder %s15, 0
      %p154 = por %p152, %p153
      %p155 = scmp.ne.s32.totalorder %s141, %s142
      %p156 = scmp.eq.s32.totalorder %s16, 1
      %p157 = por %p155, %p156
      %p159 = scmp.ne.s32.totalorder %s142, %s158
      %p160 = scmp.eq.s32.totalorder %s16, 0
      %p161 = por %p159, %p160
      %p162 = scmp.le.s32.totalorder 1, %s10
      %p163 = scmp.lt.s32.totalorder %s10, 3
      %p164 = pnand %p162, %p163
      %p165 = pneg %p164
      // Predicated region
      $region9: #{discriminator_forward.5} parent=5 // pred_check
        _
      $region10: #{discriminator_forward.5} parent=5 // pred_check_branch
        %167 = sbr.rel (%p164) target = $region12
      $region11: #{discriminator_forward.5} parent=5 // pred_region
        %s168 = ssub.s32 %s10, 1
        // Predicated region
        $region13: #{discriminator_forward.5} parent=11 // pred_check
          %p169 = pneg %p102
        $region14: #{discriminator_forward.5} parent=11 // pred_check_branch
          %171 = sbr.rel (%p169) target = $region16
        $region15: #{discriminator_forward.5} parent=11 // pred_region
          %p172 = scmp.lt.s32.totalorder %s19, 0
          %s173 = scalar_select %p172, %s19, 0
          %s174 = scalar_lea.vmem %s2, %s173
        $region16: #{discriminator_forward.5} parent=11 // pred_fallthru
          _
        // Predicated region
        $region17: #{discriminator_forward.5} parent=11 // pred_check
          %p175 = pneg %p128
        $region18: #{discriminator_forward.5} parent=11 // pred_check_branch
          %177 = sbr.rel (%p175) target = $region20
        $region19: #{discriminator_forward.5} parent=11 // pred_region
          %p178 = scmp.lt.s32.totalorder %s19, 0
          %s179 = scalar_select %p178, %s19, 0
          %s180 = scalar_lea.vmem %s3, %s179
        $region20: #{discriminator_forward.5} parent=11 // pred_fallthru
          _
      $region12: #{discriminator_forward.5} parent=5 // pred_fallthru
        _
      %p181 = scmp.lt.s32.totalorder %s10, 2
      // Predicated region
      $region21: #{discriminator_forward.5} parent=5 // pred_check
        %p182 = pneg %p181
      $region22: #{discriminator_forward.5} parent=5 // pred_check_branch
        %184 = sbr.rel (%p182) target = $region24
      $region23: #{discriminator_forward.5} parent=5 // pred_region
        // Predicated region
        $region25: #{discriminator_forward.5} parent=23 // pred_check
          %p185 = pneg %p42
        $region26: #{discriminator_forward.5} parent=23 // pred_check_branch
          %187 = sbr.rel (%p185) target = $region28
        $region27: #{discriminator_forward.5} parent=23 // pred_region
          %s188 = sand.u32 %s32, 1
          %s189 = sand.u32 %s32, 1
          %s190 = smul.addr %s189, 1024
          %s191 = scalar_lea.vmem [#allocation3], %s190
          %s192 = smul.u32 4, %s18
          %s193 = smul.addr %s192, 4
          %s194 = scalar_lea.vmem %s0, %s193
          // Predicated region
          $region29: #{discriminator_forward.5} parent=27 // pred_check
            _
          $region30: #{discriminator_forward.5} parent=27 // pred_check_branch
            %196 = sbr.rel (0) target = $region32
          $region31: #{discriminator_forward.5} parent=27 // pred_region
            // Predicated region
            $region33: #{discriminator_forward.5} parent=31 // pred_check
              _
            $region34: #{discriminator_forward.5} parent=31 // pred_check_branch
              %198 = sbr.rel (0) target = $region36
            $region35: #{discriminator_forward.5} parent=31 // pred_region
              loop: start=0, step=1, limit=1
              $region37: #{discriminator_forward.5} parent=35 // loop_pre_header
                _
              $region38: #{discriminator_forward.5} parent=35 // loop_header
                %s200 = sphi 0, %s204
                %p201 = scmp.ge.s32.totalorder %s200, 1
                %s205 = sphi %s194, %s194
                %s206 = sphi %s191, %s191
              $region39: #{discriminator_forward.5} parent=35 // loop_header_branch
                %203 = sbr.rel (%p201) target = $region43
              $region40: #{discriminator_forward.5} parent=35 // loop_body
                %v207 = vld [vmem:[%s205] sm:$0xff]
                %208 = vst [vmem:[%s206] sm:$0xff] %v207
                %v209 = vld [vmem:[%s205 + $0x8] sm:$0xff]
                %210 = vst [vmem:[%s206 + $0x8] sm:$0xff] %v209
                %v211 = vld [vmem:[%s205 + $0x20] sm:$0xff]
                %212 = vst [vmem:[%s206 + $0x10] sm:$0xff] %v211
                %v213 = vld [vmem:[%s205 + $0x28] sm:$0xff]
                %214 = vst [vmem:[%s206 + $0x18] sm:$0xff] %v213
                %v215 = vld [vmem:[%s205 + $0x40] sm:$0xff]
                %216 = vst [vmem:[%s206 + $0x20] sm:$0xff] %v215
                %v217 = vld [vmem:[%s205 + $0x48] sm:$0xff]
                %218 = vst [vmem:[%s206 + $0x28] sm:$0xff] %v217
                %v219 = vld [vmem:[%s205 + $0x60] sm:$0xff]
                %220 = vst [vmem:[%s206 + $0x30] sm:$0xff] %v219
                %v221 = vld [vmem:[%s205 + $0x68] sm:$0xff]
                %222 = vst [vmem:[%s206 + $0x38] sm:$0xff] %v221
                %v223 = vld [vmem:[%s205 + $0x80] sm:$0xff]
                %224 = vst [vmem:[%s206 + $0x40] sm:$0xff] %v223
                %v225 = vld [vmem:[%s205 + $0x88] sm:$0xff]
                %226 = vst [vmem:[%s206 + $0x48] sm:$0xff] %v225
                %v227 = vld [vmem:[%s205 + $0xa0] sm:$0xff]
                %228 = vst [vmem:[%s206 + $0x50] sm:$0xff] %v227
                %v229 = vld [vmem:[%s205 + $0xa8] sm:$0xff]
                %230 = vst [vmem:[%s206 + $0x58] sm:$0xff] %v229
                %v231 = vld [vmem:[%s205 + $0xc0] sm:$0xff]
                %232 = vst [vmem:[%s206 + $0x60] sm:$0xff] %v231
                %v233 = vld [vmem:[%s205 + $0xc8] sm:$0xff]
                %234 = vst [vmem:[%s206 + $0x68] sm:$0xff] %v233
                %v235 = vld [vmem:[%s205 + $0xe0] sm:$0xff]
                %236 = vst [vmem:[%s206 + $0x70] sm:$0xff] %v235
                %v237 = vld [vmem:[%s205 + $0xe8] sm:$0xff]
                %238 = vst [vmem:[%s206 + $0x78] sm:$0xff] %v237
                %v239 = vld [vmem:[%s205 + $0x100] sm:$0xff]
                %240 = vst [vmem:[%s206 + $0x80] sm:$0xff] %v239
                %v241 = vld [vmem:[%s205 + $0x108] sm:$0xff]
                %242 = vst [vmem:[%s206 + $0x88] sm:$0xff] %v241
                %v243 = vld [vmem:[%s205 + $0x120] sm:$0xff]
                %244 = vst [vmem:[%s206 + $0x90] sm:$0xff] %v243
                %v245 = vld [vmem:[%s205 + $0x128] sm:$0xff]
                %246 = vst [vmem:[%s206 + $0x98] sm:$0xff] %v245
                %v247 = vld [vmem:[%s205 + $0x140] sm:$0xff]
                %248 = vst [vmem:[%s206 + $0xa0] sm:$0xff] %v247
                %v249 = vld [vmem:[%s205 + $0x148] sm:$0xff]
                %250 = vst [vmem:[%s206 + $0xa8] sm:$0xff] %v249
                %v251 = vld [vmem:[%s205 + $0x160] sm:$0xff]
                %252 = vst [vmem:[%s206 + $0xb0] sm:$0xff] %v251
                %v253 = vld [vmem:[%s205 + $0x168] sm:$0xff]
                %254 = vst [vmem:[%s206 + $0xb8] sm:$0xff] %v253
                %v255 = vld [vmem:[%s205 + $0x180] sm:$0xff]
                %256 = vst [vmem:[%s206 + $0xc0] sm:$0xff] %v255
                %v257 = vld [vmem:[%s205 + $0x188] sm:$0xff]
                %258 = vst [vmem:[%s206 + $0xc8] sm:$0xff] %v257
                %v259 = vld [vmem:[%s205 + $0x1a0] sm:$0xff]
                %260 = vst [vmem:[%s206 + $0xd0] sm:$0xff] %v259
                %v261 = vld [vmem:[%s205 + $0x1a8] sm:$0xff]
                %262 = vst [vmem:[%s206 + $0xd8] sm:$0xff] %v261
                %v263 = vld [vmem:[%s205 + $0x1c0] sm:$0xff]
                %264 = vst [vmem:[%s206 + $0xe0] sm:$0xff] %v263
                %v265 = vld [vmem:[%s205 + $0x1c8] sm:$0xff]
                %266 = vst [vmem:[%s206 + $0xe8] sm:$0xff] %v265
                %v267 = vld [vmem:[%s205 + $0x1e0] sm:$0xff]
                %268 = vst [vmem:[%s206 + $0xf0] sm:$0xff] %v267
                %v269 = vld [vmem:[%s205 + $0x1e8] sm:$0xff]
                %270 = vst [vmem:[%s206 + $0xf8] sm:$0xff] %v269
                %v271 = vld [vmem:[%s205 + $0x200] sm:$0xff]
                %272 = vst [vmem:[%s206 + $0x100] sm:$0xff] %v271
                %v273 = vld [vmem:[%s205 + $0x208] sm:$0xff]
                %274 = vst [vmem:[%s206 + $0x108] sm:$0xff] %v273
                %v275 = vld [vmem:[%s205 + $0x220] sm:$0xff]
                %276 = vst [vmem:[%s206 + $0x110] sm:$0xff] %v275
                %v277 = vld [vmem:[%s205 + $0x228] sm:$0xff]
                %278 = vst [vmem:[%s206 + $0x118] sm:$0xff] %v277
                %v279 = vld [vmem:[%s205 + $0x240] sm:$0xff]
                %280 = vst [vmem:[%s206 + $0x120] sm:$0xff] %v279
                %v281 = vld [vmem:[%s205 + $0x248] sm:$0xff]
                %282 = vst [vmem:[%s206 + $0x128] sm:$0xff] %v281
                %v283 = vld [vmem:[%s205 + $0x260] sm:$0xff]
                %284 = vst [vmem:[%s206 + $0x130] sm:$0xff] %v283
                %v285 = vld [vmem:[%s205 + $0x268] sm:$0xff]
                %286 = vst [vmem:[%s206 + $0x138] sm:$0xff] %v285
                %v287 = vld [vmem:[%s205 + $0x280] sm:$0xff]
                %288 = vst [vmem:[%s206 + $0x140] sm:$0xff] %v287
                %v289 = vld [vmem:[%s205 + $0x288] sm:$0xff]
                %290 = vst [vmem:[%s206 + $0x148] sm:$0xff] %v289
                %v291 = vld [vmem:[%s205 + $0x2a0] sm:$0xff]
                %292 = vst [vmem:[%s206 + $0x150] sm:$0xff] %v291
                %v293 = vld [vmem:[%s205 + $0x2a8] sm:$0xff]
                %294 = vst [vmem:[%s206 + $0x158] sm:$0xff] %v293
                %v295 = vld [vmem:[%s205 + $0x2c0] sm:$0xff]
                %296 = vst [vmem:[%s206 + $0x160] sm:$0xff] %v295
                %v297 = vld [vmem:[%s205 + $0x2c8] sm:$0xff]
                %298 = vst [vmem:[%s206 + $0x168] sm:$0xff] %v297
                %v299 = vld [vmem:[%s205 + $0x2e0] sm:$0xff]
                %300 = vst [vmem:[%s206 + $0x170] sm:$0xff] %v299
                %v301 = vld [vmem:[%s205 + $0x2e8] sm:$0xff]
                %302 = vst [vmem:[%s206 + $0x178] sm:$0xff] %v301
                %v303 = vld [vmem:[%s205 + $0x300] sm:$0xff]
                %304 = vst [vmem:[%s206 + $0x180] sm:$0xff] %v303
                %v305 = vld [vmem:[%s205 + $0x308] sm:$0xff]
                %306 = vst [vmem:[%s206 + $0x188] sm:$0xff] %v305
                %v307 = vld [vmem:[%s205 + $0x320] sm:$0xff]
                %308 = vst [vmem:[%s206 + $0x190] sm:$0xff] %v307
                %v309 = vld [vmem:[%s205 + $0x328] sm:$0xff]
                %310 = vst [vmem:[%s206 + $0x198] sm:$0xff] %v309
                %v311 = vld [vmem:[%s205 + $0x340] sm:$0xff]
                %312 = vst [vmem:[%s206 + $0x1a0] sm:$0xff] %v311
                %v313 = vld [vmem:[%s205 + $0x348] sm:$0xff]
                %314 = vst [vmem:[%s206 + $0x1a8] sm:$0xff] %v313
                %v315 = vld [vmem:[%s205 + $0x360] sm:$0xff]
                %316 = vst [vmem:[%s206 + $0x1b0] sm:$0xff] %v315
                %v317 = vld [vmem:[%s205 + $0x368] sm:$0xff]
                %318 = vst [vmem:[%s206 + $0x1b8] sm:$0xff] %v317
                %v319 = vld [vmem:[%s205 + $0x380] sm:$0xff]
                %320 = vst [vmem:[%s206 + $0x1c0] sm:$0xff] %v319
                %v321 = vld [vmem:[%s205 + $0x388] sm:$0xff]
                %322 = vst [vmem:[%s206 + $0x1c8] sm:$0xff] %v321
                %v323 = vld [vmem:[%s205 + $0x3a0] sm:$0xff]
                %324 = vst [vmem:[%s206 + $0x1d0] sm:$0xff] %v323
                %v325 = vld [vmem:[%s205 + $0x3a8] sm:$0xff]
                %326 = vst [vmem:[%s206 + $0x1d8] sm:$0xff] %v325
                %v327 = vld [vmem:[%s205 + $0x3c0] sm:$0xff]
                %328 = vst [vmem:[%s206 + $0x1e0] sm:$0xff] %v327
                %v329 = vld [vmem:[%s205 + $0x3c8] sm:$0xff]
                %330 = vst [vmem:[%s206 + $0x1e8] sm:$0xff] %v329
                %v331 = vld [vmem:[%s205 + $0x3e0] sm:$0xff]
                %332 = vst [vmem:[%s206 + $0x1f0] sm:$0xff] %v331
                %v333 = vld [vmem:[%s205 + $0x3e8] sm:$0xff]
                %334 = vst [vmem:[%s206 + $0x1f8] sm:$0xff] %v333
                %v335 = vld [vmem:[%s205 + $0x400] sm:$0xff]
                %336 = vst [vmem:[%s206 + $0x200] sm:$0xff] %v335
                %v337 = vld [vmem:[%s205 + $0x408] sm:$0xff]
                %338 = vst [vmem:[%s206 + $0x208] sm:$0xff] %v337
                %v339 = vld [vmem:[%s205 + $0x420] sm:$0xff]
                %340 = vst [vmem:[%s206 + $0x210] sm:$0xff] %v339
                %v341 = vld [vmem:[%s205 + $0x428] sm:$0xff]
                %342 = vst [vmem:[%s206 + $0x218] sm:$0xff] %v341
                %v343 = vld [vmem:[%s205 + $0x440] sm:$0xff]
                %344 = vst [vmem:[%s206 + $0x220] sm:$0xff] %v343
                %v345 = vld [vmem:[%s205 + $0x448] sm:$0xff]
                %346 = vst [vmem:[%s206 + $0x228] sm:$0xff] %v345
                %v347 = vld [vmem:[%s205 + $0x460] sm:$0xff]
                %348 = vst [vmem:[%s206 + $0x230] sm:$0xff] %v347
                %v349 = vld [vmem:[%s205 + $0x468] sm:$0xff]
                %350 = vst [vmem:[%s206 + $0x238] sm:$0xff] %v349
                %v351 = vld [vmem:[%s205 + $0x480] sm:$0xff]
                %352 = vst [vmem:[%s206 + $0x240] sm:$0xff] %v351
                %v353 = vld [vmem:[%s205 + $0x488] sm:$0xff]
                %354 = vst [vmem:[%s206 + $0x248] sm:$0xff] %v353
                %v355 = vld [vmem:[%s205 + $0x4a0] sm:$0xff]
                %356 = vst [vmem:[%s206 + $0x250] sm:$0xff] %v355
                %v357 = vld [vmem:[%s205 + $0x4a8] sm:$0xff]
                %358 = vst [vmem:[%s206 + $0x258] sm:$0xff] %v357
                %v359 = vld [vmem:[%s205 + $0x4c0] sm:$0xff]
                %360 = vst [vmem:[%s206 + $0x260] sm:$0xff] %v359
                %v361 = vld [vmem:[%s205 + $0x4c8] sm:$0xff]
                %362 = vst [vmem:[%s206 + $0x268] sm:$0xff] %v361
                %v363 = vld [vmem:[%s205 + $0x4e0] sm:$0xff]
                %364 = vst [vmem:[%s206 + $0x270] sm:$0xff] %v363
                %v365 = vld [vmem:[%s205 + $0x4e8] sm:$0xff]
                %366 = vst [vmem:[%s206 + $0x278] sm:$0xff] %v365
                %v367 = vld [vmem:[%s205 + $0x500] sm:$0xff]
                %368 = vst [vmem:[%s206 + $0x280] sm:$0xff] %v367
                %v369 = vld [vmem:[%s205 + $0x508] sm:$0xff]
                %370 = vst [vmem:[%s206 + $0x288] sm:$0xff] %v369
                %v371 = vld [vmem:[%s205 + $0x520] sm:$0xff]
                %372 = vst [vmem:[%s206 + $0x290] sm:$0xff] %v371
                %v373 = vld [vmem:[%s205 + $0x528] sm:$0xff]
                %374 = vst [vmem:[%s206 + $0x298] sm:$0xff] %v373
                %v375 = vld [vmem:[%s205 + $0x540] sm:$0xff]
                %376 = vst [vmem:[%s206 + $0x2a0] sm:$0xff] %v375
                %v377 = vld [vmem:[%s205 + $0x548] sm:$0xff]
                %378 = vst [vmem:[%s206 + $0x2a8] sm:$0xff] %v377
                %v379 = vld [vmem:[%s205 + $0x560] sm:$0xff]
                %380 = vst [vmem:[%s206 + $0x2b0] sm:$0xff] %v379
                %v381 = vld [vmem:[%s205 + $0x568] sm:$0xff]
                %382 = vst [vmem:[%s206 + $0x2b8] sm:$0xff] %v381
                %v383 = vld [vmem:[%s205 + $0x580] sm:$0xff]
                %384 = vst [vmem:[%s206 + $0x2c0] sm:$0xff] %v383
                %v385 = vld [vmem:[%s205 + $0x588] sm:$0xff]
                %386 = vst [vmem:[%s206 + $0x2c8] sm:$0xff] %v385
                %v387 = vld [vmem:[%s205 + $0x5a0] sm:$0xff]
                %388 = vst [vmem:[%s206 + $0x2d0] sm:$0xff] %v387
                %v389 = vld [vmem:[%s205 + $0x5a8] sm:$0xff]
                %390 = vst [vmem:[%s206 + $0x2d8] sm:$0xff] %v389
                %v391 = vld [vmem:[%s205 + $0x5c0] sm:$0xff]
                %392 = vst [vmem:[%s206 + $0x2e0] sm:$0xff] %v391
                %v393 = vld [vmem:[%s205 + $0x5c8] sm:$0xff]
                %394 = vst [vmem:[%s206 + $0x2e8] sm:$0xff] %v393
                %v395 = vld [vmem:[%s205 + $0x5e0] sm:$0xff]
                %396 = vst [vmem:[%s206 + $0x2f0] sm:$0xff] %v395
                %v397 = vld [vmem:[%s205 + $0x5e8] sm:$0xff]
                %398 = vst [vmem:[%s206 + $0x2f8] sm:$0xff] %v397
                %v399 = vld [vmem:[%s205 + $0x600] sm:$0xff]
                %400 = vst [vmem:[%s206 + $0x300] sm:$0xff] %v399
                %v401 = vld [vmem:[%s205 + $0x608] sm:$0xff]
                %402 = vst [vmem:[%s206 + $0x308] sm:$0xff] %v401
                %v403 = vld [vmem:[%s205 + $0x620] sm:$0xff]
                %404 = vst [vmem:[%s206 + $0x310] sm:$0xff] %v403
                %v405 = vld [vmem:[%s205 + $0x628] sm:$0xff]
                %406 = vst [vmem:[%s206 + $0x318] sm:$0xff] %v405
                %v407 = vld [vmem:[%s205 + $0x640] sm:$0xff]
                %408 = vst [vmem:[%s206 + $0x320] sm:$0xff] %v407
                %v409 = vld [vmem:[%s205 + $0x648] sm:$0xff]
                %410 = vst [vmem:[%s206 + $0x328] sm:$0xff] %v409
                %v411 = vld [vmem:[%s205 + $0x660] sm:$0xff]
                %412 = vst [vmem:[%s206 + $0x330] sm:$0xff] %v411
                %v413 = vld [vmem:[%s205 + $0x668] sm:$0xff]
                %414 = vst [vmem:[%s206 + $0x338] sm:$0xff] %v413
                %v415 = vld [vmem:[%s205 + $0x680] sm:$0xff]
                %416 = vst [vmem:[%s206 + $0x340] sm:$0xff] %v415
                %v417 = vld [vmem:[%s205 + $0x688] sm:$0xff]
                %418 = vst [vmem:[%s206 + $0x348] sm:$0xff] %v417
                %v419 = vld [vmem:[%s205 + $0x6a0] sm:$0xff]
                %420 = vst [vmem:[%s206 + $0x350] sm:$0xff] %v419
                %v421 = vld [vmem:[%s205 + $0x6a8] sm:$0xff]
                %422 = vst [vmem:[%s206 + $0x358] sm:$0xff] %v421
                %v423 = vld [vmem:[%s205 + $0x6c0] sm:$0xff]
                %424 = vst [vmem:[%s206 + $0x360] sm:$0xff] %v423
                %v425 = vld [vmem:[%s205 + $0x6c8] sm:$0xff]
                %426 = vst [vmem:[%s206 + $0x368] sm:$0xff] %v425
                %v427 = vld [vmem:[%s205 + $0x6e0] sm:$0xff]
                %428 = vst [vmem:[%s206 + $0x370] sm:$0xff] %v427
                %v429 = vld [vmem:[%s205 + $0x6e8] sm:$0xff]
                %430 = vst [vmem:[%s206 + $0x378] sm:$0xff] %v429
                %v431 = vld [vmem:[%s205 + $0x700] sm:$0xff]
                %432 = vst [vmem:[%s206 + $0x380] sm:$0xff] %v431
                %v433 = vld [vmem:[%s205 + $0x708] sm:$0xff]
                %434 = vst [vmem:[%s206 + $0x388] sm:$0xff] %v433
                %v435 = vld [vmem:[%s205 + $0x720] sm:$0xff]
                %436 = vst [vmem:[%s206 + $0x390] sm:$0xff] %v435
                %v437 = vld [vmem:[%s205 + $0x728] sm:$0xff]
                %438 = vst [vmem:[%s206 + $0x398] sm:$0xff] %v437
                %v439 = vld [vmem:[%s205 + $0x740] sm:$0xff]
                %440 = vst [vmem:[%s206 + $0x3a0] sm:$0xff] %v439
                %v441 = vld [vmem:[%s205 + $0x748] sm:$0xff]
                %442 = vst [vmem:[%s206 + $0x3a8] sm:$0xff] %v441
                %v443 = vld [vmem:[%s205 + $0x760] sm:$0xff]
                %444 = vst [vmem:[%s206 + $0x3b0] sm:$0xff] %v443
                %v445 = vld [vmem:[%s205 + $0x768] sm:$0xff]
                %446 = vst [vmem:[%s206 + $0x3b8] sm:$0xff] %v445
                %v447 = vld [vmem:[%s205 + $0x780] sm:$0xff]
                %448 = vst [vmem:[%s206 + $0x3c0] sm:$0xff] %v447
                %v449 = vld [vmem:[%s205 + $0x788] sm:$0xff]
                %450 = vst [vmem:[%s206 + $0x3c8] sm:$0xff] %v449
                %v451 = vld [vmem:[%s205 + $0x7a0] sm:$0xff]
                %452 = vst [vmem:[%s206 + $0x3d0] sm:$0xff] %v451
                %v453 = vld [vmem:[%s205 + $0x7a8] sm:$0xff]
                %454 = vst [vmem:[%s206 + $0x3d8] sm:$0xff] %v453
                %v455 = vld [vmem:[%s205 + $0x7c0] sm:$0xff]
                %456 = vst [vmem:[%s206 + $0x3e0] sm:$0xff] %v455
                %v457 = vld [vmem:[%s205 + $0x7c8] sm:$0xff]
                %458 = vst [vmem:[%s206 + $0x3e8] sm:$0xff] %v457
                %v459 = vld [vmem:[%s205 + $0x7e0] sm:$0xff]
                %460 = vst [vmem:[%s206 + $0x3f0] sm:$0xff] %v459
                %v461 = vld [vmem:[%s205 + $0x7e8] sm:$0xff]
                %462 = vst [vmem:[%s206 + $0x3f8] sm:$0xff] %v461
              $region41: #{discriminator_forward.5} parent=35 // loop_footer
                %s204 = sadd.s32 1, %s200
              $region42: #{discriminator_forward.5} parent=35 // loop_footer_branch
                %199 = sbr.rel target = $region38
              $region43: #{discriminator_forward.5} parent=35 // loop_exit
                _
            $region36: #{discriminator_forward.5} parent=31 // pred_fallthru
              _
            // Predicated region
            $region44: #{discriminator_forward.5} parent=31 // pred_check
              _
            $region45: #{discriminator_forward.5} parent=31 // pred_check_branch
              %464 = sbr.rel target = $region47
            $region46: #{discriminator_forward.5} parent=31 // pred_region
              _
            $region47: #{discriminator_forward.5} parent=31 // pred_fallthru
              _
          $region32: #{discriminator_forward.5} parent=27 // pred_fallthru
            _
          %465 = vnop
        $region28: #{discriminator_forward.5} parent=23 // pred_fallthru
          _
        // Predicated region
        $region48: #{discriminator_forward.5} parent=23 // pred_check
          %p466 = pneg %p70
        $region49: #{discriminator_forward.5} parent=23 // pred_check_branch
          %468 = sbr.rel (%p466) target = $region51
        $region50: #{discriminator_forward.5} parent=23 // pred_region
          %s469 = smul.u32 64, %s18
          %p470 = scmp.lt.s32.totalorder %s469, 127
          %s471 = scalar_select %p470, %s469, 127
          %p472 = scmp.lt.s32.totalorder %s17, 0
          %s473 = scalar_select %p472, %s17, 0
          %s474 = sadd.s32 %s473, %s471
          %s475 = smul.addr %s474, 4
          %s476 = scalar_lea.vmem %s1, %s475
          %s477 = smul.u32 64, %s18
        $region51: #{discriminator_forward.5} parent=23 // pred_fallthru
          _
      $region24: #{discriminator_forward.5} parent=5 // pred_fallthru
        _
      %p478 = scmp.le.s32.totalorder 1, %s10
      %p479 = scmp.lt.s32.totalorder %s10, 3
      %p480 = pnand %p478, %p479
      %p481 = pneg %p480
      // Predicated region
      $region52: #{discriminator_forward.5} parent=5 // pred_check
        _
      $region53: #{discriminator_forward.5} parent=5 // pred_check_branch
        %483 = sbr.rel (%p480) target = $region55
      $region54: #{discriminator_forward.5} parent=5 // pred_region
        %s484 = ssub.s32 %s10, 1
        %s485 = sand.u32 %s35, 1
        %s486 = sand.u32 %s35, 1
        %s487 = smul.addr %s486, 1024
        %s488 = scalar_lea.vmem [#allocation3], %s487
        // Predicated region
        $region56: #{discriminator_forward.5} parent=54 // pred_check
          %p489 = pneg %p48
        $region57: #{discriminator_forward.5} parent=54 // pred_check_branch
          %491 = sbr.rel (%p489) target = $region59
        $region58: #{discriminator_forward.5} parent=54 // pred_region
          _
        $region59: #{discriminator_forward.5} parent=54 // pred_fallthru
          _
        %s492 = sand.u32 %s35, 1
        %s493 = sand.u32 %s35, 1
        %s494 = smul.addr %s493, 1024
        %s495 = scalar_lea.vmem [#allocation3], %s494
        %p496 = pneg %p48
        %p497 = pneg %p45
        %s498 = smul.u32 64, %s20
        %p499 = scmp.lt.s32.totalorder %s498, 127
        %s500 = scalar_select %p499, %s498, 127
        %p501 = scmp.lt.s32.totalorder %s19, 0
        %s502 = scalar_select %p501, %s19, 0
        %s503 = sadd.s32 %s502, %s500
        %s504 = smul.addr %s503, 4
        %s505 = scalar_lea.vmem %s1, %s504
        %p506 = pneg %p76
        %p507 = pneg %p73
        %p508 = scmp.lt.s32.totalorder %s19, 0
        %s509 = scalar_select %p508, %s19, 0
        %s510 = scalar_lea.vmem %s2, %s509
        %p511 = pneg %p102
        %p512 = pneg %p99
        %p513 = scmp.lt.s32.totalorder %s19, 0
        %s514 = scalar_select %p513, %s19, 0
        %s515 = scalar_lea.vmem %s3, %s514
        %p516 = pneg %p128
        %p517 = pneg %p125
        %p518 = pneg %p154
        %p519 = pneg %p151
        %p520 = scmp.lt.s32.totalorder %s19, 0
        %s521 = scalar_select %p520, %s19, 0
        %s522 = smul.addr %s521, 4
        %s523 = scalar_lea.vmem %s4, %s522
        %s524 = smul.u32 4, %s20
        %s525 = smul.u32 64, %s20
        %p526 = scmp.lt.s32.totalorder %s525, 127
        %s527 = scalar_select %p526, %s525, 127
        %p528 = scmp.lt.s32.totalorder %s19, 0
        %s529 = scalar_select %p528, %s19, 0
        %s530 = sadd.s32 %s529, %s527
        %s531 = smul.addr %s530, 4
        %s532 = scalar_lea.vmem %s1, %s531
        %s533 = smul.u32 64, %s20
        %p534 = scmp.lt.s32.totalorder %s19, 0
        %s535 = scalar_select %p534, %s19, 0
        %s536 = scalar_lea.vmem %s2, %s535
        %p537 = scmp.lt.s32.totalorder %s19, 0
        %s538 = scalar_select %p537, %s19, 0
        %s539 = scalar_lea.vmem %s3, %s538
        %p540 = scmp.lt.s32.totalorder %s19, 0
        %s541 = scalar_select %p540, %s19, 0
        %s542 = smul.addr %s541, 4
        %s543 = scalar_lea.vmem %s4, %s542
        %p545 = scmp.eq.s32.totalorder %s20, 0
        // Predicated region
        $region60: #{discriminator_forward.5} parent=54 // pred_check
          %p546 = pneg %p545
        $region61: #{discriminator_forward.5} parent=54 // pred_check_branch
          %548 = sbr.rel (%p546) target = $region63
        $region62: #{discriminator_forward.5} parent=54 // pred_region
          %549 = vst [vmem:[#allocation2] sm:$0xff] 0.0
          %550 = vst [vmem:[#allocation2 + $0x8] sm:$0xff] 0.0
          %551 = vst [vmem:[#allocation2 + $0x10] sm:$0xff] 0.0
          %552 = vst [vmem:[#allocation2 + $0x18] sm:$0xff] 0.0
          %553 = vst [vmem:[#allocation2 + $0x20] sm:$0xff] 0.0
          %554 = vst [vmem:[#allocation2 + $0x28] sm:$0xff] 0.0
          %555 = vst [vmem:[#allocation2 + $0x30] sm:$0xff] 0.0
          %556 = vst [vmem:[#allocation2 + $0x38] sm:$0xff] 0.0
          %557 = vst [vmem:[#allocation2 + $0x40] sm:$0xff] 0.0
          %558 = vst [vmem:[#allocation2 + $0x48] sm:$0xff] 0.0
          %559 = vst [vmem:[#allocation2 + $0x50] sm:$0xff] 0.0
          %560 = vst [vmem:[#allocation2 + $0x58] sm:$0xff] 0.0
          %561 = vst [vmem:[#allocation2 + $0x60] sm:$0xff] 0.0
          %562 = vst [vmem:[#allocation2 + $0x68] sm:$0xff] 0.0
          %563 = vst [vmem:[#allocation2 + $0x70] sm:$0xff] 0.0
          %564 = vst [vmem:[#allocation2 + $0x78] sm:$0xff] 0.0
          %565 = vst [vmem:[#allocation2 + $0x80] sm:$0xff] 0.0
          %566 = vst [vmem:[#allocation2 + $0x88] sm:$0xff] 0.0
          %567 = vst [vmem:[#allocation2 + $0x90] sm:$0xff] 0.0
          %568 = vst [vmem:[#allocation2 + $0x98] sm:$0xff] 0.0
          %569 = vst [vmem:[#allocation2 + $0xa0] sm:$0xff] 0.0
          %570 = vst [vmem:[#allocation2 + $0xa8] sm:$0xff] 0.0
          %571 = vst [vmem:[#allocation2 + $0xb0] sm:$0xff] 0.0
          %572 = vst [vmem:[#allocation2 + $0xb8] sm:$0xff] 0.0
          %573 = vst [vmem:[#allocation2 + $0xc0] sm:$0xff] 0.0
          %574 = vst [vmem:[#allocation2 + $0xc8] sm:$0xff] 0.0
          %575 = vst [vmem:[#allocation2 + $0xd0] sm:$0xff] 0.0
          %576 = vst [vmem:[#allocation2 + $0xd8] sm:$0xff] 0.0
          %577 = vst [vmem:[#allocation2 + $0xe0] sm:$0xff] 0.0
          %578 = vst [vmem:[#allocation2 + $0xe8] sm:$0xff] 0.0
          %579 = vst [vmem:[#allocation2 + $0xf0] sm:$0xff] 0.0
          %580 = vst [vmem:[#allocation2 + $0xf8] sm:$0xff] 0.0
          %581 = vst [vmem:[#allocation2 + $0x100] sm:$0xff] 0.0
          %582 = vst [vmem:[#allocation2 + $0x108] sm:$0xff] 0.0
          %583 = vst [vmem:[#allocation2 + $0x110] sm:$0xff] 0.0
          %584 = vst [vmem:[#allocation2 + $0x118] sm:$0xff] 0.0
          %585 = vst [vmem:[#allocation2 + $0x120] sm:$0xff] 0.0
          %586 = vst [vmem:[#allocation2 + $0x128] sm:$0xff] 0.0
          %587 = vst [vmem:[#allocation2 + $0x130] sm:$0xff] 0.0
          %588 = vst [vmem:[#allocation2 + $0x138] sm:$0xff] 0.0
          %589 = vst [vmem:[#allocation2 + $0x140] sm:$0xff] 0.0
          %590 = vst [vmem:[#allocation2 + $0x148] sm:$0xff] 0.0
          %591 = vst [vmem:[#allocation2 + $0x150] sm:$0xff] 0.0
          %592 = vst [vmem:[#allocation2 + $0x158] sm:$0xff] 0.0
          %593 = vst [vmem:[#allocation2 + $0x160] sm:$0xff] 0.0
          %594 = vst [vmem:[#allocation2 + $0x168] sm:$0xff] 0.0
          %595 = vst [vmem:[#allocation2 + $0x170] sm:$0xff] 0.0
          %596 = vst [vmem:[#allocation2 + $0x178] sm:$0xff] 0.0
          %597 = vst [vmem:[#allocation2 + $0x180] sm:$0xff] 0.0
          %598 = vst [vmem:[#allocation2 + $0x188] sm:$0xff] 0.0
          %599 = vst [vmem:[#allocation2 + $0x190] sm:$0xff] 0.0
          %600 = vst [vmem:[#allocation2 + $0x198] sm:$0xff] 0.0
          %601 = vst [vmem:[#allocation2 + $0x1a0] sm:$0xff] 0.0
          %602 = vst [vmem:[#allocation2 + $0x1a8] sm:$0xff] 0.0
          %603 = vst [vmem:[#allocation2 + $0x1b0] sm:$0xff] 0.0
          %604 = vst [vmem:[#allocation2 + $0x1b8] sm:$0xff] 0.0
          %605 = vst [vmem:[#allocation2 + $0x1c0] sm:$0xff] 0.0
          %606 = vst [vmem:[#allocation2 + $0x1c8] sm:$0xff] 0.0
          %607 = vst [vmem:[#allocation2 + $0x1d0] sm:$0xff] 0.0
          %608 = vst [vmem:[#allocation2 + $0x1d8] sm:$0xff] 0.0
          %609 = vst [vmem:[#allocation2 + $0x1e0] sm:$0xff] 0.0
          %610 = vst [vmem:[#allocation2 + $0x1e8] sm:$0xff] 0.0
          %611 = vst [vmem:[#allocation2 + $0x1f0] sm:$0xff] 0.0
          %612 = vst [vmem:[#allocation2 + $0x1f8] sm:$0xff] 0.0
        $region63: #{discriminator_forward.5} parent=54 // pred_fallthru
          _
        %v613 = vld [vmem:[#allocation2] sm:$0xff]
        %v614 = vld [vmem:[#allocation2 + $0x8] sm:$0xff]
        %v615 = vld [vmem:[#allocation2 + $0x10] sm:$0xff]
        %v616 = vld [vmem:[#allocation2 + $0x18] sm:$0xff]
        %v617 = vld [vmem:[#allocation2 + $0x20] sm:$0xff]
        %v618 = vld [vmem:[#allocation2 + $0x28] sm:$0xff]
        %v619 = vld [vmem:[#allocation2 + $0x30] sm:$0xff]
        %v620 = vld [vmem:[#allocation2 + $0x38] sm:$0xff]
        %v621 = vld [vmem:[#allocation2 + $0x40] sm:$0xff]
        %v622 = vld [vmem:[#allocation2 + $0x48] sm:$0xff]
        %v623 = vld [vmem:[#allocation2 + $0x50] sm:$0xff]
        %v624 = vld [vmem:[#allocation2 + $0x58] sm:$0xff]
        %v625 = vld [vmem:[#allocation2 + $0x60] sm:$0xff]
        %v626 = vld [vmem:[#allocation2 + $0x68] sm:$0xff]
        %v627 = vld [vmem:[#allocation2 + $0x70] sm:$0xff]
        %v628 = vld [vmem:[#allocation2 + $0x78] sm:$0xff]
        %v629 = vld [vmem:[#allocation2 + $0x80] sm:$0xff]
        %v630 = vld [vmem:[#allocation2 + $0x88] sm:$0xff]
        %v631 = vld [vmem:[#allocation2 + $0x90] sm:$0xff]
        %v632 = vld [vmem:[#allocation2 + $0x98] sm:$0xff]
        %v633 = vld [vmem:[#allocation2 + $0xa0] sm:$0xff]
        %v634 = vld [vmem:[#allocation2 + $0xa8] sm:$0xff]
        %v635 = vld [vmem:[#allocation2 + $0xb0] sm:$0xff]
        %v636 = vld [vmem:[#allocation2 + $0xb8] sm:$0xff]
        %v637 = vld [vmem:[#allocation2 + $0xc0] sm:$0xff]
        %v638 = vld [vmem:[#allocation2 + $0xc8] sm:$0xff]
        %v639 = vld [vmem:[#allocation2 + $0xd0] sm:$0xff]
        %v640 = vld [vmem:[#allocation2 + $0xd8] sm:$0xff]
        %v641 = vld [vmem:[#allocation2 + $0xe0] sm:$0xff]
        %v642 = vld [vmem:[#allocation2 + $0xe8] sm:$0xff]
        %v643 = vld [vmem:[#allocation2 + $0xf0] sm:$0xff]
        %v644 = vld [vmem:[#allocation2 + $0xf8] sm:$0xff]
        %v645 = vld [vmem:[#allocation2 + $0x100] sm:$0xff]
        %v646 = vld [vmem:[#allocation2 + $0x108] sm:$0xff]
        %v647 = vld [vmem:[#allocation2 + $0x110] sm:$0xff]
        %v648 = vld [vmem:[#allocation2 + $0x118] sm:$0xff]
        %v649 = vld [vmem:[#allocation2 + $0x120] sm:$0xff]
        %v650 = vld [vmem:[#allocation2 + $0x128] sm:$0xff]
        %v651 = vld [vmem:[#allocation2 + $0x130] sm:$0xff]
        %v652 = vld [vmem:[#allocation2 + $0x138] sm:$0xff]
        %v653 = vld [vmem:[#allocation2 + $0x140] sm:$0xff]
        %v654 = vld [vmem:[#allocation2 + $0x148] sm:$0xff]
        %v655 = vld [vmem:[#allocation2 + $0x150] sm:$0xff]
        %v656 = vld [vmem:[#allocation2 + $0x158] sm:$0xff]
        %v657 = vld [vmem:[#allocation2 + $0x160] sm:$0xff]
        %v658 = vld [vmem:[#allocation2 + $0x168] sm:$0xff]
        %v659 = vld [vmem:[#allocation2 + $0x170] sm:$0xff]
        %v660 = vld [vmem:[#allocation2 + $0x178] sm:$0xff]
        %v661 = vld [vmem:[#allocation2 + $0x180] sm:$0xff]
        %v662 = vld [vmem:[#allocation2 + $0x188] sm:$0xff]
        %v663 = vld [vmem:[#allocation2 + $0x190] sm:$0xff]
        %v664 = vld [vmem:[#allocation2 + $0x198] sm:$0xff]
        %v665 = vld [vmem:[#allocation2 + $0x1a0] sm:$0xff]
        %v666 = vld [vmem:[#allocation2 + $0x1a8] sm:$0xff]
        %v667 = vld [vmem:[#allocation2 + $0x1b0] sm:$0xff]
        %v668 = vld [vmem:[#allocation2 + $0x1b8] sm:$0xff]
        %v669 = vld [vmem:[#allocation2 + $0x1c0] sm:$0xff]
        %v670 = vld [vmem:[#allocation2 + $0x1c8] sm:$0xff]
        %v671 = vld [vmem:[#allocation2 + $0x1d0] sm:$0xff]
        %v672 = vld [vmem:[#allocation2 + $0x1d8] sm:$0xff]
        %v673 = vld [vmem:[#allocation2 + $0x1e0] sm:$0xff]
        %v674 = vld [vmem:[#allocation2 + $0x1e8] sm:$0xff]
        %v675 = vld [vmem:[#allocation2 + $0x1f0] sm:$0xff]
        %v676 = vld [vmem:[#allocation2 + $0x1f8] sm:$0xff]
        %v677 = vld [vmem:[%s488] sm:$0xff]
        %v678 = vld [vmem:[%s488 + $0x8] sm:$0xff]
        %v679 = vld [vmem:[%s488 + $0x10] sm:$0xff]
        %v680 = vld [vmem:[%s488 + $0x18] sm:$0xff]
        %v681 = vld [vmem:[%s488 + $0x20] sm:$0xff]
        %v682 = vld [vmem:[%s488 + $0x28] sm:$0xff]
        %v683 = vld [vmem:[%s488 + $0x30] sm:$0xff]
        %v684 = vld [vmem:[%s488 + $0x38] sm:$0xff]
        %v685 = vld [vmem:[%s488 + $0x40] sm:$0xff]
        %v686 = vld [vmem:[%s488 + $0x48] sm:$0xff]
        %v687 = vld [vmem:[%s488 + $0x50] sm:$0xff]
        %v688 = vld [vmem:[%s488 + $0x58] sm:$0xff]
        %v689 = vld [vmem:[%s488 + $0x60] sm:$0xff]
        %v690 = vld [vmem:[%s488 + $0x68] sm:$0xff]
        %v691 = vld [vmem:[%s488 + $0x70] sm:$0xff]
        %v692 = vld [vmem:[%s488 + $0x78] sm:$0xff]
        %v693 = vld [vmem:[%s488 + $0x80] sm:$0xff]
        %v694 = vld [vmem:[%s488 + $0x88] sm:$0xff]
        %v695 = vld [vmem:[%s488 + $0x90] sm:$0xff]
        %v696 = vld [vmem:[%s488 + $0x98] sm:$0xff]
        %v697 = vld [vmem:[%s488 + $0xa0] sm:$0xff]
        %v698 = vld [vmem:[%s488 + $0xa8] sm:$0xff]
        %v699 = vld [vmem:[%s488 + $0xb0] sm:$0xff]
        %v700 = vld [vmem:[%s488 + $0xb8] sm:$0xff]
        %v701 = vld [vmem:[%s488 + $0xc0] sm:$0xff]
        %v702 = vld [vmem:[%s488 + $0xc8] sm:$0xff]
        %v703 = vld [vmem:[%s488 + $0xd0] sm:$0xff]
        %v704 = vld [vmem:[%s488 + $0xd8] sm:$0xff]
        %v705 = vld [vmem:[%s488 + $0xe0] sm:$0xff]
        %v706 = vld [vmem:[%s488 + $0xe8] sm:$0xff]
        %v707 = vld [vmem:[%s488 + $0xf0] sm:$0xff]
        %v708 = vld [vmem:[%s488 + $0xf8] sm:$0xff]
        %v709 = vld [vmem:[%s488 + $0x100] sm:$0xff]
        %v710 = vld [vmem:[%s488 + $0x108] sm:$0xff]
        %v711 = vld [vmem:[%s488 + $0x110] sm:$0xff]
        %v712 = vld [vmem:[%s488 + $0x118] sm:$0xff]
        %v713 = vld [vmem:[%s488 + $0x120] sm:$0xff]
        %v714 = vld [vmem:[%s488 + $0x128] sm:$0xff]
        %v715 = vld [vmem:[%s488 + $0x130] sm:$0xff]
        %v716 = vld [vmem:[%s488 + $0x138] sm:$0xff]
        %v717 = vld [vmem:[%s488 + $0x140] sm:$0xff]
        %v718 = vld [vmem:[%s488 + $0x148] sm:$0xff]
        %v719 = vld [vmem:[%s488 + $0x150] sm:$0xff]
        %v720 = vld [vmem:[%s488 + $0x158] sm:$0xff]
        %v721 = vld [vmem:[%s488 + $0x160] sm:$0xff]
        %v722 = vld [vmem:[%s488 + $0x168] sm:$0xff]
        %v723 = vld [vmem:[%s488 + $0x170] sm:$0xff]
        %v724 = vld [vmem:[%s488 + $0x178] sm:$0xff]
        %v725 = vld [vmem:[%s488 + $0x180] sm:$0xff]
        %v726 = vld [vmem:[%s488 + $0x188] sm:$0xff]
        %v727 = vld [vmem:[%s488 + $0x190] sm:$0xff]
        %v728 = vld [vmem:[%s488 + $0x198] sm:$0xff]
        %v729 = vld [vmem:[%s488 + $0x1a0] sm:$0xff]
        %v730 = vld [vmem:[%s488 + $0x1a8] sm:$0xff]
        %v731 = vld [vmem:[%s488 + $0x1b0] sm:$0xff]
        %v732 = vld [vmem:[%s488 + $0x1b8] sm:$0xff]
        %v733 = vld [vmem:[%s488 + $0x1c0] sm:$0xff]
        %v734 = vld [vmem:[%s488 + $0x1c8] sm:$0xff]
        %v735 = vld [vmem:[%s488 + $0x1d0] sm:$0xff]
        %v736 = vld [vmem:[%s488 + $0x1d8] sm:$0xff]
        %v737 = vld [vmem:[%s488 + $0x1e0] sm:$0xff]
        %v738 = vld [vmem:[%s488 + $0x1e8] sm:$0xff]
        %v739 = vld [vmem:[%s488 + $0x1f0] sm:$0xff]
        %v740 = vld [vmem:[%s488 + $0x1f8] sm:$0xff]
        %v741 = vld [vmem:[%s488 + $0x200] sm:$0xff]
        %v742 = vld [vmem:[%s488 + $0x208] sm:$0xff]
        %v743 = vld [vmem:[%s488 + $0x210] sm:$0xff]
        %v744 = vld [vmem:[%s488 + $0x218] sm:$0xff]
        %v745 = vld [vmem:[%s488 + $0x220] sm:$0xff]
        %v746 = vld [vmem:[%s488 + $0x228] sm:$0xff]
        %v747 = vld [vmem:[%s488 + $0x230] sm:$0xff]
        %v748 = vld [vmem:[%s488 + $0x238] sm:$0xff]
        %v749 = vld [vmem:[%s488 + $0x240] sm:$0xff]
        %v750 = vld [vmem:[%s488 + $0x248] sm:$0xff]
        %v751 = vld [vmem:[%s488 + $0x250] sm:$0xff]
        %v752 = vld [vmem:[%s488 + $0x258] sm:$0xff]
        %v753 = vld [vmem:[%s488 + $0x260] sm:$0xff]
        %v754 = vld [vmem:[%s488 + $0x268] sm:$0xff]
        %v755 = vld [vmem:[%s488 + $0x270] sm:$0xff]
        %v756 = vld [vmem:[%s488 + $0x278] sm:$0xff]
        %v757 = vld [vmem:[%s488 + $0x280] sm:$0xff]
        %v758 = vld [vmem:[%s488 + $0x288] sm:$0xff]
        %v759 = vld [vmem:[%s488 + $0x290] sm:$0xff]
        %v760 = vld [vmem:[%s488 + $0x298] sm:$0xff]
        %v761 = vld [vmem:[%s488 + $0x2a0] sm:$0xff]
        %v762 = vld [vmem:[%s488 + $0x2a8] sm:$0xff]
        %v763 = vld [vmem:[%s488 + $0x2b0] sm:$0xff]
        %v764 = vld [vmem:[%s488 + $0x2b8] sm:$0xff]
        %v765 = vld [vmem:[%s488 + $0x2c0] sm:$0xff]
        %v766 = vld [vmem:[%s488 + $0x2c8] sm:$0xff]
        %v767 = vld [vmem:[%s488 + $0x2d0] sm:$0xff]
        %v768 = vld [vmem:[%s488 + $0x2d8] sm:$0xff]
        %v769 = vld [vmem:[%s488 + $0x2e0] sm:$0xff]
        %v770 = vld [vmem:[%s488 + $0x2e8] sm:$0xff]
        %v771 = vld [vmem:[%s488 + $0x2f0] sm:$0xff]
        %v772 = vld [vmem:[%s488 + $0x2f8] sm:$0xff]
        %v773 = vld [vmem:[%s488 + $0x300] sm:$0xff]
        %v774 = vld [vmem:[%s488 + $0x308] sm:$0xff]
        %v775 = vld [vmem:[%s488 + $0x310] sm:$0xff]
        %v776 = vld [vmem:[%s488 + $0x318] sm:$0xff]
        %v777 = vld [vmem:[%s488 + $0x320] sm:$0xff]
        %v778 = vld [vmem:[%s488 + $0x328] sm:$0xff]
        %v779 = vld [vmem:[%s488 + $0x330] sm:$0xff]
        %v780 = vld [vmem:[%s488 + $0x338] sm:$0xff]
        %v781 = vld [vmem:[%s488 + $0x340] sm:$0xff]
        %v782 = vld [vmem:[%s488 + $0x348] sm:$0xff]
        %v783 = vld [vmem:[%s488 + $0x350] sm:$0xff]
        %v784 = vld [vmem:[%s488 + $0x358] sm:$0xff]
        %v785 = vld [vmem:[%s488 + $0x360] sm:$0xff]
        %v786 = vld [vmem:[%s488 + $0x368] sm:$0xff]
        %v787 = vld [vmem:[%s488 + $0x370] sm:$0xff]
        %v788 = vld [vmem:[%s488 + $0x378] sm:$0xff]
        %v789 = vld [vmem:[%s488 + $0x380] sm:$0xff]
        %v790 = vld [vmem:[%s488 + $0x388] sm:$0xff]
        %v791 = vld [vmem:[%s488 + $0x390] sm:$0xff]
        %v792 = vld [vmem:[%s488 + $0x398] sm:$0xff]
        %v793 = vld [vmem:[%s488 + $0x3a0] sm:$0xff]
        %v794 = vld [vmem:[%s488 + $0x3a8] sm:$0xff]
        %v795 = vld [vmem:[%s488 + $0x3b0] sm:$0xff]
        %v796 = vld [vmem:[%s488 + $0x3b8] sm:$0xff]
        %v797 = vld [vmem:[%s488 + $0x3c0] sm:$0xff]
        %v798 = vld [vmem:[%s488 + $0x3c8] sm:$0xff]
        %v799 = vld [vmem:[%s488 + $0x3d0] sm:$0xff]
        %v800 = vld [vmem:[%s488 + $0x3d8] sm:$0xff]
        %v801 = vld [vmem:[%s488 + $0x3e0] sm:$0xff]
        %v802 = vld [vmem:[%s488 + $0x3e8] sm:$0xff]
        %v803 = vld [vmem:[%s488 + $0x3f0] sm:$0xff]
        %v804 = vld [vmem:[%s488 + $0x3f8] sm:$0xff]
        %v805 = vld [vmem:[%s532] sm:$0xf]
        %v806 = vld [vmem:[%s532 + $0x4] sm:$0xf]
        %v807 = vld [vmem:[%s532 + $0x8] sm:$0xf]
        %v808 = vld [vmem:[%s532 + $0xc] sm:$0xf]
        %v809 = vld [vmem:[%s532 + $0x10] sm:$0xf]
        %v810 = vld [vmem:[%s532 + $0x14] sm:$0xf]
        %v811 = vld [vmem:[%s532 + $0x18] sm:$0xf]
        %v812 = vld [vmem:[%s532 + $0x1c] sm:$0xf]
        %v813 = vld [vmem:[%s532 + $0x20] sm:$0xf]
        %v814 = vld [vmem:[%s532 + $0x24] sm:$0xf]
        %v815 = vld [vmem:[%s532 + $0x28] sm:$0xf]
        %v816 = vld [vmem:[%s532 + $0x2c] sm:$0xf]
        %v817 = vld [vmem:[%s532 + $0x30] sm:$0xf]
        %v818 = vld [vmem:[%s532 + $0x34] sm:$0xf]
        %v819 = vld [vmem:[%s532 + $0x38] sm:$0xf]
        %v820 = vld [vmem:[%s532 + $0x3c] sm:$0xf]
        %v821 = vld [vmem:[%s532 + $0x40] sm:$0xf]
        %v822 = vld [vmem:[%s532 + $0x44] sm:$0xf]
        %v823 = vld [vmem:[%s532 + $0x48] sm:$0xf]
        %v824 = vld [vmem:[%s532 + $0x4c] sm:$0xf]
        %v825 = vld [vmem:[%s532 + $0x50] sm:$0xf]
        %v826 = vld [vmem:[%s532 + $0x54] sm:$0xf]
        %v827 = vld [vmem:[%s532 + $0x58] sm:$0xf]
        %v828 = vld [vmem:[%s532 + $0x5c] sm:$0xf]
        %v829 = vld [vmem:[%s532 + $0x60] sm:$0xf]
        %v830 = vld [vmem:[%s532 + $0x64] sm:$0xf]
        %v831 = vld [vmem:[%s532 + $0x68] sm:$0xf]
        %v832 = vld [vmem:[%s532 + $0x6c] sm:$0xf]
        %v833 = vld [vmem:[%s532 + $0x70] sm:$0xf]
        %v834 = vld [vmem:[%s532 + $0x74] sm:$0xf]
        %v835 = vld [vmem:[%s532 + $0x78] sm:$0xf]
        %v836 = vld [vmem:[%s532 + $0x7c] sm:$0xf]
        %v837 = vld [vmem:[%s532 + $0x80] sm:$0xf]
        %v838 = vld [vmem:[%s532 + $0x84] sm:$0xf]
        %v839 = vld [vmem:[%s532 + $0x88] sm:$0xf]
        %v840 = vld [vmem:[%s532 + $0x8c] sm:$0xf]
        %v841 = vld [vmem:[%s532 + $0x90] sm:$0xf]
        %v842 = vld [vmem:[%s532 + $0x94] sm:$0xf]
        %v843 = vld [vmem:[%s532 + $0x98] sm:$0xf]
        %v844 = vld [vmem:[%s532 + $0x9c] sm:$0xf]
        %v845 = vld [vmem:[%s532 + $0xa0] sm:$0xf]
        %v846 = vld [vmem:[%s532 + $0xa4] sm:$0xf]
        %v847 = vld [vmem:[%s532 + $0xa8] sm:$0xf]
        %v848 = vld [vmem:[%s532 + $0xac] sm:$0xf]
        %v849 = vld [vmem:[%s532 + $0xb0] sm:$0xf]
        %v850 = vld [vmem:[%s532 + $0xb4] sm:$0xf]
        %v851 = vld [vmem:[%s532 + $0xb8] sm:$0xf]
        %v852 = vld [vmem:[%s532 + $0xbc] sm:$0xf]
        %v853 = vld [vmem:[%s532 + $0xc0] sm:$0xf]
        %v854 = vld [vmem:[%s532 + $0xc4] sm:$0xf]
        %v855 = vld [vmem:[%s532 + $0xc8] sm:$0xf]
        %v856 = vld [vmem:[%s532 + $0xcc] sm:$0xf]
        %v857 = vld [vmem:[%s532 + $0xd0] sm:$0xf]
        %v858 = vld [vmem:[%s532 + $0xd4] sm:$0xf]
        %v859 = vld [vmem:[%s532 + $0xd8] sm:$0xf]
        %v860 = vld [vmem:[%s532 + $0xdc] sm:$0xf]
        %v861 = vld [vmem:[%s532 + $0xe0] sm:$0xf]
        %v862 = vld [vmem:[%s532 + $0xe4] sm:$0xf]
        %v863 = vld [vmem:[%s532 + $0xe8] sm:$0xf]
        %v864 = vld [vmem:[%s532 + $0xec] sm:$0xf]
        %v865 = vld [vmem:[%s532 + $0xf0] sm:$0xf]
        %v866 = vld [vmem:[%s532 + $0xf4] sm:$0xf]
        %v867 = vld [vmem:[%s532 + $0xf8] sm:$0xf]
        %v868 = vld [vmem:[%s532 + $0xfc] sm:$0xf]
        %v997 = vunpack.c.l.b16 %v677
        %v998 = vunpack.c.h.b16 %v677
        %v999 = vunpack.c.l.b16 %v678
        %v1000 = vunpack.c.h.b16 %v678
        %v1001 = vunpack.c.l.b16 %v679
        %v1002 = vunpack.c.h.b16 %v679
        %v1003 = vunpack.c.l.b16 %v680
        %v1004 = vunpack.c.h.b16 %v680
        %v1005 = vunpack.c.l.b16 %v681
        %v1006 = vunpack.c.h.b16 %v681
        %v1007 = vunpack.c.l.b16 %v682
        %v1008 = vunpack.c.h.b16 %v682
        %v1009 = vunpack.c.l.b16 %v683
        %v1010 = vunpack.c.h.b16 %v683
        %v1011 = vunpack.c.l.b16 %v684
        %v1012 = vunpack.c.h.b16 %v684
        %v1013 = vunpack.c.l.b16 %v685
        %v1014 = vunpack.c.h.b16 %v685
        %v1015 = vunpack.c.l.b16 %v686
        %v1016 = vunpack.c.h.b16 %v686
        %v1017 = vunpack.c.l.b16 %v687
        %v1018 = vunpack.c.h.b16 %v687
        %v1019 = vunpack.c.l.b16 %v688
        %v1020 = vunpack.c.h.b16 %v688
        %v1021 = vunpack.c.l.b16 %v689
        %v1022 = vunpack.c.h.b16 %v689
        %v1023 = vunpack.c.l.b16 %v690
        %v1024 = vunpack.c.h.b16 %v690
        %v1025 = vunpack.c.l.b16 %v691
        %v1026 = vunpack.c.h.b16 %v691
        %v1027 = vunpack.c.l.b16 %v692
        %v1028 = vunpack.c.h.b16 %v692
        %v1029 = vunpack.c.l.b16 %v693
        %v1030 = vunpack.c.h.b16 %v693
        %v1031 = vunpack.c.l.b16 %v694
        %v1032 = vunpack.c.h.b16 %v694
        %v1033 = vunpack.c.l.b16 %v695
        %v1034 = vunpack.c.h.b16 %v695
        %v1035 = vunpack.c.l.b16 %v696
        %v1036 = vunpack.c.h.b16 %v696
        %v1037 = vunpack.c.l.b16 %v697
        %v1038 = vunpack.c.h.b16 %v697
        %v1039 = vunpack.c.l.b16 %v698
        %v1040 = vunpack.c.h.b16 %v698
        %v1041 = vunpack.c.l.b16 %v699
        %v1042 = vunpack.c.h.b16 %v699
        %v1043 = vunpack.c.l.b16 %v700
        %v1044 = vunpack.c.h.b16 %v700
        %v1045 = vunpack.c.l.b16 %v701
        %v1046 = vunpack.c.h.b16 %v701
        %v1047 = vunpack.c.l.b16 %v702
        %v1048 = vunpack.c.h.b16 %v702
        %v1049 = vunpack.c.l.b16 %v703
        %v1050 = vunpack.c.h.b16 %v703
        %v1051 = vunpack.c.l.b16 %v704
        %v1052 = vunpack.c.h.b16 %v704
        %v1053 = vunpack.c.l.b16 %v705
        %v1054 = vunpack.c.h.b16 %v705
        %v1055 = vunpack.c.l.b16 %v706
        %v1056 = vunpack.c.h.b16 %v706
        %v1057 = vunpack.c.l.b16 %v707
        %v1058 = vunpack.c.h.b16 %v707
        %v1059 = vunpack.c.l.b16 %v708
        %v1060 = vunpack.c.h.b16 %v708
        %v1061 = vunpack.c.l.b16 %v709
        %v1062 = vunpack.c.h.b16 %v709
        %v1063 = vunpack.c.l.b16 %v710
        %v1064 = vunpack.c.h.b16 %v710
        %v1065 = vunpack.c.l.b16 %v711
        %v1066 = vunpack.c.h.b16 %v711
        %v1067 = vunpack.c.l.b16 %v712
        %v1068 = vunpack.c.h.b16 %v712
        %v1069 = vunpack.c.l.b16 %v713
        %v1070 = vunpack.c.h.b16 %v713
        %v1071 = vunpack.c.l.b16 %v714
        %v1072 = vunpack.c.h.b16 %v714
        %v1073 = vunpack.c.l.b16 %v715
        %v1074 = vunpack.c.h.b16 %v715
        %v1075 = vunpack.c.l.b16 %v716
        %v1076 = vunpack.c.h.b16 %v716
        %v1077 = vunpack.c.l.b16 %v717
        %v1078 = vunpack.c.h.b16 %v717
        %v1079 = vunpack.c.l.b16 %v718
        %v1080 = vunpack.c.h.b16 %v718
        %v1081 = vunpack.c.l.b16 %v719
        %v1082 = vunpack.c.h.b16 %v719
        %v1083 = vunpack.c.l.b16 %v720
        %v1084 = vunpack.c.h.b16 %v720
        %v1085 = vunpack.c.l.b16 %v721
        %v1086 = vunpack.c.h.b16 %v721
        %v1087 = vunpack.c.l.b16 %v722
        %v1088 = vunpack.c.h.b16 %v722
        %v1089 = vunpack.c.l.b16 %v723
        %v1090 = vunpack.c.h.b16 %v723
        %v1091 = vunpack.c.l.b16 %v724
        %v1092 = vunpack.c.h.b16 %v724
        %v1093 = vunpack.c.l.b16 %v725
        %v1094 = vunpack.c.h.b16 %v725
        %v1095 = vunpack.c.l.b16 %v726
        %v1096 = vunpack.c.h.b16 %v726
        %v1097 = vunpack.c.l.b16 %v727
        %v1098 = vunpack.c.h.b16 %v727
        %v1099 = vunpack.c.l.b16 %v728
        %v1100 = vunpack.c.h.b16 %v728
        %v1101 = vunpack.c.l.b16 %v729
        %v1102 = vunpack.c.h.b16 %v729
        %v1103 = vunpack.c.l.b16 %v730
        %v1104 = vunpack.c.h.b16 %v730
        %v1105 = vunpack.c.l.b16 %v731
        %v1106 = vunpack.c.h.b16 %v731
        %v1107 = vunpack.c.l.b16 %v732
        %v1108 = vunpack.c.h.b16 %v732
        %v1109 = vunpack.c.l.b16 %v733
        %v1110 = vunpack.c.h.b16 %v733
        %v1111 = vunpack.c.l.b16 %v734
        %v1112 = vunpack.c.h.b16 %v734
        %v1113 = vunpack.c.l.b16 %v735
        %v1114 = vunpack.c.h.b16 %v735
        %v1115 = vunpack.c.l.b16 %v736
        %v1116 = vunpack.c.h.b16 %v736
        %v1117 = vunpack.c.l.b16 %v737
        %v1118 = vunpack.c.h.b16 %v737
        %v1119 = vunpack.c.l.b16 %v738
        %v1120 = vunpack.c.h.b16 %v738
        %v1121 = vunpack.c.l.b16 %v739
        %v1122 = vunpack.c.h.b16 %v739
        %v1123 = vunpack.c.l.b16 %v740
        %v1124 = vunpack.c.h.b16 %v740
        %v1125 = vunpack.c.l.b16 %v741
        %v1126 = vunpack.c.h.b16 %v741
        %v1127 = vunpack.c.l.b16 %v742
        %v1128 = vunpack.c.h.b16 %v742
        %v1129 = vunpack.c.l.b16 %v743
        %v1130 = vunpack.c.h.b16 %v743
        %v1131 = vunpack.c.l.b16 %v744
        %v1132 = vunpack.c.h.b16 %v744
        %v1133 = vunpack.c.l.b16 %v745
        %v1134 = vunpack.c.h.b16 %v745
        %v1135 = vunpack.c.l.b16 %v746
        %v1136 = vunpack.c.h.b16 %v746
        %v1137 = vunpack.c.l.b16 %v747
        %v1138 = vunpack.c.h.b16 %v747
        %v1139 = vunpack.c.l.b16 %v748
        %v1140 = vunpack.c.h.b16 %v748
        %v1141 = vunpack.c.l.b16 %v749
        %v1142 = vunpack.c.h.b16 %v749
        %v1143 = vunpack.c.l.b16 %v750
        %v1144 = vunpack.c.h.b16 %v750
        %v1145 = vunpack.c.l.b16 %v751
        %v1146 = vunpack.c.h.b16 %v751
        %v1147 = vunpack.c.l.b16 %v752
        %v1148 = vunpack.c.h.b16 %v752
        %v1149 = vunpack.c.l.b16 %v753
        %v1150 = vunpack.c.h.b16 %v753
        %v1151 = vunpack.c.l.b16 %v754
        %v1152 = vunpack.c.h.b16 %v754
        %v1153 = vunpack.c.l.b16 %v755
        %v1154 = vunpack.c.h.b16 %v755
        %v1155 = vunpack.c.l.b16 %v756
        %v1156 = vunpack.c.h.b16 %v756
        %v1157 = vunpack.c.l.b16 %v757
        %v1158 = vunpack.c.h.b16 %v757
        %v1159 = vunpack.c.l.b16 %v758
        %v1160 = vunpack.c.h.b16 %v758
        %v1161 = vunpack.c.l.b16 %v759
        %v1162 = vunpack.c.h.b16 %v759
        %v1163 = vunpack.c.l.b16 %v760
        %v1164 = vunpack.c.h.b16 %v760
        %v1165 = vunpack.c.l.b16 %v761
        %v1166 = vunpack.c.h.b16 %v761
        %v1167 = vunpack.c.l.b16 %v762
        %v1168 = vunpack.c.h.b16 %v762
        %v1169 = vunpack.c.l.b16 %v763
        %v1170 = vunpack.c.h.b16 %v763
        %v1171 = vunpack.c.l.b16 %v764
        %v1172 = vunpack.c.h.b16 %v764
        %v1173 = vunpack.c.l.b16 %v765
        %v1174 = vunpack.c.h.b16 %v765
        %v1175 = vunpack.c.l.b16 %v766
        %v1176 = vunpack.c.h.b16 %v766
        %v1177 = vunpack.c.l.b16 %v767
        %v1178 = vunpack.c.h.b16 %v767
        %v1179 = vunpack.c.l.b16 %v768
        %v1180 = vunpack.c.h.b16 %v768
        %v1181 = vunpack.c.l.b16 %v769
        %v1182 = vunpack.c.h.b16 %v769
        %v1183 = vunpack.c.l.b16 %v770
        %v1184 = vunpack.c.h.b16 %v770
        %v1185 = vunpack.c.l.b16 %v771
        %v1186 = vunpack.c.h.b16 %v771
        %v1187 = vunpack.c.l.b16 %v772
        %v1188 = vunpack.c.h.b16 %v772
        %v1189 = vunpack.c.l.b16 %v773
        %v1190 = vunpack.c.h.b16 %v773
        %v1191 = vunpack.c.l.b16 %v774
        %v1192 = vunpack.c.h.b16 %v774
        %v1193 = vunpack.c.l.b16 %v775
        %v1194 = vunpack.c.h.b16 %v775
        %v1195 = vunpack.c.l.b16 %v776
        %v1196 = vunpack.c.h.b16 %v776
        %v1197 = vunpack.c.l.b16 %v777
        %v1198 = vunpack.c.h.b16 %v777
        %v1199 = vunpack.c.l.b16 %v778
        %v1200 = vunpack.c.h.b16 %v778
        %v1201 = vunpack.c.l.b16 %v779
        %v1202 = vunpack.c.h.b16 %v779
        %v1203 = vunpack.c.l.b16 %v780
        %v1204 = vunpack.c.h.b16 %v780
        %v1205 = vunpack.c.l.b16 %v781
        %v1206 = vunpack.c.h.b16 %v781
        %v1207 = vunpack.c.l.b16 %v782
        %v1208 = vunpack.c.h.b16 %v782
        %v1209 = vunpack.c.l.b16 %v783
        %v1210 = vunpack.c.h.b16 %v783
        %v1211 = vunpack.c.l.b16 %v784
        %v1212 = vunpack.c.h.b16 %v784
        %v1213 = vunpack.c.l.b16 %v785
        %v1214 = vunpack.c.h.b16 %v785
        %v1215 = vunpack.c.l.b16 %v786
        %v1216 = vunpack.c.h.b16 %v786
        %v1217 = vunpack.c.l.b16 %v787
        %v1218 = vunpack.c.h.b16 %v787
        %v1219 = vunpack.c.l.b16 %v788
        %v1220 = vunpack.c.h.b16 %v788
        %v1221 = vunpack.c.l.b16 %v789
        %v1222 = vunpack.c.h.b16 %v789
        %v1223 = vunpack.c.l.b16 %v790
        %v1224 = vunpack.c.h.b16 %v790
        %v1225 = vunpack.c.l.b16 %v791
        %v1226 = vunpack.c.h.b16 %v791
        %v1227 = vunpack.c.l.b16 %v792
        %v1228 = vunpack.c.h.b16 %v792
        %v1229 = vunpack.c.l.b16 %v793
        %v1230 = vunpack.c.h.b16 %v793
        %v1231 = vunpack.c.l.b16 %v794
        %v1232 = vunpack.c.h.b16 %v794
        %v1233 = vunpack.c.l.b16 %v795
        %v1234 = vunpack.c.h.b16 %v795
        %v1235 = vunpack.c.l.b16 %v796
        %v1236 = vunpack.c.h.b16 %v796
        %v1237 = vunpack.c.l.b16 %v797
        %v1238 = vunpack.c.h.b16 %v797
        %v1239 = vunpack.c.l.b16 %v798
        %v1240 = vunpack.c.h.b16 %v798
        %v1241 = vunpack.c.l.b16 %v799
        %v1242 = vunpack.c.h.b16 %v799
        %v1243 = vunpack.c.l.b16 %v800
        %v1244 = vunpack.c.h.b16 %v800
        %v1245 = vunpack.c.l.b16 %v801
        %v1246 = vunpack.c.h.b16 %v801
        %v1247 = vunpack.c.l.b16 %v802
        %v1248 = vunpack.c.h.b16 %v802
        %v1249 = vunpack.c.l.b16 %v803
        %v1250 = vunpack.c.h.b16 %v803
        %v1251 = vunpack.c.l.b16 %v804
        %v1252 = vunpack.c.h.b16 %v804
        %v1253 = vpack.c.b16 %v1001, %v997
        %v1254 = vpack.c.b16 %v1002, %v998
        %v1255 = vpack.c.b16 %v1003, %v999
        %v1256 = vpack.c.b16 %v1004, %v1000
        %v1257 = vpack.c.b16 %v1009, %v1005
        %v1258 = vpack.c.b16 %v1010, %v1006
        %v1259 = vpack.c.b16 %v1011, %v1007
        %v1260 = vpack.c.b16 %v1012, %v1008
        %v1261 = vpack.c.b16 %v1017, %v1013
        %v1262 = vpack.c.b16 %v1018, %v1014
        %v1263 = vpack.c.b16 %v1019, %v1015
        %v1264 = vpack.c.b16 %v1020, %v1016
        %v1265 = vpack.c.b16 %v1025, %v1021
        %v1266 = vpack.c.b16 %v1026, %v1022
        %v1267 = vpack.c.b16 %v1027, %v1023
        %v1268 = vpack.c.b16 %v1028, %v1024
        %v1269 = vpack.c.b16 %v1033, %v1029
        %v1270 = vpack.c.b16 %v1034, %v1030
        %v1271 = vpack.c.b16 %v1035, %v1031
        %v1272 = vpack.c.b16 %v1036, %v1032
        %v1273 = vpack.c.b16 %v1041, %v1037
        %v1274 = vpack.c.b16 %v1042, %v1038
        %v1275 = vpack.c.b16 %v1043, %v1039
        %v1276 = vpack.c.b16 %v1044, %v1040
        %v1277 = vpack.c.b16 %v1049, %v1045
        %v1278 = vpack.c.b16 %v1050, %v1046
        %v1279 = vpack.c.b16 %v1051, %v1047
        %v1280 = vpack.c.b16 %v1052, %v1048
        %v1281 = vpack.c.b16 %v1057, %v1053
        %v1282 = vpack.c.b16 %v1058, %v1054
        %v1283 = vpack.c.b16 %v1059, %v1055
        %v1284 = vpack.c.b16 %v1060, %v1056
        %v1285 = vpack.c.b16 %v1065, %v1061
        %v1286 = vpack.c.b16 %v1066, %v1062
        %v1287 = vpack.c.b16 %v1067, %v1063
        %v1288 = vpack.c.b16 %v1068, %v1064
        %v1289 = vpack.c.b16 %v1073, %v1069
        %v1290 = vpack.c.b16 %v1074, %v1070
        %v1291 = vpack.c.b16 %v1075, %v1071
        %v1292 = vpack.c.b16 %v1076, %v1072
        %v1293 = vpack.c.b16 %v1081, %v1077
        %v1294 = vpack.c.b16 %v1082, %v1078
        %v1295 = vpack.c.b16 %v1083, %v1079
        %v1296 = vpack.c.b16 %v1084, %v1080
        %v1297 = vpack.c.b16 %v1089, %v1085
        %v1298 = vpack.c.b16 %v1090, %v1086
        %v1299 = vpack.c.b16 %v1091, %v1087
        %v1300 = vpack.c.b16 %v1092, %v1088
        %v1301 = vpack.c.b16 %v1097, %v1093
        %v1302 = vpack.c.b16 %v1098, %v1094
        %v1303 = vpack.c.b16 %v1099, %v1095
        %v1304 = vpack.c.b16 %v1100, %v1096
        %v1305 = vpack.c.b16 %v1105, %v1101
        %v1306 = vpack.c.b16 %v1106, %v1102
        %v1307 = vpack.c.b16 %v1107, %v1103
        %v1308 = vpack.c.b16 %v1108, %v1104
        %v1309 = vpack.c.b16 %v1113, %v1109
        %v1310 = vpack.c.b16 %v1114, %v1110
        %v1311 = vpack.c.b16 %v1115, %v1111
        %v1312 = vpack.c.b16 %v1116, %v1112
        %v1313 = vpack.c.b16 %v1121, %v1117
        %v1314 = vpack.c.b16 %v1122, %v1118
        %v1315 = vpack.c.b16 %v1123, %v1119
        %v1316 = vpack.c.b16 %v1124, %v1120
        %v1317 = vpack.c.b16 %v1129, %v1125
        %v1318 = vpack.c.b16 %v1130, %v1126
        %v1319 = vpack.c.b16 %v1131, %v1127
        %v1320 = vpack.c.b16 %v1132, %v1128
        %v1321 = vpack.c.b16 %v1137, %v1133
        %v1322 = vpack.c.b16 %v1138, %v1134
        %v1323 = vpack.c.b16 %v1139, %v1135
        %v1324 = vpack.c.b16 %v1140, %v1136
        %v1325 = vpack.c.b16 %v1145, %v1141
        %v1326 = vpack.c.b16 %v1146, %v1142
        %v1327 = vpack.c.b16 %v1147, %v1143
        %v1328 = vpack.c.b16 %v1148, %v1144
        %v1329 = vpack.c.b16 %v1153, %v1149
        %v1330 = vpack.c.b16 %v1154, %v1150
        %v1331 = vpack.c.b16 %v1155, %v1151
        %v1332 = vpack.c.b16 %v1156, %v1152
        %v1333 = vpack.c.b16 %v1161, %v1157
        %v1334 = vpack.c.b16 %v1162, %v1158
        %v1335 = vpack.c.b16 %v1163, %v1159
        %v1336 = vpack.c.b16 %v1164, %v1160
        %v1337 = vpack.c.b16 %v1169, %v1165
        %v1338 = vpack.c.b16 %v1170, %v1166
        %v1339 = vpack.c.b16 %v1171, %v1167
        %v1340 = vpack.c.b16 %v1172, %v1168
        %v1341 = vpack.c.b16 %v1177, %v1173
        %v1342 = vpack.c.b16 %v1178, %v1174
        %v1343 = vpack.c.b16 %v1179, %v1175
        %v1344 = vpack.c.b16 %v1180, %v1176
        %v1345 = vpack.c.b16 %v1185, %v1181
        %v1346 = vpack.c.b16 %v1186, %v1182
        %v1347 = vpack.c.b16 %v1187, %v1183
        %v1348 = vpack.c.b16 %v1188, %v1184
        %v1349 = vpack.c.b16 %v1193, %v1189
        %v1350 = vpack.c.b16 %v1194, %v1190
        %v1351 = vpack.c.b16 %v1195, %v1191
        %v1352 = vpack.c.b16 %v1196, %v1192
        %v1353 = vpack.c.b16 %v1201, %v1197
        %v1354 = vpack.c.b16 %v1202, %v1198
        %v1355 = vpack.c.b16 %v1203, %v1199
        %v1356 = vpack.c.b16 %v1204, %v1200
        %v1357 = vpack.c.b16 %v1209, %v1205
        %v1358 = vpack.c.b16 %v1210, %v1206
        %v1359 = vpack.c.b16 %v1211, %v1207
        %v1360 = vpack.c.b16 %v1212, %v1208
        %v1361 = vpack.c.b16 %v1217, %v1213
        %v1362 = vpack.c.b16 %v1218, %v1214
        %v1363 = vpack.c.b16 %v1219, %v1215
        %v1364 = vpack.c.b16 %v1220, %v1216
        %v1365 = vpack.c.b16 %v1225, %v1221
        %v1366 = vpack.c.b16 %v1226, %v1222
        %v1367 = vpack.c.b16 %v1227, %v1223
        %v1368 = vpack.c.b16 %v1228, %v1224
        %v1369 = vpack.c.b16 %v1233, %v1229
        %v1370 = vpack.c.b16 %v1234, %v1230
        %v1371 = vpack.c.b16 %v1235, %v1231
        %v1372 = vpack.c.b16 %v1236, %v1232
        %v1373 = vpack.c.b16 %v1241, %v1237
        %v1374 = vpack.c.b16 %v1242, %v1238
        %v1375 = vpack.c.b16 %v1243, %v1239
        %v1376 = vpack.c.b16 %v1244, %v1240
        %v1377 = vpack.c.b16 %v1249, %v1245
        %v1378 = vpack.c.b16 %v1250, %v1246
        %v1379 = vpack.c.b16 %v1251, %v1247
        %v1380 = vpack.c.b16 %v1252, %v1248
        %v1573 = vunpack.c.l.b16 %v805
        %v1574 = vunpack.c.l.b16 %v806
        %v1575 = vunpack.c.l.b16 %v807
        %v1576 = vunpack.c.l.b16 %v808
        %v1577 = vunpack.c.l.b16 %v809
        %v1578 = vunpack.c.l.b16 %v810
        %v1579 = vunpack.c.l.b16 %v811
        %v1580 = vunpack.c.l.b16 %v812
        %v1581 = vunpack.c.l.b16 %v813
        %v1582 = vunpack.c.l.b16 %v814
        %v1583 = vunpack.c.l.b16 %v815
        %v1584 = vunpack.c.l.b16 %v816
        %v1585 = vunpack.c.l.b16 %v817
        %v1586 = vunpack.c.l.b16 %v818
        %v1587 = vunpack.c.l.b16 %v819
        %v1588 = vunpack.c.l.b16 %v820
        %v1589 = vunpack.c.l.b16 %v821
        %v1590 = vunpack.c.l.b16 %v822
        %v1591 = vunpack.c.l.b16 %v823
        %v1592 = vunpack.c.l.b16 %v824
        %v1593 = vunpack.c.l.b16 %v825
        %v1594 = vunpack.c.l.b16 %v826
        %v1595 = vunpack.c.l.b16 %v827
        %v1596 = vunpack.c.l.b16 %v828
        %v1597 = vunpack.c.l.b16 %v829
        %v1598 = vunpack.c.l.b16 %v830
        %v1599 = vunpack.c.l.b16 %v831
        %v1600 = vunpack.c.l.b16 %v832
        %v1601 = vunpack.c.l.b16 %v833
        %v1602 = vunpack.c.l.b16 %v834
        %v1603 = vunpack.c.l.b16 %v835
        %v1604 = vunpack.c.l.b16 %v836
        %v1605 = vunpack.c.l.b16 %v837
        %v1606 = vunpack.c.l.b16 %v838
        %v1607 = vunpack.c.l.b16 %v839
        %v1608 = vunpack.c.l.b16 %v840
        %v1609 = vunpack.c.l.b16 %v841
        %v1610 = vunpack.c.l.b16 %v842
        %v1611 = vunpack.c.l.b16 %v843
        %v1612 = vunpack.c.l.b16 %v844
        %v1613 = vunpack.c.l.b16 %v845
        %v1614 = vunpack.c.l.b16 %v846
        %v1615 = vunpack.c.l.b16 %v847
        %v1616 = vunpack.c.l.b16 %v848
        %v1617 = vunpack.c.l.b16 %v849
        %v1618 = vunpack.c.l.b16 %v850
        %v1619 = vunpack.c.l.b16 %v851
        %v1620 = vunpack.c.l.b16 %v852
        %v1621 = vunpack.c.l.b16 %v853
        %v1622 = vunpack.c.l.b16 %v854
        %v1623 = vunpack.c.l.b16 %v855
        %v1624 = vunpack.c.l.b16 %v856
        %v1625 = vunpack.c.l.b16 %v857
        %v1626 = vunpack.c.l.b16 %v858
        %v1627 = vunpack.c.l.b16 %v859
        %v1628 = vunpack.c.l.b16 %v860
        %v1629 = vunpack.c.l.b16 %v861
        %v1630 = vunpack.c.l.b16 %v862
        %v1631 = vunpack.c.l.b16 %v863
        %v1632 = vunpack.c.l.b16 %v864
        %v1633 = vunpack.c.l.b16 %v865
        %v1634 = vunpack.c.l.b16 %v866
        %v1635 = vunpack.c.l.b16 %v867
        %v1636 = vunpack.c.l.b16 %v868
        %v1637 = vpack.c.b16 %v1574, %v1573
        %v1638 = vpack.c.b16 %v1576, %v1575
        %v1639 = vpack.c.b16 %v1578, %v1577
        %v1640 = vpack.c.b16 %v1580, %v1579
        %v1641 = vpack.c.b16 %v1582, %v1581
        %v1642 = vpack.c.b16 %v1584, %v1583
        %v1643 = vpack.c.b16 %v1586, %v1585
        %v1644 = vpack.c.b16 %v1588, %v1587
        %v1645 = vpack.c.b16 %v1590, %v1589
        %v1646 = vpack.c.b16 %v1592, %v1591
        %v1647 = vpack.c.b16 %v1594, %v1593
        %v1648 = vpack.c.b16 %v1596, %v1595
        %v1649 = vpack.c.b16 %v1598, %v1597
        %v1650 = vpack.c.b16 %v1600, %v1599
        %v1651 = vpack.c.b16 %v1602, %v1601
        %v1652 = vpack.c.b16 %v1604, %v1603
        %v1653 = vpack.c.b16 %v1606, %v1605
        %v1654 = vpack.c.b16 %v1608, %v1607
        %v1655 = vpack.c.b16 %v1610, %v1609
        %v1656 = vpack.c.b16 %v1612, %v1611
        %v1657 = vpack.c.b16 %v1614, %v1613
        %v1658 = vpack.c.b16 %v1616, %v1615
        %v1659 = vpack.c.b16 %v1618, %v1617
        %v1660 = vpack.c.b16 %v1620, %v1619
        %v1661 = vpack.c.b16 %v1622, %v1621
        %v1662 = vpack.c.b16 %v1624, %v1623
        %v1663 = vpack.c.b16 %v1626, %v1625
        %v1664 = vpack.c.b16 %v1628, %v1627
        %v1665 = vpack.c.b16 %v1630, %v1629
        %v1666 = vpack.c.b16 %v1632, %v1631
        %v1667 = vpack.c.b16 %v1634, %v1633
        %v1668 = vpack.c.b16 %v1636, %v1635
        %1701 = vmatprep.subr.bf16.mxu0 0
        %1702 = vmatpush1.bf16.msra.mxu0 %v1637
        %1703 = vmatprep.subr.bf16.mxu0 0
        %1704 = vmatpush1.bf16.msra.mxu0 %v1638
        %1705 = vmatprep.subr.bf16.mxu0 0
        %1706 = vmatpush1.bf16.msra.mxu0 %v1639
        %1707 = vmatprep.subr.bf16.mxu0 0
        %1708 = vmatpush1.bf16.msra.mxu0 %v1640
        %1709 = vmatprep.subr.bf16.mxu0 0
        %1710 = vmatpush1.bf16.msra.mxu0 %v1641
        %1711 = vmatprep.subr.bf16.mxu0 0
        %1712 = vmatpush1.bf16.msra.mxu0 %v1642
        %1713 = vmatprep.subr.bf16.mxu0 0
        %1714 = vmatpush1.bf16.msra.mxu0 %v1643
        %1715 = vmatprep.subr.bf16.mxu0 0
        %1716 = vmatpush1.bf16.msra.mxu0 %v1644
        %1717 = vmatprep.subr.bf16.mxu0 0
        %1718 = vmatpush1.bf16.msra.mxu0 %v1645
        %1719 = vmatprep.subr.bf16.mxu0 0
        %1720 = vmatpush1.bf16.msra.mxu0 %v1646
        %1721 = vmatprep.subr.bf16.mxu0 0
        %1722 = vmatpush1.bf16.msra.mxu0 %v1647
        %1723 = vmatprep.subr.bf16.mxu0 0
        %1724 = vmatpush1.bf16.msra.mxu0 %v1648
        %1725 = vmatprep.subr.bf16.mxu0 0
        %1726 = vmatpush1.bf16.msra.mxu0 %v1649
        %1727 = vmatprep.subr.bf16.mxu0 0
        %1728 = vmatpush1.bf16.msra.mxu0 %v1650
        %1729 = vmatprep.subr.bf16.mxu0 0
        %1730 = vmatpush1.bf16.msra.mxu0 %v1651
        %1731 = vmatprep.subr.bf16.mxu0 0
        %1732 = vmatpush1.bf16.msra.mxu0 %v1652
        %1733 = vmatprep.mubr.bf16.mxu0 %v1254
        %1734 = vmatmul.mubr.bf16.gmra.mrb[0].mxu0 %v1253
        %v1735 = vpop.f32.mrb[0].mxu0
        %v1736 = vadd.f32 0.0, %v1735
        %v1737 = vpop.f32.mrb[0].mxu0
        %v1738 = vpop.f32.mrb[0].mxu0
        %v1739 = vadd.f32 0.0, %v1738
        %v1740 = vpop.f32.mrb[0].mxu0
        %1741 = vmatprep.mubr.bf16.mxu0 %v1258
        %1742 = vmatmul.mubr.bf16.gmra.mrb[0].mxu0 %v1257
        %v1743 = vpop.f32.mrb[0].mxu0
        %v1744 = vadd.f32 0.0, %v1743
        %v1745 = vpop.f32.mrb[0].mxu0
        %v1746 = vpop.f32.mrb[0].mxu0
        %v1747 = vadd.f32 0.0, %v1746
        %v1748 = vpop.f32.mrb[0].mxu0
        %1749 = vmatprep.mubr.bf16.mxu0 %v1262
        %1750 = vmatmul.mubr.bf16.gmra.mrb[0].mxu0 %v1261
        %v1751 = vpop.f32.mrb[0].mxu0
        %v1752 = vadd.f32 0.0, %v1751
        %v1753 = vpop.f32.mrb[0].mxu0
        %v1754 = vpop.f32.mrb[0].mxu0
        %v1755 = vadd.f32 0.0, %v1754
        %v1756 = vpop.f32.mrb[0].mxu0
        %1757 = vmatprep.mubr.bf16.mxu0 %v1266
        %1758 = vmatmul.mubr.bf16.gmra.mrb[0].mxu0 %v1265
        %v1759 = vpop.f32.mrb[0].mxu0
        %v1760 = vadd.f32 0.0, %v1759
        %v1761 = vpop.f32.mrb[0].mxu0
        %v1762 = vpop.f32.mrb[0].mxu0
        %v1763 = vadd.f32 0.0, %v1762
        %v1764 = vpop.f32.mrb[0].mxu0
        %1765 = vmatprep.mubr.bf16.mxu0 %v1270
        %1766 = vmatmul.mubr.bf16.gmra.mrb[0].mxu0 %v1269
        %v1767 = vpop.f32.mrb[0].mxu0
        %v1768 = vadd.f32 0.0, %v1767
        %v1769 = vpop.f32.mrb[0].mxu0
        %v1770 = vpop.f32.mrb[0].mxu0
        %v1771 = vadd.f32 0.0, %v1770
        %v1772 = vpop.f32.mrb[0].mxu0
        %1773 = vmatprep.mubr.bf16.mxu0 %v1274
        %1774 = vmatmul.mubr.bf16.gmra.mrb[0].mxu0 %v1273
        %v1775 = vpop.f32.mrb[0].mxu0
        %v1776 = vadd.f32 0.0, %v1775
        %v1777 = vpop.f32.mrb[0].mxu0
        %v1778 = vpop.f32.mrb[0].mxu0
        %v1779 = vadd.f32 0.0, %v1778
        %v1780 = vpop.f32.mrb[0].mxu0
        %1781 = vmatprep.mubr.bf16.mxu0 %v1278
        %1782 = vmatmul.mubr.bf16.gmra.mrb[0].mxu0 %v1277
        %v1783 = vpop.f32.mrb[0].mxu0
        %v1784 = vadd.f32 0.0, %v1783
        %v1785 = vpop.f32.mrb[0].mxu0
        %v1786 = vpop.f32.mrb[0].mxu0
        %v1787 = vadd.f32 0.0, %v1786
        %v1788 = vpop.f32.mrb[0].mxu0
        %1789 = vmatprep.mubr.bf16.mxu0 %v1282
        %1790 = vmatmul.mubr.bf16.gmra.mrb[0].mxu0 %v1281
        %v1791 = vpop.f32.mrb[0].mxu0
        %v1792 = vadd.f32 0.0, %v1791
        %v1793 = vpop.f32.mrb[0].mxu0
        %v1794 = vpop.f32.mrb[0].mxu0
        %v1795 = vadd.f32 0.0, %v1794
        %v1796 = vpop.f32.mrb[0].mxu0
        %1797 = vmatprep.mubr.bf16.mxu0 %v1286
        %1798 = vmatmul.mubr.bf16.gmra.mrb[0].mxu0 %v1285
        %v1799 = vpop.f32.mrb[0].mxu0
        %v1800 = vadd.f32 0.0, %v1799
        %v1801 = vpop.f32.mrb[0].mxu0
        %v1802 = vpop.f32.mrb[0].mxu0
        %v1803 = vadd.f32 0.0, %v1802
        %v1804 = vpop.f32.mrb[0].mxu0
        %1805 = vmatprep.mubr.bf16.mxu0 %v1290
        %1806 = vmatmul.mubr.bf16.gmra.mrb[0].mxu0 %v1289
        %v1807 = vpop.f32.mrb[0].mxu0
        %v1808 = vadd.f32 0.0, %v1807
        %v1809 = vpop.f32.mrb[0].mxu0
        %v1810 = vpop.f32.mrb[0].mxu0
        %v1811 = vadd.f32 0.0, %v1810
        %v1812 = vpop.f32.mrb[0].mxu0
        %1813 = vmatprep.mubr.bf16.mxu0 %v1294
        %1814 = vmatmul.mubr.bf16.gmra.mrb[0].mxu0 %v1293
        %v1815 = vpop.f32.mrb[0].mxu0
        %v1816 = vadd.f32 0.0, %v1815
        %v1817 = vpop.f32.mrb[0].mxu0
        %v1818 = vpop.f32.mrb[0].mxu0
        %v1819 = vadd.f32 0.0, %v1818
        %v1820 = vpop.f32.mrb[0].mxu0
        %1821 = vmatprep.mubr.bf16.mxu0 %v1298
        %1822 = vmatmul.mubr.bf16.gmra.mrb[0].mxu0 %v1297
        %v1823 = vpop.f32.mrb[0].mxu0
        %v1824 = vadd.f32 0.0, %v1823
        %v1825 = vpop.f32.mrb[0].mxu0
        %v1826 = vpop.f32.mrb[0].mxu0
        %v1827 = vadd.f32 0.0, %v1826
        %v1828 = vpop.f32.mrb[0].mxu0
        %1829 = vmatprep.mubr.bf16.mxu0 %v1302
        %1830 = vmatmul.mubr.bf16.gmra.mrb[0].mxu0 %v1301
        %v1831 = vpop.f32.mrb[0].mxu0
        %v1832 = vadd.f32 0.0, %v1831
        %v1833 = vpop.f32.mrb[0].mxu0
        %v1834 = vpop.f32.mrb[0].mxu0
        %v1835 = vadd.f32 0.0, %v1834
        %v1836 = vpop.f32.mrb[0].mxu0
        %1837 = vmatprep.mubr.bf16.mxu0 %v1306
        %1838 = vmatmul.mubr.bf16.gmra.mrb[0].mxu0 %v1305
        %v1839 = vpop.f32.mrb[0].mxu0
        %v1840 = vadd.f32 0.0, %v1839
        %v1841 = vpop.f32.mrb[0].mxu0
        %v1842 = vpop.f32.mrb[0].mxu0
        %v1843 = vadd.f32 0.0, %v1842
        %v1844 = vpop.f32.mrb[0].mxu0
        %1845 = vmatprep.mubr.bf16.mxu0 %v1310
        %1846 = vmatmul.mubr.bf16.gmra.mrb[0].mxu0 %v1309
        %v1847 = vpop.f32.mrb[0].mxu0
        %v1848 = vadd.f32 0.0, %v1847
        %v1849 = vpop.f32.mrb[0].mxu0
        %v1850 = vpop.f32.mrb[0].mxu0
        %v1851 = vadd.f32 0.0, %v1850
        %v1852 = vpop.f32.mrb[0].mxu0
        %1853 = vmatprep.mubr.bf16.mxu0 %v1314
        %1854 = vmatmul.mubr.bf16.gmra.mrb[0].mxu0 %v1313
        %v1855 = vpop.f32.mrb[0].mxu0
        %v1856 = vadd.f32 0.0, %v1855
        %v1857 = vpop.f32.mrb[0].mxu0
        %v1858 = vpop.f32.mrb[0].mxu0
        %v1859 = vadd.f32 0.0, %v1858
        %v1860 = vpop.f32.mrb[0].mxu0
        %1861 = vmatprep.mubr.bf16.mxu0 %v1318
        %1862 = vmatmul.mubr.bf16.gmra.mrb[0].mxu0 %v1317
        %v1863 = vpop.f32.mrb[0].mxu0
        %v1864 = vadd.f32 0.0, %v1863
        %v1865 = vpop.f32.mrb[0].mxu0
        %v1866 = vpop.f32.mrb[0].mxu0
        %v1867 = vadd.f32 0.0, %v1866
        %v1868 = vpop.f32.mrb[0].mxu0
        %1869 = vmatprep.mubr.bf16.mxu0 %v1322
        %1870 = vmatmul.mubr.bf16.gmra.mrb[0].mxu0 %v1321
        %v1871 = vpop.f32.mrb[0].mxu0
        %v1872 = vadd.f32 0.0, %v1871
        %v1873 = vpop.f32.mrb[0].mxu0
        %v1874 = vpop.f32.mrb[0].mxu0
        %v1875 = vadd.f32 0.0, %v1874
        %v1876 = vpop.f32.mrb[0].mxu0
        %1877 = vmatprep.mubr.bf16.mxu0 %v1326
        %1878 = vmatmul.mubr.bf16.gmra.mrb[0].mxu0 %v1325
        %v1879 = vpop.f32.mrb[0].mxu0
        %v1880 = vadd.f32 0.0, %v1879
        %v1881 = vpop.f32.mrb[0].mxu0
        %v1882 = vpop.f32.mrb[0].mxu0
        %v1883 = vadd.f32 0.0, %v1882
        %v1884 = vpop.f32.mrb[0].mxu0
        %1885 = vmatprep.mubr.bf16.mxu0 %v1330
        %1886 = vmatmul.mubr.bf16.gmra.mrb[0].mxu0 %v1329
        %v1887 = vpop.f32.mrb[0].mxu0
        %v1888 = vadd.f32 0.0, %v1887
        %v1889 = vpop.f32.mrb[0].mxu0
        %v1890 = vpop.f32.mrb[0].mxu0
        %v1891 = vadd.f32 0.0, %v1890
        %v1892 = vpop.f32.mrb[0].mxu0
        %1893 = vmatprep.mubr.bf16.mxu0 %v1334
        %1894 = vmatmul.mubr.bf16.gmra.mrb[0].mxu0 %v1333
        %v1895 = vpop.f32.mrb[0].mxu0
        %v1896 = vadd.f32 0.0, %v1895
        %v1897 = vpop.f32.mrb[0].mxu0
        %v1898 = vpop.f32.mrb[0].mxu0
        %v1899 = vadd.f32 0.0, %v1898
        %v1900 = vpop.f32.mrb[0].mxu0
        %1901 = vmatprep.mubr.bf16.mxu0 %v1338
        %1902 = vmatmul.mubr.bf16.gmra.mrb[0].mxu0 %v1337
        %v1903 = vpop.f32.mrb[0].mxu0
        %v1904 = vadd.f32 0.0, %v1903
        %v1905 = vpop.f32.mrb[0].mxu0
        %v1906 = vpop.f32.mrb[0].mxu0
        %v1907 = vadd.f32 0.0, %v1906
        %v1908 = vpop.f32.mrb[0].mxu0
        %1909 = vmatprep.mubr.bf16.mxu0 %v1342
        %1910 = vmatmul.mubr.bf16.gmra.mrb[0].mxu0 %v1341
        %v1911 = vpop.f32.mrb[0].mxu0
        %v1912 = vadd.f32 0.0, %v1911
        %v1913 = vpop.f32.mrb[0].mxu0
        %v1914 = vpop.f32.mrb[0].mxu0
        %v1915 = vadd.f32 0.0, %v1914
        %v1916 = vpop.f32.mrb[0].mxu0
        %1917 = vmatprep.mubr.bf16.mxu0 %v1346
        %1918 = vmatmul.mubr.bf16.gmra.mrb[0].mxu0 %v1345
        %v1919 = vpop.f32.mrb[0].mxu0
        %v1920 = vadd.f32 0.0, %v1919
        %v1921 = vpop.f32.mrb[0].mxu0
        %v1922 = vpop.f32.mrb[0].mxu0
        %v1923 = vadd.f32 0.0, %v1922
        %v1924 = vpop.f32.mrb[0].mxu0
        %1925 = vmatprep.mubr.bf16.mxu0 %v1350
        %1926 = vmatmul.mubr.bf16.gmra.mrb[0].mxu0 %v1349
        %v1927 = vpop.f32.mrb[0].mxu0
        %v1928 = vadd.f32 0.0, %v1927
        %v1929 = vpop.f32.mrb[0].mxu0
        %v1930 = vpop.f32.mrb[0].mxu0
        %v1931 = vadd.f32 0.0, %v1930
        %v1932 = vpop.f32.mrb[0].mxu0
        %1933 = vmatprep.mubr.bf16.mxu0 %v1354
        %1934 = vmatmul.mubr.bf16.gmra.mrb[0].mxu0 %v1353
        %v1935 = vpop.f32.mrb[0].mxu0
        %v1936 = vadd.f32 0.0, %v1935
        %v1937 = vpop.f32.mrb[0].mxu0
        %v1938 = vpop.f32.mrb[0].mxu0
        %v1939 = vadd.f32 0.0, %v1938
        %v1940 = vpop.f32.mrb[0].mxu0
        %1941 = vmatprep.mubr.bf16.mxu0 %v1358
        %1942 = vmatmul.mubr.bf16.gmra.mrb[0].mxu0 %v1357
        %v1943 = vpop.f32.mrb[0].mxu0
        %v1944 = vadd.f32 0.0, %v1943
        %v1945 = vpop.f32.mrb[0].mxu0
        %v1946 = vpop.f32.mrb[0].mxu0
        %v1947 = vadd.f32 0.0, %v1946
        %v1948 = vpop.f32.mrb[0].mxu0
        %1949 = vmatprep.mubr.bf16.mxu0 %v1362
        %1950 = vmatmul.mubr.bf16.gmra.mrb[0].mxu0 %v1361
        %v1951 = vpop.f32.mrb[0].mxu0
        %v1952 = vadd.f32 0.0, %v1951
        %v1953 = vpop.f32.mrb[0].mxu0
        %v1954 = vpop.f32.mrb[0].mxu0
        %v1955 = vadd.f32 0.0, %v1954
        %v1956 = vpop.f32.mrb[0].mxu0
        %1957 = vmatprep.mubr.bf16.mxu0 %v1366
        %1958 = vmatmul.mubr.bf16.gmra.mrb[0].mxu0 %v1365
        %v1959 = vpop.f32.mrb[0].mxu0
        %v1960 = vadd.f32 0.0, %v1959
        %v1961 = vpop.f32.mrb[0].mxu0
        %v1962 = vpop.f32.mrb[0].mxu0
        %v1963 = vadd.f32 0.0, %v1962
        %v1964 = vpop.f32.mrb[0].mxu0
        %1965 = vmatprep.mubr.bf16.mxu0 %v1370
        %1966 = vmatmul.mubr.bf16.gmra.mrb[0].mxu0 %v1369
        %v1967 = vpop.f32.mrb[0].mxu0
        %v1968 = vadd.f32 0.0, %v1967
        %v1969 = vpop.f32.mrb[0].mxu0
        %v1970 = vpop.f32.mrb[0].mxu0
        %v1971 = vadd.f32 0.0, %v1970
        %v1972 = vpop.f32.mrb[0].mxu0
        %1973 = vmatprep.mubr.bf16.mxu0 %v1374
        %1974 = vmatmul.mubr.bf16.gmra.mrb[0].mxu0 %v1373
        %v1975 = vpop.f32.mrb[0].mxu0
        %v1976 = vadd.f32 0.0, %v1975
        %v1977 = vpop.f32.mrb[0].mxu0
        %v1978 = vpop.f32.mrb[0].mxu0
        %v1979 = vadd.f32 0.0, %v1978
        %v1980 = vpop.f32.mrb[0].mxu0
        %1981 = vmatprep.mubr.bf16.mxu0 %v1378
        %1982 = vmatmul.mubr.bf16.gmra.mrb[0].mxu0 %v1377
        %v1983 = vpop.f32.mrb[0].mxu0
        %v1984 = vadd.f32 0.0, %v1983
        %v1985 = vpop.f32.mrb[0].mxu0
        %v1986 = vpop.f32.mrb[0].mxu0
        %v1987 = vadd.f32 0.0, %v1986
        %v1988 = vpop.f32.mrb[0].mxu0
        %1989 = vdwg.mxu0
        %1990 = vmatprep.subr.bf16.mxu0 0
        %1991 = vmatpush1.bf16.msra.mxu0 %v1653
        %1992 = vmatprep.subr.bf16.mxu0 0
        %1993 = vmatpush1.bf16.msra.mxu0 %v1654
        %1994 = vmatprep.subr.bf16.mxu0 0
        %1995 = vmatpush1.bf16.msra.mxu0 %v1655
        %1996 = vmatprep.subr.bf16.mxu0 0
        %1997 = vmatpush1.bf16.msra.mxu0 %v1656
        %1998 = vmatprep.subr.bf16.mxu0 0
        %1999 = vmatpush1.bf16.msra.mxu0 %v1657
        %2000 = vmatprep.subr.bf16.mxu0 0
        %2001 = vmatpush1.bf16.msra.mxu0 %v1658
        %2002 = vmatprep.subr.bf16.mxu0 0
        %2003 = vmatpush1.bf16.msra.mxu0 %v1659
        %2004 = vmatprep.subr.bf16.mxu0 0
        %2005 = vmatpush1.bf16.msra.mxu0 %v1660
        %2006 = vmatprep.subr.bf16.mxu0 0
        %2007 = vmatpush1.bf16.msra.mxu0 %v1661
        %2008 = vmatprep.subr.bf16.mxu0 0
        %2009 = vmatpush1.bf16.msra.mxu0 %v1662
        %2010 = vmatprep.subr.bf16.mxu0 0
        %2011 = vmatpush1.bf16.msra.mxu0 %v1663
        %2012 = vmatprep.subr.bf16.mxu0 0
        %2013 = vmatpush1.bf16.msra.mxu0 %v1664
        %2014 = vmatprep.subr.bf16.mxu0 0
        %2015 = vmatpush1.bf16.msra.mxu0 %v1665
        %2016 = vmatprep.subr.bf16.mxu0 0
        %2017 = vmatpush1.bf16.msra.mxu0 %v1666
        %2018 = vmatprep.subr.bf16.mxu0 0
        %2019 = vmatpush1.bf16.msra.mxu0 %v1667
        %2020 = vmatprep.subr.bf16.mxu0 0
        %2021 = vmatpush1.bf16.msra.mxu0 %v1668
        %2022 = vmatprep.mubr.bf16.mxu0 %v1256
        %2023 = vmatmul.mubr.bf16.gmra.mrb[0].mxu0 %v1255
        %v2024 = vpop.f32.mrb[0].mxu0
        %v2025 = vadd.f32 %v1736, %v2024
        %v2026 = vpop.f32.mrb[0].mxu0
        %v2027 = vpop.f32.mrb[0].mxu0
        %v2028 = vadd.f32 %v1739, %v2027
        %v2029 = vpop.f32.mrb[0].mxu0
        %2030 = vmatprep.mubr.bf16.mxu0 %v1260
        %2031 = vmatmul.mubr.bf16.gmra.mrb[0].mxu0 %v1259
        %v2032 = vpop.f32.mrb[0].mxu0
        %v2033 = vadd.f32 %v1744, %v2032
        %v2034 = vpop.f32.mrb[0].mxu0
        %v2035 = vpop.f32.mrb[0].mxu0
        %v2036 = vadd.f32 %v1747, %v2035
        %v2037 = vpop.f32.mrb[0].mxu0
        %2038 = vmatprep.mubr.bf16.mxu0 %v1264
        %2039 = vmatmul.mubr.bf16.gmra.mrb[0].mxu0 %v1263
        %v2040 = vpop.f32.mrb[0].mxu0
        %v2041 = vadd.f32 %v1752, %v2040
        %v2042 = vpop.f32.mrb[0].mxu0
        %v2043 = vpop.f32.mrb[0].mxu0
        %v2044 = vadd.f32 %v1755, %v2043
        %v2045 = vpop.f32.mrb[0].mxu0
        %2046 = vmatprep.mubr.bf16.mxu0 %v1268
        %2047 = vmatmul.mubr.bf16.gmra.mrb[0].mxu0 %v1267
        %v2048 = vpop.f32.mrb[0].mxu0
        %v2049 = vadd.f32 %v1760, %v2048
        %v2050 = vpop.f32.mrb[0].mxu0
        %v2051 = vpop.f32.mrb[0].mxu0
        %v2052 = vadd.f32 %v1763, %v2051
        %v2053 = vpop.f32.mrb[0].mxu0
        %2054 = vmatprep.mubr.bf16.mxu0 %v1272
        %2055 = vmatmul.mubr.bf16.gmra.mrb[0].mxu0 %v1271
        %v2056 = vpop.f32.mrb[0].mxu0
        %v2057 = vadd.f32 %v1768, %v2056
        %v2058 = vpop.f32.mrb[0].mxu0
        %v2059 = vpop.f32.mrb[0].mxu0
        %v2060 = vadd.f32 %v1771, %v2059
        %v2061 = vpop.f32.mrb[0].mxu0
        %2062 = vmatprep.mubr.bf16.mxu0 %v1276
        %2063 = vmatmul.mubr.bf16.gmra.mrb[0].mxu0 %v1275
        %v2064 = vpop.f32.mrb[0].mxu0
        %v2065 = vadd.f32 %v1776, %v2064
        %v2066 = vpop.f32.mrb[0].mxu0
        %v2067 = vpop.f32.mrb[0].mxu0
        %v2068 = vadd.f32 %v1779, %v2067
        %v2069 = vpop.f32.mrb[0].mxu0
        %2070 = vmatprep.mubr.bf16.mxu0 %v1280
        %2071 = vmatmul.mubr.bf16.gmra.mrb[0].mxu0 %v1279
        %v2072 = vpop.f32.mrb[0].mxu0
        %v2073 = vadd.f32 %v1784, %v2072
        %v2074 = vpop.f32.mrb[0].mxu0
        %v2075 = vpop.f32.mrb[0].mxu0
        %v2076 = vadd.f32 %v1787, %v2075
        %v2077 = vpop.f32.mrb[0].mxu0
        %2078 = vmatprep.mubr.bf16.mxu0 %v1284
        %2079 = vmatmul.mubr.bf16.gmra.mrb[0].mxu0 %v1283
        %v2080 = vpop.f32.mrb[0].mxu0
        %v2081 = vadd.f32 %v1792, %v2080
        %v2082 = vpop.f32.mrb[0].mxu0
        %v2083 = vpop.f32.mrb[0].mxu0
        %v2084 = vadd.f32 %v1795, %v2083
        %v2085 = vpop.f32.mrb[0].mxu0
        %2086 = vmatprep.mubr.bf16.mxu0 %v1288
        %2087 = vmatmul.mubr.bf16.gmra.mrb[0].mxu0 %v1287
        %v2088 = vpop.f32.mrb[0].mxu0
        %v2089 = vadd.f32 %v1800, %v2088
        %v2090 = vpop.f32.mrb[0].mxu0
        %v2091 = vpop.f32.mrb[0].mxu0
        %v2092 = vadd.f32 %v1803, %v2091
        %v2093 = vpop.f32.mrb[0].mxu0
        %2094 = vmatprep.mubr.bf16.mxu0 %v1292
        %2095 = vmatmul.mubr.bf16.gmra.mrb[0].mxu0 %v1291
        %v2096 = vpop.f32.mrb[0].mxu0
        %v2097 = vadd.f32 %v1808, %v2096
        %v2098 = vpop.f32.mrb[0].mxu0
        %v2099 = vpop.f32.mrb[0].mxu0
        %v2100 = vadd.f32 %v1811, %v2099
        %v2101 = vpop.f32.mrb[0].mxu0
        %2102 = vmatprep.mubr.bf16.mxu0 %v1296
        %2103 = vmatmul.mubr.bf16.gmra.mrb[0].mxu0 %v1295
        %v2104 = vpop.f32.mrb[0].mxu0
        %v2105 = vadd.f32 %v1816, %v2104
        %v2106 = vpop.f32.mrb[0].mxu0
        %v2107 = vpop.f32.mrb[0].mxu0
        %v2108 = vadd.f32 %v1819, %v2107
        %v2109 = vpop.f32.mrb[0].mxu0
        %2110 = vmatprep.mubr.bf16.mxu0 %v1300
        %2111 = vmatmul.mubr.bf16.gmra.mrb[0].mxu0 %v1299
        %v2112 = vpop.f32.mrb[0].mxu0
        %v2113 = vadd.f32 %v1824, %v2112
        %v2114 = vpop.f32.mrb[0].mxu0
        %v2115 = vpop.f32.mrb[0].mxu0
        %v2116 = vadd.f32 %v1827, %v2115
        %v2117 = vpop.f32.mrb[0].mxu0
        %2118 = vmatprep.mubr.bf16.mxu0 %v1304
        %2119 = vmatmul.mubr.bf16.gmra.mrb[0].mxu0 %v1303
        %v2120 = vpop.f32.mrb[0].mxu0
        %v2121 = vadd.f32 %v1832, %v2120
        %v2122 = vpop.f32.mrb[0].mxu0
        %v2123 = vpop.f32.mrb[0].mxu0
        %v2124 = vadd.f32 %v1835, %v2123
        %v2125 = vpop.f32.mrb[0].mxu0
        %2126 = vmatprep.mubr.bf16.mxu0 %v1308
        %2127 = vmatmul.mubr.bf16.gmra.mrb[0].mxu0 %v1307
        %v2128 = vpop.f32.mrb[0].mxu0
        %v2129 = vadd.f32 %v1840, %v2128
        %v2130 = vpop.f32.mrb[0].mxu0
        %v2131 = vpop.f32.mrb[0].mxu0
        %v2132 = vadd.f32 %v1843, %v2131
        %v2133 = vpop.f32.mrb[0].mxu0
        %2134 = vmatprep.mubr.bf16.mxu0 %v1312
        %2135 = vmatmul.mubr.bf16.gmra.mrb[0].mxu0 %v1311
        %v2136 = vpop.f32.mrb[0].mxu0
        %v2137 = vadd.f32 %v1848, %v2136
        %v2138 = vpop.f32.mrb[0].mxu0
        %v2139 = vpop.f32.mrb[0].mxu0
        %v2140 = vadd.f32 %v1851, %v2139
        %v2141 = vpop.f32.mrb[0].mxu0
        %2142 = vmatprep.mubr.bf16.mxu0 %v1316
        %2143 = vmatmul.mubr.bf16.gmra.mrb[0].mxu0 %v1315
        %v2144 = vpop.f32.mrb[0].mxu0
        %v2145 = vadd.f32 %v1856, %v2144
        %v2146 = vpop.f32.mrb[0].mxu0
        %v2147 = vpop.f32.mrb[0].mxu0
        %v2148 = vadd.f32 %v1859, %v2147
        %v2149 = vpop.f32.mrb[0].mxu0
        %2150 = vmatprep.mubr.bf16.mxu0 %v1320
        %2151 = vmatmul.mubr.bf16.gmra.mrb[0].mxu0 %v1319
        %v2152 = vpop.f32.mrb[0].mxu0
        %v2153 = vadd.f32 %v1864, %v2152
        %v2154 = vpop.f32.mrb[0].mxu0
        %v2155 = vpop.f32.mrb[0].mxu0
        %v2156 = vadd.f32 %v1867, %v2155
        %v2157 = vpop.f32.mrb[0].mxu0
        %2158 = vmatprep.mubr.bf16.mxu0 %v1324
        %2159 = vmatmul.mubr.bf16.gmra.mrb[0].mxu0 %v1323
        %v2160 = vpop.f32.mrb[0].mxu0
        %v2161 = vadd.f32 %v1872, %v2160
        %v2162 = vpop.f32.mrb[0].mxu0
        %v2163 = vpop.f32.mrb[0].mxu0
        %v2164 = vadd.f32 %v1875, %v2163
        %v2165 = vpop.f32.mrb[0].mxu0
        %2166 = vmatprep.mubr.bf16.mxu0 %v1328
        %2167 = vmatmul.mubr.bf16.gmra.mrb[0].mxu0 %v1327
        %v2168 = vpop.f32.mrb[0].mxu0
        %v2169 = vadd.f32 %v1880, %v2168
        %v2170 = vpop.f32.mrb[0].mxu0
        %v2171 = vpop.f32.mrb[0].mxu0
        %v2172 = vadd.f32 %v1883, %v2171
        %v2173 = vpop.f32.mrb[0].mxu0
        %2174 = vmatprep.mubr.bf16.mxu0 %v1332
        %2175 = vmatmul.mubr.bf16.gmra.mrb[0].mxu0 %v1331
        %v2176 = vpop.f32.mrb[0].mxu0
        %v2177 = vadd.f32 %v1888, %v2176
        %v2178 = vpop.f32.mrb[0].mxu0
        %v2179 = vpop.f32.mrb[0].mxu0
        %v2180 = vadd.f32 %v1891, %v2179
        %v2181 = vpop.f32.mrb[0].mxu0
        %2182 = vmatprep.mubr.bf16.mxu0 %v1336
        %2183 = vmatmul.mubr.bf16.gmra.mrb[0].mxu0 %v1335
        %v2184 = vpop.f32.mrb[0].mxu0
        %v2185 = vadd.f32 %v1896, %v2184
        %v2186 = vpop.f32.mrb[0].mxu0
        %v2187 = vpop.f32.mrb[0].mxu0
        %v2188 = vadd.f32 %v1899, %v2187
        %v2189 = vpop.f32.mrb[0].mxu0
        %2190 = vmatprep.mubr.bf16.mxu0 %v1340
        %2191 = vmatmul.mubr.bf16.gmra.mrb[0].mxu0 %v1339
        %v2192 = vpop.f32.mrb[0].mxu0
        %v2193 = vadd.f32 %v1904, %v2192
        %v2194 = vpop.f32.mrb[0].mxu0
        %v2195 = vpop.f32.mrb[0].mxu0
        %v2196 = vadd.f32 %v1907, %v2195
        %v2197 = vpop.f32.mrb[0].mxu0
        %2198 = vmatprep.mubr.bf16.mxu0 %v1344
        %2199 = vmatmul.mubr.bf16.gmra.mrb[0].mxu0 %v1343
        %v2200 = vpop.f32.mrb[0].mxu0
        %v2201 = vadd.f32 %v1912, %v2200
        %v2202 = vpop.f32.mrb[0].mxu0
        %v2203 = vpop.f32.mrb[0].mxu0
        %v2204 = vadd.f32 %v1915, %v2203
        %v2205 = vpop.f32.mrb[0].mxu0
        %2206 = vmatprep.mubr.bf16.mxu0 %v1348
        %2207 = vmatmul.mubr.bf16.gmra.mrb[0].mxu0 %v1347
        %v2208 = vpop.f32.mrb[0].mxu0
        %v2209 = vadd.f32 %v1920, %v2208
        %v2210 = vpop.f32.mrb[0].mxu0
        %v2211 = vpop.f32.mrb[0].mxu0
        %v2212 = vadd.f32 %v1923, %v2211
        %v2213 = vpop.f32.mrb[0].mxu0
        %2214 = vmatprep.mubr.bf16.mxu0 %v1352
        %2215 = vmatmul.mubr.bf16.gmra.mrb[0].mxu0 %v1351
        %v2216 = vpop.f32.mrb[0].mxu0
        %v2217 = vadd.f32 %v1928, %v2216
        %v2218 = vpop.f32.mrb[0].mxu0
        %v2219 = vpop.f32.mrb[0].mxu0
        %v2220 = vadd.f32 %v1931, %v2219
        %v2221 = vpop.f32.mrb[0].mxu0
        %2222 = vmatprep.mubr.bf16.mxu0 %v1356
        %2223 = vmatmul.mubr.bf16.gmra.mrb[0].mxu0 %v1355
        %v2224 = vpop.f32.mrb[0].mxu0
        %v2225 = vadd.f32 %v1936, %v2224
        %v2226 = vpop.f32.mrb[0].mxu0
        %v2227 = vpop.f32.mrb[0].mxu0
        %v2228 = vadd.f32 %v1939, %v2227
        %v2229 = vpop.f32.mrb[0].mxu0
        %2230 = vmatprep.mubr.bf16.mxu0 %v1360
        %2231 = vmatmul.mubr.bf16.gmra.mrb[0].mxu0 %v1359
        %v2232 = vpop.f32.mrb[0].mxu0
        %v2233 = vadd.f32 %v1944, %v2232
        %v2234 = vpop.f32.mrb[0].mxu0
        %v2235 = vpop.f32.mrb[0].mxu0
        %v2236 = vadd.f32 %v1947, %v2235
        %v2237 = vpop.f32.mrb[0].mxu0
        %2238 = vmatprep.mubr.bf16.mxu0 %v1364
        %2239 = vmatmul.mubr.bf16.gmra.mrb[0].mxu0 %v1363
        %v2240 = vpop.f32.mrb[0].mxu0
        %v2241 = vadd.f32 %v1952, %v2240
        %v2242 = vpop.f32.mrb[0].mxu0
        %v2243 = vpop.f32.mrb[0].mxu0
        %v2244 = vadd.f32 %v1955, %v2243
        %v2245 = vpop.f32.mrb[0].mxu0
        %2246 = vmatprep.mubr.bf16.mxu0 %v1368
        %2247 = vmatmul.mubr.bf16.gmra.mrb[0].mxu0 %v1367
        %v2248 = vpop.f32.mrb[0].mxu0
        %v2249 = vadd.f32 %v1960, %v2248
        %v2250 = vpop.f32.mrb[0].mxu0
        %v2251 = vpop.f32.mrb[0].mxu0
        %v2252 = vadd.f32 %v1963, %v2251
        %v2253 = vpop.f32.mrb[0].mxu0
        %2254 = vmatprep.mubr.bf16.mxu0 %v1372
        %2255 = vmatmul.mubr.bf16.gmra.mrb[0].mxu0 %v1371
        %v2256 = vpop.f32.mrb[0].mxu0
        %v2257 = vadd.f32 %v1968, %v2256
        %v2258 = vpop.f32.mrb[0].mxu0
        %v2259 = vpop.f32.mrb[0].mxu0
        %v2260 = vadd.f32 %v1971, %v2259
        %v2261 = vpop.f32.mrb[0].mxu0
        %2262 = vmatprep.mubr.bf16.mxu0 %v1376
        %2263 = vmatmul.mubr.bf16.gmra.mrb[0].mxu0 %v1375
        %v2264 = vpop.f32.mrb[0].mxu0
        %v2265 = vadd.f32 %v1976, %v2264
        %v2266 = vpop.f32.mrb[0].mxu0
        %v2267 = vpop.f32.mrb[0].mxu0
        %v2268 = vadd.f32 %v1979, %v2267
        %v2269 = vpop.f32.mrb[0].mxu0
        %2270 = vmatprep.mubr.bf16.mxu0 %v1380
        %2271 = vmatmul.mubr.bf16.gmra.mrb[0].mxu0 %v1379
        %v2272 = vpop.f32.mrb[0].mxu0
        %v2273 = vadd.f32 %v1984, %v2272
        %v2274 = vpop.f32.mrb[0].mxu0
        %v2275 = vpop.f32.mrb[0].mxu0
        %v2276 = vadd.f32 %v1987, %v2275
        %v2277 = vpop.f32.mrb[0].mxu0
        %2278 = vdwg.mxu0
        %v2279 = vadd.f32 %v613, %v2025
        %v2280 = vadd.f32 %v614, %v2028
        %v2281 = vadd.f32 %v615, %v2033
        %v2282 = vadd.f32 %v616, %v2036
        %v2283 = vadd.f32 %v617, %v2041
        %v2284 = vadd.f32 %v618, %v2044
        %v2285 = vadd.f32 %v619, %v2049
        %v2286 = vadd.f32 %v620, %v2052
        %v2287 = vadd.f32 %v621, %v2057
        %v2288 = vadd.f32 %v622, %v2060
        %v2289 = vadd.f32 %v623, %v2065
        %v2290 = vadd.f32 %v624, %v2068
        %v2291 = vadd.f32 %v625, %v2073
        %v2292 = vadd.f32 %v626, %v2076
        %v2293 = vadd.f32 %v627, %v2081
        %v2294 = vadd.f32 %v628, %v2084
        %v2295 = vadd.f32 %v629, %v2089
        %v2296 = vadd.f32 %v630, %v2092
        %v2297 = vadd.f32 %v631, %v2097
        %v2298 = vadd.f32 %v632, %v2100
        %v2299 = vadd.f32 %v633, %v2105
        %v2300 = vadd.f32 %v634, %v2108
        %v2301 = vadd.f32 %v635, %v2113
        %v2302 = vadd.f32 %v636, %v2116
        %v2303 = vadd.f32 %v637, %v2121
        %v2304 = vadd.f32 %v638, %v2124
        %v2305 = vadd.f32 %v639, %v2129
        %v2306 = vadd.f32 %v640, %v2132
        %v2307 = vadd.f32 %v641, %v2137
        %v2308 = vadd.f32 %v642, %v2140
        %v2309 = vadd.f32 %v643, %v2145
        %v2310 = vadd.f32 %v644, %v2148
        %v2311 = vadd.f32 %v645, %v2153
        %v2312 = vadd.f32 %v646, %v2156
        %v2313 = vadd.f32 %v647, %v2161
        %v2314 = vadd.f32 %v648, %v2164
        %v2315 = vadd.f32 %v649, %v2169
        %v2316 = vadd.f32 %v650, %v2172
        %v2317 = vadd.f32 %v651, %v2177
        %v2318 = vadd.f32 %v652, %v2180
        %v2319 = vadd.f32 %v653, %v2185
        %v2320 = vadd.f32 %v654, %v2188
        %v2321 = vadd.f32 %v655, %v2193
        %v2322 = vadd.f32 %v656, %v2196
        %v2323 = vadd.f32 %v657, %v2201
        %v2324 = vadd.f32 %v658, %v2204
        %v2325 = vadd.f32 %v659, %v2209
        %v2326 = vadd.f32 %v660, %v2212
        %v2327 = vadd.f32 %v661, %v2217
        %v2328 = vadd.f32 %v662, %v2220
        %v2329 = vadd.f32 %v663, %v2225
        %v2330 = vadd.f32 %v664, %v2228
        %v2331 = vadd.f32 %v665, %v2233
        %v2332 = vadd.f32 %v666, %v2236
        %v2333 = vadd.f32 %v667, %v2241
        %v2334 = vadd.f32 %v668, %v2244
        %v2335 = vadd.f32 %v669, %v2249
        %v2336 = vadd.f32 %v670, %v2252
        %v2337 = vadd.f32 %v671, %v2257
        %v2338 = vadd.f32 %v672, %v2260
        %v2339 = vadd.f32 %v673, %v2265
        %v2340 = vadd.f32 %v674, %v2268
        %v2341 = vadd.f32 %v675, %v2273
        %v2342 = vadd.f32 %v676, %v2276
        %2343 = vst [vmem:[#allocation2] sm:$0xff] %v2279
        %2344 = vst [vmem:[#allocation2 + $0x8] sm:$0xff] %v2280
        %2345 = vst [vmem:[#allocation2 + $0x10] sm:$0xff] %v2281
        %2346 = vst [vmem:[#allocation2 + $0x18] sm:$0xff] %v2282
        %2347 = vst [vmem:[#allocation2 + $0x20] sm:$0xff] %v2283
        %2348 = vst [vmem:[#allocation2 + $0x28] sm:$0xff] %v2284
        %2349 = vst [vmem:[#allocation2 + $0x30] sm:$0xff] %v2285
        %2350 = vst [vmem:[#allocation2 + $0x38] sm:$0xff] %v2286
        %2351 = vst [vmem:[#allocation2 + $0x40] sm:$0xff] %v2287
        %2352 = vst [vmem:[#allocation2 + $0x48] sm:$0xff] %v2288
        %2353 = vst [vmem:[#allocation2 + $0x50] sm:$0xff] %v2289
        %2354 = vst [vmem:[#allocation2 + $0x58] sm:$0xff] %v2290
        %2355 = vst [vmem:[#allocation2 + $0x60] sm:$0xff] %v2291
        %2356 = vst [vmem:[#allocation2 + $0x68] sm:$0xff] %v2292
        %2357 = vst [vmem:[#allocation2 + $0x70] sm:$0xff] %v2293
        %2358 = vst [vmem:[#allocation2 + $0x78] sm:$0xff] %v2294
        %2359 = vst [vmem:[#allocation2 + $0x80] sm:$0xff] %v2295
        %2360 = vst [vmem:[#allocation2 + $0x88] sm:$0xff] %v2296
        %2361 = vst [vmem:[#allocation2 + $0x90] sm:$0xff] %v2297
        %2362 = vst [vmem:[#allocation2 + $0x98] sm:$0xff] %v2298
        %2363 = vst [vmem:[#allocation2 + $0xa0] sm:$0xff] %v2299
        %2364 = vst [vmem:[#allocation2 + $0xa8] sm:$0xff] %v2300
        %2365 = vst [vmem:[#allocation2 + $0xb0] sm:$0xff] %v2301
        %2366 = vst [vmem:[#allocation2 + $0xb8] sm:$0xff] %v2302
        %2367 = vst [vmem:[#allocation2 + $0xc0] sm:$0xff] %v2303
        %2368 = vst [vmem:[#allocation2 + $0xc8] sm:$0xff] %v2304
        %2369 = vst [vmem:[#allocation2 + $0xd0] sm:$0xff] %v2305
        %2370 = vst [vmem:[#allocation2 + $0xd8] sm:$0xff] %v2306
        %2371 = vst [vmem:[#allocation2 + $0xe0] sm:$0xff] %v2307
        %2372 = vst [vmem:[#allocation2 + $0xe8] sm:$0xff] %v2308
        %2373 = vst [vmem:[#allocation2 + $0xf0] sm:$0xff] %v2309
        %2374 = vst [vmem:[#allocation2 + $0xf8] sm:$0xff] %v2310
        %2375 = vst [vmem:[#allocation2 + $0x100] sm:$0xff] %v2311
        %2376 = vst [vmem:[#allocation2 + $0x108] sm:$0xff] %v2312
        %2377 = vst [vmem:[#allocation2 + $0x110] sm:$0xff] %v2313
        %2378 = vst [vmem:[#allocation2 + $0x118] sm:$0xff] %v2314
        %2379 = vst [vmem:[#allocation2 + $0x120] sm:$0xff] %v2315
        %2380 = vst [vmem:[#allocation2 + $0x128] sm:$0xff] %v2316
        %2381 = vst [vmem:[#allocation2 + $0x130] sm:$0xff] %v2317
        %2382 = vst [vmem:[#allocation2 + $0x138] sm:$0xff] %v2318
        %2383 = vst [vmem:[#allocation2 + $0x140] sm:$0xff] %v2319
        %2384 = vst [vmem:[#allocation2 + $0x148] sm:$0xff] %v2320
        %2385 = vst [vmem:[#allocation2 + $0x150] sm:$0xff] %v2321
        %2386 = vst [vmem:[#allocation2 + $0x158] sm:$0xff] %v2322
        %2387 = vst [vmem:[#allocation2 + $0x160] sm:$0xff] %v2323
        %2388 = vst [vmem:[#allocation2 + $0x168] sm:$0xff] %v2324
        %2389 = vst [vmem:[#allocation2 + $0x170] sm:$0xff] %v2325
        %2390 = vst [vmem:[#allocation2 + $0x178] sm:$0xff] %v2326
        %2391 = vst [vmem:[#allocation2 + $0x180] sm:$0xff] %v2327
        %2392 = vst [vmem:[#allocation2 + $0x188] sm:$0xff] %v2328
        %2393 = vst [vmem:[#allocation2 + $0x190] sm:$0xff] %v2329
        %2394 = vst [vmem:[#allocation2 + $0x198] sm:$0xff] %v2330
        %2395 = vst [vmem:[#allocation2 + $0x1a0] sm:$0xff] %v2331
        %2396 = vst [vmem:[#allocation2 + $0x1a8] sm:$0xff] %v2332
        %2397 = vst [vmem:[#allocation2 + $0x1b0] sm:$0xff] %v2333
        %2398 = vst [vmem:[#allocation2 + $0x1b8] sm:$0xff] %v2334
        %2399 = vst [vmem:[#allocation2 + $0x1c0] sm:$0xff] %v2335
        %2400 = vst [vmem:[#allocation2 + $0x1c8] sm:$0xff] %v2336
        %2401 = vst [vmem:[#allocation2 + $0x1d0] sm:$0xff] %v2337
        %2402 = vst [vmem:[#allocation2 + $0x1d8] sm:$0xff] %v2338
        %2403 = vst [vmem:[#allocation2 + $0x1e0] sm:$0xff] %v2339
        %2404 = vst [vmem:[#allocation2 + $0x1e8] sm:$0xff] %v2340
        %2405 = vst [vmem:[#allocation2 + $0x1f0] sm:$0xff] %v2341
        %2406 = vst [vmem:[#allocation2 + $0x1f8] sm:$0xff] %v2342
        %p2407 = scmp.eq.s32.totalorder %s20, 1
        // Predicated region
        $region64: #{discriminator_forward.5} parent=54 // pred_check
          %p2408 = pneg %p2407
        $region65: #{discriminator_forward.5} parent=54 // pred_check_branch
          %2410 = sbr.rel (%p2408) target = $region67
        $region66: #{discriminator_forward.5} parent=54 // pred_region
          %v2411 = vld [vmem:[#allocation2] sm:$0xff]
          %v2412 = vld [vmem:[#allocation2 + $0x8] sm:$0xff]
          %v2413 = vld [vmem:[#allocation2 + $0x10] sm:$0xff]
          %v2414 = vld [vmem:[#allocation2 + $0x18] sm:$0xff]
          %v2415 = vld [vmem:[#allocation2 + $0x20] sm:$0xff]
          %v2416 = vld [vmem:[#allocation2 + $0x28] sm:$0xff]
          %v2417 = vld [vmem:[#allocation2 + $0x30] sm:$0xff]
          %v2418 = vld [vmem:[#allocation2 + $0x38] sm:$0xff]
          %v2419 = vld [vmem:[#allocation2 + $0x40] sm:$0xff]
          %v2420 = vld [vmem:[#allocation2 + $0x48] sm:$0xff]
          %v2421 = vld [vmem:[#allocation2 + $0x50] sm:$0xff]
          %v2422 = vld [vmem:[#allocation2 + $0x58] sm:$0xff]
          %v2423 = vld [vmem:[#allocation2 + $0x60] sm:$0xff]
          %v2424 = vld [vmem:[#allocation2 + $0x68] sm:$0xff]
          %v2425 = vld [vmem:[#allocation2 + $0x70] sm:$0xff]
          %v2426 = vld [vmem:[#allocation2 + $0x78] sm:$0xff]
          %v2427 = vld [vmem:[#allocation2 + $0x80] sm:$0xff]
          %v2428 = vld [vmem:[#allocation2 + $0x88] sm:$0xff]
          %v2429 = vld [vmem:[#allocation2 + $0x90] sm:$0xff]
          %v2430 = vld [vmem:[#allocation2 + $0x98] sm:$0xff]
          %v2431 = vld [vmem:[#allocation2 + $0xa0] sm:$0xff]
          %v2432 = vld [vmem:[#allocation2 + $0xa8] sm:$0xff]
          %v2433 = vld [vmem:[#allocation2 + $0xb0] sm:$0xff]
          %v2434 = vld [vmem:[#allocation2 + $0xb8] sm:$0xff]
          %v2435 = vld [vmem:[#allocation2 + $0xc0] sm:$0xff]
          %v2436 = vld [vmem:[#allocation2 + $0xc8] sm:$0xff]
          %v2437 = vld [vmem:[#allocation2 + $0xd0] sm:$0xff]
          %v2438 = vld [vmem:[#allocation2 + $0xd8] sm:$0xff]
          %v2439 = vld [vmem:[#allocation2 + $0xe0] sm:$0xff]
          %v2440 = vld [vmem:[#allocation2 + $0xe8] sm:$0xff]
          %v2441 = vld [vmem:[#allocation2 + $0xf0] sm:$0xff]
          %v2442 = vld [vmem:[#allocation2 + $0xf8] sm:$0xff]
          %v2443 = vld [vmem:[#allocation2 + $0x100] sm:$0xff]
          %v2444 = vld [vmem:[#allocation2 + $0x108] sm:$0xff]
          %v2445 = vld [vmem:[#allocation2 + $0x110] sm:$0xff]
          %v2446 = vld [vmem:[#allocation2 + $0x118] sm:$0xff]
          %v2447 = vld [vmem:[#allocation2 + $0x120] sm:$0xff]
          %v2448 = vld [vmem:[#allocation2 + $0x128] sm:$0xff]
          %v2449 = vld [vmem:[#allocation2 + $0x130] sm:$0xff]
          %v2450 = vld [vmem:[#allocation2 + $0x138] sm:$0xff]
          %v2451 = vld [vmem:[#allocation2 + $0x140] sm:$0xff]
          %v2452 = vld [vmem:[#allocation2 + $0x148] sm:$0xff]
          %v2453 = vld [vmem:[#allocation2 + $0x150] sm:$0xff]
          %v2454 = vld [vmem:[#allocation2 + $0x158] sm:$0xff]
          %v2455 = vld [vmem:[#allocation2 + $0x160] sm:$0xff]
          %v2456 = vld [vmem:[#allocation2 + $0x168] sm:$0xff]
          %v2457 = vld [vmem:[#allocation2 + $0x170] sm:$0xff]
          %v2458 = vld [vmem:[#allocation2 + $0x178] sm:$0xff]
          %v2459 = vld [vmem:[#allocation2 + $0x180] sm:$0xff]
          %v2460 = vld [vmem:[#allocation2 + $0x188] sm:$0xff]
          %v2461 = vld [vmem:[#allocation2 + $0x190] sm:$0xff]
          %v2462 = vld [vmem:[#allocation2 + $0x198] sm:$0xff]
          %v2463 = vld [vmem:[#allocation2 + $0x1a0] sm:$0xff]
          %v2464 = vld [vmem:[#allocation2 + $0x1a8] sm:$0xff]
          %v2465 = vld [vmem:[#allocation2 + $0x1b0] sm:$0xff]
          %v2466 = vld [vmem:[#allocation2 + $0x1b8] sm:$0xff]
          %v2467 = vld [vmem:[#allocation2 + $0x1c0] sm:$0xff]
          %v2468 = vld [vmem:[#allocation2 + $0x1c8] sm:$0xff]
          %v2469 = vld [vmem:[#allocation2 + $0x1d0] sm:$0xff]
          %v2470 = vld [vmem:[#allocation2 + $0x1d8] sm:$0xff]
          %v2471 = vld [vmem:[#allocation2 + $0x1e0] sm:$0xff]
          %v2472 = vld [vmem:[#allocation2 + $0x1e8] sm:$0xff]
          %v2473 = vld [vmem:[#allocation2 + $0x1f0] sm:$0xff]
          %v2474 = vld [vmem:[#allocation2 + $0x1f8] sm:$0xff]
          %v2475 = vadd.f32 %v2411, %v2412
          %v2476 = vadd.f32 %v2475, %v2413
          %v2477 = vadd.f32 %v2476, %v2414
          %v2478 = vadd.f32 %v2477, %v2415
          %v2479 = vadd.f32 %v2478, %v2416
          %v2480 = vadd.f32 %v2479, %v2417
          %v2481 = vadd.f32 %v2480, %v2418
          %v2482 = vadd.f32 %v2481, %v2419
          %v2483 = vadd.f32 %v2482, %v2420
          %v2484 = vadd.f32 %v2483, %v2421
          %v2485 = vadd.f32 %v2484, %v2422
          %v2486 = vadd.f32 %v2485, %v2423
          %v2487 = vadd.f32 %v2486, %v2424
          %v2488 = vadd.f32 %v2487, %v2425
          %v2489 = vadd.f32 %v2488, %v2426
          %v2490 = vadd.f32 %v2489, %v2427
          %v2491 = vadd.f32 %v2490, %v2428
          %v2492 = vadd.f32 %v2491, %v2429
          %v2493 = vadd.f32 %v2492, %v2430
          %v2494 = vadd.f32 %v2493, %v2431
          %v2495 = vadd.f32 %v2494, %v2432
          %v2496 = vadd.f32 %v2495, %v2433
          %v2497 = vadd.f32 %v2496, %v2434
          %v2498 = vadd.f32 %v2497, %v2435
          %v2499 = vadd.f32 %v2498, %v2436
          %v2500 = vadd.f32 %v2499, %v2437
          %v2501 = vadd.f32 %v2500, %v2438
          %v2502 = vadd.f32 %v2501, %v2439
          %v2503 = vadd.f32 %v2502, %v2440
          %v2504 = vadd.f32 %v2503, %v2441
          %v2505 = vadd.f32 %v2504, %v2442
          %v2506 = vadd.f32 %v2505, %v2443
          %v2507 = vadd.f32 %v2506, %v2444
          %v2508 = vadd.f32 %v2507, %v2445
          %v2509 = vadd.f32 %v2508, %v2446
          %v2510 = vadd.f32 %v2509, %v2447
          %v2511 = vadd.f32 %v2510, %v2448
          %v2512 = vadd.f32 %v2511, %v2449
          %v2513 = vadd.f32 %v2512, %v2450
          %v2514 = vadd.f32 %v2513, %v2451
          %v2515 = vadd.f32 %v2514, %v2452
          %v2516 = vadd.f32 %v2515, %v2453
          %v2517 = vadd.f32 %v2516, %v2454
          %v2518 = vadd.f32 %v2517, %v2455
          %v2519 = vadd.f32 %v2518, %v2456
          %v2520 = vadd.f32 %v2519, %v2457
          %v2521 = vadd.f32 %v2520, %v2458
          %v2522 = vadd.f32 %v2521, %v2459
          %v2523 = vadd.f32 %v2522, %v2460
          %v2524 = vadd.f32 %v2523, %v2461
          %v2525 = vadd.f32 %v2524, %v2462
          %v2526 = vadd.f32 %v2525, %v2463
          %v2527 = vadd.f32 %v2526, %v2464
          %v2528 = vadd.f32 %v2527, %v2465
          %v2529 = vadd.f32 %v2528, %v2466
          %v2530 = vadd.f32 %v2529, %v2467
          %v2531 = vadd.f32 %v2530, %v2468
          %v2532 = vadd.f32 %v2531, %v2469
          %v2533 = vadd.f32 %v2532, %v2470
          %v2534 = vadd.f32 %v2533, %v2471
          %v2535 = vadd.f32 %v2534, %v2472
          %v2536 = vadd.f32 %v2535, %v2473
          %v2537 = vadd.f32 %v2536, %v2474
          %v2538 = vrot.slane %v2537, 4
          %v2539 = vadd.f32 %v2537, %v2538
          %v2540 = vrot.slane %v2539, 2
          %v2541 = vadd.f32 %v2539, %v2540
          %v2542 = vrot.slane %v2541, 1
          %v2543 = vadd.f32 %v2541, %v2542
          %v2544 = vmul.f32 %v2543, 0.001953125
          %v2545 = vsub.f32 %v2411, %v2544
          %v2546 = vsub.f32 %v2412, %v2544
          %v2547 = vsub.f32 %v2413, %v2544
          %v2548 = vsub.f32 %v2414, %v2544
          %v2549 = vsub.f32 %v2415, %v2544
          %v2550 = vsub.f32 %v2416, %v2544
          %v2551 = vsub.f32 %v2417, %v2544
          %v2552 = vsub.f32 %v2418, %v2544
          %v2553 = vsub.f32 %v2419, %v2544
          %v2554 = vsub.f32 %v2420, %v2544
          %v2555 = vsub.f32 %v2421, %v2544
          %v2556 = vsub.f32 %v2422, %v2544
          %v2557 = vsub.f32 %v2423, %v2544
          %v2558 = vsub.f32 %v2424, %v2544
          %v2559 = vsub.f32 %v2425, %v2544
          %v2560 = vsub.f32 %v2426, %v2544
          %v2561 = vsub.f32 %v2427, %v2544
          %v2562 = vsub.f32 %v2428, %v2544
          %v2563 = vsub.f32 %v2429, %v2544
          %v2564 = vsub.f32 %v2430, %v2544
          %v2565 = vsub.f32 %v2431, %v2544
          %v2566 = vsub.f32 %v2432, %v2544
          %v2567 = vsub.f32 %v2433, %v2544
          %v2568 = vsub.f32 %v2434, %v2544
          %v2569 = vsub.f32 %v2435, %v2544
          %v2570 = vsub.f32 %v2436, %v2544
          %v2571 = vsub.f32 %v2437, %v2544
          %v2572 = vsub.f32 %v2438, %v2544
          %v2573 = vsub.f32 %v2439, %v2544
          %v2574 = vsub.f32 %v2440, %v2544
          %v2575 = vsub.f32 %v2441, %v2544
          %v2576 = vsub.f32 %v2442, %v2544
          %v2577 = vsub.f32 %v2443, %v2544
          %v2578 = vsub.f32 %v2444, %v2544
          %v2579 = vsub.f32 %v2445, %v2544
          %v2580 = vsub.f32 %v2446, %v2544
          %v2581 = vsub.f32 %v2447, %v2544
          %v2582 = vsub.f32 %v2448, %v2544
          %v2583 = vsub.f32 %v2449, %v2544
          %v2584 = vsub.f32 %v2450, %v2544
          %v2585 = vsub.f32 %v2451, %v2544
          %v2586 = vsub.f32 %v2452, %v2544
          %v2587 = vsub.f32 %v2453, %v2544
          %v2588 = vsub.f32 %v2454, %v2544
          %v2589 = vsub.f32 %v2455, %v2544
          %v2590 = vsub.f32 %v2456, %v2544
          %v2591 = vsub.f32 %v2457, %v2544
          %v2592 = vsub.f32 %v2458, %v2544
          %v2593 = vsub.f32 %v2459, %v2544
          %v2594 = vsub.f32 %v2460, %v2544
          %v2595 = vsub.f32 %v2461, %v2544
          %v2596 = vsub.f32 %v2462, %v2544
          %v2597 = vsub.f32 %v2463, %v2544
          %v2598 = vsub.f32 %v2464, %v2544
          %v2599 = vsub.f32 %v2465, %v2544
          %v2600 = vsub.f32 %v2466, %v2544
          %v2601 = vsub.f32 %v2467, %v2544
          %v2602 = vsub.f32 %v2468, %v2544
          %v2603 = vsub.f32 %v2469, %v2544
          %v2604 = vsub.f32 %v2470, %v2544
          %v2605 = vsub.f32 %v2471, %v2544
          %v2606 = vsub.f32 %v2472, %v2544
          %v2607 = vsub.f32 %v2473, %v2544
          %v2608 = vsub.f32 %v2474, %v2544
          %v2609 = vmul.f32 %v2545, %v2545
          %v2610 = vmul.f32 %v2546, %v2546
          %v2611 = vmul.f32 %v2547, %v2547
          %v2612 = vmul.f32 %v2548, %v2548
          %v2613 = vmul.f32 %v2549, %v2549
          %v2614 = vmul.f32 %v2550, %v2550
          %v2615 = vmul.f32 %v2551, %v2551
          %v2616 = vmul.f32 %v2552, %v2552
          %v2617 = vmul.f32 %v2553, %v2553
          %v2618 = vmul.f32 %v2554, %v2554
          %v2619 = vmul.f32 %v2555, %v2555
          %v2620 = vmul.f32 %v2556, %v2556
          %v2621 = vmul.f32 %v2557, %v2557
          %v2622 = vmul.f32 %v2558, %v2558
          %v2623 = vmul.f32 %v2559, %v2559
          %v2624 = vmul.f32 %v2560, %v2560
          %v2625 = vmul.f32 %v2561, %v2561
          %v2626 = vmul.f32 %v2562, %v2562
          %v2627 = vmul.f32 %v2563, %v2563
          %v2628 = vmul.f32 %v2564, %v2564
          %v2629 = vmul.f32 %v2565, %v2565
          %v2630 = vmul.f32 %v2566, %v2566
          %v2631 = vmul.f32 %v2567, %v2567
          %v2632 = vmul.f32 %v2568, %v2568
          %v2633 = vmul.f32 %v2569, %v2569
          %v2634 = vmul.f32 %v2570, %v2570
          %v2635 = vmul.f32 %v2571, %v2571
          %v2636 = vmul.f32 %v2572, %v2572
          %v2637 = vmul.f32 %v2573, %v2573
          %v2638 = vmul.f32 %v2574, %v2574
          %v2639 = vmul.f32 %v2575, %v2575
          %v2640 = vmul.f32 %v2576, %v2576
          %v2641 = vmul.f32 %v2577, %v2577
          %v2642 = vmul.f32 %v2578, %v2578
          %v2643 = vmul.f32 %v2579, %v2579
          %v2644 = vmul.f32 %v2580, %v2580
          %v2645 = vmul.f32 %v2581, %v2581
          %v2646 = vmul.f32 %v2582, %v2582
          %v2647 = vmul.f32 %v2583, %v2583
          %v2648 = vmul.f32 %v2584, %v2584
          %v2649 = vmul.f32 %v2585, %v2585
          %v2650 = vmul.f32 %v2586, %v2586
          %v2651 = vmul.f32 %v2587, %v2587
          %v2652 = vmul.f32 %v2588, %v2588
          %v2653 = vmul.f32 %v2589, %v2589
          %v2654 = vmul.f32 %v2590, %v2590
          %v2655 = vmul.f32 %v2591, %v2591
          %v2656 = vmul.f32 %v2592, %v2592
          %v2657 = vmul.f32 %v2593, %v2593
          %v2658 = vmul.f32 %v2594, %v2594
          %v2659 = vmul.f32 %v2595, %v2595
          %v2660 = vmul.f32 %v2596, %v2596
          %v2661 = vmul.f32 %v2597, %v2597
          %v2662 = vmul.f32 %v2598, %v2598
          %v2663 = vmul.f32 %v2599, %v2599
          %v2664 = vmul.f32 %v2600, %v2600
          %v2665 = vmul.f32 %v2601, %v2601
          %v2666 = vmul.f32 %v2602, %v2602
          %v2667 = vmul.f32 %v2603, %v2603
          %v2668 = vmul.f32 %v2604, %v2604
          %v2669 = vmul.f32 %v2605, %v2605
          %v2670 = vmul.f32 %v2606, %v2606
          %v2671 = vmul.f32 %v2607, %v2607
          %v2672 = vmul.f32 %v2608, %v2608
          %v2673 = vadd.f32 %v2609, %v2610
          %v2674 = vadd.f32 %v2673, %v2611
          %v2675 = vadd.f32 %v2674, %v2612
          %v2676 = vadd.f32 %v2675, %v2613
          %v2677 = vadd.f32 %v2676, %v2614
          %v2678 = vadd.f32 %v2677, %v2615
          %v2679 = vadd.f32 %v2678, %v2616
          %v2680 = vadd.f32 %v2679, %v2617
          %v2681 = vadd.f32 %v2680, %v2618
          %v2682 = vadd.f32 %v2681, %v2619
          %v2683 = vadd.f32 %v2682, %v2620
          %v2684 = vadd.f32 %v2683, %v2621
          %v2685 = vadd.f32 %v2684, %v2622
          %v2686 = vadd.f32 %v2685, %v2623
          %v2687 = vadd.f32 %v2686, %v2624
          %v2688 = vadd.f32 %v2687, %v2625
          %v2689 = vadd.f32 %v2688, %v2626
          %v2690 = vadd.f32 %v2689, %v2627
          %v2691 = vadd.f32 %v2690, %v2628
          %v2692 = vadd.f32 %v2691, %v2629
          %v2693 = vadd.f32 %v2692, %v2630
          %v2694 = vadd.f32 %v2693, %v2631
          %v2695 = vadd.f32 %v2694, %v2632
          %v2696 = vadd.f32 %v2695, %v2633
          %v2697 = vadd.f32 %v2696, %v2634
          %v2698 = vadd.f32 %v2697, %v2635
          %v2699 = vadd.f32 %v2698, %v2636
          %v2700 = vadd.f32 %v2699, %v2637
          %v2701 = vadd.f32 %v2700, %v2638
          %v2702 = vadd.f32 %v2701, %v2639
          %v2703 = vadd.f32 %v2702, %v2640
          %v2704 = vadd.f32 %v2703, %v2641
          %v2705 = vadd.f32 %v2704, %v2642
          %v2706 = vadd.f32 %v2705, %v2643
          %v2707 = vadd.f32 %v2706, %v2644
          %v2708 = vadd.f32 %v2707, %v2645
          %v2709 = vadd.f32 %v2708, %v2646
          %v2710 = vadd.f32 %v2709, %v2647
          %v2711 = vadd.f32 %v2710, %v2648
          %v2712 = vadd.f32 %v2711, %v2649
          %v2713 = vadd.f32 %v2712, %v2650
          %v2714 = vadd.f32 %v2713, %v2651
          %v2715 = vadd.f32 %v2714, %v2652
          %v2716 = vadd.f32 %v2715, %v2653
          %v2717 = vadd.f32 %v2716, %v2654
          %v2718 = vadd.f32 %v2717, %v2655
          %v2719 = vadd.f32 %v2718, %v2656
          %v2720 = vadd.f32 %v2719, %v2657
          %v2721 = vadd.f32 %v2720, %v2658
          %v2722 = vadd.f32 %v2721, %v2659
          %v2723 = vadd.f32 %v2722, %v2660
          %v2724 = vadd.f32 %v2723, %v2661
          %v2725 = vadd.f32 %v2724, %v2662
          %v2726 = vadd.f32 %v2725, %v2663
          %v2727 = vadd.f32 %v2726, %v2664
          %v2728 = vadd.f32 %v2727, %v2665
          %v2729 = vadd.f32 %v2728, %v2666
          %v2730 = vadd.f32 %v2729, %v2667
          %v2731 = vadd.f32 %v2730, %v2668
          %v2732 = vadd.f32 %v2731, %v2669
          %v2733 = vadd.f32 %v2732, %v2670
          %v2734 = vadd.f32 %v2733, %v2671
          %v2735 = vadd.f32 %v2734, %v2672
          %v2736 = vrot.slane %v2735, 4
          %v2737 = vadd.f32 %v2735, %v2736
          %v2738 = vrot.slane %v2737, 2
          %v2739 = vadd.f32 %v2737, %v2738
          %v2740 = vrot.slane %v2739, 1
          %v2741 = vadd.f32 %v2739, %v2740
          %v2742 = vmul.f32 %v2741, 0.001953125
          %v2743 = vadd.f32 %v2742, 1e-05
          %v2744 = vrsqrt.pop %v2743
          %v2745 = vld [vmem:[%s536] sm:$0x1]
          %v2746 = vmul.f32 %v2744, %v2745
          %v2747 = vlaneseq
          %v2748 = vshrl.u32 %v2747, 7
          %v2749 = vsub.s32 0, %v2748
          %v2750 = vrot.slane %v2746, %v2749
          %v2751 = vmul.f32 %v2545, %v2750
          %v2752 = vmul.f32 %v2546, %v2750
          %v2753 = vmul.f32 %v2547, %v2750
          %v2754 = vmul.f32 %v2548, %v2750
          %v2755 = vmul.f32 %v2549, %v2750
          %v2756 = vmul.f32 %v2550, %v2750
          %v2757 = vmul.f32 %v2551, %v2750
          %v2758 = vmul.f32 %v2552, %v2750
          %v2759 = vmul.f32 %v2553, %v2750
          %v2760 = vmul.f32 %v2554, %v2750
          %v2761 = vmul.f32 %v2555, %v2750
          %v2762 = vmul.f32 %v2556, %v2750
          %v2763 = vmul.f32 %v2557, %v2750
          %v2764 = vmul.f32 %v2558, %v2750
          %v2765 = vmul.f32 %v2559, %v2750
          %v2766 = vmul.f32 %v2560, %v2750
          %v2767 = vmul.f32 %v2561, %v2750
          %v2768 = vmul.f32 %v2562, %v2750
          %v2769 = vmul.f32 %v2563, %v2750
          %v2770 = vmul.f32 %v2564, %v2750
          %v2771 = vmul.f32 %v2565, %v2750
          %v2772 = vmul.f32 %v2566, %v2750
          %v2773 = vmul.f32 %v2567, %v2750
          %v2774 = vmul.f32 %v2568, %v2750
          %v2775 = vmul.f32 %v2569, %v2750
          %v2776 = vmul.f32 %v2570, %v2750
          %v2777 = vmul.f32 %v2571, %v2750
          %v2778 = vmul.f32 %v2572, %v2750
          %v2779 = vmul.f32 %v2573, %v2750
          %v2780 = vmul.f32 %v2574, %v2750
          %v2781 = vmul.f32 %v2575, %v2750
          %v2782 = vmul.f32 %v2576, %v2750
          %v2783 = vmul.f32 %v2577, %v2750
          %v2784 = vmul.f32 %v2578, %v2750
          %v2785 = vmul.f32 %v2579, %v2750
          %v2786 = vmul.f32 %v2580, %v2750
          %v2787 = vmul.f32 %v2581, %v2750
          %v2788 = vmul.f32 %v2582, %v2750
          %v2789 = vmul.f32 %v2583, %v2750
          %v2790 = vmul.f32 %v2584, %v2750
          %v2791 = vmul.f32 %v2585, %v2750
          %v2792 = vmul.f32 %v2586, %v2750
          %v2793 = vmul.f32 %v2587, %v2750
          %v2794 = vmul.f32 %v2588, %v2750
          %v2795 = vmul.f32 %v2589, %v2750
          %v2796 = vmul.f32 %v2590, %v2750
          %v2797 = vmul.f32 %v2591, %v2750
          %v2798 = vmul.f32 %v2592, %v2750
          %v2799 = vmul.f32 %v2593, %v2750
          %v2800 = vmul.f32 %v2594, %v2750
          %v2801 = vmul.f32 %v2595, %v2750
          %v2802 = vmul.f32 %v2596, %v2750
          %v2803 = vmul.f32 %v2597, %v2750
          %v2804 = vmul.f32 %v2598, %v2750
          %v2805 = vmul.f32 %v2599, %v2750
          %v2806 = vmul.f32 %v2600, %v2750
          %v2807 = vmul.f32 %v2601, %v2750
          %v2808 = vmul.f32 %v2602, %v2750
          %v2809 = vmul.f32 %v2603, %v2750
          %v2810 = vmul.f32 %v2604, %v2750
          %v2811 = vmul.f32 %v2605, %v2750
          %v2812 = vmul.f32 %v2606, %v2750
          %v2813 = vmul.f32 %v2607, %v2750
          %v2814 = vmul.f32 %v2608, %v2750
          %v2815 = vld [vmem:[%s539] sm:$0x1]
          %v2817 = vlaneseq
          %v2818 = vshrl.u32 %v2817, 7
          %v2819 = vsub.s32 0, %v2818
          %v2820 = vrot.slane %v2815, %v2819
          %v2822 = vadd.f32 %v2751, %v2820
          %v2823 = vadd.f32 %v2752, %v2820
          %v2824 = vadd.f32 %v2753, %v2820
          %v2825 = vadd.f32 %v2754, %v2820
          %v2826 = vadd.f32 %v2755, %v2820
          %v2827 = vadd.f32 %v2756, %v2820
          %v2828 = vadd.f32 %v2757, %v2820
          %v2829 = vadd.f32 %v2758, %v2820
          %v2830 = vadd.f32 %v2759, %v2820
          %v2831 = vadd.f32 %v2760, %v2820
          %v2832 = vadd.f32 %v2761, %v2820
          %v2833 = vadd.f32 %v2762, %v2820
          %v2834 = vadd.f32 %v2763, %v2820
          %v2835 = vadd.f32 %v2764, %v2820
          %v2836 = vadd.f32 %v2765, %v2820
          %v2837 = vadd.f32 %v2766, %v2820
          %v2838 = vadd.f32 %v2767, %v2820
          %v2839 = vadd.f32 %v2768, %v2820
          %v2840 = vadd.f32 %v2769, %v2820
          %v2841 = vadd.f32 %v2770, %v2820
          %v2842 = vadd.f32 %v2771, %v2820
          %v2843 = vadd.f32 %v2772, %v2820
          %v2844 = vadd.f32 %v2773, %v2820
          %v2845 = vadd.f32 %v2774, %v2820
          %v2846 = vadd.f32 %v2775, %v2820
          %v2847 = vadd.f32 %v2776, %v2820
          %v2848 = vadd.f32 %v2777, %v2820
          %v2849 = vadd.f32 %v2778, %v2820
          %v2850 = vadd.f32 %v2779, %v2820
          %v2851 = vadd.f32 %v2780, %v2820
          %v2852 = vadd.f32 %v2781, %v2820
          %v2853 = vadd.f32 %v2782, %v2820
          %v2854 = vadd.f32 %v2783, %v2820
          %v2855 = vadd.f32 %v2784, %v2820
          %v2856 = vadd.f32 %v2785, %v2820
          %v2857 = vadd.f32 %v2786, %v2820
          %v2858 = vadd.f32 %v2787, %v2820
          %v2859 = vadd.f32 %v2788, %v2820
          %v2860 = vadd.f32 %v2789, %v2820
          %v2861 = vadd.f32 %v2790, %v2820
          %v2862 = vadd.f32 %v2791, %v2820
          %v2863 = vadd.f32 %v2792, %v2820
          %v2864 = vadd.f32 %v2793, %v2820
          %v2865 = vadd.f32 %v2794, %v2820
          %v2866 = vadd.f32 %v2795, %v2820
          %v2867 = vadd.f32 %v2796, %v2820
          %v2868 = vadd.f32 %v2797, %v2820
          %v2869 = vadd.f32 %v2798, %v2820
          %v2870 = vadd.f32 %v2799, %v2820
          %v2871 = vadd.f32 %v2800, %v2820
          %v2872 = vadd.f32 %v2801, %v2820
          %v2873 = vadd.f32 %v2802, %v2820
          %v2874 = vadd.f32 %v2803, %v2820
          %v2875 = vadd.f32 %v2804, %v2820
          %v2876 = vadd.f32 %v2805, %v2820
          %v2877 = vadd.f32 %v2806, %v2820
          %v2878 = vadd.f32 %v2807, %v2820
          %v2879 = vadd.f32 %v2808, %v2820
          %v2880 = vadd.f32 %v2809, %v2820
          %v2881 = vadd.f32 %v2810, %v2820
          %v2882 = vadd.f32 %v2811, %v2820
          %v2883 = vadd.f32 %v2812, %v2820
          %v2884 = vadd.f32 %v2813, %v2820
          %v2885 = vadd.f32 %v2814, %v2820
          %vm2886 = vcmp.gt.f32.partialorder %v2822, 0.0
          %vm2887 = vcmp.gt.f32.partialorder %v2823, 0.0
          %vm2888 = vcmp.gt.f32.partialorder %v2824, 0.0
          %vm2889 = vcmp.gt.f32.partialorder %v2825, 0.0
          %vm2890 = vcmp.gt.f32.partialorder %v2826, 0.0
          %vm2891 = vcmp.gt.f32.partialorder %v2827, 0.0
          %vm2892 = vcmp.gt.f32.partialorder %v2828, 0.0
          %vm2893 = vcmp.gt.f32.partialorder %v2829, 0.0
          %vm2894 = vcmp.gt.f32.partialorder %v2830, 0.0
          %vm2895 = vcmp.gt.f32.partialorder %v2831, 0.0
          %vm2896 = vcmp.gt.f32.partialorder %v2832, 0.0
          %vm2897 = vcmp.gt.f32.partialorder %v2833, 0.0
          %vm2898 = vcmp.gt.f32.partialorder %v2834, 0.0
          %vm2899 = vcmp.gt.f32.partialorder %v2835, 0.0
          %vm2900 = vcmp.gt.f32.partialorder %v2836, 0.0
          %vm2901 = vcmp.gt.f32.partialorder %v2837, 0.0
          %vm2902 = vcmp.gt.f32.partialorder %v2838, 0.0
          %vm2903 = vcmp.gt.f32.partialorder %v2839, 0.0
          %vm2904 = vcmp.gt.f32.partialorder %v2840, 0.0
          %vm2905 = vcmp.gt.f32.partialorder %v2841, 0.0
          %vm2906 = vcmp.gt.f32.partialorder %v2842, 0.0
          %vm2907 = vcmp.gt.f32.partialorder %v2843, 0.0
          %vm2908 = vcmp.gt.f32.partialorder %v2844, 0.0
          %vm2909 = vcmp.gt.f32.partialorder %v2845, 0.0
          %vm2910 = vcmp.gt.f32.partialorder %v2846, 0.0
          %vm2911 = vcmp.gt.f32.partialorder %v2847, 0.0
          %vm2912 = vcmp.gt.f32.partialorder %v2848, 0.0
          %vm2913 = vcmp.gt.f32.partialorder %v2849, 0.0
          %vm2914 = vcmp.gt.f32.partialorder %v2850, 0.0
          %vm2915 = vcmp.gt.f32.partialorder %v2851, 0.0
          %vm2916 = vcmp.gt.f32.partialorder %v2852, 0.0
          %vm2917 = vcmp.gt.f32.partialorder %v2853, 0.0
          %vm2918 = vcmp.gt.f32.partialorder %v2854, 0.0
          %vm2919 = vcmp.gt.f32.partialorder %v2855, 0.0
          %vm2920 = vcmp.gt.f32.partialorder %v2856, 0.0
          %vm2921 = vcmp.gt.f32.partialorder %v2857, 0.0
          %vm2922 = vcmp.gt.f32.partialorder %v2858, 0.0
          %vm2923 = vcmp.gt.f32.partialorder %v2859, 0.0
          %vm2924 = vcmp.gt.f32.partialorder %v2860, 0.0
          %vm2925 = vcmp.gt.f32.partialorder %v2861, 0.0
          %vm2926 = vcmp.gt.f32.partialorder %v2862, 0.0
          %vm2927 = vcmp.gt.f32.partialorder %v2863, 0.0
          %vm2928 = vcmp.gt.f32.partialorder %v2864, 0.0
          %vm2929 = vcmp.gt.f32.partialorder %v2865, 0.0
          %vm2930 = vcmp.gt.f32.partialorder %v2866, 0.0
          %vm2931 = vcmp.gt.f32.partialorder %v2867, 0.0
          %vm2932 = vcmp.gt.f32.partialorder %v2868, 0.0
          %vm2933 = vcmp.gt.f32.partialorder %v2869, 0.0
          %vm2934 = vcmp.gt.f32.partialorder %v2870, 0.0
          %vm2935 = vcmp.gt.f32.partialorder %v2871, 0.0
          %vm2936 = vcmp.gt.f32.partialorder %v2872, 0.0
          %vm2937 = vcmp.gt.f32.partialorder %v2873, 0.0
          %vm2938 = vcmp.gt.f32.partialorder %v2874, 0.0
          %vm2939 = vcmp.gt.f32.partialorder %v2875, 0.0
          %vm2940 = vcmp.gt.f32.partialorder %v2876, 0.0
          %vm2941 = vcmp.gt.f32.partialorder %v2877, 0.0
          %vm2942 = vcmp.gt.f32.partialorder %v2878, 0.0
          %vm2943 = vcmp.gt.f32.partialorder %v2879, 0.0
          %vm2944 = vcmp.gt.f32.partialorder %v2880, 0.0
          %vm2945 = vcmp.gt.f32.partialorder %v2881, 0.0
          %vm2946 = vcmp.gt.f32.partialorder %v2882, 0.0
          %vm2947 = vcmp.gt.f32.partialorder %v2883, 0.0
          %vm2948 = vcmp.gt.f32.partialorder %v2884, 0.0
          %vm2949 = vcmp.gt.f32.partialorder %v2885, 0.0
          %v2950 = vmul.f32 %v2822, 0.2
          %v2951 = vmul.f32 %v2823, 0.2
          %v2952 = vmul.f32 %v2824, 0.2
          %v2953 = vmul.f32 %v2825, 0.2
          %v2954 = vmul.f32 %v2826, 0.2
          %v2955 = vmul.f32 %v2827, 0.2
          %v2956 = vmul.f32 %v2828, 0.2
          %v2957 = vmul.f32 %v2829, 0.2
          %v2958 = vmul.f32 %v2830, 0.2
          %v2959 = vmul.f32 %v2831, 0.2
          %v2960 = vmul.f32 %v2832, 0.2
          %v2961 = vmul.f32 %v2833, 0.2
          %v2962 = vmul.f32 %v2834, 0.2
          %v2963 = vmul.f32 %v2835, 0.2
          %v2964 = vmul.f32 %v2836, 0.2
          %v2965 = vmul.f32 %v2837, 0.2
          %v2966 = vmul.f32 %v2838, 0.2
          %v2967 = vmul.f32 %v2839, 0.2
          %v2968 = vmul.f32 %v2840, 0.2
          %v2969 = vmul.f32 %v2841, 0.2
          %v2970 = vmul.f32 %v2842, 0.2
          %v2971 = vmul.f32 %v2843, 0.2
          %v2972 = vmul.f32 %v2844, 0.2
          %v2973 = vmul.f32 %v2845, 0.2
          %v2974 = vmul.f32 %v2846, 0.2
          %v2975 = vmul.f32 %v2847, 0.2
          %v2976 = vmul.f32 %v2848, 0.2
          %v2977 = vmul.f32 %v2849, 0.2
          %v2978 = vmul.f32 %v2850, 0.2
          %v2979 = vmul.f32 %v2851, 0.2
          %v2980 = vmul.f32 %v2852, 0.2
          %v2981 = vmul.f32 %v2853, 0.2
          %v2982 = vmul.f32 %v2854, 0.2
          %v2983 = vmul.f32 %v2855, 0.2
          %v2984 = vmul.f32 %v2856, 0.2
          %v2985 = vmul.f32 %v2857, 0.2
          %v2986 = vmul.f32 %v2858, 0.2
          %v2987 = vmul.f32 %v2859, 0.2
          %v2988 = vmul.f32 %v2860, 0.2
          %v2989 = vmul.f32 %v2861, 0.2
          %v2990 = vmul.f32 %v2862, 0.2
          %v2991 = vmul.f32 %v2863, 0.2
          %v2992 = vmul.f32 %v2864, 0.2
          %v2993 = vmul.f32 %v2865, 0.2
          %v2994 = vmul.f32 %v2866, 0.2
          %v2995 = vmul.f32 %v2867, 0.2
          %v2996 = vmul.f32 %v2868, 0.2
          %v2997 = vmul.f32 %v2869, 0.2
          %v2998 = vmul.f32 %v2870, 0.2
          %v2999 = vmul.f32 %v2871, 0.2
          %v3000 = vmul.f32 %v2872, 0.2
          %v3001 = vmul.f32 %v2873, 0.2
          %v3002 = vmul.f32 %v2874, 0.2
          %v3003 = vmul.f32 %v2875, 0.2
          %v3004 = vmul.f32 %v2876, 0.2
          %v3005 = vmul.f32 %v2877, 0.2
          %v3006 = vmul.f32 %v2878, 0.2
          %v3007 = vmul.f32 %v2879, 0.2
          %v3008 = vmul.f32 %v2880, 0.2
          %v3009 = vmul.f32 %v2881, 0.2
          %v3010 = vmul.f32 %v2882, 0.2
          %v3011 = vmul.f32 %v2883, 0.2
          %v3012 = vmul.f32 %v2884, 0.2
          %v3013 = vmul.f32 %v2885, 0.2
          %v3014 = vsel %vm2886, %v2822, %v2950
          %v3015 = vsel %vm2887, %v2823, %v2951
          %v3016 = vsel %vm2888, %v2824, %v2952
          %v3017 = vsel %vm2889, %v2825, %v2953
          %v3018 = vsel %vm2890, %v2826, %v2954
          %v3019 = vsel %vm2891, %v2827, %v2955
          %v3020 = vsel %vm2892, %v2828, %v2956
          %v3021 = vsel %vm2893, %v2829, %v2957
          %v3022 = vsel %vm2894, %v2830, %v2958
          %v3023 = vsel %vm2895, %v2831, %v2959
          %v3024 = vsel %vm2896, %v2832, %v2960
          %v3025 = vsel %vm2897, %v2833, %v2961
          %v3026 = vsel %vm2898, %v2834, %v2962
          %v3027 = vsel %vm2899, %v2835, %v2963
          %v3028 = vsel %vm2900, %v2836, %v2964
          %v3029 = vsel %vm2901, %v2837, %v2965
          %v3030 = vsel %vm2902, %v2838, %v2966
          %v3031 = vsel %vm2903, %v2839, %v2967
          %v3032 = vsel %vm2904, %v2840, %v2968
          %v3033 = vsel %vm2905, %v2841, %v2969
          %v3034 = vsel %vm2906, %v2842, %v2970
          %v3035 = vsel %vm2907, %v2843, %v2971
          %v3036 = vsel %vm2908, %v2844, %v2972
          %v3037 = vsel %vm2909, %v2845, %v2973
          %v3038 = vsel %vm2910, %v2846, %v2974
          %v3039 = vsel %vm2911, %v2847, %v2975
          %v3040 = vsel %vm2912, %v2848, %v2976
          %v3041 = vsel %vm2913, %v2849, %v2977
          %v3042 = vsel %vm2914, %v2850, %v2978
          %v3043 = vsel %vm2915, %v2851, %v2979
          %v3044 = vsel %vm2916, %v2852, %v2980
          %v3045 = vsel %vm2917, %v2853, %v2981
          %v3046 = vsel %vm2918, %v2854, %v2982
          %v3047 = vsel %vm2919, %v2855, %v2983
          %v3048 = vsel %vm2920, %v2856, %v2984
          %v3049 = vsel %vm2921, %v2857, %v2985
          %v3050 = vsel %vm2922, %v2858, %v2986
          %v3051 = vsel %vm2923, %v2859, %v2987
          %v3052 = vsel %vm2924, %v2860, %v2988
          %v3053 = vsel %vm2925, %v2861, %v2989
          %v3054 = vsel %vm2926, %v2862, %v2990
          %v3055 = vsel %vm2927, %v2863, %v2991
          %v3056 = vsel %vm2928, %v2864, %v2992
          %v3057 = vsel %vm2929, %v2865, %v2993
          %v3058 = vsel %vm2930, %v2866, %v2994
          %v3059 = vsel %vm2931, %v2867, %v2995
          %v3060 = vsel %vm2932, %v2868, %v2996
          %v3061 = vsel %vm2933, %v2869, %v2997
          %v3062 = vsel %vm2934, %v2870, %v2998
          %v3063 = vsel %vm2935, %v2871, %v2999
          %v3064 = vsel %vm2936, %v2872, %v3000
          %v3065 = vsel %vm2937, %v2873, %v3001
          %v3066 = vsel %vm2938, %v2874, %v3002
          %v3067 = vsel %vm2939, %v2875, %v3003
          %v3068 = vsel %vm2940, %v2876, %v3004
          %v3069 = vsel %vm2941, %v2877, %v3005
          %v3070 = vsel %vm2942, %v2878, %v3006
          %v3071 = vsel %vm2943, %v2879, %v3007
          %v3072 = vsel %vm2944, %v2880, %v3008
          %v3073 = vsel %vm2945, %v2881, %v3009
          %v3074 = vsel %vm2946, %v2882, %v3010
          %v3075 = vsel %vm2947, %v2883, %v3011
          %v3076 = vsel %vm2948, %v2884, %v3012
          %v3077 = vsel %vm2949, %v2885, %v3013
          %v3078 = vpack.c.bf16 %v3015, %v3014
          %v3079 = vpack.c.bf16 %v3017, %v3016
          %v3080 = vpack.c.bf16 %v3019, %v3018
          %v3081 = vpack.c.bf16 %v3021, %v3020
          %v3082 = vpack.c.bf16 %v3023, %v3022
          %v3083 = vpack.c.bf16 %v3025, %v3024
          %v3084 = vpack.c.bf16 %v3027, %v3026
          %v3085 = vpack.c.bf16 %v3029, %v3028
          %v3086 = vpack.c.bf16 %v3031, %v3030
          %v3087 = vpack.c.bf16 %v3033, %v3032
          %v3088 = vpack.c.bf16 %v3035, %v3034
          %v3089 = vpack.c.bf16 %v3037, %v3036
          %v3090 = vpack.c.bf16 %v3039, %v3038
          %v3091 = vpack.c.bf16 %v3041, %v3040
          %v3092 = vpack.c.bf16 %v3043, %v3042
          %v3093 = vpack.c.bf16 %v3045, %v3044
          %v3094 = vpack.c.bf16 %v3047, %v3046
          %v3095 = vpack.c.bf16 %v3049, %v3048
          %v3096 = vpack.c.bf16 %v3051, %v3050
          %v3097 = vpack.c.bf16 %v3053, %v3052
          %v3098 = vpack.c.bf16 %v3055, %v3054
          %v3099 = vpack.c.bf16 %v3057, %v3056
          %v3100 = vpack.c.bf16 %v3059, %v3058
          %v3101 = vpack.c.bf16 %v3061, %v3060
          %v3102 = vpack.c.bf16 %v3063, %v3062
          %v3103 = vpack.c.bf16 %v3065, %v3064
          %v3104 = vpack.c.bf16 %v3067, %v3066
          %v3105 = vpack.c.bf16 %v3069, %v3068
          %v3106 = vpack.c.bf16 %v3071, %v3070
          %v3107 = vpack.c.bf16 %v3073, %v3072
          %v3108 = vpack.c.bf16 %v3075, %v3074
          %v3109 = vpack.c.bf16 %v3077, %v3076
          %v3142 = vunpack.c.l.b16 %v3078
          %v3143 = vunpack.c.h.b16 %v3078
          %v3144 = vunpack.c.l.b16 %v3079
          %v3145 = vunpack.c.h.b16 %v3079
          %v3146 = vunpack.c.l.b16 %v3080
          %v3147 = vunpack.c.h.b16 %v3080
          %v3148 = vunpack.c.l.b16 %v3081
          %v3149 = vunpack.c.h.b16 %v3081
          %v3150 = vunpack.c.l.b16 %v3082
          %v3151 = vunpack.c.h.b16 %v3082
          %v3152 = vunpack.c.l.b16 %v3083
          %v3153 = vunpack.c.h.b16 %v3083
          %v3154 = vunpack.c.l.b16 %v3084
          %v3155 = vunpack.c.h.b16 %v3084
          %v3156 = vunpack.c.l.b16 %v3085
          %v3157 = vunpack.c.h.b16 %v3085
          %v3158 = vunpack.c.l.b16 %v3086
          %v3159 = vunpack.c.h.b16 %v3086
          %v3160 = vunpack.c.l.b16 %v3087
          %v3161 = vunpack.c.h.b16 %v3087
          %v3162 = vunpack.c.l.b16 %v3088
          %v3163 = vunpack.c.h.b16 %v3088
          %v3164 = vunpack.c.l.b16 %v3089
          %v3165 = vunpack.c.h.b16 %v3089
          %v3166 = vunpack.c.l.b16 %v3090
          %v3167 = vunpack.c.h.b16 %v3090
          %v3168 = vunpack.c.l.b16 %v3091
          %v3169 = vunpack.c.h.b16 %v3091
          %v3170 = vunpack.c.l.b16 %v3092
          %v3171 = vunpack.c.h.b16 %v3092
          %v3172 = vunpack.c.l.b16 %v3093
          %v3173 = vunpack.c.h.b16 %v3093
          %v3174 = vunpack.c.l.b16 %v3094
          %v3175 = vunpack.c.h.b16 %v3094
          %v3176 = vunpack.c.l.b16 %v3095
          %v3177 = vunpack.c.h.b16 %v3095
          %v3178 = vunpack.c.l.b16 %v3096
          %v3179 = vunpack.c.h.b16 %v3096
          %v3180 = vunpack.c.l.b16 %v3097
          %v3181 = vunpack.c.h.b16 %v3097
          %v3182 = vunpack.c.l.b16 %v3098
          %v3183 = vunpack.c.h.b16 %v3098
          %v3184 = vunpack.c.l.b16 %v3099
          %v3185 = vunpack.c.h.b16 %v3099
          %v3186 = vunpack.c.l.b16 %v3100
          %v3187 = vunpack.c.h.b16 %v3100
          %v3188 = vunpack.c.l.b16 %v3101
          %v3189 = vunpack.c.h.b16 %v3101
          %v3190 = vunpack.c.l.b16 %v3102
          %v3191 = vunpack.c.h.b16 %v3102
          %v3192 = vunpack.c.l.b16 %v3103
          %v3193 = vunpack.c.h.b16 %v3103
          %v3194 = vunpack.c.l.b16 %v3104
          %v3195 = vunpack.c.h.b16 %v3104
          %v3196 = vunpack.c.l.b16 %v3105
          %v3197 = vunpack.c.h.b16 %v3105
          %v3198 = vunpack.c.l.b16 %v3106
          %v3199 = vunpack.c.h.b16 %v3106
          %v3200 = vunpack.c.l.b16 %v3107
          %v3201 = vunpack.c.h.b16 %v3107
          %v3202 = vunpack.c.l.b16 %v3108
          %v3203 = vunpack.c.h.b16 %v3108
          %v3204 = vunpack.c.l.b16 %v3109
          %v3205 = vunpack.c.h.b16 %v3109
          %v3206 = vpack.c.b16 %v3142, %v3142
          %v3207 = vpack.c.b16 %v3143, %v3143
          %v3208 = vpack.c.b16 %v3144, %v3144
          %v3209 = vpack.c.b16 %v3145, %v3145
          %v3210 = vpack.c.b16 %v3146, %v3146
          %v3211 = vpack.c.b16 %v3147, %v3147
          %v3212 = vpack.c.b16 %v3148, %v3148
          %v3213 = vpack.c.b16 %v3149, %v3149
          %v3214 = vpack.c.b16 %v3150, %v3150
          %v3215 = vpack.c.b16 %v3151, %v3151
          %v3216 = vpack.c.b16 %v3152, %v3152
          %v3217 = vpack.c.b16 %v3153, %v3153
          %v3218 = vpack.c.b16 %v3154, %v3154
          %v3219 = vpack.c.b16 %v3155, %v3155
          %v3220 = vpack.c.b16 %v3156, %v3156
          %v3221 = vpack.c.b16 %v3157, %v3157
          %v3222 = vpack.c.b16 %v3158, %v3158
          %v3223 = vpack.c.b16 %v3159, %v3159
          %v3224 = vpack.c.b16 %v3160, %v3160
          %v3225 = vpack.c.b16 %v3161, %v3161
          %v3226 = vpack.c.b16 %v3162, %v3162
          %v3227 = vpack.c.b16 %v3163, %v3163
          %v3228 = vpack.c.b16 %v3164, %v3164
          %v3229 = vpack.c.b16 %v3165, %v3165
          %v3230 = vpack.c.b16 %v3166, %v3166
          %v3231 = vpack.c.b16 %v3167, %v3167
          %v3232 = vpack.c.b16 %v3168, %v3168
          %v3233 = vpack.c.b16 %v3169, %v3169
          %v3234 = vpack.c.b16 %v3170, %v3170
          %v3235 = vpack.c.b16 %v3171, %v3171
          %v3236 = vpack.c.b16 %v3172, %v3172
          %v3237 = vpack.c.b16 %v3173, %v3173
          %v3238 = vpack.c.b16 %v3174, %v3174
          %v3239 = vpack.c.b16 %v3175, %v3175
          %v3240 = vpack.c.b16 %v3176, %v3176
          %v3241 = vpack.c.b16 %v3177, %v3177
          %v3242 = vpack.c.b16 %v3178, %v3178
          %v3243 = vpack.c.b16 %v3179, %v3179
          %v3244 = vpack.c.b16 %v3180, %v3180
          %v3245 = vpack.c.b16 %v3181, %v3181
          %v3246 = vpack.c.b16 %v3182, %v3182
          %v3247 = vpack.c.b16 %v3183, %v3183
          %v3248 = vpack.c.b16 %v3184, %v3184
          %v3249 = vpack.c.b16 %v3185, %v3185
          %v3250 = vpack.c.b16 %v3186, %v3186
          %v3251 = vpack.c.b16 %v3187, %v3187
          %v3252 = vpack.c.b16 %v3188, %v3188
          %v3253 = vpack.c.b16 %v3189, %v3189
          %v3254 = vpack.c.b16 %v3190, %v3190
          %v3255 = vpack.c.b16 %v3191, %v3191
          %v3256 = vpack.c.b16 %v3192, %v3192
          %v3257 = vpack.c.b16 %v3193, %v3193
          %v3258 = vpack.c.b16 %v3194, %v3194
          %v3259 = vpack.c.b16 %v3195, %v3195
          %v3260 = vpack.c.b16 %v3196, %v3196
          %v3261 = vpack.c.b16 %v3197, %v3197
          %v3262 = vpack.c.b16 %v3198, %v3198
          %v3263 = vpack.c.b16 %v3199, %v3199
          %v3264 = vpack.c.b16 %v3200, %v3200
          %v3265 = vpack.c.b16 %v3201, %v3201
          %v3266 = vpack.c.b16 %v3202, %v3202
          %v3267 = vpack.c.b16 %v3203, %v3203
          %v3268 = vpack.c.b16 %v3204, %v3204
          %v3269 = vpack.c.b16 %v3205, %v3205
          %3334 = vst [vmem:[%s543] sm:$0xf] %v3206
          %3335 = vst [vmem:[%s543 + $0x4] sm:$0xf] %v3207
          %3336 = vst [vmem:[%s543 + $0x8] sm:$0xf] %v3208
          %3337 = vst [vmem:[%s543 + $0xc] sm:$0xf] %v3209
          %3338 = vst [vmem:[%s543 + $0x10] sm:$0xf] %v3210
          %3339 = vst [vmem:[%s543 + $0x14] sm:$0xf] %v3211
          %3340 = vst [vmem:[%s543 + $0x18] sm:$0xf] %v3212
          %3341 = vst [vmem:[%s543 + $0x1c] sm:$0xf] %v3213
          %3342 = vst [vmem:[%s543 + $0x20] sm:$0xf] %v3214
          %3343 = vst [vmem:[%s543 + $0x24] sm:$0xf] %v3215
          %3344 = vst [vmem:[%s543 + $0x28] sm:$0xf] %v3216
          %3345 = vst [vmem:[%s543 + $0x2c] sm:$0xf] %v3217
          %3346 = vst [vmem:[%s543 + $0x30] sm:$0xf] %v3218
          %3347 = vst [vmem:[%s543 + $0x34] sm:$0xf] %v3219
          %3348 = vst [vmem:[%s543 + $0x38] sm:$0xf] %v3220
          %3349 = vst [vmem:[%s543 + $0x3c] sm:$0xf] %v3221
          %3350 = vst [vmem:[%s543 + $0x40] sm:$0xf] %v3222
          %3351 = vst [vmem:[%s543 + $0x44] sm:$0xf] %v3223
          %3352 = vst [vmem:[%s543 + $0x48] sm:$0xf] %v3224
          %3353 = vst [vmem:[%s543 + $0x4c] sm:$0xf] %v3225
          %3354 = vst [vmem:[%s543 + $0x50] sm:$0xf] %v3226
          %3355 = vst [vmem:[%s543 + $0x54] sm:$0xf] %v3227
          %3356 = vst [vmem:[%s543 + $0x58] sm:$0xf] %v3228
          %3357 = vst [vmem:[%s543 + $0x5c] sm:$0xf] %v3229
          %3358 = vst [vmem:[%s543 + $0x60] sm:$0xf] %v3230
          %3359 = vst [vmem:[%s543 + $0x64] sm:$0xf] %v3231
          %3360 = vst [vmem:[%s543 + $0x68] sm:$0xf] %v3232
          %3361 = vst [vmem:[%s543 + $0x6c] sm:$0xf] %v3233
          %3362 = vst [vmem:[%s543 + $0x70] sm:$0xf] %v3234
          %3363 = vst [vmem:[%s543 + $0x74] sm:$0xf] %v3235
          %3364 = vst [vmem:[%s543 + $0x78] sm:$0xf] %v3236
          %3365 = vst [vmem:[%s543 + $0x7c] sm:$0xf] %v3237
          %3366 = vst [vmem:[%s543 + $0x80] sm:$0xf] %v3238
          %3367 = vst [vmem:[%s543 + $0x84] sm:$0xf] %v3239
          %3368 = vst [vmem:[%s543 + $0x88] sm:$0xf] %v3240
          %3369 = vst [vmem:[%s543 + $0x8c] sm:$0xf] %v3241
          %3370 = vst [vmem:[%s543 + $0x90] sm:$0xf] %v3242
          %3371 = vst [vmem:[%s543 + $0x94] sm:$0xf] %v3243
          %3372 = vst [vmem:[%s543 + $0x98] sm:$0xf] %v3244
          %3373 = vst [vmem:[%s543 + $0x9c] sm:$0xf] %v3245
          %3374 = vst [vmem:[%s543 + $0xa0] sm:$0xf] %v3246
          %3375 = vst [vmem:[%s543 + $0xa4] sm:$0xf] %v3247
          %3376 = vst [vmem:[%s543 + $0xa8] sm:$0xf] %v3248
          %3377 = vst [vmem:[%s543 + $0xac] sm:$0xf] %v3249
          %3378 = vst [vmem:[%s543 + $0xb0] sm:$0xf] %v3250
          %3379 = vst [vmem:[%s543 + $0xb4] sm:$0xf] %v3251
          %3380 = vst [vmem:[%s543 + $0xb8] sm:$0xf] %v3252
          %3381 = vst [vmem:[%s543 + $0xbc] sm:$0xf] %v3253
          %3382 = vst [vmem:[%s543 + $0xc0] sm:$0xf] %v3254
          %3383 = vst [vmem:[%s543 + $0xc4] sm:$0xf] %v3255
          %3384 = vst [vmem:[%s543 + $0xc8] sm:$0xf] %v3256
          %3385 = vst [vmem:[%s543 + $0xcc] sm:$0xf] %v3257
          %3386 = vst [vmem:[%s543 + $0xd0] sm:$0xf] %v3258
          %3387 = vst [vmem:[%s543 + $0xd4] sm:$0xf] %v3259
          %3388 = vst [vmem:[%s543 + $0xd8] sm:$0xf] %v3260
          %3389 = vst [vmem:[%s543 + $0xdc] sm:$0xf] %v3261
          %3390 = vst [vmem:[%s543 + $0xe0] sm:$0xf] %v3262
          %3391 = vst [vmem:[%s543 + $0xe4] sm:$0xf] %v3263
          %3392 = vst [vmem:[%s543 + $0xe8] sm:$0xf] %v3264
          %3393 = vst [vmem:[%s543 + $0xec] sm:$0xf] %v3265
          %3394 = vst [vmem:[%s543 + $0xf0] sm:$0xf] %v3266
          %3395 = vst [vmem:[%s543 + $0xf4] sm:$0xf] %v3267
          %3396 = vst [vmem:[%s543 + $0xf8] sm:$0xf] %v3268
          %3397 = vst [vmem:[%s543 + $0xfc] sm:$0xf] %v3269
        $region67: #{discriminator_forward.5} parent=54 // pred_fallthru
          _
        %p3398 = scmp.lt.s32.totalorder %s19, 0
        %s3399 = scalar_select %p3398, %s19, 0
        %s3400 = smul.addr %s3399, 4
        %s3401 = scalar_lea.vmem %s4, %s3400
        // Predicated region
        $region68: #{discriminator_forward.5} parent=54 // pred_check
          %p3402 = pneg %p151
        $region69: #{discriminator_forward.5} parent=54 // pred_check_branch
          %3404 = sbr.rel (%p3402) target = $region71
        $region70: #{discriminator_forward.5} parent=54 // pred_region
          _
        $region71: #{discriminator_forward.5} parent=54 // pred_fallthru
          _
        // Predicated region
        $region72: #{discriminator_forward.5} parent=54 // pred_check
          %p3405 = pneg %p151
        $region73: #{discriminator_forward.5} parent=54 // pred_check_branch
          %3407 = sbr.rel (%p3405) target = $region75
        $region74: #{discriminator_forward.5} parent=54 // pred_region
          %p3408 = scmp.lt.s32.totalorder %s19, 0
          %s3409 = scalar_select %p3408, %s19, 0
          %s3410 = smul.addr %s3409, 4
          %s3411 = scalar_lea.vmem %s4, %s3410
        $region75: #{discriminator_forward.5} parent=54 // pred_fallthru
          _
      $region55: #{discriminator_forward.5} parent=5 // pred_fallthru
        _
      %p3412 = scmp.le.s32.totalorder 2, %s10
      // Predicated region
      $region76: #{discriminator_forward.5} parent=5 // pred_check
        %p3413 = pneg %p3412
      $region77: #{discriminator_forward.5} parent=5 // pred_check_branch
        %3415 = sbr.rel (%p3413) target = $region79
      $region78: #{discriminator_forward.5} parent=5 // pred_region
        %s3416 = ssub.s32 %s10, 2
      $region79: #{discriminator_forward.5} parent=5 // pred_fallthru
        _
    $region6: #{discriminator_forward.5} parent=1 // loop_footer
      %s14 = sadd.s32 1, %s10
    $region7: #{discriminator_forward.5} parent=1 // loop_footer_branch
      %9 = sbr.rel target = $region3
    $region8: #{discriminator_forward.5} parent=1 // loop_exit
      _

// kernel: discriminator_forward.6
$region0: #{discriminator_forward.6}
  #allocation0 [shape = 'u32[]', space=smem, size = 0x4, offset = 0x4, fixed_abs, tag = 'smem constant byte address 0x4 - core index']
  #allocation1 [shape = 'u32[144,128]{1,0:T(1,128)}', space=vmem, size = 0x12000, scoped, tag = 'internal scratch']
  #allocation2 [shape = 'f32[128,128]{1,0:T(8,128)}', space=vmem, size = 0x10000, scoped, tag = 'scratch operand']
  %s0 = inlined_call_operand.vmem [shape: bf16[128,2048], index: 0, kind: input, shape index: {}]
  %s1 = inlined_call_operand.vmem [shape: bf16[2048,256], index: 1, kind: input, shape index: {}]
  %s2 = inlined_call_operand.vmem [shape: f32[1,256], index: 2, kind: input, shape index: {}]
  %s3 = inlined_call_operand.vmem [shape: f32[1,256], index: 3, kind: input, shape index: {}]
  %s4 = inlined_call_operand.vmem [shape: bf16[128,256], index: 4, kind: output, shape index: {}]
  %s5 = sld [smem:[#allocation0]]
  $region158: #{discriminator_forward.6} parent=0
    _
  %s7 = ssub.s32 1, %s5
  %s8 = scalar_select 0, %s7, %s5
  $region1: #{discriminator_forward.6} parent=0
    #allocation3 [shape = 'u8[262144]{0}', space=vmem, size = 0x40000, scoped, tag = 'input window, operand 0']
    #allocation4 [shape = 'u8[262144]{0}', space=vmem, size = 0x40000, scoped, tag = 'input window, operand 1']
    #allocation5 [shape = 'u8[65536]{0}', space=vmem, size = 0x10000, scoped, tag = 'output window, operand 0']
    loop: start=0, step=1, limit=10
    $region2: #{discriminator_forward.6} parent=1 // loop_pre_header
      _
    $region3: #{discriminator_forward.6} parent=1 // loop_header
      %s10 = sphi 0, %s14
      %p11 = scmp.ge.s32.totalorder %s10, 10
      %s17 = sphi 0, %s29
      %s18 = sphi 0, %s25
      %s19 = sphi 0, %s17
      %s20 = sphi 0, %s18
      %s21 = sphi 0, %s19
      %s22 = sphi 0, %s20
      %s32 = sphi 0, %s34
      %s35 = sphi 0, %s32
      %s36 = sphi 0, %s35
      %s52 = sphi 0, %s36
      %s60 = sphi 0, %s62
      %s63 = sphi 0, %s60
      %s64 = sphi 0, %s63
      %s80 = sphi 0, %s64
      %s86 = sphi 0, %s88
      %s89 = sphi 0, %s86
      %s90 = sphi 0, %s89
      %s106 = sphi 0, %s90
      %s112 = sphi 0, %s114
      %s115 = sphi 0, %s112
      %s116 = sphi 0, %s115
      %s132 = sphi 0, %s116
      %s138 = sphi 0, %s140
      %s141 = sphi 0, %s138
      %s142 = sphi 0, %s141
      %s158 = sphi 0, %s142
    $region4: #{discriminator_forward.6} parent=1 // loop_header_branch
      %13 = sbr.rel (%p11) target = $region8
    $region5: #{discriminator_forward.6} parent=1 // loop_body
      %s15 = ssub.s32 %s10, 1
      %s16 = ssub.s32 %s10, 2
      %s23 = sadd.s32 1, %s18
      %p24 = scmp.ge.s32.totalorder %s23, 4
      %s25 = scalar_select %p24, 0, %s23
      %s26 = sadd.s32 1, %s17
      %s27 = scalar_select %p24, %s26, %s17
      %p28 = scmp.ge.s32.totalorder %s27, 2
      %s29 = scalar_select %p28, 0, %s27
      %s30 = ssub.s32 %s18, %s25
      %p31 = scmp.eq.s32.totalorder %s30, 0
      %s33 = sadd.s32 %s32, 1
      %s34 = scalar_select %p31, %s32, %s33
      %p37 = pneg %p31
      %p38 = scmp.eq.s32.totalorder %s10, 7
      %p39 = por %p37, %p38
      %p40 = scmp.ne.s32.totalorder %s32, %s35
      %p41 = scmp.eq.s32.totalorder %s10, 0
      %p42 = por %p40, %p41
      %p43 = scmp.ne.s32.totalorder %s32, %s35
      %p44 = scmp.eq.s32.totalorder %s15, 7
      %p45 = por %p43, %p44
      %p46 = scmp.ne.s32.totalorder %s35, %s36
      %p47 = scmp.eq.s32.totalorder %s15, 0
      %p48 = por %p46, %p47
      %p49 = scmp.ne.s32.totalorder %s35, %s36
      %p50 = scmp.eq.s32.totalorder %s16, 7
      %p51 = por %p49, %p50
      %p53 = scmp.ne.s32.totalorder %s36, %s52
      %p54 = scmp.eq.s32.totalorder %s16, 0
      %p55 = por %p53, %p54
      %s56 = ssub.s32 %s18, %s25
      %s57 = ssub.s32 %s17, %s29
      %s58 = sor.u32 %s56, %s57
      %p59 = scmp.eq.s32.totalorder %s58, 0
      %s61 = sadd.s32 %s60, 1
      %s62 = scalar_select %p59, %s60, %s61
      %p65 = pneg %p59
      %p66 = scmp.eq.s32.totalorder %s10, 7
      %p67 = por %p65, %p66
      %p68 = scmp.ne.s32.totalorder %s60, %s63
      %p69 = scmp.eq.s32.totalorder %s10, 0
      %p70 = por %p68, %p69
      %p71 = scmp.ne.s32.totalorder %s60, %s63
      %p72 = scmp.eq.s32.totalorder %s15, 7
      %p73 = por %p71, %p72
      %p74 = scmp.ne.s32.totalorder %s63, %s64
      %p75 = scmp.eq.s32.totalorder %s15, 0
      %p76 = por %p74, %p75
      %p77 = scmp.ne.s32.totalorder %s63, %s64
      %p78 = scmp.eq.s32.totalorder %s16, 7
      %p79 = por %p77, %p78
      %p81 = scmp.ne.s32.totalorder %s64, %s80
      %p82 = scmp.eq.s32.totalorder %s16, 0
      %p83 = por %p81, %p82
      %s84 = ssub.s32 %s17, %s29
      %p85 = scmp.eq.s32.totalorder %s84, 0
      %s87 = sadd.s32 %s86, 1
      %s88 = scalar_select %p85, %s86, %s87
      %p91 = pneg %p85
      %p92 = scmp.eq.s32.totalorder %s10, 7
      %p93 = por %p91, %p92
      %p94 = scmp.ne.s32.totalorder %s86, %s89
      %p95 = scmp.eq.s32.totalorder %s10, 0
      %p96 = por %p94, %p95
      %p97 = scmp.ne.s32.totalorder %s86, %s89
      %p98 = scmp.eq.s32.totalorder %s15, 7
      %p99 = por %p97, %p98
      %p100 = scmp.ne.s32.totalorder %s89, %s90
      %p101 = scmp.eq.s32.totalorder %s15, 0
      %p102 = por %p100, %p101
      %p103 = scmp.ne.s32.totalorder %s89, %s90
      %p104 = scmp.eq.s32.totalorder %s16, 7
      %p105 = por %p103, %p104
      %p107 = scmp.ne.s32.totalorder %s90, %s106
      %p108 = scmp.eq.s32.totalorder %s16, 0
      %p109 = por %p107, %p108
      %s110 = ssub.s32 %s17, %s29
      %p111 = scmp.eq.s32.totalorder %s110, 0
      %s113 = sadd.s32 %s112, 1
      %s114 = scalar_select %p111, %s112, %s113
      %p117 = pneg %p111
      %p118 = scmp.eq.s32.totalorder %s10, 7
      %p119 = por %p117, %p118
      %p120 = scmp.ne.s32.totalorder %s112, %s115
      %p121 = scmp.eq.s32.totalorder %s10, 0
      %p122 = por %p120, %p121
      %p123 = scmp.ne.s32.totalorder %s112, %s115
      %p124 = scmp.eq.s32.totalorder %s15, 7
      %p125 = por %p123, %p124
      %p126 = scmp.ne.s32.totalorder %s115, %s116
      %p127 = scmp.eq.s32.totalorder %s15, 0
      %p128 = por %p126, %p127
      %p129 = scmp.ne.s32.totalorder %s115, %s116
      %p130 = scmp.eq.s32.totalorder %s16, 7
      %p131 = por %p129, %p130
      %p133 = scmp.ne.s32.totalorder %s116, %s132
      %p134 = scmp.eq.s32.totalorder %s16, 0
      %p135 = por %p133, %p134
      %s136 = ssub.s32 %s17, %s29
      %p137 = scmp.eq.s32.totalorder %s136, 0
      %s139 = sadd.s32 %s138, 1
      %s140 = scalar_select %p137, %s138, %s139
      %p143 = pneg %p137
      %p144 = scmp.eq.s32.totalorder %s10, 7
      %p145 = por %p143, %p144
      %p146 = scmp.ne.s32.totalorder %s138, %s141
      %p147 = scmp.eq.s32.totalorder %s10, 0
      %p148 = por %p146, %p147
      %p149 = scmp.ne.s32.totalorder %s138, %s141
      %p150 = scmp.eq.s32.totalorder %s15, 7
      %p151 = por %p149, %p150
      %p152 = scmp.ne.s32.totalorder %s141, %s142
      %p153 = scmp.eq.s32.totalorder %s15, 0
      %p154 = por %p152, %p153
      %p155 = scmp.ne.s32.totalorder %s141, %s142
      %p156 = scmp.eq.s32.totalorder %s16, 7
      %p157 = por %p155, %p156
      %p159 = scmp.ne.s32.totalorder %s142, %s158
      %p160 = scmp.eq.s32.totalorder %s16, 0
      %p161 = por %p159, %p160
      %p162 = scmp.le.s32.totalorder 1, %s10
      %p163 = scmp.lt.s32.totalorder %s10, 9
      %p164 = pnand %p162, %p163
      %p165 = pneg %p164
      // Predicated region
      $region9: #{discriminator_forward.6} parent=5 // pred_check
        _
      $region10: #{discriminator_forward.6} parent=5 // pred_check_branch
        %167 = sbr.rel (%p164) target = $region12
      $region11: #{discriminator_forward.6} parent=5 // pred_region
        %s168 = ssub.s32 %s10, 1
      $region12: #{discriminator_forward.6} parent=5 // pred_fallthru
        _
      %p169 = scmp.lt.s32.totalorder %s10, 8
      // Predicated region
      $region13: #{discriminator_forward.6} parent=5 // pred_check
        %p170 = pneg %p169
      $region14: #{discriminator_forward.6} parent=5 // pred_check_branch
        %172 = sbr.rel (%p170) target = $region16
      $region15: #{discriminator_forward.6} parent=5 // pred_region
        // Predicated region
        $region17: #{discriminator_forward.6} parent=15 // pred_check
          %p173 = pneg %p42
        $region18: #{discriminator_forward.6} parent=15 // pred_check_branch
          %175 = sbr.rel (%p173) target = $region20
        $region19: #{discriminator_forward.6} parent=15 // pred_region
          %s176 = sand.u32 %s32, 1
          %s177 = sand.u32 %s32, 1
          %s178 = smul.addr %s177, 256
          %s179 = scalar_lea.vmem [#allocation3], %s178
          %s180 = smul.u32 4, %s18
          %s181 = smul.addr %s180, 4
          %s182 = scalar_lea.vmem %s0, %s181
          // Predicated region
          $region21: #{discriminator_forward.6} parent=19 // pred_check
            _
          $region22: #{discriminator_forward.6} parent=19 // pred_check_branch
            %184 = sbr.rel (0) target = $region24
          $region23: #{discriminator_forward.6} parent=19 // pred_region
            // Predicated region
            $region25: #{discriminator_forward.6} parent=23 // pred_check
              _
            $region26: #{discriminator_forward.6} parent=23 // pred_check_branch
              %186 = sbr.rel (0) target = $region28
            $region27: #{discriminator_forward.6} parent=23 // pred_region
              loop: start=0, step=1, limit=1
              $region29: #{discriminator_forward.6} parent=27 // loop_pre_header
                _
              $region30: #{discriminator_forward.6} parent=27 // loop_header
                %s188 = sphi 0, %s192
                %p189 = scmp.ge.s32.totalorder %s188, 1
                %s193 = sphi %s182, %s182
                %s194 = sphi %s179, %s179
              $region31: #{discriminator_forward.6} parent=27 // loop_header_branch
                %191 = sbr.rel (%p189) target = $region35
              $region32: #{discriminator_forward.6} parent=27 // loop_body
                %v195 = vld [vmem:[%s193] sm:$0xff]
                %196 = vst [vmem:[%s194] sm:$0xff] %v195
                %v197 = vld [vmem:[%s193 + $0x8] sm:$0xff]
                %198 = vst [vmem:[%s194 + $0x8] sm:$0xff] %v197
                %v199 = vld [vmem:[%s193 + $0x40] sm:$0xff]
                %200 = vst [vmem:[%s194 + $0x10] sm:$0xff] %v199
                %v201 = vld [vmem:[%s193 + $0x48] sm:$0xff]
                %202 = vst [vmem:[%s194 + $0x18] sm:$0xff] %v201
                %v203 = vld [vmem:[%s193 + $0x80] sm:$0xff]
                %204 = vst [vmem:[%s194 + $0x20] sm:$0xff] %v203
                %v205 = vld [vmem:[%s193 + $0x88] sm:$0xff]
                %206 = vst [vmem:[%s194 + $0x28] sm:$0xff] %v205
                %v207 = vld [vmem:[%s193 + $0xc0] sm:$0xff]
                %208 = vst [vmem:[%s194 + $0x30] sm:$0xff] %v207
                %v209 = vld [vmem:[%s193 + $0xc8] sm:$0xff]
                %210 = vst [vmem:[%s194 + $0x38] sm:$0xff] %v209
                %v211 = vld [vmem:[%s193 + $0x100] sm:$0xff]
                %212 = vst [vmem:[%s194 + $0x40] sm:$0xff] %v211
                %v213 = vld [vmem:[%s193 + $0x108] sm:$0xff]
                %214 = vst [vmem:[%s194 + $0x48] sm:$0xff] %v213
                %v215 = vld [vmem:[%s193 + $0x140] sm:$0xff]
                %216 = vst [vmem:[%s194 + $0x50] sm:$0xff] %v215
                %v217 = vld [vmem:[%s193 + $0x148] sm:$0xff]
                %218 = vst [vmem:[%s194 + $0x58] sm:$0xff] %v217
                %v219 = vld [vmem:[%s193 + $0x180] sm:$0xff]
                %220 = vst [vmem:[%s194 + $0x60] sm:$0xff] %v219
                %v221 = vld [vmem:[%s193 + $0x188] sm:$0xff]
                %222 = vst [vmem:[%s194 + $0x68] sm:$0xff] %v221
                %v223 = vld [vmem:[%s193 + $0x1c0] sm:$0xff]
                %224 = vst [vmem:[%s194 + $0x70] sm:$0xff] %v223
                %v225 = vld [vmem:[%s193 + $0x1c8] sm:$0xff]
                %226 = vst [vmem:[%s194 + $0x78] sm:$0xff] %v225
                %v227 = vld [vmem:[%s193 + $0x200] sm:$0xff]
                %228 = vst [vmem:[%s194 + $0x80] sm:$0xff] %v227
                %v229 = vld [vmem:[%s193 + $0x208] sm:$0xff]
                %230 = vst [vmem:[%s194 + $0x88] sm:$0xff] %v229
                %v231 = vld [vmem:[%s193 + $0x240] sm:$0xff]
                %232 = vst [vmem:[%s194 + $0x90] sm:$0xff] %v231
                %v233 = vld [vmem:[%s193 + $0x248] sm:$0xff]
                %234 = vst [vmem:[%s194 + $0x98] sm:$0xff] %v233
                %v235 = vld [vmem:[%s193 + $0x280] sm:$0xff]
                %236 = vst [vmem:[%s194 + $0xa0] sm:$0xff] %v235
                %v237 = vld [vmem:[%s193 + $0x288] sm:$0xff]
                %238 = vst [vmem:[%s194 + $0xa8] sm:$0xff] %v237
                %v239 = vld [vmem:[%s193 + $0x2c0] sm:$0xff]
                %240 = vst [vmem:[%s194 + $0xb0] sm:$0xff] %v239
                %v241 = vld [vmem:[%s193 + $0x2c8] sm:$0xff]
                %242 = vst [vmem:[%s194 + $0xb8] sm:$0xff] %v241
                %v243 = vld [vmem:[%s193 + $0x300] sm:$0xff]
                %244 = vst [vmem:[%s194 + $0xc0] sm:$0xff] %v243
                %v245 = vld [vmem:[%s193 + $0x308] sm:$0xff]
                %246 = vst [vmem:[%s194 + $0xc8] sm:$0xff] %v245
                %v247 = vld [vmem:[%s193 + $0x340] sm:$0xff]
                %248 = vst [vmem:[%s194 + $0xd0] sm:$0xff] %v247
                %v249 = vld [vmem:[%s193 + $0x348] sm:$0xff]
                %250 = vst [vmem:[%s194 + $0xd8] sm:$0xff] %v249
                %v251 = vld [vmem:[%s193 + $0x380] sm:$0xff]
                %252 = vst [vmem:[%s194 + $0xe0] sm:$0xff] %v251
                %v253 = vld [vmem:[%s193 + $0x388] sm:$0xff]
                %254 = vst [vmem:[%s194 + $0xe8] sm:$0xff] %v253
                %v255 = vld [vmem:[%s193 + $0x3c0] sm:$0xff]
                %256 = vst [vmem:[%s194 + $0xf0] sm:$0xff] %v255
                %v257 = vld [vmem:[%s193 + $0x3c8] sm:$0xff]
                %258 = vst [vmem:[%s194 + $0xf8] sm:$0xff] %v257
              $region33: #{discriminator_forward.6} parent=27 // loop_footer
                %s192 = sadd.s32 1, %s188
              $region34: #{discriminator_forward.6} parent=27 // loop_footer_branch
                %187 = sbr.rel target = $region30
              $region35: #{discriminator_forward.6} parent=27 // loop_exit
                _
            $region28: #{discriminator_forward.6} parent=23 // pred_fallthru
              _
            // Predicated region
            $region36: #{discriminator_forward.6} parent=23 // pred_check
              _
            $region37: #{discriminator_forward.6} parent=23 // pred_check_branch
              %260 = sbr.rel target = $region39
            $region38: #{discriminator_forward.6} parent=23 // pred_region
              _
            $region39: #{discriminator_forward.6} parent=23 // pred_fallthru
              _
          $region24: #{discriminator_forward.6} parent=19 // pred_fallthru
            _
          %261 = vnop
        $region20: #{discriminator_forward.6} parent=15 // pred_fallthru
          _
        // Predicated region
        $region40: #{discriminator_forward.6} parent=15 // pred_check
          %p262 = pneg %p70
        $region41: #{discriminator_forward.6} parent=15 // pred_check_branch
          %264 = sbr.rel (%p262) target = $region43
        $region42: #{discriminator_forward.6} parent=15 // pred_region
          %s265 = sand.u32 %s60, 1
          %s266 = sand.u32 %s60, 1
          %s267 = smul.addr %s266, 256
          %s268 = scalar_lea.vmem [#allocation4], %s267
          %s269 = smul.u32 64, %s18
          %s270 = smul.addr %s269, 2
          %s271 = sadd.s32 %s17, %s270
          %s272 = smul.addr %s271, 4
          %s273 = scalar_lea.vmem %s1, %s272
          // Predicated region
          $region44: #{discriminator_forward.6} parent=42 // pred_check
            _
          $region45: #{discriminator_forward.6} parent=42 // pred_check_branch
            %275 = sbr.rel (0) target = $region47
          $region46: #{discriminator_forward.6} parent=42 // pred_region
            // Predicated region
            $region48: #{discriminator_forward.6} parent=46 // pred_check
              _
            $region49: #{discriminator_forward.6} parent=46 // pred_check_branch
              %277 = sbr.rel target = $region51
            $region50: #{discriminator_forward.6} parent=46 // pred_region
              // Predicated region
              $region63: #{discriminator_forward.6} parent=50 // pred_check
                _
              $region64: #{discriminator_forward.6} parent=50 // pred_check_branch
                %418 = sbr.rel (0) target = $region66
              $region65: #{discriminator_forward.6} parent=50 // pred_region
                loop: start=0, step=1, limit=1
                $region67: #{discriminator_forward.6} parent=65 // loop_pre_header
                  _
                $region68: #{discriminator_forward.6} parent=65 // loop_header
                  %s420 = sphi 0, %s424
                  %p421 = scmp.ge.s32.totalorder %s420, 1
                  %s425 = sphi %s273, %s273
                  %s426 = sphi %s268, %s268
                $region69: #{discriminator_forward.6} parent=65 // loop_header_branch
                  %423 = sbr.rel (%p421) target = $region73
                $region70: #{discriminator_forward.6} parent=65 // loop_body
                  _
                $region71: #{discriminator_forward.6} parent=65 // loop_footer
                  %s424 = sadd.s32 1, %s420
                $region72: #{discriminator_forward.6} parent=65 // loop_footer_branch
                  %419 = sbr.rel target = $region68
                $region73: #{discriminator_forward.6} parent=65 // loop_exit
                  _
                loop: start=0, step=1, limit=1
                $region74: #{discriminator_forward.6} parent=65 // loop_pre_header
                  _
                $region75: #{discriminator_forward.6} parent=65 // loop_header
                  %s429 = sphi 0, %s433
                  %p430 = scmp.ge.s32.totalorder %s429, 1
                  %s434 = sphi %s273, %s273
                  %s435 = sphi %s268, %s268
                $region76: #{discriminator_forward.6} parent=65 // loop_header_branch
                  %432 = sbr.rel (%p430) target = $region80
                $region77: #{discriminator_forward.6} parent=65 // loop_body
                  %v436 = vld [vmem:[%s434] sm:$0xf]
                  %437 = vst [vmem:[%s435] sm:$0xf] %v436
                  %v438 = vld [vmem:[%s434 + $0x8] sm:$0xf]
                  %439 = vst [vmem:[%s435 + $0x4] sm:$0xf] %v438
                  %v440 = vld [vmem:[%s434 + $0x10] sm:$0xf]
                  %441 = vst [vmem:[%s435 + $0x8] sm:$0xf] %v440
                  %v442 = vld [vmem:[%s434 + $0x18] sm:$0xf]
                  %443 = vst [vmem:[%s435 + $0xc] sm:$0xf] %v442
                  %v444 = vld [vmem:[%s434 + $0x20] sm:$0xf]
                  %445 = vst [vmem:[%s435 + $0x10] sm:$0xf] %v444
                  %v446 = vld [vmem:[%s434 + $0x28] sm:$0xf]
                  %447 = vst [vmem:[%s435 + $0x14] sm:$0xf] %v446
                  %v448 = vld [vmem:[%s434 + $0x30] sm:$0xf]
                  %449 = vst [vmem:[%s435 + $0x18] sm:$0xf] %v448
                  %v450 = vld [vmem:[%s434 + $0x38] sm:$0xf]
                  %451 = vst [vmem:[%s435 + $0x1c] sm:$0xf] %v450
                  %v452 = vld [vmem:[%s434 + $0x40] sm:$0xf]
                  %453 = vst [vmem:[%s435 + $0x20] sm:$0xf] %v452
                  %v454 = vld [vmem:[%s434 + $0x48] sm:$0xf]
                  %455 = vst [vmem:[%s435 + $0x24] sm:$0xf] %v454
                  %v456 = vld [vmem:[%s434 + $0x50] sm:$0xf]
                  %457 = vst [vmem:[%s435 + $0x28] sm:$0xf] %v456
                  %v458 = vld [vmem:[%s434 + $0x58] sm:$0xf]
                  %459 = vst [vmem:[%s435 + $0x2c] sm:$0xf] %v458
                  %v460 = vld [vmem:[%s434 + $0x60] sm:$0xf]
                  %461 = vst [vmem:[%s435 + $0x30] sm:$0xf] %v460
                  %v462 = vld [vmem:[%s434 + $0x68] sm:$0xf]
                  %463 = vst [vmem:[%s435 + $0x34] sm:$0xf] %v462
                  %v464 = vld [vmem:[%s434 + $0x70] sm:$0xf]
                  %465 = vst [vmem:[%s435 + $0x38] sm:$0xf] %v464
                  %v466 = vld [vmem:[%s434 + $0x78] sm:$0xf]
                  %467 = vst [vmem:[%s435 + $0x3c] sm:$0xf] %v466
                  %v468 = vld [vmem:[%s434 + $0x80] sm:$0xf]
                  %469 = vst [vmem:[%s435 + $0x40] sm:$0xf] %v468
                  %v470 = vld [vmem:[%s434 + $0x88] sm:$0xf]
                  %471 = vst [vmem:[%s435 + $0x44] sm:$0xf] %v470
                  %v472 = vld [vmem:[%s434 + $0x90] sm:$0xf]
                  %473 = vst [vmem:[%s435 + $0x48] sm:$0xf] %v472
                  %v474 = vld [vmem:[%s434 + $0x98] sm:$0xf]
                  %475 = vst [vmem:[%s435 + $0x4c] sm:$0xf] %v474
                  %v476 = vld [vmem:[%s434 + $0xa0] sm:$0xf]
                  %477 = vst [vmem:[%s435 + $0x50] sm:$0xf] %v476
                  %v478 = vld [vmem:[%s434 + $0xa8] sm:$0xf]
                  %479 = vst [vmem:[%s435 + $0x54] sm:$0xf] %v478
                  %v480 = vld [vmem:[%s434 + $0xb0] sm:$0xf]
                  %481 = vst [vmem:[%s435 + $0x58] sm:$0xf] %v480
                  %v482 = vld [vmem:[%s434 + $0xb8] sm:$0xf]
                  %483 = vst [vmem:[%s435 + $0x5c] sm:$0xf] %v482
                  %v484 = vld [vmem:[%s434 + $0xc0] sm:$0xf]
                  %485 = vst [vmem:[%s435 + $0x60] sm:$0xf] %v484
                  %v486 = vld [vmem:[%s434 + $0xc8] sm:$0xf]
                  %487 = vst [vmem:[%s435 + $0x64] sm:$0xf] %v486
                  %v488 = vld [vmem:[%s434 + $0xd0] sm:$0xf]
                  %489 = vst [vmem:[%s435 + $0x68] sm:$0xf] %v488
                  %v490 = vld [vmem:[%s434 + $0xd8] sm:$0xf]
                  %491 = vst [vmem:[%s435 + $0x6c] sm:$0xf] %v490
                  %v492 = vld [vmem:[%s434 + $0xe0] sm:$0xf]
                  %493 = vst [vmem:[%s435 + $0x70] sm:$0xf] %v492
                  %v494 = vld [vmem:[%s434 + $0xe8] sm:$0xf]
                  %495 = vst [vmem:[%s435 + $0x74] sm:$0xf] %v494
                  %v496 = vld [vmem:[%s434 + $0xf0] sm:$0xf]
                  %497 = vst [vmem:[%s435 + $0x78] sm:$0xf] %v496
                  %v498 = vld [vmem:[%s434 + $0xf8] sm:$0xf]
                  %499 = vst [vmem:[%s435 + $0x7c] sm:$0xf] %v498
                  %v500 = vld [vmem:[%s434 + $0x100] sm:$0xf]
                  %501 = vst [vmem:[%s435 + $0x80] sm:$0xf] %v500
                  %v502 = vld [vmem:[%s434 + $0x108] sm:$0xf]
                  %503 = vst [vmem:[%s435 + $0x84] sm:$0xf] %v502
                  %v504 = vld [vmem:[%s434 + $0x110] sm:$0xf]
                  %505 = vst [vmem:[%s435 + $0x88] sm:$0xf] %v504
                  %v506 = vld [vmem:[%s434 + $0x118] sm:$0xf]
                  %507 = vst [vmem:[%s435 + $0x8c] sm:$0xf] %v506
                  %v508 = vld [vmem:[%s434 + $0x120] sm:$0xf]
                  %509 = vst [vmem:[%s435 + $0x90] sm:$0xf] %v508
                  %v510 = vld [vmem:[%s434 + $0x128] sm:$0xf]
                  %511 = vst [vmem:[%s435 + $0x94] sm:$0xf] %v510
                  %v512 = vld [vmem:[%s434 + $0x130] sm:$0xf]
                  %513 = vst [vmem:[%s435 + $0x98] sm:$0xf] %v512
                  %v514 = vld [vmem:[%s434 + $0x138] sm:$0xf]
                  %515 = vst [vmem:[%s435 + $0x9c] sm:$0xf] %v514
                  %v516 = vld [vmem:[%s434 + $0x140] sm:$0xf]
                  %517 = vst [vmem:[%s435 + $0xa0] sm:$0xf] %v516
                  %v518 = vld [vmem:[%s434 + $0x148] sm:$0xf]
                  %519 = vst [vmem:[%s435 + $0xa4] sm:$0xf] %v518
                  %v520 = vld [vmem:[%s434 + $0x150] sm:$0xf]
                  %521 = vst [vmem:[%s435 + $0xa8] sm:$0xf] %v520
                  %v522 = vld [vmem:[%s434 + $0x158] sm:$0xf]
                  %523 = vst [vmem:[%s435 + $0xac] sm:$0xf] %v522
                  %v524 = vld [vmem:[%s434 + $0x160] sm:$0xf]
                  %525 = vst [vmem:[%s435 + $0xb0] sm:$0xf] %v524
                  %v526 = vld [vmem:[%s434 + $0x168] sm:$0xf]
                  %527 = vst [vmem:[%s435 + $0xb4] sm:$0xf] %v526
                  %v528 = vld [vmem:[%s434 + $0x170] sm:$0xf]
                  %529 = vst [vmem:[%s435 + $0xb8] sm:$0xf] %v528
                  %v530 = vld [vmem:[%s434 + $0x178] sm:$0xf]
                  %531 = vst [vmem:[%s435 + $0xbc] sm:$0xf] %v530
                  %v532 = vld [vmem:[%s434 + $0x180] sm:$0xf]
                  %533 = vst [vmem:[%s435 + $0xc0] sm:$0xf] %v532
                  %v534 = vld [vmem:[%s434 + $0x188] sm:$0xf]
                  %535 = vst [vmem:[%s435 + $0xc4] sm:$0xf] %v534
                  %v536 = vld [vmem:[%s434 + $0x190] sm:$0xf]
                  %537 = vst [vmem:[%s435 + $0xc8] sm:$0xf] %v536
                  %v538 = vld [vmem:[%s434 + $0x198] sm:$0xf]
                  %539 = vst [vmem:[%s435 + $0xcc] sm:$0xf] %v538
                  %v540 = vld [vmem:[%s434 + $0x1a0] sm:$0xf]
                  %541 = vst [vmem:[%s435 + $0xd0] sm:$0xf] %v540
                  %v542 = vld [vmem:[%s434 + $0x1a8] sm:$0xf]
                  %543 = vst [vmem:[%s435 + $0xd4] sm:$0xf] %v542
                  %v544 = vld [vmem:[%s434 + $0x1b0] sm:$0xf]
                  %545 = vst [vmem:[%s435 + $0xd8] sm:$0xf] %v544
                  %v546 = vld [vmem:[%s434 + $0x1b8] sm:$0xf]
                  %547 = vst [vmem:[%s435 + $0xdc] sm:$0xf] %v546
                  %v548 = vld [vmem:[%s434 + $0x1c0] sm:$0xf]
                  %549 = vst [vmem:[%s435 + $0xe0] sm:$0xf] %v548
                  %v550 = vld [vmem:[%s434 + $0x1c8] sm:$0xf]
                  %551 = vst [vmem:[%s435 + $0xe4] sm:$0xf] %v550
                  %v552 = vld [vmem:[%s434 + $0x1d0] sm:$0xf]
                  %553 = vst [vmem:[%s435 + $0xe8] sm:$0xf] %v552
                  %v554 = vld [vmem:[%s434 + $0x1d8] sm:$0xf]
                  %555 = vst [vmem:[%s435 + $0xec] sm:$0xf] %v554
                  %v556 = vld [vmem:[%s434 + $0x1e0] sm:$0xf]
                  %557 = vst [vmem:[%s435 + $0xf0] sm:$0xf] %v556
                  %v558 = vld [vmem:[%s434 + $0x1e8] sm:$0xf]
                  %559 = vst [vmem:[%s435 + $0xf4] sm:$0xf] %v558
                  %v560 = vld [vmem:[%s434 + $0x1f0] sm:$0xf]
                  %561 = vst [vmem:[%s435 + $0xf8] sm:$0xf] %v560
                  %v562 = vld [vmem:[%s434 + $0x1f8] sm:$0xf]
                  %563 = vst [vmem:[%s435 + $0xfc] sm:$0xf] %v562
                $region78: #{discriminator_forward.6} parent=65 // loop_footer
                  %s433 = sadd.s32 1, %s429
                $region79: #{discriminator_forward.6} parent=65 // loop_footer_branch
                  %428 = sbr.rel target = $region75
                $region80: #{discriminator_forward.6} parent=65 // loop_exit
                  _
              $region66: #{discriminator_forward.6} parent=50 // pred_fallthru
                _
            $region51: #{discriminator_forward.6} parent=46 // pred_fallthru
              _
            // Predicated region
            $region52: #{discriminator_forward.6} parent=46 // pred_check
              _
            $region53: #{discriminator_forward.6} parent=46 // pred_check_branch
              %279 = sbr.rel (0) target = $region55
            $region54: #{discriminator_forward.6} parent=46 // pred_region
              loop: start=0, step=1, limit=1
              $region56: #{discriminator_forward.6} parent=54 // loop_pre_header
                _
              $region57: #{discriminator_forward.6} parent=54 // loop_header
                %s282 = sphi 0, %s286
                %p283 = scmp.ge.s32.totalorder %s282, 1
                %s287 = sphi %s273, %s273
                %s288 = sphi %s268, %s268
              $region58: #{discriminator_forward.6} parent=54 // loop_header_branch
                %285 = sbr.rel (%p283) target = $region62
              $region59: #{discriminator_forward.6} parent=54 // loop_body
                %v289 = vld [vmem:[%s287] sm:$0xf]
                %290 = vst [vmem:[%s288] sm:$0xf] %v289
                %v291 = vld [vmem:[%s287 + $0x8] sm:$0xf]
                %292 = vst [vmem:[%s288 + $0x4] sm:$0xf] %v291
                %v293 = vld [vmem:[%s287 + $0x10] sm:$0xf]
                %294 = vst [vmem:[%s288 + $0x8] sm:$0xf] %v293
                %v295 = vld [vmem:[%s287 + $0x18] sm:$0xf]
                %296 = vst [vmem:[%s288 + $0xc] sm:$0xf] %v295
                %v297 = vld [vmem:[%s287 + $0x20] sm:$0xf]
                %298 = vst [vmem:[%s288 + $0x10] sm:$0xf] %v297
                %v299 = vld [vmem:[%s287 + $0x28] sm:$0xf]
                %300 = vst [vmem:[%s288 + $0x14] sm:$0xf] %v299
                %v301 = vld [vmem:[%s287 + $0x30] sm:$0xf]
                %302 = vst [vmem:[%s288 + $0x18] sm:$0xf] %v301
                %v303 = vld [vmem:[%s287 + $0x38] sm:$0xf]
                %304 = vst [vmem:[%s288 + $0x1c] sm:$0xf] %v303
                %v305 = vld [vmem:[%s287 + $0x40] sm:$0xf]
                %306 = vst [vmem:[%s288 + $0x20] sm:$0xf] %v305
                %v307 = vld [vmem:[%s287 + $0x48] sm:$0xf]
                %308 = vst [vmem:[%s288 + $0x24] sm:$0xf] %v307
                %v309 = vld [vmem:[%s287 + $0x50] sm:$0xf]
                %310 = vst [vmem:[%s288 + $0x28] sm:$0xf] %v309
                %v311 = vld [vmem:[%s287 + $0x58] sm:$0xf]
                %312 = vst [vmem:[%s288 + $0x2c] sm:$0xf] %v311
                %v313 = vld [vmem:[%s287 + $0x60] sm:$0xf]
                %314 = vst [vmem:[%s288 + $0x30] sm:$0xf] %v313
                %v315 = vld [vmem:[%s287 + $0x68] sm:$0xf]
                %316 = vst [vmem:[%s288 + $0x34] sm:$0xf] %v315
                %v317 = vld [vmem:[%s287 + $0x70] sm:$0xf]
                %318 = vst [vmem:[%s288 + $0x38] sm:$0xf] %v317
                %v319 = vld [vmem:[%s287 + $0x78] sm:$0xf]
                %320 = vst [vmem:[%s288 + $0x3c] sm:$0xf] %v319
                %v321 = vld [vmem:[%s287 + $0x80] sm:$0xf]
                %322 = vst [vmem:[%s288 + $0x40] sm:$0xf] %v321
                %v323 = vld [vmem:[%s287 + $0x88] sm:$0xf]
                %324 = vst [vmem:[%s288 + $0x44] sm:$0xf] %v323
                %v325 = vld [vmem:[%s287 + $0x90] sm:$0xf]
                %326 = vst [vmem:[%s288 + $0x48] sm:$0xf] %v325
                %v327 = vld [vmem:[%s287 + $0x98] sm:$0xf]
                %328 = vst [vmem:[%s288 + $0x4c] sm:$0xf] %v327
                %v329 = vld [vmem:[%s287 + $0xa0] sm:$0xf]
                %330 = vst [vmem:[%s288 + $0x50] sm:$0xf] %v329
                %v331 = vld [vmem:[%s287 + $0xa8] sm:$0xf]
                %332 = vst [vmem:[%s288 + $0x54] sm:$0xf] %v331
                %v333 = vld [vmem:[%s287 + $0xb0] sm:$0xf]
                %334 = vst [vmem:[%s288 + $0x58] sm:$0xf] %v333
                %v335 = vld [vmem:[%s287 + $0xb8] sm:$0xf]
                %336 = vst [vmem:[%s288 + $0x5c] sm:$0xf] %v335
                %v337 = vld [vmem:[%s287 + $0xc0] sm:$0xf]
                %338 = vst [vmem:[%s288 + $0x60] sm:$0xf] %v337
                %v339 = vld [vmem:[%s287 + $0xc8] sm:$0xf]
                %340 = vst [vmem:[%s288 + $0x64] sm:$0xf] %v339
                %v341 = vld [vmem:[%s287 + $0xd0] sm:$0xf]
                %342 = vst [vmem:[%s288 + $0x68] sm:$0xf] %v341
                %v343 = vld [vmem:[%s287 + $0xd8] sm:$0xf]
                %344 = vst [vmem:[%s288 + $0x6c] sm:$0xf] %v343
                %v345 = vld [vmem:[%s287 + $0xe0] sm:$0xf]
                %346 = vst [vmem:[%s288 + $0x70] sm:$0xf] %v345
                %v347 = vld [vmem:[%s287 + $0xe8] sm:$0xf]
                %348 = vst [vmem:[%s288 + $0x74] sm:$0xf] %v347
                %v349 = vld [vmem:[%s287 + $0xf0] sm:$0xf]
                %350 = vst [vmem:[%s288 + $0x78] sm:$0xf] %v349
                %v351 = vld [vmem:[%s287 + $0xf8] sm:$0xf]
                %352 = vst [vmem:[%s288 + $0x7c] sm:$0xf] %v351
                %v353 = vld [vmem:[%s287 + $0x100] sm:$0xf]
                %354 = vst [vmem:[%s288 + $0x80] sm:$0xf] %v353
                %v355 = vld [vmem:[%s287 + $0x108] sm:$0xf]
                %356 = vst [vmem:[%s288 + $0x84] sm:$0xf] %v355
                %v357 = vld [vmem:[%s287 + $0x110] sm:$0xf]
                %358 = vst [vmem:[%s288 + $0x88] sm:$0xf] %v357
                %v359 = vld [vmem:[%s287 + $0x118] sm:$0xf]
                %360 = vst [vmem:[%s288 + $0x8c] sm:$0xf] %v359
                %v361 = vld [vmem:[%s287 + $0x120] sm:$0xf]
                %362 = vst [vmem:[%s288 + $0x90] sm:$0xf] %v361
                %v363 = vld [vmem:[%s287 + $0x128] sm:$0xf]
                %364 = vst [vmem:[%s288 + $0x94] sm:$0xf] %v363
                %v365 = vld [vmem:[%s287 + $0x130] sm:$0xf]
                %366 = vst [vmem:[%s288 + $0x98] sm:$0xf] %v365
                %v367 = vld [vmem:[%s287 + $0x138] sm:$0xf]
                %368 = vst [vmem:[%s288 + $0x9c] sm:$0xf] %v367
                %v369 = vld [vmem:[%s287 + $0x140] sm:$0xf]
                %370 = vst [vmem:[%s288 + $0xa0] sm:$0xf] %v369
                %v371 = vld [vmem:[%s287 + $0x148] sm:$0xf]
                %372 = vst [vmem:[%s288 + $0xa4] sm:$0xf] %v371
                %v373 = vld [vmem:[%s287 + $0x150] sm:$0xf]
                %374 = vst [vmem:[%s288 + $0xa8] sm:$0xf] %v373
                %v375 = vld [vmem:[%s287 + $0x158] sm:$0xf]
                %376 = vst [vmem:[%s288 + $0xac] sm:$0xf] %v375
                %v377 = vld [vmem:[%s287 + $0x160] sm:$0xf]
                %378 = vst [vmem:[%s288 + $0xb0] sm:$0xf] %v377
                %v379 = vld [vmem:[%s287 + $0x168] sm:$0xf]
                %380 = vst [vmem:[%s288 + $0xb4] sm:$0xf] %v379
                %v381 = vld [vmem:[%s287 + $0x170] sm:$0xf]
                %382 = vst [vmem:[%s288 + $0xb8] sm:$0xf] %v381
                %v383 = vld [vmem:[%s287 + $0x178] sm:$0xf]
                %384 = vst [vmem:[%s288 + $0xbc] sm:$0xf] %v383
                %v385 = vld [vmem:[%s287 + $0x180] sm:$0xf]
                %386 = vst [vmem:[%s288 + $0xc0] sm:$0xf] %v385
                %v387 = vld [vmem:[%s287 + $0x188] sm:$0xf]
                %388 = vst [vmem:[%s288 + $0xc4] sm:$0xf] %v387
                %v389 = vld [vmem:[%s287 + $0x190] sm:$0xf]
                %390 = vst [vmem:[%s288 + $0xc8] sm:$0xf] %v389
                %v391 = vld [vmem:[%s287 + $0x198] sm:$0xf]
                %392 = vst [vmem:[%s288 + $0xcc] sm:$0xf] %v391
                %v393 = vld [vmem:[%s287 + $0x1a0] sm:$0xf]
                %394 = vst [vmem:[%s288 + $0xd0] sm:$0xf] %v393
                %v395 = vld [vmem:[%s287 + $0x1a8] sm:$0xf]
                %396 = vst [vmem:[%s288 + $0xd4] sm:$0xf] %v395
                %v397 = vld [vmem:[%s287 + $0x1b0] sm:$0xf]
                %398 = vst [vmem:[%s288 + $0xd8] sm:$0xf] %v397
                %v399 = vld [vmem:[%s287 + $0x1b8] sm:$0xf]
                %400 = vst [vmem:[%s288 + $0xdc] sm:$0xf] %v399
                %v401 = vld [vmem:[%s287 + $0x1c0] sm:$0xf]
                %402 = vst [vmem:[%s288 + $0xe0] sm:$0xf] %v401
                %v403 = vld [vmem:[%s287 + $0x1c8] sm:$0xf]
                %404 = vst [vmem:[%s288 + $0xe4] sm:$0xf] %v403
                %v405 = vld [vmem:[%s287 + $0x1d0] sm:$0xf]
                %406 = vst [vmem:[%s288 + $0xe8] sm:$0xf] %v405
                %v407 = vld [vmem:[%s287 + $0x1d8] sm:$0xf]
                %408 = vst [vmem:[%s288 + $0xec] sm:$0xf] %v407
                %v409 = vld [vmem:[%s287 + $0x1e0] sm:$0xf]
                %410 = vst [vmem:[%s288 + $0xf0] sm:$0xf] %v409
                %v411 = vld [vmem:[%s287 + $0x1e8] sm:$0xf]
                %412 = vst [vmem:[%s288 + $0xf4] sm:$0xf] %v411
                %v413 = vld [vmem:[%s287 + $0x1f0] sm:$0xf]
                %414 = vst [vmem:[%s288 + $0xf8] sm:$0xf] %v413
                %v415 = vld [vmem:[%s287 + $0x1f8] sm:$0xf]
                %416 = vst [vmem:[%s288 + $0xfc] sm:$0xf] %v415
              $region60: #{discriminator_forward.6} parent=54 // loop_footer
                %s286 = sadd.s32 1, %s282
              $region61: #{discriminator_forward.6} parent=54 // loop_footer_branch
                %281 = sbr.rel target = $region57
              $region62: #{discriminator_forward.6} parent=54 // loop_exit
                _
            $region55: #{discriminator_forward.6} parent=46 // pred_fallthru
              _
          $region47: #{discriminator_forward.6} parent=42 // pred_fallthru
            _
          %564 = vnop
        $region43: #{discriminator_forward.6} parent=15 // pred_fallthru
          _
        // Predicated region
        $region81: #{discriminator_forward.6} parent=15 // pred_check
          %p565 = pneg %p96
        $region82: #{discriminator_forward.6} parent=15 // pred_check_branch
          %567 = sbr.rel (%p565) target = $region84
        $region83: #{discriminator_forward.6} parent=15 // pred_region
          %p568 = scmp.lt.s32.totalorder %s17, 1
          %s569 = scalar_select %p568, %s17, 1
          %s570 = scalar_lea.vmem %s2, %s569
        $region84: #{discriminator_forward.6} parent=15 // pred_fallthru
          _
        // Predicated region
        $region85: #{discriminator_forward.6} parent=15 // pred_check
          %p571 = pneg %p122
        $region86: #{discriminator_forward.6} parent=15 // pred_check_branch
          %573 = sbr.rel (%p571) target = $region88
        $region87: #{discriminator_forward.6} parent=15 // pred_region
          %p574 = scmp.lt.s32.totalorder %s17, 1
          %s575 = scalar_select %p574, %s17, 1
          %s576 = scalar_lea.vmem %s3, %s575
        $region88: #{discriminator_forward.6} parent=15 // pred_fallthru
          _
      $region16: #{discriminator_forward.6} parent=5 // pred_fallthru
        _
      %p577 = scmp.le.s32.totalorder 1, %s10
      %p578 = scmp.lt.s32.totalorder %s10, 9
      %p579 = pnand %p577, %p578
      %p580 = pneg %p579
      // Predicated region
      $region89: #{discriminator_forward.6} parent=5 // pred_check
        _
      $region90: #{discriminator_forward.6} parent=5 // pred_check_branch
        %582 = sbr.rel (%p579) target = $region92
      $region91: #{discriminator_forward.6} parent=5 // pred_region
        %s583 = ssub.s32 %s10, 1
        %s584 = sand.u32 %s35, 1
        %s585 = sand.u32 %s35, 1
        %s586 = smul.addr %s585, 256
        %s587 = scalar_lea.vmem [#allocation3], %s586
        // Predicated region
        $region93: #{discriminator_forward.6} parent=91 // pred_check
          %p588 = pneg %p48
        $region94: #{discriminator_forward.6} parent=91 // pred_check_branch
          %590 = sbr.rel (%p588) target = $region96
        $region95: #{discriminator_forward.6} parent=91 // pred_region
          _
        $region96: #{discriminator_forward.6} parent=91 // pred_fallthru
          _
        %s591 = sand.u32 %s63, 1
        %s592 = sand.u32 %s63, 1
        %s593 = smul.addr %s592, 256
        %s594 = scalar_lea.vmem [#allocation4], %s593
        // Predicated region
        $region97: #{discriminator_forward.6} parent=91 // pred_check
          %p595 = pneg %p76
        $region98: #{discriminator_forward.6} parent=91 // pred_check_branch
          %597 = sbr.rel (%p595) target = $region100
        $region99: #{discriminator_forward.6} parent=91 // pred_region
          _
        $region100: #{discriminator_forward.6} parent=91 // pred_fallthru
          _
        %s598 = sand.u32 %s35, 1
        %s599 = sand.u32 %s35, 1
        %s600 = smul.addr %s599, 256
        %s601 = scalar_lea.vmem [#allocation3], %s600
        %p602 = pneg %p48
        %p603 = pneg %p45
        %s604 = sand.u32 %s63, 1
        %s605 = sand.u32 %s63, 1
        %s606 = smul.addr %s605, 256
        %s607 = scalar_lea.vmem [#allocation4], %s606
        %p608 = pneg %p76
        %p609 = pneg %p73
        %p610 = scmp.lt.s32.totalorder %s19, 1
        %s611 = scalar_select %p610, %s19, 1
        %s612 = scalar_lea.vmem %s2, %s611
        %p613 = pneg %p102
        %p614 = pneg %p99
        %p615 = scmp.lt.s32.totalorder %s19, 1
        %s616 = scalar_select %p615, %s19, 1
        %s617 = scalar_lea.vmem %s3, %s616
        %p618 = pneg %p128
        %p619 = pneg %p125
        %p620 = pneg %p154
        %p621 = pneg %p151
        %s622 = sand.u32 %s141, 1
        %s623 = sand.u32 %s141, 1
        %s624 = smul.addr %s623, 64
        %s625 = scalar_lea.vmem [#allocation5], %s624
        %s626 = smul.u32 4, %s20
        %s627 = smul.u32 64, %s20
        %p628 = scmp.lt.s32.totalorder %s19, 1
        %s629 = scalar_select %p628, %s19, 1
        %s630 = scalar_lea.vmem %s2, %s629
        %p631 = scmp.lt.s32.totalorder %s19, 1
        %s632 = scalar_select %p631, %s19, 1
        %s633 = scalar_lea.vmem %s3, %s632
        %p635 = scmp.eq.s32.totalorder %s20, 0
        // Predicated region
        $region101: #{discriminator_forward.6} parent=91 // pred_check
          %p636 = pneg %p635
        $region102: #{discriminator_forward.6} parent=91 // pred_check_branch
          %638 = sbr.rel (%p636) target = $region104
        $region103: #{discriminator_forward.6} parent=91 // pred_region
          %639 = vst [vmem:[#allocation2] sm:$0xff] 0.0
          %640 = vst [vmem:[#allocation2 + $0x8] sm:$0xff] 0.0
          %641 = vst [vmem:[#allocation2 + $0x10] sm:$0xff] 0.0
          %642 = vst [vmem:[#allocation2 + $0x18] sm:$0xff] 0.0
          %643 = vst [vmem:[#allocation2 + $0x20] sm:$0xff] 0.0
          %644 = vst [vmem:[#allocation2 + $0x28] sm:$0xff] 0.0
          %645 = vst [vmem:[#allocation2 + $0x30] sm:$0xff] 0.0
          %646 = vst [vmem:[#allocation2 + $0x38] sm:$0xff] 0.0
          %647 = vst [vmem:[#allocation2 + $0x40] sm:$0xff] 0.0
          %648 = vst [vmem:[#allocation2 + $0x48] sm:$0xff] 0.0
          %649 = vst [vmem:[#allocation2 + $0x50] sm:$0xff] 0.0
          %650 = vst [vmem:[#allocation2 + $0x58] sm:$0xff] 0.0
          %651 = vst [vmem:[#allocation2 + $0x60] sm:$0xff] 0.0
          %652 = vst [vmem:[#allocation2 + $0x68] sm:$0xff] 0.0
          %653 = vst [vmem:[#allocation2 + $0x70] sm:$0xff] 0.0
          %654 = vst [vmem:[#allocation2 + $0x78] sm:$0xff] 0.0
        $region104: #{discriminator_forward.6} parent=91 // pred_fallthru
          _
        %v655 = vld [vmem:[#allocation2] sm:$0xff]
        %v656 = vld [vmem:[#allocation2 + $0x8] sm:$0xff]
        %v657 = vld [vmem:[#allocation2 + $0x10] sm:$0xff]
        %v658 = vld [vmem:[#allocation2 + $0x18] sm:$0xff]
        %v659 = vld [vmem:[#allocation2 + $0x20] sm:$0xff]
        %v660 = vld [vmem:[#allocation2 + $0x28] sm:$0xff]
        %v661 = vld [vmem:[#allocation2 + $0x30] sm:$0xff]
        %v662 = vld [vmem:[#allocation2 + $0x38] sm:$0xff]
        %v663 = vld [vmem:[#allocation2 + $0x40] sm:$0xff]
        %v664 = vld [vmem:[#allocation2 + $0x48] sm:$0xff]
        %v665 = vld [vmem:[#allocation2 + $0x50] sm:$0xff]
        %v666 = vld [vmem:[#allocation2 + $0x58] sm:$0xff]
        %v667 = vld [vmem:[#allocation2 + $0x60] sm:$0xff]
        %v668 = vld [vmem:[#allocation2 + $0x68] sm:$0xff]
        %v669 = vld [vmem:[#allocation2 + $0x70] sm:$0xff]
        %v670 = vld [vmem:[#allocation2 + $0x78] sm:$0xff]
        %v671 = vld [vmem:[%s587] sm:$0xff]
        %v672 = vld [vmem:[%s587 + $0x8] sm:$0xff]
        %v673 = vld [vmem:[%s587 + $0x10] sm:$0xff]
        %v674 = vld [vmem:[%s587 + $0x18] sm:$0xff]
        %v675 = vld [vmem:[%s587 + $0x20] sm:$0xff]
        %v676 = vld [vmem:[%s587 + $0x28] sm:$0xff]
        %v677 = vld [vmem:[%s587 + $0x30] sm:$0xff]
        %v678 = vld [vmem:[%s587 + $0x38] sm:$0xff]
        %v679 = vld [vmem:[%s587 + $0x40] sm:$0xff]
        %v680 = vld [vmem:[%s587 + $0x48] sm:$0xff]
        %v681 = vld [vmem:[%s587 + $0x50] sm:$0xff]
        %v682 = vld [vmem:[%s587 + $0x58] sm:$0xff]
        %v683 = vld [vmem:[%s587 + $0x60] sm:$0xff]
        %v684 = vld [vmem:[%s587 + $0x68] sm:$0xff]
        %v685 = vld [vmem:[%s587 + $0x70] sm:$0xff]
        %v686 = vld [vmem:[%s587 + $0x78] sm:$0xff]
        %v687 = vld [vmem:[%s587 + $0x80] sm:$0xff]
        %v688 = vld [vmem:[%s587 + $0x88] sm:$0xff]
        %v689 = vld [vmem:[%s587 + $0x90] sm:$0xff]
        %v690 = vld [vmem:[%s587 + $0x98] sm:$0xff]
        %v691 = vld [vmem:[%s587 + $0xa0] sm:$0xff]
        %v692 = vld [vmem:[%s587 + $0xa8] sm:$0xff]
        %v693 = vld [vmem:[%s587 + $0xb0] sm:$0xff]
        %v694 = vld [vmem:[%s587 + $0xb8] sm:$0xff]
        %v695 = vld [vmem:[%s587 + $0xc0] sm:$0xff]
        %v696 = vld [vmem:[%s587 + $0xc8] sm:$0xff]
        %v697 = vld [vmem:[%s587 + $0xd0] sm:$0xff]
        %v698 = vld [vmem:[%s587 + $0xd8] sm:$0xff]
        %v699 = vld [vmem:[%s587 + $0xe0] sm:$0xff]
        %v700 = vld [vmem:[%s587 + $0xe8] sm:$0xff]
        %v701 = vld [vmem:[%s587 + $0xf0] sm:$0xff]
        %v702 = vld [vmem:[%s587 + $0xf8] sm:$0xff]
        %v703 = vld [vmem:[%s594] sm:$0xf]
        %v704 = vld [vmem:[%s594 + $0x4] sm:$0xf]
        %v705 = vld [vmem:[%s594 + $0x8] sm:$0xf]
        %v706 = vld [vmem:[%s594 + $0xc] sm:$0xf]
        %v707 = vld [vmem:[%s594 + $0x10] sm:$0xf]
        %v708 = vld [vmem:[%s594 + $0x14] sm:$0xf]
        %v709 = vld [vmem:[%s594 + $0x18] sm:$0xf]
        %v710 = vld [vmem:[%s594 + $0x1c] sm:$0xf]
        %v711 = vld [vmem:[%s594 + $0x20] sm:$0xf]
        %v712 = vld [vmem:[%s594 + $0x24] sm:$0xf]
        %v713 = vld [vmem:[%s594 + $0x28] sm:$0xf]
        %v714 = vld [vmem:[%s594 + $0x2c] sm:$0xf]
        %v715 = vld [vmem:[%s594 + $0x30] sm:$0xf]
        %v716 = vld [vmem:[%s594 + $0x34] sm:$0xf]
        %v717 = vld [vmem:[%s594 + $0x38] sm:$0xf]
        %v718 = vld [vmem:[%s594 + $0x3c] sm:$0xf]
        %v719 = vld [vmem:[%s594 + $0x40] sm:$0xf]
        %v720 = vld [vmem:[%s594 + $0x44] sm:$0xf]
        %v721 = vld [vmem:[%s594 + $0x48] sm:$0xf]
        %v722 = vld [vmem:[%s594 + $0x4c] sm:$0xf]
        %v723 = vld [vmem:[%s594 + $0x50] sm:$0xf]
        %v724 = vld [vmem:[%s594 + $0x54] sm:$0xf]
        %v725 = vld [vmem:[%s594 + $0x58] sm:$0xf]
        %v726 = vld [vmem:[%s594 + $0x5c] sm:$0xf]
        %v727 = vld [vmem:[%s594 + $0x60] sm:$0xf]
        %v728 = vld [vmem:[%s594 + $0x64] sm:$0xf]
        %v729 = vld [vmem:[%s594 + $0x68] sm:$0xf]
        %v730 = vld [vmem:[%s594 + $0x6c] sm:$0xf]
        %v731 = vld [vmem:[%s594 + $0x70] sm:$0xf]
        %v732 = vld [vmem:[%s594 + $0x74] sm:$0xf]
        %v733 = vld [vmem:[%s594 + $0x78] sm:$0xf]
        %v734 = vld [vmem:[%s594 + $0x7c] sm:$0xf]
        %v735 = vld [vmem:[%s594 + $0x80] sm:$0xf]
        %v736 = vld [vmem:[%s594 + $0x84] sm:$0xf]
        %v737 = vld [vmem:[%s594 + $0x88] sm:$0xf]
        %v738 = vld [vmem:[%s594 + $0x8c] sm:$0xf]
        %v739 = vld [vmem:[%s594 + $0x90] sm:$0xf]
        %v740 = vld [vmem:[%s594 + $0x94] sm:$0xf]
        %v741 = vld [vmem:[%s594 + $0x98] sm:$0xf]
        %v742 = vld [vmem:[%s594 + $0x9c] sm:$0xf]
        %v743 = vld [vmem:[%s594 + $0xa0] sm:$0xf]
        %v744 = vld [vmem:[%s594 + $0xa4] sm:$0xf]
        %v745 = vld [vmem:[%s594 + $0xa8] sm:$0xf]
        %v746 = vld [vmem:[%s594 + $0xac] sm:$0xf]
        %v747 = vld [vmem:[%s594 + $0xb0] sm:$0xf]
        %v748 = vld [vmem:[%s594 + $0xb4] sm:$0xf]
        %v749 = vld [vmem:[%s594 + $0xb8] sm:$0xf]
        %v750 = vld [vmem:[%s594 + $0xbc] sm:$0xf]
        %v751 = vld [vmem:[%s594 + $0xc0] sm:$0xf]
        %v752 = vld [vmem:[%s594 + $0xc4] sm:$0xf]
        %v753 = vld [vmem:[%s594 + $0xc8] sm:$0xf]
        %v754 = vld [vmem:[%s594 + $0xcc] sm:$0xf]
        %v755 = vld [vmem:[%s594 + $0xd0] sm:$0xf]
        %v756 = vld [vmem:[%s594 + $0xd4] sm:$0xf]
        %v757 = vld [vmem:[%s594 + $0xd8] sm:$0xf]
        %v758 = vld [vmem:[%s594 + $0xdc] sm:$0xf]
        %v759 = vld [vmem:[%s594 + $0xe0] sm:$0xf]
        %v760 = vld [vmem:[%s594 + $0xe4] sm:$0xf]
        %v761 = vld [vmem:[%s594 + $0xe8] sm:$0xf]
        %v762 = vld [vmem:[%s594 + $0xec] sm:$0xf]
        %v763 = vld [vmem:[%s594 + $0xf0] sm:$0xf]
        %v764 = vld [vmem:[%s594 + $0xf4] sm:$0xf]
        %v765 = vld [vmem:[%s594 + $0xf8] sm:$0xf]
        %v766 = vld [vmem:[%s594 + $0xfc] sm:$0xf]
        %v799 = vunpack.c.l.b16 %v671
        %v800 = vunpack.c.h.b16 %v671
        %v801 = vunpack.c.l.b16 %v672
        %v802 = vunpack.c.h.b16 %v672
        %v803 = vunpack.c.l.b16 %v673
        %v804 = vunpack.c.h.b16 %v673
        %v805 = vunpack.c.l.b16 %v674
        %v806 = vunpack.c.h.b16 %v674
        %v807 = vunpack.c.l.b16 %v675
        %v808 = vunpack.c.h.b16 %v675
        %v809 = vunpack.c.l.b16 %v676
        %v810 = vunpack.c.h.b16 %v676
        %v811 = vunpack.c.l.b16 %v677
        %v812 = vunpack.c.h.b16 %v677
        %v813 = vunpack.c.l.b16 %v678
        %v814 = vunpack.c.h.b16 %v678
        %v815 = vunpack.c.l.b16 %v679
        %v816 = vunpack.c.h.b16 %v679
        %v817 = vunpack.c.l.b16 %v680
        %v818 = vunpack.c.h.b16 %v680
        %v819 = vunpack.c.l.b16 %v681
        %v820 = vunpack.c.h.b16 %v681
        %v821 = vunpack.c.l.b16 %v682
        %v822 = vunpack.c.h.b16 %v682
        %v823 = vunpack.c.l.b16 %v683
        %v824 = vunpack.c.h.b16 %v683
        %v825 = vunpack.c.l.b16 %v684
        %v826 = vunpack.c.h.b16 %v684
        %v827 = vunpack.c.l.b16 %v685
        %v828 = vunpack.c.h.b16 %v685
        %v829 = vunpack.c.l.b16 %v686
        %v830 = vunpack.c.h.b16 %v686
        %v831 = vunpack.c.l.b16 %v687
        %v832 = vunpack.c.h.b16 %v687
        %v833 = vunpack.c.l.b16 %v688
        %v834 = vunpack.c.h.b16 %v688
        %v835 = vunpack.c.l.b16 %v689
        %v836 = vunpack.c.h.b16 %v689
        %v837 = vunpack.c.l.b16 %v690
        %v838 = vunpack.c.h.b16 %v690
        %v839 = vunpack.c.l.b16 %v691
        %v840 = vunpack.c.h.b16 %v691
        %v841 = vunpack.c.l.b16 %v692
        %v842 = vunpack.c.h.b16 %v692
        %v843 = vunpack.c.l.b16 %v693
        %v844 = vunpack.c.h.b16 %v693
        %v845 = vunpack.c.l.b16 %v694
        %v846 = vunpack.c.h.b16 %v694
        %v847 = vunpack.c.l.b16 %v695
        %v848 = vunpack.c.h.b16 %v695
        %v849 = vunpack.c.l.b16 %v696
        %v850 = vunpack.c.h.b16 %v696
        %v851 = vunpack.c.l.b16 %v697
        %v852 = vunpack.c.h.b16 %v697
        %v853 = vunpack.c.l.b16 %v698
        %v854 = vunpack.c.h.b16 %v698
        %v855 = vunpack.c.l.b16 %v699
        %v856 = vunpack.c.h.b16 %v699
        %v857 = vunpack.c.l.b16 %v700
        %v858 = vunpack.c.h.b16 %v700
        %v859 = vunpack.c.l.b16 %v701
        %v860 = vunpack.c.h.b16 %v701
        %v861 = vunpack.c.l.b16 %v702
        %v862 = vunpack.c.h.b16 %v702
        %v863 = vpack.c.b16 %v803, %v799
        %v864 = vpack.c.b16 %v804, %v800
        %v865 = vpack.c.b16 %v805, %v801
        %v866 = vpack.c.b16 %v806, %v802
        %v867 = vpack.c.b16 %v811, %v807
        %v868 = vpack.c.b16 %v812, %v808
        %v869 = vpack.c.b16 %v813, %v809
        %v870 = vpack.c.b16 %v814, %v810
        %v871 = vpack.c.b16 %v819, %v815
        %v872 = vpack.c.b16 %v820, %v816
        %v873 = vpack.c.b16 %v821, %v817
        %v874 = vpack.c.b16 %v822, %v818
        %v875 = vpack.c.b16 %v827, %v823
        %v876 = vpack.c.b16 %v828, %v824
        %v877 = vpack.c.b16 %v829, %v825
        %v878 = vpack.c.b16 %v830, %v826
        %v879 = vpack.c.b16 %v835, %v831
        %v880 = vpack.c.b16 %v836, %v832
        %v881 = vpack.c.b16 %v837, %v833
        %v882 = vpack.c.b16 %v838, %v834
        %v883 = vpack.c.b16 %v843, %v839
        %v884 = vpack.c.b16 %v844, %v840
        %v885 = vpack.c.b16 %v845, %v841
        %v886 = vpack.c.b16 %v846, %v842
        %v887 = vpack.c.b16 %v851, %v847
        %v888 = vpack.c.b16 %v852, %v848
        %v889 = vpack.c.b16 %v853, %v849
        %v890 = vpack.c.b16 %v854, %v850
        %v891 = vpack.c.b16 %v859, %v855
        %v892 = vpack.c.b16 %v860, %v856
        %v893 = vpack.c.b16 %v861, %v857
        %v894 = vpack.c.b16 %v862, %v858
        %v991 = vunpack.c.l.b16 %v703
        %v992 = vunpack.c.l.b16 %v704
        %v993 = vunpack.c.l.b16 %v705
        %v994 = vunpack.c.l.b16 %v706
        %v995 = vunpack.c.l.b16 %v707
        %v996 = vunpack.c.l.b16 %v708
        %v997 = vunpack.c.l.b16 %v709
        %v998 = vunpack.c.l.b16 %v710
        %v999 = vunpack.c.l.b16 %v711
        %v1000 = vunpack.c.l.b16 %v712
        %v1001 = vunpack.c.l.b16 %v713
        %v1002 = vunpack.c.l.b16 %v714
        %v1003 = vunpack.c.l.b16 %v715
        %v1004 = vunpack.c.l.b16 %v716
        %v1005 = vunpack.c.l.b16 %v717
        %v1006 = vunpack.c.l.b16 %v718
        %v1007 = vunpack.c.l.b16 %v719
        %v1008 = vunpack.c.l.b16 %v720
        %v1009 = vunpack.c.l.b16 %v721
        %v1010 = vunpack.c.l.b16 %v722
        %v1011 = vunpack.c.l.b16 %v723
        %v1012 = vunpack.c.l.b16 %v724
        %v1013 = vunpack.c.l.b16 %v725
        %v1014 = vunpack.c.l.b16 %v726
        %v1015 = vunpack.c.l.b16 %v727
        %v1016 = vunpack.c.l.b16 %v728
        %v1017 = vunpack.c.l.b16 %v729
        %v1018 = vunpack.c.l.b16 %v730
        %v1019 = vunpack.c.l.b16 %v731
        %v1020 = vunpack.c.l.b16 %v732
        %v1021 = vunpack.c.l.b16 %v733
        %v1022 = vunpack.c.l.b16 %v734
        %v1023 = vunpack.c.l.b16 %v735
        %v1024 = vunpack.c.l.b16 %v736
        %v1025 = vunpack.c.l.b16 %v737
        %v1026 = vunpack.c.l.b16 %v738
        %v1027 = vunpack.c.l.b16 %v739
        %v1028 = vunpack.c.l.b16 %v740
        %v1029 = vunpack.c.l.b16 %v741
        %v1030 = vunpack.c.l.b16 %v742
        %v1031 = vunpack.c.l.b16 %v743
        %v1032 = vunpack.c.l.b16 %v744
        %v1033 = vunpack.c.l.b16 %v745
        %v1034 = vunpack.c.l.b16 %v746
        %v1035 = vunpack.c.l.b16 %v747
        %v1036 = vunpack.c.l.b16 %v748
        %v1037 = vunpack.c.l.b16 %v749
        %v1038 = vunpack.c.l.b16 %v750
        %v1039 = vunpack.c.l.b16 %v751
        %v1040 = vunpack.c.l.b16 %v752
        %v1041 = vunpack.c.l.b16 %v753
        %v1042 = vunpack.c.l.b16 %v754
        %v1043 = vunpack.c.l.b16 %v755
        %v1044 = vunpack.c.l.b16 %v756
        %v1045 = vunpack.c.l.b16 %v757
        %v1046 = vunpack.c.l.b16 %v758
        %v1047 = vunpack.c.l.b16 %v759
        %v1048 = vunpack.c.l.b16 %v760
        %v1049 = vunpack.c.l.b16 %v761
        %v1050 = vunpack.c.l.b16 %v762
        %v1051 = vunpack.c.l.b16 %v763
        %v1052 = vunpack.c.l.b16 %v764
        %v1053 = vunpack.c.l.b16 %v765
        %v1054 = vunpack.c.l.b16 %v766
        %v1055 = vpack.c.b16 %v992, %v991
        %v1056 = vpack.c.b16 %v994, %v993
        %v1057 = vpack.c.b16 %v996, %v995
        %v1058 = vpack.c.b16 %v998, %v997
        %v1059 = vpack.c.b16 %v1000, %v999
        %v1060 = vpack.c.b16 %v1002, %v1001
        %v1061 = vpack.c.b16 %v1004, %v1003
        %v1062 = vpack.c.b16 %v1006, %v1005
        %v1063 = vpack.c.b16 %v1008, %v1007
        %v1064 = vpack.c.b16 %v1010, %v1009
        %v1065 = vpack.c.b16 %v1012, %v1011
        %v1066 = vpack.c.b16 %v1014, %v1013
        %v1067 = vpack.c.b16 %v1016, %v1015
        %v1068 = vpack.c.b16 %v1018, %v1017
        %v1069 = vpack.c.b16 %v1020, %v1019
        %v1070 = vpack.c.b16 %v1022, %v1021
        %v1071 = vpack.c.b16 %v1024, %v1023
        %v1072 = vpack.c.b16 %v1026, %v1025
        %v1073 = vpack.c.b16 %v1028, %v1027
        %v1074 = vpack.c.b16 %v1030, %v1029
        %v1075 = vpack.c.b16 %v1032, %v1031
        %v1076 = vpack.c.b16 %v1034, %v1033
        %v1077 = vpack.c.b16 %v1036, %v1035
        %v1078 = vpack.c.b16 %v1038, %v1037
        %v1079 = vpack.c.b16 %v1040, %v1039
        %v1080 = vpack.c.b16 %v1042, %v1041
        %v1081 = vpack.c.b16 %v1044, %v1043
        %v1082 = vpack.c.b16 %v1046, %v1045
        %v1083 = vpack.c.b16 %v1048, %v1047
        %v1084 = vpack.c.b16 %v1050, %v1049
        %v1085 = vpack.c.b16 %v1052, %v1051
        %v1086 = vpack.c.b16 %v1054, %v1053
        %1119 = vmatprep.subr.bf16.mxu0 0
        %1120 = vmatpush1.bf16.msra.mxu0 %v1055
        %1121 = vmatprep.subr.bf16.mxu0 0
        %1122 = vmatpush1.bf16.msra.mxu0 %v1056
        %1123 = vmatprep.subr.bf16.mxu0 0
        %1124 = vmatpush1.bf16.msra.mxu0 %v1057
        %1125 = vmatprep.subr.bf16.mxu0 0
        %1126 = vmatpush1.bf16.msra.mxu0 %v1058
        %1127 = vmatprep.subr.bf16.mxu0 0
        %1128 = vmatpush1.bf16.msra.mxu0 %v1059
        %1129 = vmatprep.subr.bf16.mxu0 0
        %1130 = vmatpush1.bf16.msra.mxu0 %v1060
        %1131 = vmatprep.subr.bf16.mxu0 0
        %1132 = vmatpush1.bf16.msra.mxu0 %v1061
        %1133 = vmatprep.subr.bf16.mxu0 0
        %1134 = vmatpush1.bf16.msra.mxu0 %v1062
        %1135 = vmatprep.subr.bf16.mxu0 0
        %1136 = vmatpush1.bf16.msra.mxu0 %v1063
        %1137 = vmatprep.subr.bf16.mxu0 0
        %1138 = vmatpush1.bf16.msra.mxu0 %v1064
        %1139 = vmatprep.subr.bf16.mxu0 0
        %1140 = vmatpush1.bf16.msra.mxu0 %v1065
        %1141 = vmatprep.subr.bf16.mxu0 0
        %1142 = vmatpush1.bf16.msra.mxu0 %v1066
        %1143 = vmatprep.subr.bf16.mxu0 0
        %1144 = vmatpush1.bf16.msra.mxu0 %v1067
        %1145 = vmatprep.subr.bf16.mxu0 0
        %1146 = vmatpush1.bf16.msra.mxu0 %v1068
        %1147 = vmatprep.subr.bf16.mxu0 0
        %1148 = vmatpush1.bf16.msra.mxu0 %v1069
        %1149 = vmatprep.subr.bf16.mxu0 0
        %1150 = vmatpush1.bf16.msra.mxu0 %v1070
        %1151 = vmatprep.mubr.bf16.mxu0 %v864
        %1152 = vmatmul.mubr.bf16.gmra.mrb[0].mxu0 %v863
        %v1153 = vpop.f32.mrb[0].mxu0
        %v1154 = vadd.f32 0.0, %v1153
        %v1155 = vpop.f32.mrb[0].mxu0
        %v1156 = vpop.f32.mrb[0].mxu0
        %v1157 = vadd.f32 0.0, %v1156
        %v1158 = vpop.f32.mrb[0].mxu0
        %1159 = vmatprep.mubr.bf16.mxu0 %v868
        %1160 = vmatmul.mubr.bf16.gmra.mrb[0].mxu0 %v867
        %v1161 = vpop.f32.mrb[0].mxu0
        %v1162 = vadd.f32 0.0, %v1161
        %v1163 = vpop.f32.mrb[0].mxu0
        %v1164 = vpop.f32.mrb[0].mxu0
        %v1165 = vadd.f32 0.0, %v1164
        %v1166 = vpop.f32.mrb[0].mxu0
        %1167 = vmatprep.mubr.bf16.mxu0 %v872
        %1168 = vmatmul.mubr.bf16.gmra.mrb[0].mxu0 %v871
        %v1169 = vpop.f32.mrb[0].mxu0
        %v1170 = vadd.f32 0.0, %v1169
        %v1171 = vpop.f32.mrb[0].mxu0
        %v1172 = vpop.f32.mrb[0].mxu0
        %v1173 = vadd.f32 0.0, %v1172
        %v1174 = vpop.f32.mrb[0].mxu0
        %1175 = vmatprep.mubr.bf16.mxu0 %v876
        %1176 = vmatmul.mubr.bf16.gmra.mrb[0].mxu0 %v875
        %v1177 = vpop.f32.mrb[0].mxu0
        %v1178 = vadd.f32 0.0, %v1177
        %v1179 = vpop.f32.mrb[0].mxu0
        %v1180 = vpop.f32.mrb[0].mxu0
        %v1181 = vadd.f32 0.0, %v1180
        %v1182 = vpop.f32.mrb[0].mxu0
        %1183 = vmatprep.mubr.bf16.mxu0 %v880
        %1184 = vmatmul.mubr.bf16.gmra.mrb[0].mxu0 %v879
        %v1185 = vpop.f32.mrb[0].mxu0
        %v1186 = vadd.f32 0.0, %v1185
        %v1187 = vpop.f32.mrb[0].mxu0
        %v1188 = vpop.f32.mrb[0].mxu0
        %v1189 = vadd.f32 0.0, %v1188
        %v1190 = vpop.f32.mrb[0].mxu0
        %1191 = vmatprep.mubr.bf16.mxu0 %v884
        %1192 = vmatmul.mubr.bf16.gmra.mrb[0].mxu0 %v883
        %v1193 = vpop.f32.mrb[0].mxu0
        %v1194 = vadd.f32 0.0, %v1193
        %v1195 = vpop.f32.mrb[0].mxu0
        %v1196 = vpop.f32.mrb[0].mxu0
        %v1197 = vadd.f32 0.0, %v1196
        %v1198 = vpop.f32.mrb[0].mxu0
        %1199 = vmatprep.mubr.bf16.mxu0 %v888
        %1200 = vmatmul.mubr.bf16.gmra.mrb[0].mxu0 %v887
        %v1201 = vpop.f32.mrb[0].mxu0
        %v1202 = vadd.f32 0.0, %v1201
        %v1203 = vpop.f32.mrb[0].mxu0
        %v1204 = vpop.f32.mrb[0].mxu0
        %v1205 = vadd.f32 0.0, %v1204
        %v1206 = vpop.f32.mrb[0].mxu0
        %1207 = vmatprep.mubr.bf16.mxu0 %v892
        %1208 = vmatmul.mubr.bf16.gmra.mrb[0].mxu0 %v891
        %v1209 = vpop.f32.mrb[0].mxu0
        %v1210 = vadd.f32 0.0, %v1209
        %v1211 = vpop.f32.mrb[0].mxu0
        %v1212 = vpop.f32.mrb[0].mxu0
        %v1213 = vadd.f32 0.0, %v1212
        %v1214 = vpop.f32.mrb[0].mxu0
        %1215 = vdwg.mxu0
        %1216 = vmatprep.subr.bf16.mxu0 0
        %1217 = vmatpush1.bf16.msra.mxu0 %v1071
        %1218 = vmatprep.subr.bf16.mxu0 0
        %1219 = vmatpush1.bf16.msra.mxu0 %v1072
        %1220 = vmatprep.subr.bf16.mxu0 0
        %1221 = vmatpush1.bf16.msra.mxu0 %v1073
        %1222 = vmatprep.subr.bf16.mxu0 0
        %1223 = vmatpush1.bf16.msra.mxu0 %v1074
        %1224 = vmatprep.subr.bf16.mxu0 0
        %1225 = vmatpush1.bf16.msra.mxu0 %v1075
        %1226 = vmatprep.subr.bf16.mxu0 0
        %1227 = vmatpush1.bf16.msra.mxu0 %v1076
        %1228 = vmatprep.subr.bf16.mxu0 0
        %1229 = vmatpush1.bf16.msra.mxu0 %v1077
        %1230 = vmatprep.subr.bf16.mxu0 0
        %1231 = vmatpush1.bf16.msra.mxu0 %v1078
        %1232 = vmatprep.subr.bf16.mxu0 0
        %1233 = vmatpush1.bf16.msra.mxu0 %v1079
        %1234 = vmatprep.subr.bf16.mxu0 0
        %1235 = vmatpush1.bf16.msra.mxu0 %v1080
        %1236 = vmatprep.subr.bf16.mxu0 0
        %1237 = vmatpush1.bf16.msra.mxu0 %v1081
        %1238 = vmatprep.subr.bf16.mxu0 0
        %1239 = vmatpush1.bf16.msra.mxu0 %v1082
        %1240 = vmatprep.subr.bf16.mxu0 0
        %1241 = vmatpush1.bf16.msra.mxu0 %v1083
        %1242 = vmatprep.subr.bf16.mxu0 0
        %1243 = vmatpush1.bf16.msra.mxu0 %v1084
        %1244 = vmatprep.subr.bf16.mxu0 0
        %1245 = vmatpush1.bf16.msra.mxu0 %v1085
        %1246 = vmatprep.subr.bf16.mxu0 0
        %1247 = vmatpush1.bf16.msra.mxu0 %v1086
        %1248 = vmatprep.mubr.bf16.mxu0 %v866
        %1249 = vmatmul.mubr.bf16.gmra.mrb[0].mxu0 %v865
        %v1250 = vpop.f32.mrb[0].mxu0
        %v1251 = vadd.f32 %v1154, %v1250
        %v1252 = vpop.f32.mrb[0].mxu0
        %v1253 = vpop.f32.mrb[0].mxu0
        %v1254 = vadd.f32 %v1157, %v1253
        %v1255 = vpop.f32.mrb[0].mxu0
        %1256 = vmatprep.mubr.bf16.mxu0 %v870
        %1257 = vmatmul.mubr.bf16.gmra.mrb[0].mxu0 %v869
        %v1258 = vpop.f32.mrb[0].mxu0
        %v1259 = vadd.f32 %v1162, %v1258
        %v1260 = vpop.f32.mrb[0].mxu0
        %v1261 = vpop.f32.mrb[0].mxu0
        %v1262 = vadd.f32 %v1165, %v1261
        %v1263 = vpop.f32.mrb[0].mxu0
        %1264 = vmatprep.mubr.bf16.mxu0 %v874
        %1265 = vmatmul.mubr.bf16.gmra.mrb[0].mxu0 %v873
        %v1266 = vpop.f32.mrb[0].mxu0
        %v1267 = vadd.f32 %v1170, %v1266
        %v1268 = vpop.f32.mrb[0].mxu0
        %v1269 = vpop.f32.mrb[0].mxu0
        %v1270 = vadd.f32 %v1173, %v1269
        %v1271 = vpop.f32.mrb[0].mxu0
        %1272 = vmatprep.mubr.bf16.mxu0 %v878
        %1273 = vmatmul.mubr.bf16.gmra.mrb[0].mxu0 %v877
        %v1274 = vpop.f32.mrb[0].mxu0
        %v1275 = vadd.f32 %v1178, %v1274
        %v1276 = vpop.f32.mrb[0].mxu0
        %v1277 = vpop.f32.mrb[0].mxu0
        %v1278 = vadd.f32 %v1181, %v1277
        %v1279 = vpop.f32.mrb[0].mxu0
        %1280 = vmatprep.mubr.bf16.mxu0 %v882
        %1281 = vmatmul.mubr.bf16.gmra.mrb[0].mxu0 %v881
        %v1282 = vpop.f32.mrb[0].mxu0
        %v1283 = vadd.f32 %v1186, %v1282
        %v1284 = vpop.f32.mrb[0].mxu0
        %v1285 = vpop.f32.mrb[0].mxu0
        %v1286 = vadd.f32 %v1189, %v1285
        %v1287 = vpop.f32.mrb[0].mxu0
        %1288 = vmatprep.mubr.bf16.mxu0 %v886
        %1289 = vmatmul.mubr.bf16.gmra.mrb[0].mxu0 %v885
        %v1290 = vpop.f32.mrb[0].mxu0
        %v1291 = vadd.f32 %v1194, %v1290
        %v1292 = vpop.f32.mrb[0].mxu0
        %v1293 = vpop.f32.mrb[0].mxu0
        %v1294 = vadd.f32 %v1197, %v1293
        %v1295 = vpop.f32.mrb[0].mxu0
        %1296 = vmatprep.mubr.bf16.mxu0 %v890
        %1297 = vmatmul.mubr.bf16.gmra.mrb[0].mxu0 %v889
        %v1298 = vpop.f32.mrb[0].mxu0
        %v1299 = vadd.f32 %v1202, %v1298
        %v1300 = vpop.f32.mrb[0].mxu0
        %v1301 = vpop.f32.mrb[0].mxu0
        %v1302 = vadd.f32 %v1205, %v1301
        %v1303 = vpop.f32.mrb[0].mxu0
        %1304 = vmatprep.mubr.bf16.mxu0 %v894
        %1305 = vmatmul.mubr.bf16.gmra.mrb[0].mxu0 %v893
        %v1306 = vpop.f32.mrb[0].mxu0
        %v1307 = vadd.f32 %v1210, %v1306
        %v1308 = vpop.f32.mrb[0].mxu0
        %v1309 = vpop.f32.mrb[0].mxu0
        %v1310 = vadd.f32 %v1213, %v1309
        %v1311 = vpop.f32.mrb[0].mxu0
        %1312 = vdwg.mxu0
        %v1313 = vadd.f32 %v655, %v1251
        %v1314 = vadd.f32 %v656, %v1254
        %v1315 = vadd.f32 %v657, %v1259
        %v1316 = vadd.f32 %v658, %v1262
        %v1317 = vadd.f32 %v659, %v1267
        %v1318 = vadd.f32 %v660, %v1270
        %v1319 = vadd.f32 %v661, %v1275
        %v1320 = vadd.f32 %v662, %v1278
        %v1321 = vadd.f32 %v663, %v1283
        %v1322 = vadd.f32 %v664, %v1286
        %v1323 = vadd.f32 %v665, %v1291
        %v1324 = vadd.f32 %v666, %v1294
        %v1325 = vadd.f32 %v667, %v1299
        %v1326 = vadd.f32 %v668, %v1302
        %v1327 = vadd.f32 %v669, %v1307
        %v1328 = vadd.f32 %v670, %v1310
        %1329 = vst [vmem:[#allocation2] sm:$0xff] %v1313
        %1330 = vst [vmem:[#allocation2 + $0x8] sm:$0xff] %v1314
        %1331 = vst [vmem:[#allocation2 + $0x10] sm:$0xff] %v1315
        %1332 = vst [vmem:[#allocation2 + $0x18] sm:$0xff] %v1316
        %1333 = vst [vmem:[#allocation2 + $0x20] sm:$0xff] %v1317
        %1334 = vst [vmem:[#allocation2 + $0x28] sm:$0xff] %v1318
        %1335 = vst [vmem:[#allocation2 + $0x30] sm:$0xff] %v1319
        %1336 = vst [vmem:[#allocation2 + $0x38] sm:$0xff] %v1320
        %1337 = vst [vmem:[#allocation2 + $0x40] sm:$0xff] %v1321
        %1338 = vst [vmem:[#allocation2 + $0x48] sm:$0xff] %v1322
        %1339 = vst [vmem:[#allocation2 + $0x50] sm:$0xff] %v1323
        %1340 = vst [vmem:[#allocation2 + $0x58] sm:$0xff] %v1324
        %1341 = vst [vmem:[#allocation2 + $0x60] sm:$0xff] %v1325
        %1342 = vst [vmem:[#allocation2 + $0x68] sm:$0xff] %v1326
        %1343 = vst [vmem:[#allocation2 + $0x70] sm:$0xff] %v1327
        %1344 = vst [vmem:[#allocation2 + $0x78] sm:$0xff] %v1328
        %p1345 = scmp.eq.s32.totalorder %s20, 3
        // Predicated region
        $region105: #{discriminator_forward.6} parent=91 // pred_check
          %p1346 = pneg %p1345
        $region106: #{discriminator_forward.6} parent=91 // pred_check_branch
          %1348 = sbr.rel (%p1346) target = $region108
        $region107: #{discriminator_forward.6} parent=91 // pred_region
          %v1349 = vld [vmem:[#allocation2] sm:$0xff]
          %v1350 = vld [vmem:[#allocation2 + $0x8] sm:$0xff]
          %v1351 = vld [vmem:[#allocation2 + $0x10] sm:$0xff]
          %v1352 = vld [vmem:[#allocation2 + $0x18] sm:$0xff]
          %v1353 = vld [vmem:[#allocation2 + $0x20] sm:$0xff]
          %v1354 = vld [vmem:[#allocation2 + $0x28] sm:$0xff]
          %v1355 = vld [vmem:[#allocation2 + $0x30] sm:$0xff]
          %v1356 = vld [vmem:[#allocation2 + $0x38] sm:$0xff]
          %v1357 = vld [vmem:[#allocation2 + $0x40] sm:$0xff]
          %v1358 = vld [vmem:[#allocation2 + $0x48] sm:$0xff]
          %v1359 = vld [vmem:[#allocation2 + $0x50] sm:$0xff]
          %v1360 = vld [vmem:[#allocation2 + $0x58] sm:$0xff]
          %v1361 = vld [vmem:[#allocation2 + $0x60] sm:$0xff]
          %v1362 = vld [vmem:[#allocation2 + $0x68] sm:$0xff]
          %v1363 = vld [vmem:[#allocation2 + $0x70] sm:$0xff]
          %v1364 = vld [vmem:[#allocation2 + $0x78] sm:$0xff]
          %v1365 = vadd.f32 %v1349, %v1350
          %v1366 = vadd.f32 %v1365, %v1351
          %v1367 = vadd.f32 %v1366, %v1352
          %v1368 = vadd.f32 %v1367, %v1353
          %v1369 = vadd.f32 %v1368, %v1354
          %v1370 = vadd.f32 %v1369, %v1355
          %v1371 = vadd.f32 %v1370, %v1356
          %v1372 = vadd.f32 %v1371, %v1357
          %v1373 = vadd.f32 %v1372, %v1358
          %v1374 = vadd.f32 %v1373, %v1359
          %v1375 = vadd.f32 %v1374, %v1360
          %v1376 = vadd.f32 %v1375, %v1361
          %v1377 = vadd.f32 %v1376, %v1362
          %v1378 = vadd.f32 %v1377, %v1363
          %v1379 = vadd.f32 %v1378, %v1364
          %v1380 = vrot.slane %v1379, 4
          %v1381 = vadd.f32 %v1379, %v1380
          %v1382 = vrot.slane %v1381, 2
          %v1383 = vadd.f32 %v1381, %v1382
          %v1384 = vrot.slane %v1383, 1
          %v1385 = vadd.f32 %v1383, %v1384
          %v1386 = vmul.f32 %v1385, 0.0078125
          %v1387 = vsub.f32 %v1349, %v1386
          %v1388 = vsub.f32 %v1350, %v1386
          %v1389 = vsub.f32 %v1351, %v1386
          %v1390 = vsub.f32 %v1352, %v1386
          %v1391 = vsub.f32 %v1353, %v1386
          %v1392 = vsub.f32 %v1354, %v1386
          %v1393 = vsub.f32 %v1355, %v1386
          %v1394 = vsub.f32 %v1356, %v1386
          %v1395 = vsub.f32 %v1357, %v1386
          %v1396 = vsub.f32 %v1358, %v1386
          %v1397 = vsub.f32 %v1359, %v1386
          %v1398 = vsub.f32 %v1360, %v1386
          %v1399 = vsub.f32 %v1361, %v1386
          %v1400 = vsub.f32 %v1362, %v1386
          %v1401 = vsub.f32 %v1363, %v1386
          %v1402 = vsub.f32 %v1364, %v1386
          %v1403 = vmul.f32 %v1387, %v1387
          %v1404 = vmul.f32 %v1388, %v1388
          %v1405 = vmul.f32 %v1389, %v1389
          %v1406 = vmul.f32 %v1390, %v1390
          %v1407 = vmul.f32 %v1391, %v1391
          %v1408 = vmul.f32 %v1392, %v1392
          %v1409 = vmul.f32 %v1393, %v1393
          %v1410 = vmul.f32 %v1394, %v1394
          %v1411 = vmul.f32 %v1395, %v1395
          %v1412 = vmul.f32 %v1396, %v1396
          %v1413 = vmul.f32 %v1397, %v1397
          %v1414 = vmul.f32 %v1398, %v1398
          %v1415 = vmul.f32 %v1399, %v1399
          %v1416 = vmul.f32 %v1400, %v1400
          %v1417 = vmul.f32 %v1401, %v1401
          %v1418 = vmul.f32 %v1402, %v1402
          %v1419 = vadd.f32 %v1403, %v1404
          %v1420 = vadd.f32 %v1419, %v1405
          %v1421 = vadd.f32 %v1420, %v1406
          %v1422 = vadd.f32 %v1421, %v1407
          %v1423 = vadd.f32 %v1422, %v1408
          %v1424 = vadd.f32 %v1423, %v1409
          %v1425 = vadd.f32 %v1424, %v1410
          %v1426 = vadd.f32 %v1425, %v1411
          %v1427 = vadd.f32 %v1426, %v1412
          %v1428 = vadd.f32 %v1427, %v1413
          %v1429 = vadd.f32 %v1428, %v1414
          %v1430 = vadd.f32 %v1429, %v1415
          %v1431 = vadd.f32 %v1430, %v1416
          %v1432 = vadd.f32 %v1431, %v1417
          %v1433 = vadd.f32 %v1432, %v1418
          %v1434 = vrot.slane %v1433, 4
          %v1435 = vadd.f32 %v1433, %v1434
          %v1436 = vrot.slane %v1435, 2
          %v1437 = vadd.f32 %v1435, %v1436
          %v1438 = vrot.slane %v1437, 1
          %v1439 = vadd.f32 %v1437, %v1438
          %v1440 = vmul.f32 %v1439, 0.0078125
          %v1441 = vadd.f32 %v1440, 1e-05
          %v1442 = vrsqrt.pop %v1441
          %v1443 = vld [vmem:[%s630] sm:$0x1]
          %v1444 = vmul.f32 %v1442, %v1443
          %v1445 = vlaneseq
          %v1446 = vshrl.u32 %v1445, 7
          %v1447 = vsub.s32 0, %v1446
          %v1448 = vrot.slane %v1444, %v1447
          %v1449 = vmul.f32 %v1387, %v1448
          %v1450 = vmul.f32 %v1388, %v1448
          %v1451 = vmul.f32 %v1389, %v1448
          %v1452 = vmul.f32 %v1390, %v1448
          %v1453 = vmul.f32 %v1391, %v1448
          %v1454 = vmul.f32 %v1392, %v1448
          %v1455 = vmul.f32 %v1393, %v1448
          %v1456 = vmul.f32 %v1394, %v1448
          %v1457 = vmul.f32 %v1395, %v1448
          %v1458 = vmul.f32 %v1396, %v1448
          %v1459 = vmul.f32 %v1397, %v1448
          %v1460 = vmul.f32 %v1398, %v1448
          %v1461 = vmul.f32 %v1399, %v1448
          %v1462 = vmul.f32 %v1400, %v1448
          %v1463 = vmul.f32 %v1401, %v1448
          %v1464 = vmul.f32 %v1402, %v1448
          %v1465 = vld [vmem:[%s633] sm:$0x1]
          %v1467 = vlaneseq
          %v1468 = vshrl.u32 %v1467, 7
          %v1469 = vsub.s32 0, %v1468
          %v1470 = vrot.slane %v1465, %v1469
          %v1472 = vadd.f32 %v1449, %v1470
          %v1473 = vadd.f32 %v1450, %v1470
          %v1474 = vadd.f32 %v1451, %v1470
          %v1475 = vadd.f32 %v1452, %v1470
          %v1476 = vadd.f32 %v1453, %v1470
          %v1477 = vadd.f32 %v1454, %v1470
          %v1478 = vadd.f32 %v1455, %v1470
          %v1479 = vadd.f32 %v1456, %v1470
          %v1480 = vadd.f32 %v1457, %v1470
          %v1481 = vadd.f32 %v1458, %v1470
          %v1482 = vadd.f32 %v1459, %v1470
          %v1483 = vadd.f32 %v1460, %v1470
          %v1484 = vadd.f32 %v1461, %v1470
          %v1485 = vadd.f32 %v1462, %v1470
          %v1486 = vadd.f32 %v1463, %v1470
          %v1487 = vadd.f32 %v1464, %v1470
          %vm1488 = vcmp.gt.f32.partialorder %v1472, 0.0
          %vm1489 = vcmp.gt.f32.partialorder %v1473, 0.0
          %vm1490 = vcmp.gt.f32.partialorder %v1474, 0.0
          %vm1491 = vcmp.gt.f32.partialorder %v1475, 0.0
          %vm1492 = vcmp.gt.f32.partialorder %v1476, 0.0
          %vm1493 = vcmp.gt.f32.partialorder %v1477, 0.0
          %vm1494 = vcmp.gt.f32.partialorder %v1478, 0.0
          %vm1495 = vcmp.gt.f32.partialorder %v1479, 0.0
          %vm1496 = vcmp.gt.f32.partialorder %v1480, 0.0
          %vm1497 = vcmp.gt.f32.partialorder %v1481, 0.0
          %vm1498 = vcmp.gt.f32.partialorder %v1482, 0.0
          %vm1499 = vcmp.gt.f32.partialorder %v1483, 0.0
          %vm1500 = vcmp.gt.f32.partialorder %v1484, 0.0
          %vm1501 = vcmp.gt.f32.partialorder %v1485, 0.0
          %vm1502 = vcmp.gt.f32.partialorder %v1486, 0.0
          %vm1503 = vcmp.gt.f32.partialorder %v1487, 0.0
          %v1504 = vmul.f32 %v1472, 0.2
          %v1505 = vmul.f32 %v1473, 0.2
          %v1506 = vmul.f32 %v1474, 0.2
          %v1507 = vmul.f32 %v1475, 0.2
          %v1508 = vmul.f32 %v1476, 0.2
          %v1509 = vmul.f32 %v1477, 0.2
          %v1510 = vmul.f32 %v1478, 0.2
          %v1511 = vmul.f32 %v1479, 0.2
          %v1512 = vmul.f32 %v1480, 0.2
          %v1513 = vmul.f32 %v1481, 0.2
          %v1514 = vmul.f32 %v1482, 0.2
          %v1515 = vmul.f32 %v1483, 0.2
          %v1516 = vmul.f32 %v1484, 0.2
          %v1517 = vmul.f32 %v1485, 0.2
          %v1518 = vmul.f32 %v1486, 0.2
          %v1519 = vmul.f32 %v1487, 0.2
          %v1520 = vsel %vm1488, %v1472, %v1504
          %v1521 = vsel %vm1489, %v1473, %v1505
          %v1522 = vsel %vm1490, %v1474, %v1506
          %v1523 = vsel %vm1491, %v1475, %v1507
          %v1524 = vsel %vm1492, %v1476, %v1508
          %v1525 = vsel %vm1493, %v1477, %v1509
          %v1526 = vsel %vm1494, %v1478, %v1510
          %v1527 = vsel %vm1495, %v1479, %v1511
          %v1528 = vsel %vm1496, %v1480, %v1512
          %v1529 = vsel %vm1497, %v1481, %v1513
          %v1530 = vsel %vm1498, %v1482, %v1514
          %v1531 = vsel %vm1499, %v1483, %v1515
          %v1532 = vsel %vm1500, %v1484, %v1516
          %v1533 = vsel %vm1501, %v1485, %v1517
          %v1534 = vsel %vm1502, %v1486, %v1518
          %v1535 = vsel %vm1503, %v1487, %v1519
          %v1536 = vpack.c.bf16 %v1521, %v1520
          %v1537 = vpack.c.bf16 %v1523, %v1522
          %v1538 = vpack.c.bf16 %v1525, %v1524
          %v1539 = vpack.c.bf16 %v1527, %v1526
          %v1540 = vpack.c.bf16 %v1529, %v1528
          %v1541 = vpack.c.bf16 %v1531, %v1530
          %v1542 = vpack.c.bf16 %v1533, %v1532
          %v1543 = vpack.c.bf16 %v1535, %v1534
          %v1552 = vunpack.c.l.b16 %v1536
          %v1553 = vunpack.c.h.b16 %v1536
          %v1554 = vunpack.c.l.b16 %v1537
          %v1555 = vunpack.c.h.b16 %v1537
          %v1556 = vunpack.c.l.b16 %v1538
          %v1557 = vunpack.c.h.b16 %v1538
          %v1558 = vunpack.c.l.b16 %v1539
          %v1559 = vunpack.c.h.b16 %v1539
          %v1560 = vunpack.c.l.b16 %v1540
          %v1561 = vunpack.c.h.b16 %v1540
          %v1562 = vunpack.c.l.b16 %v1541
          %v1563 = vunpack.c.h.b16 %v1541
          %v1564 = vunpack.c.l.b16 %v1542
          %v1565 = vunpack.c.h.b16 %v1542
          %v1566 = vunpack.c.l.b16 %v1543
          %v1567 = vunpack.c.h.b16 %v1543
          %v1568 = vpack.c.b16 %v1552, %v1552
          %v1569 = vpack.c.b16 %v1553, %v1553
          %v1570 = vpack.c.b16 %v1554, %v1554
          %v1571 = vpack.c.b16 %v1555, %v1555
          %v1572 = vpack.c.b16 %v1556, %v1556
          %v1573 = vpack.c.b16 %v1557, %v1557
          %v1574 = vpack.c.b16 %v1558, %v1558
          %v1575 = vpack.c.b16 %v1559, %v1559
          %v1576 = vpack.c.b16 %v1560, %v1560
          %v1577 = vpack.c.b16 %v1561, %v1561
          %v1578 = vpack.c.b16 %v1562, %v1562
          %v1579 = vpack.c.b16 %v1563, %v1563
          %v1580 = vpack.c.b16 %v1564, %v1564
          %v1581 = vpack.c.b16 %v1565, %v1565
          %v1582 = vpack.c.b16 %v1566, %v1566
          %v1583 = vpack.c.b16 %v1567, %v1567
          %1600 = vst [vmem:[%s625] sm:$0xf] %v1568
          %1601 = vst [vmem:[%s625 + $0x4] sm:$0xf] %v1569
          %1602 = vst [vmem:[%s625 + $0x8] sm:$0xf] %v1570
          %1603 = vst [vmem:[%s625 + $0xc] sm:$0xf] %v1571
          %1604 = vst [vmem:[%s625 + $0x10] sm:$0xf] %v1572
          %1605 = vst [vmem:[%s625 + $0x14] sm:$0xf] %v1573
          %1606 = vst [vmem:[%s625 + $0x18] sm:$0xf] %v1574
          %1607 = vst [vmem:[%s625 + $0x1c] sm:$0xf] %v1575
          %1608 = vst [vmem:[%s625 + $0x20] sm:$0xf] %v1576
          %1609 = vst [vmem:[%s625 + $0x24] sm:$0xf] %v1577
          %1610 = vst [vmem:[%s625 + $0x28] sm:$0xf] %v1578
          %1611 = vst [vmem:[%s625 + $0x2c] sm:$0xf] %v1579
          %1612 = vst [vmem:[%s625 + $0x30] sm:$0xf] %v1580
          %1613 = vst [vmem:[%s625 + $0x34] sm:$0xf] %v1581
          %1614 = vst [vmem:[%s625 + $0x38] sm:$0xf] %v1582
          %1615 = vst [vmem:[%s625 + $0x3c] sm:$0xf] %v1583
        $region108: #{discriminator_forward.6} parent=91 // pred_fallthru
          _
        %s1616 = sand.u32 %s141, 1
        %s1617 = sand.u32 %s141, 1
        %s1618 = smul.addr %s1617, 64
        %s1619 = scalar_lea.vmem [#allocation5], %s1618
        // Predicated region
        $region109: #{discriminator_forward.6} parent=91 // pred_check
          %p1620 = pneg %p151
        $region110: #{discriminator_forward.6} parent=91 // pred_check_branch
          %1622 = sbr.rel (%p1620) target = $region112
        $region111: #{discriminator_forward.6} parent=91 // pred_region
          %s1623 = smul.addr %s19, 4
          %s1624 = scalar_lea.vmem %s4, %s1623
          // Predicated region
          $region113: #{discriminator_forward.6} parent=111 // pred_check
            _
          $region114: #{discriminator_forward.6} parent=111 // pred_check_branch
            %1626 = sbr.rel (0) target = $region116
          $region115: #{discriminator_forward.6} parent=111 // pred_region
            // Predicated region
            $region117: #{discriminator_forward.6} parent=115 // pred_check
              _
            $region118: #{discriminator_forward.6} parent=115 // pred_check_branch
              %1628 = sbr.rel target = $region120
            $region119: #{discriminator_forward.6} parent=115 // pred_region
              // Predicated region
              $region132: #{discriminator_forward.6} parent=119 // pred_check
                _
              $region133: #{discriminator_forward.6} parent=119 // pred_check_branch
                %1673 = sbr.rel (0) target = $region135
              $region134: #{discriminator_forward.6} parent=119 // pred_region
                loop: start=0, step=1, limit=1
                $region136: #{discriminator_forward.6} parent=134 // loop_pre_header
                  _
                $region137: #{discriminator_forward.6} parent=134 // loop_header
                  %s1675 = sphi 0, %s1679
                  %p1676 = scmp.ge.s32.totalorder %s1675, 1
                  %s1680 = sphi %s1619, %s1619
                  %s1681 = sphi %s1624, %s1624
                $region138: #{discriminator_forward.6} parent=134 // loop_header_branch
                  %1678 = sbr.rel (%p1676) target = $region142
                $region139: #{discriminator_forward.6} parent=134 // loop_body
                  _
                $region140: #{discriminator_forward.6} parent=134 // loop_footer
                  %s1679 = sadd.s32 1, %s1675
                $region141: #{discriminator_forward.6} parent=134 // loop_footer_branch
                  %1674 = sbr.rel target = $region137
                $region142: #{discriminator_forward.6} parent=134 // loop_exit
                  _
                loop: start=0, step=1, limit=1
                $region143: #{discriminator_forward.6} parent=134 // loop_pre_header
                  _
                $region144: #{discriminator_forward.6} parent=134 // loop_header
                  %s1684 = sphi 0, %s1688
                  %p1685 = scmp.ge.s32.totalorder %s1684, 1
                  %s1689 = sphi %s1619, %s1619
                  %s1690 = sphi %s1624, %s1624
                $region145: #{discriminator_forward.6} parent=134 // loop_header_branch
                  %1687 = sbr.rel (%p1685) target = $region149
                $region146: #{discriminator_forward.6} parent=134 // loop_body
                  %v1691 = vld [vmem:[%s1689] sm:$0xf]
                  %1692 = vst [vmem:[%s1690] sm:$0xf] %v1691
                  %v1693 = vld [vmem:[%s1689 + $0x4] sm:$0xf]
                  %1694 = vst [vmem:[%s1690 + $0x8] sm:$0xf] %v1693
                  %v1695 = vld [vmem:[%s1689 + $0x8] sm:$0xf]
                  %1696 = vst [vmem:[%s1690 + $0x10] sm:$0xf] %v1695
                  %v1697 = vld [vmem:[%s1689 + $0xc] sm:$0xf]
                  %1698 = vst [vmem:[%s1690 + $0x18] sm:$0xf] %v1697
                  %v1699 = vld [vmem:[%s1689 + $0x10] sm:$0xf]
                  %1700 = vst [vmem:[%s1690 + $0x20] sm:$0xf] %v1699
                  %v1701 = vld [vmem:[%s1689 + $0x14] sm:$0xf]
                  %1702 = vst [vmem:[%s1690 + $0x28] sm:$0xf] %v1701
                  %v1703 = vld [vmem:[%s1689 + $0x18] sm:$0xf]
                  %1704 = vst [vmem:[%s1690 + $0x30] sm:$0xf] %v1703
                  %v1705 = vld [vmem:[%s1689 + $0x1c] sm:$0xf]
                  %1706 = vst [vmem:[%s1690 + $0x38] sm:$0xf] %v1705
                  %v1707 = vld [vmem:[%s1689 + $0x20] sm:$0xf]
                  %1708 = vst [vmem:[%s1690 + $0x40] sm:$0xf] %v1707
                  %v1709 = vld [vmem:[%s1689 + $0x24] sm:$0xf]
                  %1710 = vst [vmem:[%s1690 + $0x48] sm:$0xf] %v1709
                  %v1711 = vld [vmem:[%s1689 + $0x28] sm:$0xf]
                  %1712 = vst [vmem:[%s1690 + $0x50] sm:$0xf] %v1711
                  %v1713 = vld [vmem:[%s1689 + $0x2c] sm:$0xf]
                  %1714 = vst [vmem:[%s1690 + $0x58] sm:$0xf] %v1713
                  %v1715 = vld [vmem:[%s1689 + $0x30] sm:$0xf]
                  %1716 = vst [vmem:[%s1690 + $0x60] sm:$0xf] %v1715
                  %v1717 = vld [vmem:[%s1689 + $0x34] sm:$0xf]
                  %1718 = vst [vmem:[%s1690 + $0x68] sm:$0xf] %v1717
                  %v1719 = vld [vmem:[%s1689 + $0x38] sm:$0xf]
                  %1720 = vst [vmem:[%s1690 + $0x70] sm:$0xf] %v1719
                  %v1721 = vld [vmem:[%s1689 + $0x3c] sm:$0xf]
                  %1722 = vst [vmem:[%s1690 + $0x78] sm:$0xf] %v1721
                $region147: #{discriminator_forward.6} parent=134 // loop_footer
                  %s1688 = sadd.s32 1, %s1684
                $region148: #{discriminator_forward.6} parent=134 // loop_footer_branch
                  %1683 = sbr.rel target = $region144
                $region149: #{discriminator_forward.6} parent=134 // loop_exit
                  _
              $region135: #{discriminator_forward.6} parent=119 // pred_fallthru
                _
            $region120: #{discriminator_forward.6} parent=115 // pred_fallthru
              _
            // Predicated region
            $region121: #{discriminator_forward.6} parent=115 // pred_check
              _
            $region122: #{discriminator_forward.6} parent=115 // pred_check_branch
              %1630 = sbr.rel (0) target = $region124
            $region123: #{discriminator_forward.6} parent=115 // pred_region
              loop: start=0, step=1, limit=1
              $region125: #{discriminator_forward.6} parent=123 // loop_pre_header
                _
              $region126: #{discriminator_forward.6} parent=123 // loop_header
                %s1633 = sphi 0, %s1637
                %p1634 = scmp.ge.s32.totalorder %s1633, 1
                %s1638 = sphi %s1619, %s1619
                %s1639 = sphi %s1624, %s1624
              $region127: #{discriminator_forward.6} parent=123 // loop_header_branch
                %1636 = sbr.rel (%p1634) target = $region131
              $region128: #{discriminator_forward.6} parent=123 // loop_body
                %v1640 = vld [vmem:[%s1638] sm:$0xf]
                %1641 = vst [vmem:[%s1639] sm:$0xf] %v1640
                %v1642 = vld [vmem:[%s1638 + $0x4] sm:$0xf]
                %1643 = vst [vmem:[%s1639 + $0x8] sm:$0xf] %v1642
                %v1644 = vld [vmem:[%s1638 + $0x8] sm:$0xf]
                %1645 = vst [vmem:[%s1639 + $0x10] sm:$0xf] %v1644
                %v1646 = vld [vmem:[%s1638 + $0xc] sm:$0xf]
                %1647 = vst [vmem:[%s1639 + $0x18] sm:$0xf] %v1646
                %v1648 = vld [vmem:[%s1638 + $0x10] sm:$0xf]
                %1649 = vst [vmem:[%s1639 + $0x20] sm:$0xf] %v1648
                %v1650 = vld [vmem:[%s1638 + $0x14] sm:$0xf]
                %1651 = vst [vmem:[%s1639 + $0x28] sm:$0xf] %v1650
                %v1652 = vld [vmem:[%s1638 + $0x18] sm:$0xf]
                %1653 = vst [vmem:[%s1639 + $0x30] sm:$0xf] %v1652
                %v1654 = vld [vmem:[%s1638 + $0x1c] sm:$0xf]
                %1655 = vst [vmem:[%s1639 + $0x38] sm:$0xf] %v1654
                %v1656 = vld [vmem:[%s1638 + $0x20] sm:$0xf]
                %1657 = vst [vmem:[%s1639 + $0x40] sm:$0xf] %v1656
                %v1658 = vld [vmem:[%s1638 + $0x24] sm:$0xf]
                %1659 = vst [vmem:[%s1639 + $0x48] sm:$0xf] %v1658
                %v1660 = vld [vmem:[%s1638 + $0x28] sm:$0xf]
                %1661 = vst [vmem:[%s1639 + $0x50] sm:$0xf] %v1660
                %v1662 = vld [vmem:[%s1638 + $0x2c] sm:$0xf]
                %1663 = vst [vmem:[%s1639 + $0x58] sm:$0xf] %v1662
                %v1664 = vld [vmem:[%s1638 + $0x30] sm:$0xf]
                %1665 = vst [vmem:[%s1639 + $0x60] sm:$0xf] %v1664
                %v1666 = vld [vmem:[%s1638 + $0x34] sm:$0xf]
                %1667 = vst [vmem:[%s1639 + $0x68] sm:$0xf] %v1666
                %v1668 = vld [vmem:[%s1638 + $0x38] sm:$0xf]
                %1669 = vst [vmem:[%s1639 + $0x70] sm:$0xf] %v1668
                %v1670 = vld [vmem:[%s1638 + $0x3c] sm:$0xf]
                %1671 = vst [vmem:[%s1639 + $0x78] sm:$0xf] %v1670
              $region129: #{discriminator_forward.6} parent=123 // loop_footer
                %s1637 = sadd.s32 1, %s1633
              $region130: #{discriminator_forward.6} parent=123 // loop_footer_branch
                %1632 = sbr.rel target = $region126
              $region131: #{discriminator_forward.6} parent=123 // loop_exit
                _
            $region124: #{discriminator_forward.6} parent=115 // pred_fallthru
              _
          $region116: #{discriminator_forward.6} parent=111 // pred_fallthru
            _
          %1723 = vnop
        $region112: #{discriminator_forward.6} parent=91 // pred_fallthru
          _
      $region92: #{discriminator_forward.6} parent=5 // pred_fallthru
        _
      %p1724 = scmp.le.s32.totalorder 2, %s10
      // Predicated region
      $region150: #{discriminator_forward.6} parent=5 // pred_check
        %p1725 = pneg %p1724
      $region151: #{discriminator_forward.6} parent=5 // pred_check_branch
        %1727 = sbr.rel (%p1725) target = $region153
      $region152: #{discriminator_forward.6} parent=5 // pred_region
        %s1728 = ssub.s32 %s10, 2
        // Predicated region
        $region154: #{discriminator_forward.6} parent=152 // pred_check
          %p1729 = pneg %p157
        $region155: #{discriminator_forward.6} parent=152 // pred_check_branch
          %1731 = sbr.rel (%p1729) target = $region157
        $region156: #{discriminator_forward.6} parent=152 // pred_region
          %s1732 = sand.u32 %s142, 1
          %s1733 = sand.u32 %s142, 1
          %s1734 = smul.addr %s1733, 64
          %s1735 = scalar_lea.vmem [#allocation5], %s1734
        $region157: #{discriminator_forward.6} parent=152 // pred_fallthru
          _
      $region153: #{discriminator_forward.6} parent=5 // pred_fallthru
        _
    $region6: #{discriminator_forward.6} parent=1 // loop_footer
      %s14 = sadd.s32 1, %s10
    $region7: #{discriminator_forward.6} parent=1 // loop_footer_branch
      %9 = sbr.rel target = $region3
    $region8: #{discriminator_forward.6} parent=1 // loop_exit
      _

// kernel: discriminator_forward.7
$region0: #{discriminator_forward.7}
  #allocation0 [shape = 'u32[]', space=smem, size = 0x4, offset = 0x4, fixed_abs, tag = 'smem constant byte address 0x4 - core index']
  #allocation1 [shape = 'u32[144,128]{1,0:T(1,128)}', space=vmem, size = 0x12000, scoped, tag = 'internal scratch']
  #allocation2 [shape = 'f32[32,512]{1,0:T(8,128)}', space=vmem, size = 0x10000, scoped, tag = 'scratch operand']
  %s0 = inlined_call_operand.vmem [shape: bf16[32,4096], index: 0, kind: input, shape index: {}]
  %s1 = inlined_call_operand.vmem [shape: bf16[4096,512], index: 1, kind: input, shape index: {}]
  %s2 = inlined_call_operand.vmem [shape: f32[1,512], index: 2, kind: input, shape index: {}]
  %s3 = inlined_call_operand.vmem [shape: f32[1,512], index: 3, kind: input, shape index: {}]
  %s4 = inlined_call_operand.vmem [shape: f32[16,512], index: 4, kind: input, shape index: {}]
  %s5 = inlined_call_operand.vmem [shape: f32[2,1], index: 5, kind: output, shape index: {}]
  %s6 = sld [smem:[#allocation0]]
  $region84: #{discriminator_forward.7} parent=0
    _
  %s8 = ssub.s32 1, %s6
  %s9 = scalar_select 0, %s8, %s6
  $region1: #{discriminator_forward.7} parent=0
    #allocation3 [shape = 'u8[131072]{0}', space=vmem, size = 0x20000, scoped, tag = 'input window, operand 0']
    loop: start=0, step=1, limit=6
    $region2: #{discriminator_forward.7} parent=1 // loop_pre_header
      _
    $region3: #{discriminator_forward.7} parent=1 // loop_header
      %s11 = sphi 0, %s15
      %p12 = scmp.ge.s32.totalorder %s11, 6
      %s21 = sphi 0, %s23
      %s24 = sphi 0, %s21
      %s25 = sphi 0, %s24
      %s41 = sphi 0, %s25
      %s47 = sphi 0, %s49
      %s50 = sphi 0, %s47
      %s51 = sphi 0, %s50
      %s67 = sphi 0, %s51
      %s71 = sphi 0, %s71
      %s73 = sphi 0, %s71
      %s74 = sphi 0, %s73
      %s88 = sphi 0, %s74
      %s92 = sphi 0, %s92
      %s94 = sphi 0, %s92
      %s95 = sphi 0, %s94
      %s109 = sphi 0, %s95
      %s113 = sphi 0, %s113
      %s115 = sphi 0, %s113
      %s116 = sphi 0, %s115
      %s130 = sphi 0, %s116
      %s134 = sphi 0, %s134
      %s136 = sphi 0, %s134
      %s137 = sphi 0, %s136
      %s151 = sphi 0, %s137
    $region4: #{discriminator_forward.7} parent=1 // loop_header_branch
      %14 = sbr.rel (%p12) target = $region8
    $region5: #{discriminator_forward.7} parent=1 // loop_body
      %s16 = ssub.s32 %s11, 1
      %s17 = ssub.s32 %s11, 2
      %s18 = sadd.s32 %s11, 1
      %s19 = ssub.s32 %s11, %s18
      %p20 = scmp.eq.s32.totalorder %s19, 0
      %s22 = sadd.s32 %s21, 1
      %s23 = scalar_select %p20, %s21, %s22
      %p26 = pneg %p20
      %p27 = scmp.eq.s32.totalorder %s11, 3
      %p28 = por %p26, %p27
      %p29 = scmp.ne.s32.totalorder %s21, %s24
      %p30 = scmp.eq.s32.totalorder %s11, 0
      %p31 = por %p29, %p30
      %p32 = scmp.ne.s32.totalorder %s21, %s24
      %p33 = scmp.eq.s32.totalorder %s16, 3
      %p34 = por %p32, %p33
      %p35 = scmp.ne.s32.totalorder %s24, %s25
      %p36 = scmp.eq.s32.totalorder %s16, 0
      %p37 = por %p35, %p36
      %p38 = scmp.ne.s32.totalorder %s24, %s25
      %p39 = scmp.eq.s32.totalorder %s17, 3
      %p40 = por %p38, %p39
      %p42 = scmp.ne.s32.totalorder %s25, %s41
      %p43 = scmp.eq.s32.totalorder %s17, 0
      %p44 = por %p42, %p43
      %s45 = ssub.s32 %s11, %s18
      %p46 = scmp.eq.s32.totalorder %s45, 0
      %s48 = sadd.s32 %s47, 1
      %s49 = scalar_select %p46, %s47, %s48
      %p52 = pneg %p46
      %p53 = scmp.eq.s32.totalorder %s11, 3
      %p54 = por %p52, %p53
      %p55 = scmp.ne.s32.totalorder %s47, %s50
      %p56 = scmp.eq.s32.totalorder %s11, 0
      %p57 = por %p55, %p56
      %p58 = scmp.ne.s32.totalorder %s47, %s50
      %p59 = scmp.eq.s32.totalorder %s16, 3
      %p60 = por %p58, %p59
      %p61 = scmp.ne.s32.totalorder %s50, %s51
      %p62 = scmp.eq.s32.totalorder %s16, 0
      %p63 = por %p61, %p62
      %p64 = scmp.ne.s32.totalorder %s50, %s51
      %p65 = scmp.eq.s32.totalorder %s17, 3
      %p66 = por %p64, %p65
      %p68 = scmp.ne.s32.totalorder %s51, %s67
      %p69 = scmp.eq.s32.totalorder %s17, 0
      %p70 = por %p68, %p69
      %s72 = sadd.s32 %s71, 1
      %p75 = scmp.eq.s32.totalorder %s11, 3
      %p76 = scmp.ne.s32.totalorder %s71, %s73
      %p77 = scmp.eq.s32.totalorder %s11, 0
      %p78 = por %p76, %p77
      %p79 = scmp.ne.s32.totalorder %s71, %s73
      %p80 = scmp.eq.s32.totalorder %s16, 3
      %p81 = por %p79, %p80
      %p82 = scmp.ne.s32.totalorder %s73, %s74
      %p83 = scmp.eq.s32.totalorder %s16, 0
      %p84 = por %p82, %p83
      %p85 = scmp.ne.s32.totalorder %s73, %s74
      %p86 = scmp.eq.s32.totalorder %s17, 3
      %p87 = por %p85, %p86
      %p89 = scmp.ne.s32.totalorder %s74, %s88
      %p90 = scmp.eq.s32.totalorder %s17, 0
      %p91 = por %p89, %p90
      %s93 = sadd.s32 %s92, 1
      %p96 = scmp.eq.s32.totalorder %s11, 3
      %p97 = scmp.ne.s32.totalorder %s92, %s94
      %p98 = scmp.eq.s32.totalorder %s11, 0
      %p99 = por %p97, %p98
      %p100 = scmp.ne.s32.totalorder %s92, %s94
      %p101 = scmp.eq.s32.totalorder %s16, 3
      %p102 = por %p100, %p101
      %p103 = scmp.ne.s32.totalorder %s94, %s95
      %p104 = scmp.eq.s32.totalorder %s16, 0
      %p105 = por %p103, %p104
      %p106 = scmp.ne.s32.totalorder %s94, %s95
      %p107 = scmp.eq.s32.totalorder %s17, 3
      %p108 = por %p106, %p107
      %p110 = scmp.ne.s32.totalorder %s95, %s109
      %p111 = scmp.eq.s32.totalorder %s17, 0
      %p112 = por %p110, %p111
      %s114 = sadd.s32 %s113, 1
      %p117 = scmp.eq.s32.totalorder %s11, 3
      %p118 = scmp.ne.s32.totalorder %s113, %s115
      %p119 = scmp.eq.s32.totalorder %s11, 0
      %p120 = por %p118, %p119
      %p121 = scmp.ne.s32.totalorder %s113, %s115
      %p122 = scmp.eq.s32.totalorder %s16, 3
      %p123 = por %p121, %p122
      %p124 = scmp.ne.s32.totalorder %s115, %s116
      %p125 = scmp.eq.s32.totalorder %s16, 0
      %p126 = por %p124, %p125
      %p127 = scmp.ne.s32.totalorder %s115, %s116
      %p128 = scmp.eq.s32.totalorder %s17, 3
      %p129 = por %p127, %p128
      %p131 = scmp.ne.s32.totalorder %s116, %s130
      %p132 = scmp.eq.s32.totalorder %s17, 0
      %p133 = por %p131, %p132
      %s135 = sadd.s32 %s134, 1
      %p138 = scmp.eq.s32.totalorder %s11, 3
      %p139 = scmp.ne.s32.totalorder %s134, %s136
      %p140 = scmp.eq.s32.totalorder %s11, 0
      %p141 = por %p139, %p140
      %p142 = scmp.ne.s32.totalorder %s134, %s136
      %p143 = scmp.eq.s32.totalorder %s16, 3
      %p144 = por %p142, %p143
      %p145 = scmp.ne.s32.totalorder %s136, %s137
      %p146 = scmp.eq.s32.totalorder %s16, 0
      %p147 = por %p145, %p146
      %p148 = scmp.ne.s32.totalorder %s136, %s137
      %p149 = scmp.eq.s32.totalorder %s17, 3
      %p150 = por %p148, %p149
      %p152 = scmp.ne.s32.totalorder %s137, %s151
      %p153 = scmp.eq.s32.totalorder %s17, 0
      %p154 = por %p152, %p153
      %p155 = scmp.le.s32.totalorder 1, %s11
      %p156 = scmp.lt.s32.totalorder %s11, 5
      %p157 = pnand %p155, %p156
      %p158 = pneg %p157
      // Predicated region
      $region9: #{discriminator_forward.7} parent=5 // pred_check
        _
      $region10: #{discriminator_forward.7} parent=5 // pred_check_branch
        %160 = sbr.rel (%p157) target = $region12
      $region11: #{discriminator_forward.7} parent=5 // pred_region
        %s161 = ssub.s32 %s11, 1
        // Predicated region
        $region13: #{discriminator_forward.7} parent=11 // pred_check
          %p162 = pneg %p84
        $region14: #{discriminator_forward.7} parent=11 // pred_check_branch
          %164 = sbr.rel (%p162) target = $region16
        $region15: #{discriminator_forward.7} parent=11 // pred_region
          _
        $region16: #{discriminator_forward.7} parent=11 // pred_fallthru
          _
        // Predicated region
        $region17: #{discriminator_forward.7} parent=11 // pred_check
          %p165 = pneg %p105
        $region18: #{discriminator_forward.7} parent=11 // pred_check_branch
          %167 = sbr.rel (%p165) target = $region20
        $region19: #{discriminator_forward.7} parent=11 // pred_region
          _
        $region20: #{discriminator_forward.7} parent=11 // pred_fallthru
          _
        // Predicated region
        $region21: #{discriminator_forward.7} parent=11 // pred_check
          %p168 = pneg %p126
        $region22: #{discriminator_forward.7} parent=11 // pred_check_branch
          %170 = sbr.rel (%p168) target = $region24
        $region23: #{discriminator_forward.7} parent=11 // pred_region
          _
        $region24: #{discriminator_forward.7} parent=11 // pred_fallthru
          _
      $region12: #{discriminator_forward.7} parent=5 // pred_fallthru
        _
      %p171 = scmp.lt.s32.totalorder %s11, 4
      // Predicated region
      $region25: #{discriminator_forward.7} parent=5 // pred_check
        %p172 = pneg %p171
      $region26: #{discriminator_forward.7} parent=5 // pred_check_branch
        %174 = sbr.rel (%p172) target = $region28
      $region27: #{discriminator_forward.7} parent=5 // pred_region
        // Predicated region
        $region29: #{discriminator_forward.7} parent=27 // pred_check
          %p175 = pneg %p31
        $region30: #{discriminator_forward.7} parent=27 // pred_check_branch
          %177 = sbr.rel (%p175) target = $region32
        $region31: #{discriminator_forward.7} parent=27 // pred_region
          %s178 = sand.u32 %s21, 1
          %s179 = sand.u32 %s21, 1
          %s180 = smul.addr %s179, 128
          %s181 = scalar_lea.vmem [#allocation3], %s180
          %s182 = smul.u32 8, %s11
          %s183 = smul.addr %s182, 4
          %s184 = scalar_lea.vmem %s0, %s183
          // Predicated region
          $region33: #{discriminator_forward.7} parent=31 // pred_check
            _
          $region34: #{discriminator_forward.7} parent=31 // pred_check_branch
            %186 = sbr.rel (0) target = $region36
          $region35: #{discriminator_forward.7} parent=31 // pred_region
            // Predicated region
            $region37: #{discriminator_forward.7} parent=35 // pred_check
              _
            $region38: #{discriminator_forward.7} parent=35 // pred_check_branch
              %188 = sbr.rel (0) target = $region40
            $region39: #{discriminator_forward.7} parent=35 // pred_region
              loop: start=0, step=1, limit=1
              $region41: #{discriminator_forward.7} parent=39 // loop_pre_header
                _
              $region42: #{discriminator_forward.7} parent=39 // loop_header
                %s190 = sphi 0, %s194
                %p191 = scmp.ge.s32.totalorder %s190, 1
                %s195 = sphi %s184, %s184
                %s196 = sphi %s181, %s181
              $region43: #{discriminator_forward.7} parent=39 // loop_header_branch
                %193 = sbr.rel (%p191) target = $region47
              $region44: #{discriminator_forward.7} parent=39 // loop_body
                %v197 = vld [vmem:[%s195] sm:$0xff]
                %198 = vst [vmem:[%s196] sm:$0xff] %v197
                %v199 = vld [vmem:[%s195 + $0x8] sm:$0xff]
                %200 = vst [vmem:[%s196 + $0x8] sm:$0xff] %v199
                %v201 = vld [vmem:[%s195 + $0x10] sm:$0xff]
                %202 = vst [vmem:[%s196 + $0x10] sm:$0xff] %v201
                %v203 = vld [vmem:[%s195 + $0x18] sm:$0xff]
                %204 = vst [vmem:[%s196 + $0x18] sm:$0xff] %v203
                %v205 = vld [vmem:[%s195 + $0x80] sm:$0xff]
                %206 = vst [vmem:[%s196 + $0x20] sm:$0xff] %v205
                %v207 = vld [vmem:[%s195 + $0x88] sm:$0xff]
                %208 = vst [vmem:[%s196 + $0x28] sm:$0xff] %v207
                %v209 = vld [vmem:[%s195 + $0x90] sm:$0xff]
                %210 = vst [vmem:[%s196 + $0x30] sm:$0xff] %v209
                %v211 = vld [vmem:[%s195 + $0x98] sm:$0xff]
                %212 = vst [vmem:[%s196 + $0x38] sm:$0xff] %v211
                %v213 = vld [vmem:[%s195 + $0x100] sm:$0xff]
                %214 = vst [vmem:[%s196 + $0x40] sm:$0xff] %v213
                %v215 = vld [vmem:[%s195 + $0x108] sm:$0xff]
                %216 = vst [vmem:[%s196 + $0x48] sm:$0xff] %v215
                %v217 = vld [vmem:[%s195 + $0x110] sm:$0xff]
                %218 = vst [vmem:[%s196 + $0x50] sm:$0xff] %v217
                %v219 = vld [vmem:[%s195 + $0x118] sm:$0xff]
                %220 = vst [vmem:[%s196 + $0x58] sm:$0xff] %v219
                %v221 = vld [vmem:[%s195 + $0x180] sm:$0xff]
                %222 = vst [vmem:[%s196 + $0x60] sm:$0xff] %v221
                %v223 = vld [vmem:[%s195 + $0x188] sm:$0xff]
                %224 = vst [vmem:[%s196 + $0x68] sm:$0xff] %v223
                %v225 = vld [vmem:[%s195 + $0x190] sm:$0xff]
                %226 = vst [vmem:[%s196 + $0x70] sm:$0xff] %v225
                %v227 = vld [vmem:[%s195 + $0x198] sm:$0xff]
                %228 = vst [vmem:[%s196 + $0x78] sm:$0xff] %v227
              $region45: #{discriminator_forward.7} parent=39 // loop_footer
                %s194 = sadd.s32 1, %s190
              $region46: #{discriminator_forward.7} parent=39 // loop_footer_branch
                %189 = sbr.rel target = $region42
              $region47: #{discriminator_forward.7} parent=39 // loop_exit
                _
            $region40: #{discriminator_forward.7} parent=35 // pred_fallthru
              _
            // Predicated region
            $region48: #{discriminator_forward.7} parent=35 // pred_check
              _
            $region49: #{discriminator_forward.7} parent=35 // pred_check_branch
              %230 = sbr.rel target = $region51
            $region50: #{discriminator_forward.7} parent=35 // pred_region
              _
            $region51: #{discriminator_forward.7} parent=35 // pred_fallthru
              _
          $region36: #{discriminator_forward.7} parent=31 // pred_fallthru
            _
          %231 = vnop
        $region32: #{discriminator_forward.7} parent=27 // pred_fallthru
          _
        // Predicated region
        $region52: #{discriminator_forward.7} parent=27 // pred_check
          %p232 = pneg %p57
        $region53: #{discriminator_forward.7} parent=27 // pred_check_branch
          %234 = sbr.rel (%p232) target = $region55
        $region54: #{discriminator_forward.7} parent=27 // pred_region
          %s235 = smul.u32 128, %s11
          %p236 = scmp.lt.s32.totalorder %s235, 511
          %s237 = scalar_select %p236, %s235, 511
          %s238 = smul.addr %s237, 4
          %s239 = smul.addr %s238, 4
          %s240 = scalar_lea.vmem %s1, %s239
          %s241 = smul.u32 128, %s11
        $region55: #{discriminator_forward.7} parent=27 // pred_fallthru
          _
      $region28: #{discriminator_forward.7} parent=5 // pred_fallthru
        _
      %p242 = scmp.le.s32.totalorder 1, %s11
      %p243 = scmp.lt.s32.totalorder %s11, 5
      %p244 = pnand %p242, %p243
      %p245 = pneg %p244
      // Predicated region
      $region56: #{discriminator_forward.7} parent=5 // pred_check
        _
      $region57: #{discriminator_forward.7} parent=5 // pred_check_branch
        %247 = sbr.rel (%p244) target = $region59
      $region58: #{discriminator_forward.7} parent=5 // pred_region
        %s248 = ssub.s32 %s11, 1
        %s249 = sand.u32 %s24, 1
        %s250 = sand.u32 %s24, 1
        %s251 = smul.addr %s250, 128
        %s252 = scalar_lea.vmem [#allocation3], %s251
        // Predicated region
        $region60: #{discriminator_forward.7} parent=58 // pred_check
          %p253 = pneg %p37
        $region61: #{discriminator_forward.7} parent=58 // pred_check_branch
          %255 = sbr.rel (%p253) target = $region63
        $region62: #{discriminator_forward.7} parent=58 // pred_region
          _
        $region63: #{discriminator_forward.7} parent=58 // pred_fallthru
          _
        %s256 = sand.u32 %s24, 1
        %s257 = sand.u32 %s24, 1
        %s258 = smul.addr %s257, 128
        %s259 = scalar_lea.vmem [#allocation3], %s258
        %p260 = pneg %p37
        %p261 = pneg %p34
        %s262 = smul.u32 128, %s16
        %p263 = scmp.lt.s32.totalorder %s262, 511
        %s264 = scalar_select %p263, %s262, 511
        %s265 = smul.addr %s264, 4
        %s266 = smul.addr %s265, 4
        %s267 = scalar_lea.vmem %s1, %s266
        %p268 = pneg %p63
        %p269 = pneg %p60
        %p270 = pneg %p84
        %p271 = pneg %p81
        %p272 = pneg %p105
        %p273 = pneg %p102
        %p274 = pneg %p126
        %p275 = pneg %p123
        %p276 = pneg %p147
        %p277 = pneg %p144
        %s278 = smul.u32 8, %s16
        %s279 = smul.u32 128, %s16
        %p280 = scmp.lt.s32.totalorder %s279, 511
        %s281 = scalar_select %p280, %s279, 511
        %s282 = smul.addr %s281, 4
        %s283 = smul.addr %s282, 4
        %s284 = scalar_lea.vmem %s1, %s283
        %s285 = smul.u32 128, %s16
        %p286 = scmp.eq.s32.totalorder %s16, 0
        // Predicated region
        $region64: #{discriminator_forward.7} parent=58 // pred_check
          %p287 = pneg %p286
        $region65: #{discriminator_forward.7} parent=58 // pred_check_branch
          %289 = sbr.rel (%p287) target = $region67
        $region66: #{discriminator_forward.7} parent=58 // pred_region
          %290 = vst [vmem:[#allocation2] sm:$0xff] 0.0
          %291 = vst [vmem:[#allocation2 + $0x8] sm:$0xff] 0.0
          %292 = vst [vmem:[#allocation2 + $0x10] sm:$0xff] 0.0
          %293 = vst [vmem:[#allocation2 + $0x18] sm:$0xff] 0.0
          %294 = vst [vmem:[#allocation2 + $0x20] sm:$0xff] 0.0
          %295 = vst [vmem:[#allocation2 + $0x28] sm:$0xff] 0.0
          %296 = vst [vmem:[#allocation2 + $0x30] sm:$0xff] 0.0
          %297 = vst [vmem:[#allocation2 + $0x38] sm:$0xff] 0.0
          %298 = vst [vmem:[#allocation2 + $0x40] sm:$0xff] 0.0
          %299 = vst [vmem:[#allocation2 + $0x48] sm:$0xff] 0.0
          %300 = vst [vmem:[#allocation2 + $0x50] sm:$0xff] 0.0
          %301 = vst [vmem:[#allocation2 + $0x58] sm:$0xff] 0.0
          %302 = vst [vmem:[#allocation2 + $0x60] sm:$0xff] 0.0
          %303 = vst [vmem:[#allocation2 + $0x68] sm:$0xff] 0.0
          %304 = vst [vmem:[#allocation2 + $0x70] sm:$0xff] 0.0
          %305 = vst [vmem:[#allocation2 + $0x78] sm:$0xff] 0.0
        $region67: #{discriminator_forward.7} parent=58 // pred_fallthru
          _
        %v306 = vld [vmem:[#allocation2] sm:$0xff]
        %v307 = vld [vmem:[#allocation2 + $0x8] sm:$0xff]
        %v308 = vld [vmem:[#allocation2 + $0x10] sm:$0xff]
        %v309 = vld [vmem:[#allocation2 + $0x18] sm:$0xff]
        %v310 = vld [vmem:[#allocation2 + $0x20] sm:$0xff]
        %v311 = vld [vmem:[#allocation2 + $0x28] sm:$0xff]
        %v312 = vld [vmem:[#allocation2 + $0x30] sm:$0xff]
        %v313 = vld [vmem:[#allocation2 + $0x38] sm:$0xff]
        %v314 = vld [vmem:[#allocation2 + $0x40] sm:$0xff]
        %v315 = vld [vmem:[#allocation2 + $0x48] sm:$0xff]
        %v316 = vld [vmem:[#allocation2 + $0x50] sm:$0xff]
        %v317 = vld [vmem:[#allocation2 + $0x58] sm:$0xff]
        %v318 = vld [vmem:[#allocation2 + $0x60] sm:$0xff]
        %v319 = vld [vmem:[#allocation2 + $0x68] sm:$0xff]
        %v320 = vld [vmem:[#allocation2 + $0x70] sm:$0xff]
        %v321 = vld [vmem:[#allocation2 + $0x78] sm:$0xff]
        %v322 = vld [vmem:[%s252] sm:$0xff]
        %v323 = vld [vmem:[%s252 + $0x8] sm:$0xff]
        %v324 = vld [vmem:[%s252 + $0x10] sm:$0xff]
        %v325 = vld [vmem:[%s252 + $0x18] sm:$0xff]
        %v326 = vld [vmem:[%s252 + $0x20] sm:$0xff]
        %v327 = vld [vmem:[%s252 + $0x28] sm:$0xff]
        %v328 = vld [vmem:[%s252 + $0x30] sm:$0xff]
        %v329 = vld [vmem:[%s252 + $0x38] sm:$0xff]
        %v330 = vld [vmem:[%s252 + $0x40] sm:$0xff]
        %v331 = vld [vmem:[%s252 + $0x48] sm:$0xff]
        %v332 = vld [vmem:[%s252 + $0x50] sm:$0xff]
        %v333 = vld [vmem:[%s252 + $0x58] sm:$0xff]
        %v334 = vld [vmem:[%s252 + $0x60] sm:$0xff]
        %v335 = vld [vmem:[%s252 + $0x68] sm:$0xff]
        %v336 = vld [vmem:[%s252 + $0x70] sm:$0xff]
        %v337 = vld [vmem:[%s252 + $0x78] sm:$0xff]
        %v338 = vld [vmem:[%s284] sm:$0xff]
        %v339 = vld [vmem:[%s284 + $0x8] sm:$0xff]
        %v340 = vld [vmem:[%s284 + $0x10] sm:$0xff]
        %v341 = vld [vmem:[%s284 + $0x18] sm:$0xff]
        %v342 = vld [vmem:[%s284 + $0x20] sm:$0xff]
        %v343 = vld [vmem:[%s284 + $0x28] sm:$0xff]
        %v344 = vld [vmem:[%s284 + $0x30] sm:$0xff]
        %v345 = vld [vmem:[%s284 + $0x38] sm:$0xff]
        %v346 = vld [vmem:[%s284 + $0x40] sm:$0xff]
        %v347 = vld [vmem:[%s284 + $0x48] sm:$0xff]
        %v348 = vld [vmem:[%s284 + $0x50] sm:$0xff]
        %v349 = vld [vmem:[%s284 + $0x58] sm:$0xff]
        %v350 = vld [vmem:[%s284 + $0x60] sm:$0xff]
        %v351 = vld [vmem:[%s284 + $0x68] sm:$0xff]
        %v352 = vld [vmem:[%s284 + $0x70] sm:$0xff]
        %v353 = vld [vmem:[%s284 + $0x78] sm:$0xff]
        %v354 = vld [vmem:[%s284 + $0x80] sm:$0xff]
        %v355 = vld [vmem:[%s284 + $0x88] sm:$0xff]
        %v356 = vld [vmem:[%s284 + $0x90] sm:$0xff]
        %v357 = vld [vmem:[%s284 + $0x98] sm:$0xff]
        %v358 = vld [vmem:[%s284 + $0xa0] sm:$0xff]
        %v359 = vld [vmem:[%s284 + $0xa8] sm:$0xff]
        %v360 = vld [vmem:[%s284 + $0xb0] sm:$0xff]
        %v361 = vld [vmem:[%s284 + $0xb8] sm:$0xff]
        %v362 = vld [vmem:[%s284 + $0xc0] sm:$0xff]
        %v363 = vld [vmem:[%s284 + $0xc8] sm:$0xff]
        %v364 = vld [vmem:[%s284 + $0xd0] sm:$0xff]
        %v365 = vld [vmem:[%s284 + $0xd8] sm:$0xff]
        %v366 = vld [vmem:[%s284 + $0xe0] sm:$0xff]
        %v367 = vld [vmem:[%s284 + $0xe8] sm:$0xff]
        %v368 = vld [vmem:[%s284 + $0xf0] sm:$0xff]
        %v369 = vld [vmem:[%s284 + $0xf8] sm:$0xff]
        %v370 = vld [vmem:[%s284 + $0x100] sm:$0xff]
        %v371 = vld [vmem:[%s284 + $0x108] sm:$0xff]
        %v372 = vld [vmem:[%s284 + $0x110] sm:$0xff]
        %v373 = vld [vmem:[%s284 + $0x118] sm:$0xff]
        %v374 = vld [vmem:[%s284 + $0x120] sm:$0xff]
        %v375 = vld [vmem:[%s284 + $0x128] sm:$0xff]
        %v376 = vld [vmem:[%s284 + $0x130] sm:$0xff]
        %v377 = vld [vmem:[%s284 + $0x138] sm:$0xff]
        %v378 = vld [vmem:[%s284 + $0x140] sm:$0xff]
        %v379 = vld [vmem:[%s284 + $0x148] sm:$0xff]
        %v380 = vld [vmem:[%s284 + $0x150] sm:$0xff]
        %v381 = vld [vmem:[%s284 + $0x158] sm:$0xff]
        %v382 = vld [vmem:[%s284 + $0x160] sm:$0xff]
        %v383 = vld [vmem:[%s284 + $0x168] sm:$0xff]
        %v384 = vld [vmem:[%s284 + $0x170] sm:$0xff]
        %v385 = vld [vmem:[%s284 + $0x178] sm:$0xff]
        %v386 = vld [vmem:[%s284 + $0x180] sm:$0xff]
        %v387 = vld [vmem:[%s284 + $0x188] sm:$0xff]
        %v388 = vld [vmem:[%s284 + $0x190] sm:$0xff]
        %v389 = vld [vmem:[%s284 + $0x198] sm:$0xff]
        %v390 = vld [vmem:[%s284 + $0x1a0] sm:$0xff]
        %v391 = vld [vmem:[%s284 + $0x1a8] sm:$0xff]
        %v392 = vld [vmem:[%s284 + $0x1b0] sm:$0xff]
        %v393 = vld [vmem:[%s284 + $0x1b8] sm:$0xff]
        %v394 = vld [vmem:[%s284 + $0x1c0] sm:$0xff]
        %v395 = vld [vmem:[%s284 + $0x1c8] sm:$0xff]
        %v396 = vld [vmem:[%s284 + $0x1d0] sm:$0xff]
        %v397 = vld [vmem:[%s284 + $0x1d8] sm:$0xff]
        %v398 = vld [vmem:[%s284 + $0x1e0] sm:$0xff]
        %v399 = vld [vmem:[%s284 + $0x1e8] sm:$0xff]
        %v400 = vld [vmem:[%s284 + $0x1f0] sm:$0xff]
        %v401 = vld [vmem:[%s284 + $0x1f8] sm:$0xff]
        %v402 = vld [vmem:[%s284 + $0x200] sm:$0xff]
        %v403 = vld [vmem:[%s284 + $0x208] sm:$0xff]
        %v404 = vld [vmem:[%s284 + $0x210] sm:$0xff]
        %v405 = vld [vmem:[%s284 + $0x218] sm:$0xff]
        %v406 = vld [vmem:[%s284 + $0x220] sm:$0xff]
        %v407 = vld [vmem:[%s284 + $0x228] sm:$0xff]
        %v408 = vld [vmem:[%s284 + $0x230] sm:$0xff]
        %v409 = vld [vmem:[%s284 + $0x238] sm:$0xff]
        %v410 = vld [vmem:[%s284 + $0x240] sm:$0xff]
        %v411 = vld [vmem:[%s284 + $0x248] sm:$0xff]
        %v412 = vld [vmem:[%s284 + $0x250] sm:$0xff]
        %v413 = vld [vmem:[%s284 + $0x258] sm:$0xff]
        %v414 = vld [vmem:[%s284 + $0x260] sm:$0xff]
        %v415 = vld [vmem:[%s284 + $0x268] sm:$0xff]
        %v416 = vld [vmem:[%s284 + $0x270] sm:$0xff]
        %v417 = vld [vmem:[%s284 + $0x278] sm:$0xff]
        %v418 = vld [vmem:[%s284 + $0x280] sm:$0xff]
        %v419 = vld [vmem:[%s284 + $0x288] sm:$0xff]
        %v420 = vld [vmem:[%s284 + $0x290] sm:$0xff]
        %v421 = vld [vmem:[%s284 + $0x298] sm:$0xff]
        %v422 = vld [vmem:[%s284 + $0x2a0] sm:$0xff]
        %v423 = vld [vmem:[%s284 + $0x2a8] sm:$0xff]
        %v424 = vld [vmem:[%s284 + $0x2b0] sm:$0xff]
        %v425 = vld [vmem:[%s284 + $0x2b8] sm:$0xff]
        %v426 = vld [vmem:[%s284 + $0x2c0] sm:$0xff]
        %v427 = vld [vmem:[%s284 + $0x2c8] sm:$0xff]
        %v428 = vld [vmem:[%s284 + $0x2d0] sm:$0xff]
        %v429 = vld [vmem:[%s284 + $0x2d8] sm:$0xff]
        %v430 = vld [vmem:[%s284 + $0x2e0] sm:$0xff]
        %v431 = vld [vmem:[%s284 + $0x2e8] sm:$0xff]
        %v432 = vld [vmem:[%s284 + $0x2f0] sm:$0xff]
        %v433 = vld [vmem:[%s284 + $0x2f8] sm:$0xff]
        %v434 = vld [vmem:[%s284 + $0x300] sm:$0xff]
        %v435 = vld [vmem:[%s284 + $0x308] sm:$0xff]
        %v436 = vld [vmem:[%s284 + $0x310] sm:$0xff]
        %v437 = vld [vmem:[%s284 + $0x318] sm:$0xff]
        %v438 = vld [vmem:[%s284 + $0x320] sm:$0xff]
        %v439 = vld [vmem:[%s284 + $0x328] sm:$0xff]
        %v440 = vld [vmem:[%s284 + $0x330] sm:$0xff]
        %v441 = vld [vmem:[%s284 + $0x338] sm:$0xff]
        %v442 = vld [vmem:[%s284 + $0x340] sm:$0xff]
        %v443 = vld [vmem:[%s284 + $0x348] sm:$0xff]
        %v444 = vld [vmem:[%s284 + $0x350] sm:$0xff]
        %v445 = vld [vmem:[%s284 + $0x358] sm:$0xff]
        %v446 = vld [vmem:[%s284 + $0x360] sm:$0xff]
        %v447 = vld [vmem:[%s284 + $0x368] sm:$0xff]
        %v448 = vld [vmem:[%s284 + $0x370] sm:$0xff]
        %v449 = vld [vmem:[%s284 + $0x378] sm:$0xff]
        %v450 = vld [vmem:[%s284 + $0x380] sm:$0xff]
        %v451 = vld [vmem:[%s284 + $0x388] sm:$0xff]
        %v452 = vld [vmem:[%s284 + $0x390] sm:$0xff]
        %v453 = vld [vmem:[%s284 + $0x398] sm:$0xff]
        %v454 = vld [vmem:[%s284 + $0x3a0] sm:$0xff]
        %v455 = vld [vmem:[%s284 + $0x3a8] sm:$0xff]
        %v456 = vld [vmem:[%s284 + $0x3b0] sm:$0xff]
        %v457 = vld [vmem:[%s284 + $0x3b8] sm:$0xff]
        %v458 = vld [vmem:[%s284 + $0x3c0] sm:$0xff]
        %v459 = vld [vmem:[%s284 + $0x3c8] sm:$0xff]
        %v460 = vld [vmem:[%s284 + $0x3d0] sm:$0xff]
        %v461 = vld [vmem:[%s284 + $0x3d8] sm:$0xff]
        %v462 = vld [vmem:[%s284 + $0x3e0] sm:$0xff]
        %v463 = vld [vmem:[%s284 + $0x3e8] sm:$0xff]
        %v464 = vld [vmem:[%s284 + $0x3f0] sm:$0xff]
        %v465 = vld [vmem:[%s284 + $0x3f8] sm:$0xff]
        %v466 = vld [vmem:[%s284 + $0x400] sm:$0xff]
        %v467 = vld [vmem:[%s284 + $0x408] sm:$0xff]
        %v468 = vld [vmem:[%s284 + $0x410] sm:$0xff]
        %v469 = vld [vmem:[%s284 + $0x418] sm:$0xff]
        %v470 = vld [vmem:[%s284 + $0x420] sm:$0xff]
        %v471 = vld [vmem:[%s284 + $0x428] sm:$0xff]
        %v472 = vld [vmem:[%s284 + $0x430] sm:$0xff]
        %v473 = vld [vmem:[%s284 + $0x438] sm:$0xff]
        %v474 = vld [vmem:[%s284 + $0x440] sm:$0xff]
        %v475 = vld [vmem:[%s284 + $0x448] sm:$0xff]
        %v476 = vld [vmem:[%s284 + $0x450] sm:$0xff]
        %v477 = vld [vmem:[%s284 + $0x458] sm:$0xff]
        %v478 = vld [vmem:[%s284 + $0x460] sm:$0xff]
        %v479 = vld [vmem:[%s284 + $0x468] sm:$0xff]
        %v480 = vld [vmem:[%s284 + $0x470] sm:$0xff]
        %v481 = vld [vmem:[%s284 + $0x478] sm:$0xff]
        %v482 = vld [vmem:[%s284 + $0x480] sm:$0xff]
        %v483 = vld [vmem:[%s284 + $0x488] sm:$0xff]
        %v484 = vld [vmem:[%s284 + $0x490] sm:$0xff]
        %v485 = vld [vmem:[%s284 + $0x498] sm:$0xff]
        %v486 = vld [vmem:[%s284 + $0x4a0] sm:$0xff]
        %v487 = vld [vmem:[%s284 + $0x4a8] sm:$0xff]
        %v488 = vld [vmem:[%s284 + $0x4b0] sm:$0xff]
        %v489 = vld [vmem:[%s284 + $0x4b8] sm:$0xff]
        %v490 = vld [vmem:[%s284 + $0x4c0] sm:$0xff]
        %v491 = vld [vmem:[%s284 + $0x4c8] sm:$0xff]
        %v492 = vld [vmem:[%s284 + $0x4d0] sm:$0xff]
        %v493 = vld [vmem:[%s284 + $0x4d8] sm:$0xff]
        %v494 = vld [vmem:[%s284 + $0x4e0] sm:$0xff]
        %v495 = vld [vmem:[%s284 + $0x4e8] sm:$0xff]
        %v496 = vld [vmem:[%s284 + $0x4f0] sm:$0xff]
        %v497 = vld [vmem:[%s284 + $0x4f8] sm:$0xff]
        %v498 = vld [vmem:[%s284 + $0x500] sm:$0xff]
        %v499 = vld [vmem:[%s284 + $0x508] sm:$0xff]
        %v500 = vld [vmem:[%s284 + $0x510] sm:$0xff]
        %v501 = vld [vmem:[%s284 + $0x518] sm:$0xff]
        %v502 = vld [vmem:[%s284 + $0x520] sm:$0xff]
        %v503 = vld [vmem:[%s284 + $0x528] sm:$0xff]
        %v504 = vld [vmem:[%s284 + $0x530] sm:$0xff]
        %v505 = vld [vmem:[%s284 + $0x538] sm:$0xff]
        %v506 = vld [vmem:[%s284 + $0x540] sm:$0xff]
        %v507 = vld [vmem:[%s284 + $0x548] sm:$0xff]
        %v508 = vld [vmem:[%s284 + $0x550] sm:$0xff]
        %v509 = vld [vmem:[%s284 + $0x558] sm:$0xff]
        %v510 = vld [vmem:[%s284 + $0x560] sm:$0xff]
        %v511 = vld [vmem:[%s284 + $0x568] sm:$0xff]
        %v512 = vld [vmem:[%s284 + $0x570] sm:$0xff]
        %v513 = vld [vmem:[%s284 + $0x578] sm:$0xff]
        %v514 = vld [vmem:[%s284 + $0x580] sm:$0xff]
        %v515 = vld [vmem:[%s284 + $0x588] sm:$0xff]
        %v516 = vld [vmem:[%s284 + $0x590] sm:$0xff]
        %v517 = vld [vmem:[%s284 + $0x598] sm:$0xff]
        %v518 = vld [vmem:[%s284 + $0x5a0] sm:$0xff]
        %v519 = vld [vmem:[%s284 + $0x5a8] sm:$0xff]
        %v520 = vld [vmem:[%s284 + $0x5b0] sm:$0xff]
        %v521 = vld [vmem:[%s284 + $0x5b8] sm:$0xff]
        %v522 = vld [vmem:[%s284 + $0x5c0] sm:$0xff]
        %v523 = vld [vmem:[%s284 + $0x5c8] sm:$0xff]
        %v524 = vld [vmem:[%s284 + $0x5d0] sm:$0xff]
        %v525 = vld [vmem:[%s284 + $0x5d8] sm:$0xff]
        %v526 = vld [vmem:[%s284 + $0x5e0] sm:$0xff]
        %v527 = vld [vmem:[%s284 + $0x5e8] sm:$0xff]
        %v528 = vld [vmem:[%s284 + $0x5f0] sm:$0xff]
        %v529 = vld [vmem:[%s284 + $0x5f8] sm:$0xff]
        %v530 = vld [vmem:[%s284 + $0x600] sm:$0xff]
        %v531 = vld [vmem:[%s284 + $0x608] sm:$0xff]
        %v532 = vld [vmem:[%s284 + $0x610] sm:$0xff]
        %v533 = vld [vmem:[%s284 + $0x618] sm:$0xff]
        %v534 = vld [vmem:[%s284 + $0x620] sm:$0xff]
        %v535 = vld [vmem:[%s284 + $0x628] sm:$0xff]
        %v536 = vld [vmem:[%s284 + $0x630] sm:$0xff]
        %v537 = vld [vmem:[%s284 + $0x638] sm:$0xff]
        %v538 = vld [vmem:[%s284 + $0x640] sm:$0xff]
        %v539 = vld [vmem:[%s284 + $0x648] sm:$0xff]
        %v540 = vld [vmem:[%s284 + $0x650] sm:$0xff]
        %v541 = vld [vmem:[%s284 + $0x658] sm:$0xff]
        %v542 = vld [vmem:[%s284 + $0x660] sm:$0xff]
        %v543 = vld [vmem:[%s284 + $0x668] sm:$0xff]
        %v544 = vld [vmem:[%s284 + $0x670] sm:$0xff]
        %v545 = vld [vmem:[%s284 + $0x678] sm:$0xff]
        %v546 = vld [vmem:[%s284 + $0x680] sm:$0xff]
        %v547 = vld [vmem:[%s284 + $0x688] sm:$0xff]
        %v548 = vld [vmem:[%s284 + $0x690] sm:$0xff]
        %v549 = vld [vmem:[%s284 + $0x698] sm:$0xff]
        %v550 = vld [vmem:[%s284 + $0x6a0] sm:$0xff]
        %v551 = vld [vmem:[%s284 + $0x6a8] sm:$0xff]
        %v552 = vld [vmem:[%s284 + $0x6b0] sm:$0xff]
        %v553 = vld [vmem:[%s284 + $0x6b8] sm:$0xff]
        %v554 = vld [vmem:[%s284 + $0x6c0] sm:$0xff]
        %v555 = vld [vmem:[%s284 + $0x6c8] sm:$0xff]
        %v556 = vld [vmem:[%s284 + $0x6d0] sm:$0xff]
        %v557 = vld [vmem:[%s284 + $0x6d8] sm:$0xff]
        %v558 = vld [vmem:[%s284 + $0x6e0] sm:$0xff]
        %v559 = vld [vmem:[%s284 + $0x6e8] sm:$0xff]
        %v560 = vld [vmem:[%s284 + $0x6f0] sm:$0xff]
        %v561 = vld [vmem:[%s284 + $0x6f8] sm:$0xff]
        %v562 = vld [vmem:[%s284 + $0x700] sm:$0xff]
        %v563 = vld [vmem:[%s284 + $0x708] sm:$0xff]
        %v564 = vld [vmem:[%s284 + $0x710] sm:$0xff]
        %v565 = vld [vmem:[%s284 + $0x718] sm:$0xff]
        %v566 = vld [vmem:[%s284 + $0x720] sm:$0xff]
        %v567 = vld [vmem:[%s284 + $0x728] sm:$0xff]
        %v568 = vld [vmem:[%s284 + $0x730] sm:$0xff]
        %v569 = vld [vmem:[%s284 + $0x738] sm:$0xff]
        %v570 = vld [vmem:[%s284 + $0x740] sm:$0xff]
        %v571 = vld [vmem:[%s284 + $0x748] sm:$0xff]
        %v572 = vld [vmem:[%s284 + $0x750] sm:$0xff]
        %v573 = vld [vmem:[%s284 + $0x758] sm:$0xff]
        %v574 = vld [vmem:[%s284 + $0x760] sm:$0xff]
        %v575 = vld [vmem:[%s284 + $0x768] sm:$0xff]
        %v576 = vld [vmem:[%s284 + $0x770] sm:$0xff]
        %v577 = vld [vmem:[%s284 + $0x778] sm:$0xff]
        %v578 = vld [vmem:[%s284 + $0x780] sm:$0xff]
        %v579 = vld [vmem:[%s284 + $0x788] sm:$0xff]
        %v580 = vld [vmem:[%s284 + $0x790] sm:$0xff]
        %v581 = vld [vmem:[%s284 + $0x798] sm:$0xff]
        %v582 = vld [vmem:[%s284 + $0x7a0] sm:$0xff]
        %v583 = vld [vmem:[%s284 + $0x7a8] sm:$0xff]
        %v584 = vld [vmem:[%s284 + $0x7b0] sm:$0xff]
        %v585 = vld [vmem:[%s284 + $0x7b8] sm:$0xff]
        %v586 = vld [vmem:[%s284 + $0x7c0] sm:$0xff]
        %v587 = vld [vmem:[%s284 + $0x7c8] sm:$0xff]
        %v588 = vld [vmem:[%s284 + $0x7d0] sm:$0xff]
        %v589 = vld [vmem:[%s284 + $0x7d8] sm:$0xff]
        %v590 = vld [vmem:[%s284 + $0x7e0] sm:$0xff]
        %v591 = vld [vmem:[%s284 + $0x7e8] sm:$0xff]
        %v592 = vld [vmem:[%s284 + $0x7f0] sm:$0xff]
        %v593 = vld [vmem:[%s284 + $0x7f8] sm:$0xff]
        %v610 = vunpack.c.l.b16 %v322
        %v611 = vunpack.c.h.b16 %v322
        %v612 = vunpack.c.l.b16 %v323
        %v613 = vunpack.c.h.b16 %v323
        %v614 = vunpack.c.l.b16 %v324
        %v615 = vunpack.c.h.b16 %v324
        %v616 = vunpack.c.l.b16 %v325
        %v617 = vunpack.c.h.b16 %v325
        %v618 = vunpack.c.l.b16 %v326
        %v619 = vunpack.c.h.b16 %v326
        %v620 = vunpack.c.l.b16 %v327
        %v621 = vunpack.c.h.b16 %v327
        %v622 = vunpack.c.l.b16 %v328
        %v623 = vunpack.c.h.b16 %v328
        %v624 = vunpack.c.l.b16 %v329
        %v625 = vunpack.c.h.b16 %v329
        %v626 = vunpack.c.l.b16 %v330
        %v627 = vunpack.c.h.b16 %v330
        %v628 = vunpack.c.l.b16 %v331
        %v629 = vunpack.c.h.b16 %v331
        %v630 = vunpack.c.l.b16 %v332
        %v631 = vunpack.c.h.b16 %v332
        %v632 = vunpack.c.l.b16 %v333
        %v633 = vunpack.c.h.b16 %v333
        %v634 = vunpack.c.l.b16 %v334
        %v635 = vunpack.c.h.b16 %v334
        %v636 = vunpack.c.l.b16 %v335
        %v637 = vunpack.c.h.b16 %v335
        %v638 = vunpack.c.l.b16 %v336
        %v639 = vunpack.c.h.b16 %v336
        %v640 = vunpack.c.l.b16 %v337
        %v641 = vunpack.c.h.b16 %v337
        %v642 = vpack.c.b16 %v618, %v610
        %v643 = vpack.c.b16 %v619, %v611
        %v644 = vpack.c.b16 %v620, %v612
        %v645 = vpack.c.b16 %v621, %v613
        %v646 = vpack.c.b16 %v622, %v614
        %v647 = vpack.c.b16 %v623, %v615
        %v648 = vpack.c.b16 %v624, %v616
        %v649 = vpack.c.b16 %v625, %v617
        %v650 = vpack.c.b16 %v634, %v626
        %v651 = vpack.c.b16 %v635, %v627
        %v652 = vpack.c.b16 %v636, %v628
        %v653 = vpack.c.b16 %v637, %v629
        %v654 = vpack.c.b16 %v638, %v630
        %v655 = vpack.c.b16 %v639, %v631
        %v656 = vpack.c.b16 %v640, %v632
        %v657 = vpack.c.b16 %v641, %v633
        %v930 = vunpack.c.l.b16 %v338
        %v931 = vunpack.c.h.b16 %v338
        %v932 = vunpack.c.l.b16 %v339
        %v933 = vunpack.c.h.b16 %v339
        %v934 = vunpack.c.l.b16 %v340
        %v935 = vunpack.c.h.b16 %v340
        %v936 = vunpack.c.l.b16 %v341
        %v937 = vunpack.c.h.b16 %v341
        %v938 = vunpack.c.l.b16 %v342
        %v939 = vunpack.c.h.b16 %v342
        %v940 = vunpack.c.l.b16 %v343
        %v941 = vunpack.c.h.b16 %v343
        %v942 = vunpack.c.l.b16 %v344
        %v943 = vunpack.c.h.b16 %v344
        %v944 = vunpack.c.l.b16 %v345
        %v945 = vunpack.c.h.b16 %v345
        %v946 = vunpack.c.l.b16 %v346
        %v947 = vunpack.c.h.b16 %v346
        %v948 = vunpack.c.l.b16 %v347
        %v949 = vunpack.c.h.b16 %v347
        %v950 = vunpack.c.l.b16 %v348
        %v951 = vunpack.c.h.b16 %v348
        %v952 = vunpack.c.l.b16 %v349
        %v953 = vunpack.c.h.b16 %v349
        %v954 = vunpack.c.l.b16 %v350
        %v955 = vunpack.c.h.b16 %v350
        %v956 = vunpack.c.l.b16 %v351
        %v957 = vunpack.c.h.b16 %v351
        %v958 = vunpack.c.l.b16 %v352
        %v959 = vunpack.c.h.b16 %v352
        %v960 = vunpack.c.l.b16 %v353
        %v961 = vunpack.c.h.b16 %v353
        %v962 = vunpack.c.l.b16 %v354
        %v963 = vunpack.c.h.b16 %v354
        %v964 = vunpack.c.l.b16 %v355
        %v965 = vunpack.c.h.b16 %v355
        %v966 = vunpack.c.l.b16 %v356
        %v967 = vunpack.c.h.b16 %v356
        %v968 = vunpack.c.l.b16 %v357
        %v969 = vunpack.c.h.b16 %v357
        %v970 = vunpack.c.l.b16 %v358
        %v971 = vunpack.c.h.b16 %v358
        %v972 = vunpack.c.l.b16 %v359
        %v973 = vunpack.c.h.b16 %v359
        %v974 = vunpack.c.l.b16 %v360
        %v975 = vunpack.c.h.b16 %v360
        %v976 = vunpack.c.l.b16 %v361
        %v977 = vunpack.c.h.b16 %v361
        %v978 = vunpack.c.l.b16 %v362
        %v979 = vunpack.c.h.b16 %v362
        %v980 = vunpack.c.l.b16 %v363
        %v981 = vunpack.c.h.b16 %v363
        %v982 = vunpack.c.l.b16 %v364
        %v983 = vunpack.c.h.b16 %v364
        %v984 = vunpack.c.l.b16 %v365
        %v985 = vunpack.c.h.b16 %v365
        %v986 = vunpack.c.l.b16 %v366
        %v987 = vunpack.c.h.b16 %v366
        %v988 = vunpack.c.l.b16 %v367
        %v989 = vunpack.c.h.b16 %v367
        %v990 = vunpack.c.l.b16 %v368
        %v991 = vunpack.c.h.b16 %v368
        %v992 = vunpack.c.l.b16 %v369
        %v993 = vunpack.c.h.b16 %v369
        %v994 = vunpack.c.l.b16 %v370
        %v995 = vunpack.c.h.b16 %v370
        %v996 = vunpack.c.l.b16 %v371
        %v997 = vunpack.c.h.b16 %v371
        %v998 = vunpack.c.l.b16 %v372
        %v999 = vunpack.c.h.b16 %v372
        %v1000 = vunpack.c.l.b16 %v373
        %v1001 = vunpack.c.h.b16 %v373
        %v1002 = vunpack.c.l.b16 %v374
        %v1003 = vunpack.c.h.b16 %v374
        %v1004 = vunpack.c.l.b16 %v375
        %v1005 = vunpack.c.h.b16 %v375
        %v1006 = vunpack.c.l.b16 %v376
        %v1007 = vunpack.c.h.b16 %v376
        %v1008 = vunpack.c.l.b16 %v377
        %v1009 = vunpack.c.h.b16 %v377
        %v1010 = vunpack.c.l.b16 %v378
        %v1011 = vunpack.c.h.b16 %v378
        %v1012 = vunpack.c.l.b16 %v379
        %v1013 = vunpack.c.h.b16 %v379
        %v1014 = vunpack.c.l.b16 %v380
        %v1015 = vunpack.c.h.b16 %v380
        %v1016 = vunpack.c.l.b16 %v381
        %v1017 = vunpack.c.h.b16 %v381
        %v1018 = vunpack.c.l.b16 %v382
        %v1019 = vunpack.c.h.b16 %v382
        %v1020 = vunpack.c.l.b16 %v383
        %v1021 = vunpack.c.h.b16 %v383
        %v1022 = vunpack.c.l.b16 %v384
        %v1023 = vunpack.c.h.b16 %v384
        %v1024 = vunpack.c.l.b16 %v385
        %v1025 = vunpack.c.h.b16 %v385
        %v1026 = vunpack.c.l.b16 %v386
        %v1027 = vunpack.c.h.b16 %v386
        %v1028 = vunpack.c.l.b16 %v387
        %v1029 = vunpack.c.h.b16 %v387
        %v1030 = vunpack.c.l.b16 %v388
        %v1031 = vunpack.c.h.b16 %v388
        %v1032 = vunpack.c.l.b16 %v389
        %v1033 = vunpack.c.h.b16 %v389
        %v1034 = vunpack.c.l.b16 %v390
        %v1035 = vunpack.c.h.b16 %v390
        %v1036 = vunpack.c.l.b16 %v391
        %v1037 = vunpack.c.h.b16 %v391
        %v1038 = vunpack.c.l.b16 %v392
        %v1039 = vunpack.c.h.b16 %v392
        %v1040 = vunpack.c.l.b16 %v393
        %v1041 = vunpack.c.h.b16 %v393
        %v1042 = vunpack.c.l.b16 %v394
        %v1043 = vunpack.c.h.b16 %v394
        %v1044 = vunpack.c.l.b16 %v395
        %v1045 = vunpack.c.h.b16 %v395
        %v1046 = vunpack.c.l.b16 %v396
        %v1047 = vunpack.c.h.b16 %v396
        %v1048 = vunpack.c.l.b16 %v397
        %v1049 = vunpack.c.h.b16 %v397
        %v1050 = vunpack.c.l.b16 %v398
        %v1051 = vunpack.c.h.b16 %v398
        %v1052 = vunpack.c.l.b16 %v399
        %v1053 = vunpack.c.h.b16 %v399
        %v1054 = vunpack.c.l.b16 %v400
        %v1055 = vunpack.c.h.b16 %v400
        %v1056 = vunpack.c.l.b16 %v401
        %v1057 = vunpack.c.h.b16 %v401
        %v1058 = vunpack.c.l.b16 %v402
        %v1059 = vunpack.c.h.b16 %v402
        %v1060 = vunpack.c.l.b16 %v403
        %v1061 = vunpack.c.h.b16 %v403
        %v1062 = vunpack.c.l.b16 %v404
        %v1063 = vunpack.c.h.b16 %v404
        %v1064 = vunpack.c.l.b16 %v405
        %v1065 = vunpack.c.h.b16 %v405
        %v1066 = vunpack.c.l.b16 %v406
        %v1067 = vunpack.c.h.b16 %v406
        %v1068 = vunpack.c.l.b16 %v407
        %v1069 = vunpack.c.h.b16 %v407
        %v1070 = vunpack.c.l.b16 %v408
        %v1071 = vunpack.c.h.b16 %v408
        %v1072 = vunpack.c.l.b16 %v409
        %v1073 = vunpack.c.h.b16 %v409
        %v1074 = vunpack.c.l.b16 %v410
        %v1075 = vunpack.c.h.b16 %v410
        %v1076 = vunpack.c.l.b16 %v411
        %v1077 = vunpack.c.h.b16 %v411
        %v1078 = vunpack.c.l.b16 %v412
        %v1079 = vunpack.c.h.b16 %v412
        %v1080 = vunpack.c.l.b16 %v413
        %v1081 = vunpack.c.h.b16 %v413
        %v1082 = vunpack.c.l.b16 %v414
        %v1083 = vunpack.c.h.b16 %v414
        %v1084 = vunpack.c.l.b16 %v415
        %v1085 = vunpack.c.h.b16 %v415
        %v1086 = vunpack.c.l.b16 %v416
        %v1087 = vunpack.c.h.b16 %v416
        %v1088 = vunpack.c.l.b16 %v417
        %v1089 = vunpack.c.h.b16 %v417
        %v1090 = vunpack.c.l.b16 %v418
        %v1091 = vunpack.c.h.b16 %v418
        %v1092 = vunpack.c.l.b16 %v419
        %v1093 = vunpack.c.h.b16 %v419
        %v1094 = vunpack.c.l.b16 %v420
        %v1095 = vunpack.c.h.b16 %v420
        %v1096 = vunpack.c.l.b16 %v421
        %v1097 = vunpack.c.h.b16 %v421
        %v1098 = vunpack.c.l.b16 %v422
        %v1099 = vunpack.c.h.b16 %v422
        %v1100 = vunpack.c.l.b16 %v423
        %v1101 = vunpack.c.h.b16 %v423
        %v1102 = vunpack.c.l.b16 %v424
        %v1103 = vunpack.c.h.b16 %v424
        %v1104 = vunpack.c.l.b16 %v425
        %v1105 = vunpack.c.h.b16 %v425
        %v1106 = vunpack.c.l.b16 %v426
        %v1107 = vunpack.c.h.b16 %v426
        %v1108 = vunpack.c.l.b16 %v427
        %v1109 = vunpack.c.h.b16 %v427
        %v1110 = vunpack.c.l.b16 %v428
        %v1111 = vunpack.c.h.b16 %v428
        %v1112 = vunpack.c.l.b16 %v429
        %v1113 = vunpack.c.h.b16 %v429
        %v1114 = vunpack.c.l.b16 %v430
        %v1115 = vunpack.c.h.b16 %v430
        %v1116 = vunpack.c.l.b16 %v431
        %v1117 = vunpack.c.h.b16 %v431
        %v1118 = vunpack.c.l.b16 %v432
        %v1119 = vunpack.c.h.b16 %v432
        %v1120 = vunpack.c.l.b16 %v433
        %v1121 = vunpack.c.h.b16 %v433
        %v1122 = vunpack.c.l.b16 %v434
        %v1123 = vunpack.c.h.b16 %v434
        %v1124 = vunpack.c.l.b16 %v435
        %v1125 = vunpack.c.h.b16 %v435
        %v1126 = vunpack.c.l.b16 %v436
        %v1127 = vunpack.c.h.b16 %v436
        %v1128 = vunpack.c.l.b16 %v437
        %v1129 = vunpack.c.h.b16 %v437
        %v1130 = vunpack.c.l.b16 %v438
        %v1131 = vunpack.c.h.b16 %v438
        %v1132 = vunpack.c.l.b16 %v439
        %v1133 = vunpack.c.h.b16 %v439
        %v1134 = vunpack.c.l.b16 %v440
        %v1135 = vunpack.c.h.b16 %v440
        %v1136 = vunpack.c.l.b16 %v441
        %v1137 = vunpack.c.h.b16 %v441
        %v1138 = vunpack.c.l.b16 %v442
        %v1139 = vunpack.c.h.b16 %v442
        %v1140 = vunpack.c.l.b16 %v443
        %v1141 = vunpack.c.h.b16 %v443
        %v1142 = vunpack.c.l.b16 %v444
        %v1143 = vunpack.c.h.b16 %v444
        %v1144 = vunpack.c.l.b16 %v445
        %v1145 = vunpack.c.h.b16 %v445
        %v1146 = vunpack.c.l.b16 %v446
        %v1147 = vunpack.c.h.b16 %v446
        %v1148 = vunpack.c.l.b16 %v447
        %v1149 = vunpack.c.h.b16 %v447
        %v1150 = vunpack.c.l.b16 %v448
        %v1151 = vunpack.c.h.b16 %v448
        %v1152 = vunpack.c.l.b16 %v449
        %v1153 = vunpack.c.h.b16 %v449
        %v1154 = vunpack.c.l.b16 %v450
        %v1155 = vunpack.c.h.b16 %v450
        %v1156 = vunpack.c.l.b16 %v451
        %v1157 = vunpack.c.h.b16 %v451
        %v1158 = vunpack.c.l.b16 %v452
        %v1159 = vunpack.c.h.b16 %v452
        %v1160 = vunpack.c.l.b16 %v453
        %v1161 = vunpack.c.h.b16 %v453
        %v1162 = vunpack.c.l.b16 %v454
        %v1163 = vunpack.c.h.b16 %v454
        %v1164 = vunpack.c.l.b16 %v455
        %v1165 = vunpack.c.h.b16 %v455
        %v1166 = vunpack.c.l.b16 %v456
        %v1167 = vunpack.c.h.b16 %v456
        %v1168 = vunpack.c.l.b16 %v457
        %v1169 = vunpack.c.h.b16 %v457
        %v1170 = vunpack.c.l.b16 %v458
        %v1171 = vunpack.c.h.b16 %v458
        %v1172 = vunpack.c.l.b16 %v459
        %v1173 = vunpack.c.h.b16 %v459
        %v1174 = vunpack.c.l.b16 %v460
        %v1175 = vunpack.c.h.b16 %v460
        %v1176 = vunpack.c.l.b16 %v461
        %v1177 = vunpack.c.h.b16 %v461
        %v1178 = vunpack.c.l.b16 %v462
        %v1179 = vunpack.c.h.b16 %v462
        %v1180 = vunpack.c.l.b16 %v463
        %v1181 = vunpack.c.h.b16 %v463
        %v1182 = vunpack.c.l.b16 %v464
        %v1183 = vunpack.c.h.b16 %v464
        %v1184 = vunpack.c.l.b16 %v465
        %v1185 = vunpack.c.h.b16 %v465
        %v1186 = vunpack.c.l.b16 %v466
        %v1187 = vunpack.c.h.b16 %v466
        %v1188 = vunpack.c.l.b16 %v467
        %v1189 = vunpack.c.h.b16 %v467
        %v1190 = vunpack.c.l.b16 %v468
        %v1191 = vunpack.c.h.b16 %v468
        %v1192 = vunpack.c.l.b16 %v469
        %v1193 = vunpack.c.h.b16 %v469
        %v1194 = vunpack.c.l.b16 %v470
        %v1195 = vunpack.c.h.b16 %v470
        %v1196 = vunpack.c.l.b16 %v471
        %v1197 = vunpack.c.h.b16 %v471
        %v1198 = vunpack.c.l.b16 %v472
        %v1199 = vunpack.c.h.b16 %v472
        %v1200 = vunpack.c.l.b16 %v473
        %v1201 = vunpack.c.h.b16 %v473
        %v1202 = vunpack.c.l.b16 %v474
        %v1203 = vunpack.c.h.b16 %v474
        %v1204 = vunpack.c.l.b16 %v475
        %v1205 = vunpack.c.h.b16 %v475
        %v1206 = vunpack.c.l.b16 %v476
        %v1207 = vunpack.c.h.b16 %v476
        %v1208 = vunpack.c.l.b16 %v477
        %v1209 = vunpack.c.h.b16 %v477
        %v1210 = vunpack.c.l.b16 %v478
        %v1211 = vunpack.c.h.b16 %v478
        %v1212 = vunpack.c.l.b16 %v479
        %v1213 = vunpack.c.h.b16 %v479
        %v1214 = vunpack.c.l.b16 %v480
        %v1215 = vunpack.c.h.b16 %v480
        %v1216 = vunpack.c.l.b16 %v481
        %v1217 = vunpack.c.h.b16 %v481
        %v1218 = vunpack.c.l.b16 %v482
        %v1219 = vunpack.c.h.b16 %v482
        %v1220 = vunpack.c.l.b16 %v483
        %v1221 = vunpack.c.h.b16 %v483
        %v1222 = vunpack.c.l.b16 %v484
        %v1223 = vunpack.c.h.b16 %v484
        %v1224 = vunpack.c.l.b16 %v485
        %v1225 = vunpack.c.h.b16 %v485
        %v1226 = vunpack.c.l.b16 %v486
        %v1227 = vunpack.c.h.b16 %v486
        %v1228 = vunpack.c.l.b16 %v487
        %v1229 = vunpack.c.h.b16 %v487
        %v1230 = vunpack.c.l.b16 %v488
        %v1231 = vunpack.c.h.b16 %v488
        %v1232 = vunpack.c.l.b16 %v489
        %v1233 = vunpack.c.h.b16 %v489
        %v1234 = vunpack.c.l.b16 %v490
        %v1235 = vunpack.c.h.b16 %v490
        %v1236 = vunpack.c.l.b16 %v491
        %v1237 = vunpack.c.h.b16 %v491
        %v1238 = vunpack.c.l.b16 %v492
        %v1239 = vunpack.c.h.b16 %v492
        %v1240 = vunpack.c.l.b16 %v493
        %v1241 = vunpack.c.h.b16 %v493
        %v1242 = vunpack.c.l.b16 %v494
        %v1243 = vunpack.c.h.b16 %v494
        %v1244 = vunpack.c.l.b16 %v495
        %v1245 = vunpack.c.h.b16 %v495
        %v1246 = vunpack.c.l.b16 %v496
        %v1247 = vunpack.c.h.b16 %v496
        %v1248 = vunpack.c.l.b16 %v497
        %v1249 = vunpack.c.h.b16 %v497
        %v1250 = vunpack.c.l.b16 %v498
        %v1251 = vunpack.c.h.b16 %v498
        %v1252 = vunpack.c.l.b16 %v499
        %v1253 = vunpack.c.h.b16 %v499
        %v1254 = vunpack.c.l.b16 %v500
        %v1255 = vunpack.c.h.b16 %v500
        %v1256 = vunpack.c.l.b16 %v501
        %v1257 = vunpack.c.h.b16 %v501
        %v1258 = vunpack.c.l.b16 %v502
        %v1259 = vunpack.c.h.b16 %v502
        %v1260 = vunpack.c.l.b16 %v503
        %v1261 = vunpack.c.h.b16 %v503
        %v1262 = vunpack.c.l.b16 %v504
        %v1263 = vunpack.c.h.b16 %v504
        %v1264 = vunpack.c.l.b16 %v505
        %v1265 = vunpack.c.h.b16 %v505
        %v1266 = vunpack.c.l.b16 %v506
        %v1267 = vunpack.c.h.b16 %v506
        %v1268 = vunpack.c.l.b16 %v507
        %v1269 = vunpack.c.h.b16 %v507
        %v1270 = vunpack.c.l.b16 %v508
        %v1271 = vunpack.c.h.b16 %v508
        %v1272 = vunpack.c.l.b16 %v509
        %v1273 = vunpack.c.h.b16 %v509
        %v1274 = vunpack.c.l.b16 %v510
        %v1275 = vunpack.c.h.b16 %v510
        %v1276 = vunpack.c.l.b16 %v511
        %v1277 = vunpack.c.h.b16 %v511
        %v1278 = vunpack.c.l.b16 %v512
        %v1279 = vunpack.c.h.b16 %v512
        %v1280 = vunpack.c.l.b16 %v513
        %v1281 = vunpack.c.h.b16 %v513
        %v1282 = vunpack.c.l.b16 %v514
        %v1283 = vunpack.c.h.b16 %v514
        %v1284 = vunpack.c.l.b16 %v515
        %v1285 = vunpack.c.h.b16 %v515
        %v1286 = vunpack.c.l.b16 %v516
        %v1287 = vunpack.c.h.b16 %v516
        %v1288 = vunpack.c.l.b16 %v517
        %v1289 = vunpack.c.h.b16 %v517
        %v1290 = vunpack.c.l.b16 %v518
        %v1291 = vunpack.c.h.b16 %v518
        %v1292 = vunpack.c.l.b16 %v519
        %v1293 = vunpack.c.h.b16 %v519
        %v1294 = vunpack.c.l.b16 %v520
        %v1295 = vunpack.c.h.b16 %v520
        %v1296 = vunpack.c.l.b16 %v521
        %v1297 = vunpack.c.h.b16 %v521
        %v1298 = vunpack.c.l.b16 %v522
        %v1299 = vunpack.c.h.b16 %v522
        %v1300 = vunpack.c.l.b16 %v523
        %v1301 = vunpack.c.h.b16 %v523
        %v1302 = vunpack.c.l.b16 %v524
        %v1303 = vunpack.c.h.b16 %v524
        %v1304 = vunpack.c.l.b16 %v525
        %v1305 = vunpack.c.h.b16 %v525
        %v1306 = vunpack.c.l.b16 %v526
        %v1307 = vunpack.c.h.b16 %v526
        %v1308 = vunpack.c.l.b16 %v527
        %v1309 = vunpack.c.h.b16 %v527
        %v1310 = vunpack.c.l.b16 %v528
        %v1311 = vunpack.c.h.b16 %v528
        %v1312 = vunpack.c.l.b16 %v529
        %v1313 = vunpack.c.h.b16 %v529
        %v1314 = vunpack.c.l.b16 %v530
        %v1315 = vunpack.c.h.b16 %v530
        %v1316 = vunpack.c.l.b16 %v531
        %v1317 = vunpack.c.h.b16 %v531
        %v1318 = vunpack.c.l.b16 %v532
        %v1319 = vunpack.c.h.b16 %v532
        %v1320 = vunpack.c.l.b16 %v533
        %v1321 = vunpack.c.h.b16 %v533
        %v1322 = vunpack.c.l.b16 %v534
        %v1323 = vunpack.c.h.b16 %v534
        %v1324 = vunpack.c.l.b16 %v535
        %v1325 = vunpack.c.h.b16 %v535
        %v1326 = vunpack.c.l.b16 %v536
        %v1327 = vunpack.c.h.b16 %v536
        %v1328 = vunpack.c.l.b16 %v537
        %v1329 = vunpack.c.h.b16 %v537
        %v1330 = vunpack.c.l.b16 %v538
        %v1331 = vunpack.c.h.b16 %v538
        %v1332 = vunpack.c.l.b16 %v539
        %v1333 = vunpack.c.h.b16 %v539
        %v1334 = vunpack.c.l.b16 %v540
        %v1335 = vunpack.c.h.b16 %v540
        %v1336 = vunpack.c.l.b16 %v541
        %v1337 = vunpack.c.h.b16 %v541
        %v1338 = vunpack.c.l.b16 %v542
        %v1339 = vunpack.c.h.b16 %v542
        %v1340 = vunpack.c.l.b16 %v543
        %v1341 = vunpack.c.h.b16 %v543
        %v1342 = vunpack.c.l.b16 %v544
        %v1343 = vunpack.c.h.b16 %v544
        %v1344 = vunpack.c.l.b16 %v545
        %v1345 = vunpack.c.h.b16 %v545
        %v1346 = vunpack.c.l.b16 %v546
        %v1347 = vunpack.c.h.b16 %v546
        %v1348 = vunpack.c.l.b16 %v547
        %v1349 = vunpack.c.h.b16 %v547
        %v1350 = vunpack.c.l.b16 %v548
        %v1351 = vunpack.c.h.b16 %v548
        %v1352 = vunpack.c.l.b16 %v549
        %v1353 = vunpack.c.h.b16 %v549
        %v1354 = vunpack.c.l.b16 %v550
        %v1355 = vunpack.c.h.b16 %v550
        %v1356 = vunpack.c.l.b16 %v551
        %v1357 = vunpack.c.h.b16 %v551
        %v1358 = vunpack.c.l.b16 %v552
        %v1359 = vunpack.c.h.b16 %v552
        %v1360 = vunpack.c.l.b16 %v553
        %v1361 = vunpack.c.h.b16 %v553
        %v1362 = vunpack.c.l.b16 %v554
        %v1363 = vunpack.c.h.b16 %v554
        %v1364 = vunpack.c.l.b16 %v555
        %v1365 = vunpack.c.h.b16 %v555
        %v1366 = vunpack.c.l.b16 %v556
        %v1367 = vunpack.c.h.b16 %v556
        %v1368 = vunpack.c.l.b16 %v557
        %v1369 = vunpack.c.h.b16 %v557
        %v1370 = vunpack.c.l.b16 %v558
        %v1371 = vunpack.c.h.b16 %v558
        %v1372 = vunpack.c.l.b16 %v559
        %v1373 = vunpack.c.h.b16 %v559
        %v1374 = vunpack.c.l.b16 %v560
        %v1375 = vunpack.c.h.b16 %v560
        %v1376 = vunpack.c.l.b16 %v561
        %v1377 = vunpack.c.h.b16 %v561
        %v1378 = vunpack.c.l.b16 %v562
        %v1379 = vunpack.c.h.b16 %v562
        %v1380 = vunpack.c.l.b16 %v563
        %v1381 = vunpack.c.h.b16 %v563
        %v1382 = vunpack.c.l.b16 %v564
        %v1383 = vunpack.c.h.b16 %v564
        %v1384 = vunpack.c.l.b16 %v565
        %v1385 = vunpack.c.h.b16 %v565
        %v1386 = vunpack.c.l.b16 %v566
        %v1387 = vunpack.c.h.b16 %v566
        %v1388 = vunpack.c.l.b16 %v567
        %v1389 = vunpack.c.h.b16 %v567
        %v1390 = vunpack.c.l.b16 %v568
        %v1391 = vunpack.c.h.b16 %v568
        %v1392 = vunpack.c.l.b16 %v569
        %v1393 = vunpack.c.h.b16 %v569
        %v1394 = vunpack.c.l.b16 %v570
        %v1395 = vunpack.c.h.b16 %v570
        %v1396 = vunpack.c.l.b16 %v571
        %v1397 = vunpack.c.h.b16 %v571
        %v1398 = vunpack.c.l.b16 %v572
        %v1399 = vunpack.c.h.b16 %v572
        %v1400 = vunpack.c.l.b16 %v573
        %v1401 = vunpack.c.h.b16 %v573
        %v1402 = vunpack.c.l.b16 %v574
        %v1403 = vunpack.c.h.b16 %v574
        %v1404 = vunpack.c.l.b16 %v575
        %v1405 = vunpack.c.h.b16 %v575
        %v1406 = vunpack.c.l.b16 %v576
        %v1407 = vunpack.c.h.b16 %v576
        %v1408 = vunpack.c.l.b16 %v577
        %v1409 = vunpack.c.h.b16 %v577
        %v1410 = vunpack.c.l.b16 %v578
        %v1411 = vunpack.c.h.b16 %v578
        %v1412 = vunpack.c.l.b16 %v579
        %v1413 = vunpack.c.h.b16 %v579
        %v1414 = vunpack.c.l.b16 %v580
        %v1415 = vunpack.c.h.b16 %v580
        %v1416 = vunpack.c.l.b16 %v581
        %v1417 = vunpack.c.h.b16 %v581
        %v1418 = vunpack.c.l.b16 %v582
        %v1419 = vunpack.c.h.b16 %v582
        %v1420 = vunpack.c.l.b16 %v583
        %v1421 = vunpack.c.h.b16 %v583
        %v1422 = vunpack.c.l.b16 %v584
        %v1423 = vunpack.c.h.b16 %v584
        %v1424 = vunpack.c.l.b16 %v585
        %v1425 = vunpack.c.h.b16 %v585
        %v1426 = vunpack.c.l.b16 %v586
        %v1427 = vunpack.c.h.b16 %v586
        %v1428 = vunpack.c.l.b16 %v587
        %v1429 = vunpack.c.h.b16 %v587
        %v1430 = vunpack.c.l.b16 %v588
        %v1431 = vunpack.c.h.b16 %v588
        %v1432 = vunpack.c.l.b16 %v589
        %v1433 = vunpack.c.h.b16 %v589
        %v1434 = vunpack.c.l.b16 %v590
        %v1435 = vunpack.c.h.b16 %v590
        %v1436 = vunpack.c.l.b16 %v591
        %v1437 = vunpack.c.h.b16 %v591
        %v1438 = vunpack.c.l.b16 %v592
        %v1439 = vunpack.c.h.b16 %v592
        %v1440 = vunpack.c.l.b16 %v593
        %v1441 = vunpack.c.h.b16 %v593
        %v1442 = vpack.c.b16 %v934, %v930
        %v1443 = vpack.c.b16 %v935, %v931
        %v1444 = vpack.c.b16 %v936, %v932
        %v1445 = vpack.c.b16 %v937, %v933
        %v1446 = vpack.c.b16 %v942, %v938
        %v1447 = vpack.c.b16 %v943, %v939
        %v1448 = vpack.c.b16 %v944, %v940
        %v1449 = vpack.c.b16 %v945, %v941
        %v1450 = vpack.c.b16 %v950, %v946
        %v1451 = vpack.c.b16 %v951, %v947
        %v1452 = vpack.c.b16 %v952, %v948
        %v1453 = vpack.c.b16 %v953, %v949
        %v1454 = vpack.c.b16 %v958, %v954
        %v1455 = vpack.c.b16 %v959, %v955
        %v1456 = vpack.c.b16 %v960, %v956
        %v1457 = vpack.c.b16 %v961, %v957
        %v1458 = vpack.c.b16 %v966, %v962
        %v1459 = vpack.c.b16 %v967, %v963
        %v1460 = vpack.c.b16 %v968, %v964
        %v1461 = vpack.c.b16 %v969, %v965
        %v1462 = vpack.c.b16 %v974, %v970
        %v1463 = vpack.c.b16 %v975, %v971
        %v1464 = vpack.c.b16 %v976, %v972
        %v1465 = vpack.c.b16 %v977, %v973
        %v1466 = vpack.c.b16 %v982, %v978
        %v1467 = vpack.c.b16 %v983, %v979
        %v1468 = vpack.c.b16 %v984, %v980
        %v1469 = vpack.c.b16 %v985, %v981
        %v1470 = vpack.c.b16 %v990, %v986
        %v1471 = vpack.c.b16 %v991, %v987
        %v1472 = vpack.c.b16 %v992, %v988
        %v1473 = vpack.c.b16 %v993, %v989
        %v1474 = vpack.c.b16 %v998, %v994
        %v1475 = vpack.c.b16 %v999, %v995
        %v1476 = vpack.c.b16 %v1000, %v996
        %v1477 = vpack.c.b16 %v1001, %v997
        %v1478 = vpack.c.b16 %v1006, %v1002
        %v1479 = vpack.c.b16 %v1007, %v1003
        %v1480 = vpack.c.b16 %v1008, %v1004
        %v1481 = vpack.c.b16 %v1009, %v1005
        %v1482 = vpack.c.b16 %v1014, %v1010
        %v1483 = vpack.c.b16 %v1015, %v1011
        %v1484 = vpack.c.b16 %v1016, %v1012
        %v1485 = vpack.c.b16 %v1017, %v1013
        %v1486 = vpack.c.b16 %v1022, %v1018
        %v1487 = vpack.c.b16 %v1023, %v1019
        %v1488 = vpack.c.b16 %v1024, %v1020
        %v1489 = vpack.c.b16 %v1025, %v1021
        %v1490 = vpack.c.b16 %v1030, %v1026
        %v1491 = vpack.c.b16 %v1031, %v1027
        %v1492 = vpack.c.b16 %v1032, %v1028
        %v1493 = vpack.c.b16 %v1033, %v1029
        %v1494 = vpack.c.b16 %v1038, %v1034
        %v1495 = vpack.c.b16 %v1039, %v1035
        %v1496 = vpack.c.b16 %v1040, %v1036
        %v1497 = vpack.c.b16 %v1041, %v1037
        %v1498 = vpack.c.b16 %v1046, %v1042
        %v1499 = vpack.c.b16 %v1047, %v1043
        %v1500 = vpack.c.b16 %v1048, %v1044
        %v1501 = vpack.c.b16 %v1049, %v1045
        %v1502 = vpack.c.b16 %v1054, %v1050
        %v1503 = vpack.c.b16 %v1055, %v1051
        %v1504 = vpack.c.b16 %v1056, %v1052
        %v1505 = vpack.c.b16 %v1057, %v1053
        %v1506 = vpack.c.b16 %v1062, %v1058
        %v1507 = vpack.c.b16 %v1063, %v1059
        %v1508 = vpack.c.b16 %v1064, %v1060
        %v1509 = vpack.c.b16 %v1065, %v1061
        %v1510 = vpack.c.b16 %v1070, %v1066
        %v1511 = vpack.c.b16 %v1071, %v1067
        %v1512 = vpack.c.b16 %v1072, %v1068
        %v1513 = vpack.c.b16 %v1073, %v1069
        %v1514 = vpack.c.b16 %v1078, %v1074
        %v1515 = vpack.c.b16 %v1079, %v1075
        %v1516 = vpack.c.b16 %v1080, %v1076
        %v1517 = vpack.c.b16 %v1081, %v1077
        %v1518 = vpack.c.b16 %v1086, %v1082
        %v1519 = vpack.c.b16 %v1087, %v1083
        %v1520 = vpack.c.b16 %v1088, %v1084
        %v1521 = vpack.c.b16 %v1089, %v1085
        %v1522 = vpack.c.b16 %v1094, %v1090
        %v1523 = vpack.c.b16 %v1095, %v1091
        %v1524 = vpack.c.b16 %v1096, %v1092
        %v1525 = vpack.c.b16 %v1097, %v1093
        %v1526 = vpack.c.b16 %v1102, %v1098
        %v1527 = vpack.c.b16 %v1103, %v1099
        %v1528 = vpack.c.b16 %v1104, %v1100
        %v1529 = vpack.c.b16 %v1105, %v1101
        %v1530 = vpack.c.b16 %v1110, %v1106
        %v1531 = vpack.c.b16 %v1111, %v1107
        %v1532 = vpack.c.b16 %v1112, %v1108
        %v1533 = vpack.c.b16 %v1113, %v1109
        %v1534 = vpack.c.b16 %v1118, %v1114
        %v1535 = vpack.c.b16 %v1119, %v1115
        %v1536 = vpack.c.b16 %v1120, %v1116
        %v1537 = vpack.c.b16 %v1121, %v1117
        %v1538 = vpack.c.b16 %v1126, %v1122
        %v1539 = vpack.c.b16 %v1127, %v1123
        %v1540 = vpack.c.b16 %v1128, %v1124
        %v1541 = vpack.c.b16 %v1129, %v1125
        %v1542 = vpack.c.b16 %v1134, %v1130
        %v1543 = vpack.c.b16 %v1135, %v1131
        %v1544 = vpack.c.b16 %v1136, %v1132
        %v1545 = vpack.c.b16 %v1137, %v1133
        %v1546 = vpack.c.b16 %v1142, %v1138
        %v1547 = vpack.c.b16 %v1143, %v1139
        %v1548 = vpack.c.b16 %v1144, %v1140
        %v1549 = vpack.c.b16 %v1145, %v1141
        %v1550 = vpack.c.b16 %v1150, %v1146
        %v1551 = vpack.c.b16 %v1151, %v1147
        %v1552 = vpack.c.b16 %v1152, %v1148
        %v1553 = vpack.c.b16 %v1153, %v1149
        %v1554 = vpack.c.b16 %v1158, %v1154
        %v1555 = vpack.c.b16 %v1159, %v1155
        %v1556 = vpack.c.b16 %v1160, %v1156
        %v1557 = vpack.c.b16 %v1161, %v1157
        %v1558 = vpack.c.b16 %v1166, %v1162
        %v1559 = vpack.c.b16 %v1167, %v1163
        %v1560 = vpack.c.b16 %v1168, %v1164
        %v1561 = vpack.c.b16 %v1169, %v1165
        %v1562 = vpack.c.b16 %v1174, %v1170
        %v1563 = vpack.c.b16 %v1175, %v1171
        %v1564 = vpack.c.b16 %v1176, %v1172
        %v1565 = vpack.c.b16 %v1177, %v1173
        %v1566 = vpack.c.b16 %v1182, %v1178
        %v1567 = vpack.c.b16 %v1183, %v1179
        %v1568 = vpack.c.b16 %v1184, %v1180
        %v1569 = vpack.c.b16 %v1185, %v1181
        %v1570 = vpack.c.b16 %v1190, %v1186
        %v1571 = vpack.c.b16 %v1191, %v1187
        %v1572 = vpack.c.b16 %v1192, %v1188
        %v1573 = vpack.c.b16 %v1193, %v1189
        %v1574 = vpack.c.b16 %v1198, %v1194
        %v1575 = vpack.c.b16 %v1199, %v1195
        %v1576 = vpack.c.b16 %v1200, %v1196
        %v1577 = vpack.c.b16 %v1201, %v1197
        %v1578 = vpack.c.b16 %v1206, %v1202
        %v1579 = vpack.c.b16 %v1207, %v1203
        %v1580 = vpack.c.b16 %v1208, %v1204
        %v1581 = vpack.c.b16 %v1209, %v1205
        %v1582 = vpack.c.b16 %v1214, %v1210
        %v1583 = vpack.c.b16 %v1215, %v1211
        %v1584 = vpack.c.b16 %v1216, %v1212
        %v1585 = vpack.c.b16 %v1217, %v1213
        %v1586 = vpack.c.b16 %v1222, %v1218
        %v1587 = vpack.c.b16 %v1223, %v1219
        %v1588 = vpack.c.b16 %v1224, %v1220
        %v1589 = vpack.c.b16 %v1225, %v1221
        %v1590 = vpack.c.b16 %v1230, %v1226
        %v1591 = vpack.c.b16 %v1231, %v1227
        %v1592 = vpack.c.b16 %v1232, %v1228
        %v1593 = vpack.c.b16 %v1233, %v1229
        %v1594 = vpack.c.b16 %v1238, %v1234
        %v1595 = vpack.c.b16 %v1239, %v1235
        %v1596 = vpack.c.b16 %v1240, %v1236
        %v1597 = vpack.c.b16 %v1241, %v1237
        %v1598 = vpack.c.b16 %v1246, %v1242
        %v1599 = vpack.c.b16 %v1247, %v1243
        %v1600 = vpack.c.b16 %v1248, %v1244
        %v1601 = vpack.c.b16 %v1249, %v1245
        %v1602 = vpack.c.b16 %v1254, %v1250
        %v1603 = vpack.c.b16 %v1255, %v1251
        %v1604 = vpack.c.b16 %v1256, %v1252
        %v1605 = vpack.c.b16 %v1257, %v1253
        %v1606 = vpack.c.b16 %v1262, %v1258
        %v1607 = vpack.c.b16 %v1263, %v1259
        %v1608 = vpack.c.b16 %v1264, %v1260
        %v1609 = vpack.c.b16 %v1265, %v1261
        %v1610 = vpack.c.b16 %v1270, %v1266
        %v1611 = vpack.c.b16 %v1271, %v1267
        %v1612 = vpack.c.b16 %v1272, %v1268
        %v1613 = vpack.c.b16 %v1273, %v1269
        %v1614 = vpack.c.b16 %v1278, %v1274
        %v1615 = vpack.c.b16 %v1279, %v1275
        %v1616 = vpack.c.b16 %v1280, %v1276
        %v1617 = vpack.c.b16 %v1281, %v1277
        %v1618 = vpack.c.b16 %v1286, %v1282
        %v1619 = vpack.c.b16 %v1287, %v1283
        %v1620 = vpack.c.b16 %v1288, %v1284
        %v1621 = vpack.c.b16 %v1289, %v1285
        %v1622 = vpack.c.b16 %v1294, %v1290
        %v1623 = vpack.c.b16 %v1295, %v1291
        %v1624 = vpack.c.b16 %v1296, %v1292
        %v1625 = vpack.c.b16 %v1297, %v1293
        %v1626 = vpack.c.b16 %v1302, %v1298
        %v1627 = vpack.c.b16 %v1303, %v1299
        %v1628 = vpack.c.b16 %v1304, %v1300
        %v1629 = vpack.c.b16 %v1305, %v1301
        %v1630 = vpack.c.b16 %v1310, %v1306
        %v1631 = vpack.c.b16 %v1311, %v1307
        %v1632 = vpack.c.b16 %v1312, %v1308
        %v1633 = vpack.c.b16 %v1313, %v1309
        %v1634 = vpack.c.b16 %v1318, %v1314
        %v1635 = vpack.c.b16 %v1319, %v1315
        %v1636 = vpack.c.b16 %v1320, %v1316
        %v1637 = vpack.c.b16 %v1321, %v1317
        %v1638 = vpack.c.b16 %v1326, %v1322
        %v1639 = vpack.c.b16 %v1327, %v1323
        %v1640 = vpack.c.b16 %v1328, %v1324
        %v1641 = vpack.c.b16 %v1329, %v1325
        %v1642 = vpack.c.b16 %v1334, %v1330
        %v1643 = vpack.c.b16 %v1335, %v1331
        %v1644 = vpack.c.b16 %v1336, %v1332
        %v1645 = vpack.c.b16 %v1337, %v1333
        %v1646 = vpack.c.b16 %v1342, %v1338
        %v1647 = vpack.c.b16 %v1343, %v1339
        %v1648 = vpack.c.b16 %v1344, %v1340
        %v1649 = vpack.c.b16 %v1345, %v1341
        %v1650 = vpack.c.b16 %v1350, %v1346
        %v1651 = vpack.c.b16 %v1351, %v1347
        %v1652 = vpack.c.b16 %v1352, %v1348
        %v1653 = vpack.c.b16 %v1353, %v1349
        %v1654 = vpack.c.b16 %v1358, %v1354
        %v1655 = vpack.c.b16 %v1359, %v1355
        %v1656 = vpack.c.b16 %v1360, %v1356
        %v1657 = vpack.c.b16 %v1361, %v1357
        %v1658 = vpack.c.b16 %v1366, %v1362
        %v1659 = vpack.c.b16 %v1367, %v1363
        %v1660 = vpack.c.b16 %v1368, %v1364
        %v1661 = vpack.c.b16 %v1369, %v1365
        %v1662 = vpack.c.b16 %v1374, %v1370
        %v1663 = vpack.c.b16 %v1375, %v1371
        %v1664 = vpack.c.b16 %v1376, %v1372
        %v1665 = vpack.c.b16 %v1377, %v1373
        %v1666 = vpack.c.b16 %v1382, %v1378
        %v1667 = vpack.c.b16 %v1383, %v1379
        %v1668 = vpack.c.b16 %v1384, %v1380
        %v1669 = vpack.c.b16 %v1385, %v1381
        %v1670 = vpack.c.b16 %v1390, %v1386
        %v1671 = vpack.c.b16 %v1391, %v1387
        %v1672 = vpack.c.b16 %v1392, %v1388
        %v1673 = vpack.c.b16 %v1393, %v1389
        %v1674 = vpack.c.b16 %v1398, %v1394
        %v1675 = vpack.c.b16 %v1399, %v1395
        %v1676 = vpack.c.b16 %v1400, %v1396
        %v1677 = vpack.c.b16 %v1401, %v1397
        %v1678 = vpack.c.b16 %v1406, %v1402
        %v1679 = vpack.c.b16 %v1407, %v1403
        %v1680 = vpack.c.b16 %v1408, %v1404
        %v1681 = vpack.c.b16 %v1409, %v1405
        %v1682 = vpack.c.b16 %v1414, %v1410
        %v1683 = vpack.c.b16 %v1415, %v1411
        %v1684 = vpack.c.b16 %v1416, %v1412
        %v1685 = vpack.c.b16 %v1417, %v1413
        %v1686 = vpack.c.b16 %v1422, %v1418
        %v1687 = vpack.c.b16 %v1423, %v1419
        %v1688 = vpack.c.b16 %v1424, %v1420
        %v1689 = vpack.c.b16 %v1425, %v1421
        %v1690 = vpack.c.b16 %v1430, %v1426
        %v1691 = vpack.c.b16 %v1431, %v1427
        %v1692 = vpack.c.b16 %v1432, %v1428
        %v1693 = vpack.c.b16 %v1433, %v1429
        %v1694 = vpack.c.b16 %v1438, %v1434
        %v1695 = vpack.c.b16 %v1439, %v1435
        %v1696 = vpack.c.b16 %v1440, %v1436
        %v1697 = vpack.c.b16 %v1441, %v1437
        %1954 = vmatprep.subr.bf16.mxu0 %v1443
        %1955 = vmatpush1.bf16.msra.mxu0 %v1442
        %1956 = vmatprep.subr.bf16.mxu0 %v1447
        %1957 = vmatpush1.bf16.msra.mxu0 %v1446
        %1958 = vmatprep.subr.bf16.mxu0 %v1451
        %1959 = vmatpush1.bf16.msra.mxu0 %v1450
        %1960 = vmatprep.subr.bf16.mxu0 %v1455
        %1961 = vmatpush1.bf16.msra.mxu0 %v1454
        %1962 = vmatprep.subr.bf16.mxu0 %v1459
        %1963 = vmatpush1.bf16.msra.mxu0 %v1458
        %1964 = vmatprep.subr.bf16.mxu0 %v1463
        %1965 = vmatpush1.bf16.msra.mxu0 %v1462
        %1966 = vmatprep.subr.bf16.mxu0 %v1467
        %1967 = vmatpush1.bf16.msra.mxu0 %v1466
        %1968 = vmatprep.subr.bf16.mxu0 %v1471
        %1969 = vmatpush1.bf16.msra.mxu0 %v1470
        %1970 = vmatprep.subr.bf16.mxu0 %v1475
        %1971 = vmatpush1.bf16.msra.mxu0 %v1474
        %1972 = vmatprep.subr.bf16.mxu0 %v1479
        %1973 = vmatpush1.bf16.msra.mxu0 %v1478
        %1974 = vmatprep.subr.bf16.mxu0 %v1483
        %1975 = vmatpush1.bf16.msra.mxu0 %v1482
        %1976 = vmatprep.subr.bf16.mxu0 %v1487
        %1977 = vmatpush1.bf16.msra.mxu0 %v1486
        %1978 = vmatprep.subr.bf16.mxu0 %v1491
        %1979 = vmatpush1.bf16.msra.mxu0 %v1490
        %1980 = vmatprep.subr.bf16.mxu0 %v1495
        %1981 = vmatpush1.bf16.msra.mxu0 %v1494
        %1982 = vmatprep.subr.bf16.mxu0 %v1499
        %1983 = vmatpush1.bf16.msra.mxu0 %v1498
        %1984 = vmatprep.subr.bf16.mxu0 %v1503
        %1985 = vmatpush1.bf16.msra.mxu0 %v1502
        %1986 = vmatprep.mubr.bf16.mxu0 %v643
        %1987 = vmatmul.mubr.bf16.gmra.mrb[0].mxu0 %v642
        %v1988 = vpop.f32.mrb[0].mxu0
        %v1989 = vadd.f32 0.0, %v1988
        %v1990 = vpop.f32.mrb[0].mxu0
        %v1991 = vadd.f32 0.0, %v1990
        %v1992 = vpop.f32.mrb[0].mxu0
        %v1993 = vadd.f32 0.0, %v1992
        %v1994 = vpop.f32.mrb[0].mxu0
        %v1995 = vadd.f32 0.0, %v1994
        %1996 = vmatprep.mubr.bf16.mxu0 %v651
        %1997 = vmatmul.mubr.bf16.gmra.mrb[0].mxu0 %v650
        %v1998 = vpop.f32.mrb[0].mxu0
        %v1999 = vadd.f32 0.0, %v1998
        %v2000 = vpop.f32.mrb[0].mxu0
        %v2001 = vadd.f32 0.0, %v2000
        %v2002 = vpop.f32.mrb[0].mxu0
        %v2003 = vadd.f32 0.0, %v2002
        %v2004 = vpop.f32.mrb[0].mxu0
        %v2005 = vadd.f32 0.0, %v2004
        %2006 = vdwg.mxu0
        %2007 = vmatprep.subr.bf16.mxu0 %v1507
        %2008 = vmatpush1.bf16.msra.mxu0 %v1506
        %2009 = vmatprep.subr.bf16.mxu0 %v1511
        %2010 = vmatpush1.bf16.msra.mxu0 %v1510
        %2011 = vmatprep.subr.bf16.mxu0 %v1515
        %2012 = vmatpush1.bf16.msra.mxu0 %v1514
        %2013 = vmatprep.subr.bf16.mxu0 %v1519
        %2014 = vmatpush1.bf16.msra.mxu0 %v1518
        %2015 = vmatprep.subr.bf16.mxu0 %v1523
        %2016 = vmatpush1.bf16.msra.mxu0 %v1522
        %2017 = vmatprep.subr.bf16.mxu0 %v1527
        %2018 = vmatpush1.bf16.msra.mxu0 %v1526
        %2019 = vmatprep.subr.bf16.mxu0 %v1531
        %2020 = vmatpush1.bf16.msra.mxu0 %v1530
        %2021 = vmatprep.subr.bf16.mxu0 %v1535
        %2022 = vmatpush1.bf16.msra.mxu0 %v1534
        %2023 = vmatprep.subr.bf16.mxu0 %v1539
        %2024 = vmatpush1.bf16.msra.mxu0 %v1538
        %2025 = vmatprep.subr.bf16.mxu0 %v1543
        %2026 = vmatpush1.bf16.msra.mxu0 %v1542
        %2027 = vmatprep.subr.bf16.mxu0 %v1547
        %2028 = vmatpush1.bf16.msra.mxu0 %v1546
        %2029 = vmatprep.subr.bf16.mxu0 %v1551
        %2030 = vmatpush1.bf16.msra.mxu0 %v1550
        %2031 = vmatprep.subr.bf16.mxu0 %v1555
        %2032 = vmatpush1.bf16.msra.mxu0 %v1554
        %2033 = vmatprep.subr.bf16.mxu0 %v1559
        %2034 = vmatpush1.bf16.msra.mxu0 %v1558
        %2035 = vmatprep.subr.bf16.mxu0 %v1563
        %2036 = vmatpush1.bf16.msra.mxu0 %v1562
        %2037 = vmatprep.subr.bf16.mxu0 %v1567
        %2038 = vmatpush1.bf16.msra.mxu0 %v1566
        %2039 = vmatprep.mubr.bf16.mxu0 %v645
        %2040 = vmatmul.mubr.bf16.gmra.mrb[0].mxu0 %v644
        %v2041 = vpop.f32.mrb[0].mxu0
        %v2042 = vadd.f32 %v1989, %v2041
        %v2043 = vpop.f32.mrb[0].mxu0
        %v2044 = vadd.f32 %v1991, %v2043
        %v2045 = vpop.f32.mrb[0].mxu0
        %v2046 = vadd.f32 %v1993, %v2045
        %v2047 = vpop.f32.mrb[0].mxu0
        %v2048 = vadd.f32 %v1995, %v2047
        %2049 = vmatprep.mubr.bf16.mxu0 %v653
        %2050 = vmatmul.mubr.bf16.gmra.mrb[0].mxu0 %v652
        %v2051 = vpop.f32.mrb[0].mxu0
        %v2052 = vadd.f32 %v1999, %v2051
        %v2053 = vpop.f32.mrb[0].mxu0
        %v2054 = vadd.f32 %v2001, %v2053
        %v2055 = vpop.f32.mrb[0].mxu0
        %v2056 = vadd.f32 %v2003, %v2055
        %v2057 = vpop.f32.mrb[0].mxu0
        %v2058 = vadd.f32 %v2005, %v2057
        %2059 = vdwg.mxu0
        %2060 = vmatprep.subr.bf16.mxu0 %v1571
        %2061 = vmatpush1.bf16.msra.mxu0 %v1570
        %2062 = vmatprep.subr.bf16.mxu0 %v1575
        %2063 = vmatpush1.bf16.msra.mxu0 %v1574
        %2064 = vmatprep.subr.bf16.mxu0 %v1579
        %2065 = vmatpush1.bf16.msra.mxu0 %v1578
        %2066 = vmatprep.subr.bf16.mxu0 %v1583
        %2067 = vmatpush1.bf16.msra.mxu0 %v1582
        %2068 = vmatprep.subr.bf16.mxu0 %v1587
        %2069 = vmatpush1.bf16.msra.mxu0 %v1586
        %2070 = vmatprep.subr.bf16.mxu0 %v1591
        %2071 = vmatpush1.bf16.msra.mxu0 %v1590
        %2072 = vmatprep.subr.bf16.mxu0 %v1595
        %2073 = vmatpush1.bf16.msra.mxu0 %v1594
        %2074 = vmatprep.subr.bf16.mxu0 %v1599
        %2075 = vmatpush1.bf16.msra.mxu0 %v1598
        %2076 = vmatprep.subr.bf16.mxu0 %v1603
        %2077 = vmatpush1.bf16.msra.mxu0 %v1602
        %2078 = vmatprep.subr.bf16.mxu0 %v1607
        %2079 = vmatpush1.bf16.msra.mxu0 %v1606
        %2080 = vmatprep.subr.bf16.mxu0 %v1611
        %2081 = vmatpush1.bf16.msra.mxu0 %v1610
        %2082 = vmatprep.subr.bf16.mxu0 %v1615
        %2083 = vmatpush1.bf16.msra.mxu0 %v1614
        %2084 = vmatprep.subr.bf16.mxu0 %v1619
        %2085 = vmatpush1.bf16.msra.mxu0 %v1618
        %2086 = vmatprep.subr.bf16.mxu0 %v1623
        %2087 = vmatpush1.bf16.msra.mxu0 %v1622
        %2088 = vmatprep.subr.bf16.mxu0 %v1627
        %2089 = vmatpush1.bf16.msra.mxu0 %v1626
        %2090 = vmatprep.subr.bf16.mxu0 %v1631
        %2091 = vmatpush1.bf16.msra.mxu0 %v1630
        %2092 = vmatprep.mubr.bf16.mxu0 %v647
        %2093 = vmatmul.mubr.bf16.gmra.mrb[0].mxu0 %v646
        %v2094 = vpop.f32.mrb[0].mxu0
        %v2095 = vadd.f32 %v2042, %v2094
        %v2096 = vpop.f32.mrb[0].mxu0
        %v2097 = vadd.f32 %v2044, %v2096
        %v2098 = vpop.f32.mrb[0].mxu0
        %v2099 = vadd.f32 %v2046, %v2098
        %v2100 = vpop.f32.mrb[0].mxu0
        %v2101 = vadd.f32 %v2048, %v2100
        %2102 = vmatprep.mubr.bf16.mxu0 %v655
        %2103 = vmatmul.mubr.bf16.gmra.mrb[0].mxu0 %v654
        %v2104 = vpop.f32.mrb[0].mxu0
        %v2105 = vadd.f32 %v2052, %v2104
        %v2106 = vpop.f32.mrb[0].mxu0
        %v2107 = vadd.f32 %v2054, %v2106
        %v2108 = vpop.f32.mrb[0].mxu0
        %v2109 = vadd.f32 %v2056, %v2108
        %v2110 = vpop.f32.mrb[0].mxu0
        %v2111 = vadd.f32 %v2058, %v2110
        %2112 = vdwg.mxu0
        %2113 = vmatprep.subr.bf16.mxu0 %v1635
        %2114 = vmatpush1.bf16.msra.mxu0 %v1634
        %2115 = vmatprep.subr.bf16.mxu0 %v1639
        %2116 = vmatpush1.bf16.msra.mxu0 %v1638
        %2117 = vmatprep.subr.bf16.mxu0 %v1643
        %2118 = vmatpush1.bf16.msra.mxu0 %v1642
        %2119 = vmatprep.subr.bf16.mxu0 %v1647
        %2120 = vmatpush1.bf16.msra.mxu0 %v1646
        %2121 = vmatprep.subr.bf16.mxu0 %v1651
        %2122 = vmatpush1.bf16.msra.mxu0 %v1650
        %2123 = vmatprep.subr.bf16.mxu0 %v1655
        %2124 = vmatpush1.bf16.msra.mxu0 %v1654
        %2125 = vmatprep.subr.bf16.mxu0 %v1659
        %2126 = vmatpush1.bf16.msra.mxu0 %v1658
        %2127 = vmatprep.subr.bf16.mxu0 %v1663
        %2128 = vmatpush1.bf16.msra.mxu0 %v1662
        %2129 = vmatprep.subr.bf16.mxu0 %v1667
        %2130 = vmatpush1.bf16.msra.mxu0 %v1666
        %2131 = vmatprep.subr.bf16.mxu0 %v1671
        %2132 = vmatpush1.bf16.msra.mxu0 %v1670
        %2133 = vmatprep.subr.bf16.mxu0 %v1675
        %2134 = vmatpush1.bf16.msra.mxu0 %v1674
        %2135 = vmatprep.subr.bf16.mxu0 %v1679
        %2136 = vmatpush1.bf16.msra.mxu0 %v1678
        %2137 = vmatprep.subr.bf16.mxu0 %v1683
        %2138 = vmatpush1.bf16.msra.mxu0 %v1682
        %2139 = vmatprep.subr.bf16.mxu0 %v1687
        %2140 = vmatpush1.bf16.msra.mxu0 %v1686
        %2141 = vmatprep.subr.bf16.mxu0 %v1691
        %2142 = vmatpush1.bf16.msra.mxu0 %v1690
        %2143 = vmatprep.subr.bf16.mxu0 %v1695
        %2144 = vmatpush1.bf16.msra.mxu0 %v1694
        %2145 = vmatprep.mubr.bf16.mxu0 %v649
        %2146 = vmatmul.mubr.bf16.gmra.mrb[0].mxu0 %v648
        %v2147 = vpop.f32.mrb[0].mxu0
        %v2148 = vadd.f32 %v2095, %v2147
        %v2149 = vpop.f32.mrb[0].mxu0
        %v2150 = vadd.f32 %v2097, %v2149
        %v2151 = vpop.f32.mrb[0].mxu0
        %v2152 = vadd.f32 %v2099, %v2151
        %v2153 = vpop.f32.mrb[0].mxu0
        %v2154 = vadd.f32 %v2101, %v2153
        %2155 = vmatprep.mubr.bf16.mxu0 %v657
        %2156 = vmatmul.mubr.bf16.gmra.mrb[0].mxu0 %v656
        %v2157 = vpop.f32.mrb[0].mxu0
        %v2158 = vadd.f32 %v2105, %v2157
        %v2159 = vpop.f32.mrb[0].mxu0
        %v2160 = vadd.f32 %v2107, %v2159
        %v2161 = vpop.f32.mrb[0].mxu0
        %v2162 = vadd.f32 %v2109, %v2161
        %v2163 = vpop.f32.mrb[0].mxu0
        %v2164 = vadd.f32 %v2111, %v2163
        %2165 = vdwg.mxu0
        %2166 = vmatprep.subr.bf16.mxu0 %v1445
        %2167 = vmatpush1.bf16.msra.mxu0 %v1444
        %2168 = vmatprep.subr.bf16.mxu0 %v1449
        %2169 = vmatpush1.bf16.msra.mxu0 %v1448
        %2170 = vmatprep.subr.bf16.mxu0 %v1453
        %2171 = vmatpush1.bf16.msra.mxu0 %v1452
        %2172 = vmatprep.subr.bf16.mxu0 %v1457
        %2173 = vmatpush1.bf16.msra.mxu0 %v1456
        %2174 = vmatprep.subr.bf16.mxu0 %v1461
        %2175 = vmatpush1.bf16.msra.mxu0 %v1460
        %2176 = vmatprep.subr.bf16.mxu0 %v1465
        %2177 = vmatpush1.bf16.msra.mxu0 %v1464
        %2178 = vmatprep.subr.bf16.mxu0 %v1469
        %2179 = vmatpush1.bf16.msra.mxu0 %v1468
        %2180 = vmatprep.subr.bf16.mxu0 %v1473
        %2181 = vmatpush1.bf16.msra.mxu0 %v1472
        %2182 = vmatprep.subr.bf16.mxu0 %v1477
        %2183 = vmatpush1.bf16.msra.mxu0 %v1476
        %2184 = vmatprep.subr.bf16.mxu0 %v1481
        %2185 = vmatpush1.bf16.msra.mxu0 %v1480
        %2186 = vmatprep.subr.bf16.mxu0 %v1485
        %2187 = vmatpush1.bf16.msra.mxu0 %v1484
        %2188 = vmatprep.subr.bf16.mxu0 %v1489
        %2189 = vmatpush1.bf16.msra.mxu0 %v1488
        %2190 = vmatprep.subr.bf16.mxu0 %v1493
        %2191 = vmatpush1.bf16.msra.mxu0 %v1492
        %2192 = vmatprep.subr.bf16.mxu0 %v1497
        %2193 = vmatpush1.bf16.msra.mxu0 %v1496
        %2194 = vmatprep.subr.bf16.mxu0 %v1501
        %2195 = vmatpush1.bf16.msra.mxu0 %v1500
        %2196 = vmatprep.subr.bf16.mxu0 %v1505
        %2197 = vmatpush1.bf16.msra.mxu0 %v1504
        %2198 = vmatprep.mubr.bf16.mxu0 %v643
        %2199 = vmatmul.mubr.bf16.gmra.mrb[0].mxu0 %v642
        %v2200 = vpop.f32.mrb[0].mxu0
        %v2201 = vadd.f32 0.0, %v2200
        %v2202 = vpop.f32.mrb[0].mxu0
        %v2203 = vadd.f32 0.0, %v2202
        %v2204 = vpop.f32.mrb[0].mxu0
        %v2205 = vadd.f32 0.0, %v2204
        %v2206 = vpop.f32.mrb[0].mxu0
        %v2207 = vadd.f32 0.0, %v2206
        %2208 = vmatprep.mubr.bf16.mxu0 %v651
        %2209 = vmatmul.mubr.bf16.gmra.mrb[0].mxu0 %v650
        %v2210 = vpop.f32.mrb[0].mxu0
        %v2211 = vadd.f32 0.0, %v2210
        %v2212 = vpop.f32.mrb[0].mxu0
        %v2213 = vadd.f32 0.0, %v2212
        %v2214 = vpop.f32.mrb[0].mxu0
        %v2215 = vadd.f32 0.0, %v2214
        %v2216 = vpop.f32.mrb[0].mxu0
        %v2217 = vadd.f32 0.0, %v2216
        %2218 = vdwg.mxu0
        %2219 = vmatprep.subr.bf16.mxu0 %v1509
        %2220 = vmatpush1.bf16.msra.mxu0 %v1508
        %2221 = vmatprep.subr.bf16.mxu0 %v1513
        %2222 = vmatpush1.bf16.msra.mxu0 %v1512
        %2223 = vmatprep.subr.bf16.mxu0 %v1517
        %2224 = vmatpush1.bf16.msra.mxu0 %v1516
        %2225 = vmatprep.subr.bf16.mxu0 %v1521
        %2226 = vmatpush1.bf16.msra.mxu0 %v1520
        %2227 = vmatprep.subr.bf16.mxu0 %v1525
        %2228 = vmatpush1.bf16.msra.mxu0 %v1524
        %2229 = vmatprep.subr.bf16.mxu0 %v1529
        %2230 = vmatpush1.bf16.msra.mxu0 %v1528
        %2231 = vmatprep.subr.bf16.mxu0 %v1533
        %2232 = vmatpush1.bf16.msra.mxu0 %v1532
        %2233 = vmatprep.subr.bf16.mxu0 %v1537
        %2234 = vmatpush1.bf16.msra.mxu0 %v1536
        %2235 = vmatprep.subr.bf16.mxu0 %v1541
        %2236 = vmatpush1.bf16.msra.mxu0 %v1540
        %2237 = vmatprep.subr.bf16.mxu0 %v1545
        %2238 = vmatpush1.bf16.msra.mxu0 %v1544
        %2239 = vmatprep.subr.bf16.mxu0 %v1549
        %2240 = vmatpush1.bf16.msra.mxu0 %v1548
        %2241 = vmatprep.subr.bf16.mxu0 %v1553
        %2242 = vmatpush1.bf16.msra.mxu0 %v1552
        %2243 = vmatprep.subr.bf16.mxu0 %v1557
        %2244 = vmatpush1.bf16.msra.mxu0 %v1556
        %2245 = vmatprep.subr.bf16.mxu0 %v1561
        %2246 = vmatpush1.bf16.msra.mxu0 %v1560
        %2247 = vmatprep.subr.bf16.mxu0 %v1565
        %2248 = vmatpush1.bf16.msra.mxu0 %v1564
        %2249 = vmatprep.subr.bf16.mxu0 %v1569
        %2250 = vmatpush1.bf16.msra.mxu0 %v1568
        %2251 = vmatprep.mubr.bf16.mxu0 %v645
        %2252 = vmatmul.mubr.bf16.gmra.mrb[0].mxu0 %v644
        %v2253 = vpop.f32.mrb[0].mxu0
        %v2254 = vadd.f32 %v2201, %v2253
        %v2255 = vpop.f32.mrb[0].mxu0
        %v2256 = vadd.f32 %v2203, %v2255
        %v2257 = vpop.f32.mrb[0].mxu0
        %v2258 = vadd.f32 %v2205, %v2257
        %v2259 = vpop.f32.mrb[0].mxu0
        %v2260 = vadd.f32 %v2207, %v2259
        %2261 = vmatprep.mubr.bf16.mxu0 %v653
        %2262 = vmatmul.mubr.bf16.gmra.mrb[0].mxu0 %v652
        %v2263 = vpop.f32.mrb[0].mxu0
        %v2264 = vadd.f32 %v2211, %v2263
        %v2265 = vpop.f32.mrb[0].mxu0
        %v2266 = vadd.f32 %v2213, %v2265
        %v2267 = vpop.f32.mrb[0].mxu0
        %v2268 = vadd.f32 %v2215, %v2267
        %v2269 = vpop.f32.mrb[0].mxu0
        %v2270 = vadd.f32 %v2217, %v2269
        %2271 = vdwg.mxu0
        %2272 = vmatprep.subr.bf16.mxu0 %v1573
        %2273 = vmatpush1.bf16.msra.mxu0 %v1572
        %2274 = vmatprep.subr.bf16.mxu0 %v1577
        %2275 = vmatpush1.bf16.msra.mxu0 %v1576
        %2276 = vmatprep.subr.bf16.mxu0 %v1581
        %2277 = vmatpush1.bf16.msra.mxu0 %v1580
        %2278 = vmatprep.subr.bf16.mxu0 %v1585
        %2279 = vmatpush1.bf16.msra.mxu0 %v1584
        %2280 = vmatprep.subr.bf16.mxu0 %v1589
        %2281 = vmatpush1.bf16.msra.mxu0 %v1588
        %2282 = vmatprep.subr.bf16.mxu0 %v1593
        %2283 = vmatpush1.bf16.msra.mxu0 %v1592
        %2284 = vmatprep.subr.bf16.mxu0 %v1597
        %2285 = vmatpush1.bf16.msra.mxu0 %v1596
        %2286 = vmatprep.subr.bf16.mxu0 %v1601
        %2287 = vmatpush1.bf16.msra.mxu0 %v1600
        %2288 = vmatprep.subr.bf16.mxu0 %v1605
        %2289 = vmatpush1.bf16.msra.mxu0 %v1604
        %2290 = vmatprep.subr.bf16.mxu0 %v1609
        %2291 = vmatpush1.bf16.msra.mxu0 %v1608
        %2292 = vmatprep.subr.bf16.mxu0 %v1613
        %2293 = vmatpush1.bf16.msra.mxu0 %v1612
        %2294 = vmatprep.subr.bf16.mxu0 %v1617
        %2295 = vmatpush1.bf16.msra.mxu0 %v1616
        %2296 = vmatprep.subr.bf16.mxu0 %v1621
        %2297 = vmatpush1.bf16.msra.mxu0 %v1620
        %2298 = vmatprep.subr.bf16.mxu0 %v1625
        %2299 = vmatpush1.bf16.msra.mxu0 %v1624
        %2300 = vmatprep.subr.bf16.mxu0 %v1629
        %2301 = vmatpush1.bf16.msra.mxu0 %v1628
        %2302 = vmatprep.subr.bf16.mxu0 %v1633
        %2303 = vmatpush1.bf16.msra.mxu0 %v1632
        %2304 = vmatprep.mubr.bf16.mxu0 %v647
        %2305 = vmatmul.mubr.bf16.gmra.mrb[0].mxu0 %v646
        %v2306 = vpop.f32.mrb[0].mxu0
        %v2307 = vadd.f32 %v2254, %v2306
        %v2308 = vpop.f32.mrb[0].mxu0
        %v2309 = vadd.f32 %v2256, %v2308
        %v2310 = vpop.f32.mrb[0].mxu0
        %v2311 = vadd.f32 %v2258, %v2310
        %v2312 = vpop.f32.mrb[0].mxu0
        %v2313 = vadd.f32 %v2260, %v2312
        %2314 = vmatprep.mubr.bf16.mxu0 %v655
        %2315 = vmatmul.mubr.bf16.gmra.mrb[0].mxu0 %v654
        %v2316 = vpop.f32.mrb[0].mxu0
        %v2317 = vadd.f32 %v2264, %v2316
        %v2318 = vpop.f32.mrb[0].mxu0
        %v2319 = vadd.f32 %v2266, %v2318
        %v2320 = vpop.f32.mrb[0].mxu0
        %v2321 = vadd.f32 %v2268, %v2320
        %v2322 = vpop.f32.mrb[0].mxu0
        %v2323 = vadd.f32 %v2270, %v2322
        %2324 = vdwg.mxu0
        %2325 = vmatprep.subr.bf16.mxu0 %v1637
        %2326 = vmatpush1.bf16.msra.mxu0 %v1636
        %2327 = vmatprep.subr.bf16.mxu0 %v1641
        %2328 = vmatpush1.bf16.msra.mxu0 %v1640
        %2329 = vmatprep.subr.bf16.mxu0 %v1645
        %2330 = vmatpush1.bf16.msra.mxu0 %v1644
        %2331 = vmatprep.subr.bf16.mxu0 %v1649
        %2332 = vmatpush1.bf16.msra.mxu0 %v1648
        %2333 = vmatprep.subr.bf16.mxu0 %v1653
        %2334 = vmatpush1.bf16.msra.mxu0 %v1652
        %2335 = vmatprep.subr.bf16.mxu0 %v1657
        %2336 = vmatpush1.bf16.msra.mxu0 %v1656
        %2337 = vmatprep.subr.bf16.mxu0 %v1661
        %2338 = vmatpush1.bf16.msra.mxu0 %v1660
        %2339 = vmatprep.subr.bf16.mxu0 %v1665
        %2340 = vmatpush1.bf16.msra.mxu0 %v1664
        %2341 = vmatprep.subr.bf16.mxu0 %v1669
        %2342 = vmatpush1.bf16.msra.mxu0 %v1668
        %2343 = vmatprep.subr.bf16.mxu0 %v1673
        %2344 = vmatpush1.bf16.msra.mxu0 %v1672
        %2345 = vmatprep.subr.bf16.mxu0 %v1677
        %2346 = vmatpush1.bf16.msra.mxu0 %v1676
        %2347 = vmatprep.subr.bf16.mxu0 %v1681
        %2348 = vmatpush1.bf16.msra.mxu0 %v1680
        %2349 = vmatprep.subr.bf16.mxu0 %v1685
        %2350 = vmatpush1.bf16.msra.mxu0 %v1684
        %2351 = vmatprep.subr.bf16.mxu0 %v1689
        %2352 = vmatpush1.bf16.msra.mxu0 %v1688
        %2353 = vmatprep.subr.bf16.mxu0 %v1693
        %2354 = vmatpush1.bf16.msra.mxu0 %v1692
        %2355 = vmatprep.subr.bf16.mxu0 %v1697
        %2356 = vmatpush1.bf16.msra.mxu0 %v1696
        %2357 = vmatprep.mubr.bf16.mxu0 %v649
        %2358 = vmatmul.mubr.bf16.gmra.mrb[0].mxu0 %v648
        %v2359 = vpop.f32.mrb[0].mxu0
        %v2360 = vadd.f32 %v2307, %v2359
        %v2361 = vpop.f32.mrb[0].mxu0
        %v2362 = vadd.f32 %v2309, %v2361
        %v2363 = vpop.f32.mrb[0].mxu0
        %v2364 = vadd.f32 %v2311, %v2363
        %v2365 = vpop.f32.mrb[0].mxu0
        %v2366 = vadd.f32 %v2313, %v2365
        %2367 = vmatprep.mubr.bf16.mxu0 %v657
        %2368 = vmatmul.mubr.bf16.gmra.mrb[0].mxu0 %v656
        %v2369 = vpop.f32.mrb[0].mxu0
        %v2370 = vadd.f32 %v2317, %v2369
        %v2371 = vpop.f32.mrb[0].mxu0
        %v2372 = vadd.f32 %v2319, %v2371
        %v2373 = vpop.f32.mrb[0].mxu0
        %v2374 = vadd.f32 %v2321, %v2373
        %v2375 = vpop.f32.mrb[0].mxu0
        %v2376 = vadd.f32 %v2323, %v2375
        %2377 = vdwg.mxu0
        %v2378 = vadd.f32 %v306, %v2148
        %v2379 = vadd.f32 %v307, %v2150
        %v2380 = vadd.f32 %v308, %v2360
        %v2381 = vadd.f32 %v309, %v2362
        %v2382 = vadd.f32 %v310, %v2152
        %v2383 = vadd.f32 %v311, %v2154
        %v2384 = vadd.f32 %v312, %v2364
        %v2385 = vadd.f32 %v313, %v2366
        %v2386 = vadd.f32 %v314, %v2158
        %v2387 = vadd.f32 %v315, %v2160
        %v2388 = vadd.f32 %v316, %v2370
        %v2389 = vadd.f32 %v317, %v2372
        %v2390 = vadd.f32 %v318, %v2162
        %v2391 = vadd.f32 %v319, %v2164
        %v2392 = vadd.f32 %v320, %v2374
        %v2393 = vadd.f32 %v321, %v2376
        %2394 = vst [vmem:[#allocation2] sm:$0xff] %v2378
        %2395 = vst [vmem:[#allocation2 + $0x8] sm:$0xff] %v2379
        %2396 = vst [vmem:[#allocation2 + $0x10] sm:$0xff] %v2380
        %2397 = vst [vmem:[#allocation2 + $0x18] sm:$0xff] %v2381
        %2398 = vst [vmem:[#allocation2 + $0x20] sm:$0xff] %v2382
        %2399 = vst [vmem:[#allocation2 + $0x28] sm:$0xff] %v2383
        %2400 = vst [vmem:[#allocation2 + $0x30] sm:$0xff] %v2384
        %2401 = vst [vmem:[#allocation2 + $0x38] sm:$0xff] %v2385
        %2402 = vst [vmem:[#allocation2 + $0x40] sm:$0xff] %v2386
        %2403 = vst [vmem:[#allocation2 + $0x48] sm:$0xff] %v2387
        %2404 = vst [vmem:[#allocation2 + $0x50] sm:$0xff] %v2388
        %2405 = vst [vmem:[#allocation2 + $0x58] sm:$0xff] %v2389
        %2406 = vst [vmem:[#allocation2 + $0x60] sm:$0xff] %v2390
        %2407 = vst [vmem:[#allocation2 + $0x68] sm:$0xff] %v2391
        %2408 = vst [vmem:[#allocation2 + $0x70] sm:$0xff] %v2392
        %2409 = vst [vmem:[#allocation2 + $0x78] sm:$0xff] %v2393
        %p2410 = scmp.eq.s32.totalorder %s16, 3
        // Predicated region
        $region68: #{discriminator_forward.7} parent=58 // pred_check
          %p2411 = pneg %p2410
        $region69: #{discriminator_forward.7} parent=58 // pred_check_branch
          %2413 = sbr.rel (%p2411) target = $region71
        $region70: #{discriminator_forward.7} parent=58 // pred_region
          %v2414 = vld [vmem:[#allocation2] sm:$0xff]
          %v2415 = vld [vmem:[#allocation2 + $0x8] sm:$0xff]
          %v2416 = vld [vmem:[#allocation2 + $0x10] sm:$0xff]
          %v2417 = vld [vmem:[#allocation2 + $0x18] sm:$0xff]
          %v2418 = vld [vmem:[#allocation2 + $0x20] sm:$0xff]
          %v2419 = vld [vmem:[#allocation2 + $0x28] sm:$0xff]
          %v2420 = vld [vmem:[#allocation2 + $0x30] sm:$0xff]
          %v2421 = vld [vmem:[#allocation2 + $0x38] sm:$0xff]
          %v2422 = vld [vmem:[#allocation2 + $0x40] sm:$0xff]
          %v2423 = vld [vmem:[#allocation2 + $0x48] sm:$0xff]
          %v2424 = vld [vmem:[#allocation2 + $0x50] sm:$0xff]
          %v2425 = vld [vmem:[#allocation2 + $0x58] sm:$0xff]
          %v2426 = vld [vmem:[#allocation2 + $0x60] sm:$0xff]
          %v2427 = vld [vmem:[#allocation2 + $0x68] sm:$0xff]
          %v2428 = vld [vmem:[#allocation2 + $0x70] sm:$0xff]
          %v2429 = vld [vmem:[#allocation2 + $0x78] sm:$0xff]
          %v2430 = vadd.f32 %v2414, %v2418
          %v2431 = vadd.f32 %v2430, %v2422
          %v2432 = vadd.f32 %v2431, %v2426
          %v2433 = vrot.slane %v2432, 4
          %v2434 = vadd.f32 %v2432, %v2433
          %v2435 = vrot.slane %v2434, 2
          %v2436 = vadd.f32 %v2434, %v2435
          %v2437 = vrot.slane %v2436, 1
          %v2438 = vadd.f32 %v2436, %v2437
          %v2439 = vadd.f32 %v2415, %v2419
          %v2440 = vadd.f32 %v2439, %v2423
          %v2441 = vadd.f32 %v2440, %v2427
          %v2442 = vrot.slane %v2441, 4
          %v2443 = vadd.f32 %v2441, %v2442
          %v2444 = vrot.slane %v2443, 2
          %v2445 = vadd.f32 %v2443, %v2444
          %v2446 = vrot.slane %v2445, 1
          %v2447 = vadd.f32 %v2445, %v2446
          %v2448 = vadd.f32 %v2416, %v2420
          %v2449 = vadd.f32 %v2448, %v2424
          %v2450 = vadd.f32 %v2449, %v2428
          %v2451 = vrot.slane %v2450, 4
          %v2452 = vadd.f32 %v2450, %v2451
          %v2453 = vrot.slane %v2452, 2
          %v2454 = vadd.f32 %v2452, %v2453
          %v2455 = vrot.slane %v2454, 1
          %v2456 = vadd.f32 %v2454, %v2455
          %v2457 = vadd.f32 %v2417, %v2421
          %v2458 = vadd.f32 %v2457, %v2425
          %v2459 = vadd.f32 %v2458, %v2429
          %v2460 = vrot.slane %v2459, 4
          %v2461 = vadd.f32 %v2459, %v2460
          %v2462 = vrot.slane %v2461, 2
          %v2463 = vadd.f32 %v2461, %v2462
          %v2464 = vrot.slane %v2463, 1
          %v2465 = vadd.f32 %v2463, %v2464
          %v2466 = vmul.f32 %v2438, 0.03125
          %v2467 = vmul.f32 %v2447, 0.03125
          %v2468 = vmul.f32 %v2456, 0.03125
          %v2469 = vmul.f32 %v2465, 0.03125
          %v2470 = vsub.f32 %v2414, %v2466
          %v2471 = vsub.f32 %v2415, %v2467
          %v2472 = vsub.f32 %v2416, %v2468
          %v2473 = vsub.f32 %v2417, %v2469
          %v2474 = vsub.f32 %v2418, %v2466
          %v2475 = vsub.f32 %v2419, %v2467
          %v2476 = vsub.f32 %v2420, %v2468
          %v2477 = vsub.f32 %v2421, %v2469
          %v2478 = vsub.f32 %v2422, %v2466
          %v2479 = vsub.f32 %v2423, %v2467
          %v2480 = vsub.f32 %v2424, %v2468
          %v2481 = vsub.f32 %v2425, %v2469
          %v2482 = vsub.f32 %v2426, %v2466
          %v2483 = vsub.f32 %v2427, %v2467
          %v2484 = vsub.f32 %v2428, %v2468
          %v2485 = vsub.f32 %v2429, %v2469
          %v2486 = vmul.f32 %v2470, %v2470
          %v2487 = vmul.f32 %v2471, %v2471
          %v2488 = vmul.f32 %v2472, %v2472
          %v2489 = vmul.f32 %v2473, %v2473
          %v2490 = vmul.f32 %v2474, %v2474
          %v2491 = vmul.f32 %v2475, %v2475
          %v2492 = vmul.f32 %v2476, %v2476
          %v2493 = vmul.f32 %v2477, %v2477
          %v2494 = vmul.f32 %v2478, %v2478
          %v2495 = vmul.f32 %v2479, %v2479
          %v2496 = vmul.f32 %v2480, %v2480
          %v2497 = vmul.f32 %v2481, %v2481
          %v2498 = vmul.f32 %v2482, %v2482
          %v2499 = vmul.f32 %v2483, %v2483
          %v2500 = vmul.f32 %v2484, %v2484
          %v2501 = vmul.f32 %v2485, %v2485
          %v2502 = vadd.f32 %v2486, %v2490
          %v2503 = vadd.f32 %v2502, %v2494
          %v2504 = vadd.f32 %v2503, %v2498
          %v2505 = vrot.slane %v2504, 4
          %v2506 = vadd.f32 %v2504, %v2505
          %v2507 = vrot.slane %v2506, 2
          %v2508 = vadd.f32 %v2506, %v2507
          %v2509 = vrot.slane %v2508, 1
          %v2510 = vadd.f32 %v2508, %v2509
          %v2511 = vadd.f32 %v2487, %v2491
          %v2512 = vadd.f32 %v2511, %v2495
          %v2513 = vadd.f32 %v2512, %v2499
          %v2514 = vrot.slane %v2513, 4
          %v2515 = vadd.f32 %v2513, %v2514
          %v2516 = vrot.slane %v2515, 2
          %v2517 = vadd.f32 %v2515, %v2516
          %v2518 = vrot.slane %v2517, 1
          %v2519 = vadd.f32 %v2517, %v2518
          %v2520 = vadd.f32 %v2488, %v2492
          %v2521 = vadd.f32 %v2520, %v2496
          %v2522 = vadd.f32 %v2521, %v2500
          %v2523 = vrot.slane %v2522, 4
          %v2524 = vadd.f32 %v2522, %v2523
          %v2525 = vrot.slane %v2524, 2
          %v2526 = vadd.f32 %v2524, %v2525
          %v2527 = vrot.slane %v2526, 1
          %v2528 = vadd.f32 %v2526, %v2527
          %v2529 = vadd.f32 %v2489, %v2493
          %v2530 = vadd.f32 %v2529, %v2497
          %v2531 = vadd.f32 %v2530, %v2501
          %v2532 = vrot.slane %v2531, 4
          %v2533 = vadd.f32 %v2531, %v2532
          %v2534 = vrot.slane %v2533, 2
          %v2535 = vadd.f32 %v2533, %v2534
          %v2536 = vrot.slane %v2535, 1
          %v2537 = vadd.f32 %v2535, %v2536
          %v2538 = vmul.f32 %v2510, 0.03125
          %v2539 = vmul.f32 %v2519, 0.03125
          %v2540 = vmul.f32 %v2528, 0.03125
          %v2541 = vmul.f32 %v2537, 0.03125
          %v2542 = vadd.f32 %v2538, 1e-05
          %v2543 = vadd.f32 %v2539, 1e-05
          %v2544 = vadd.f32 %v2540, 1e-05
          %v2545 = vadd.f32 %v2541, 1e-05
          %v2546 = vrsqrt.pop %v2542
          %v2547 = vrsqrt.pop %v2543
          %v2548 = vrsqrt.pop %v2544
          %v2549 = vrsqrt.pop %v2545
          %v2550 = vld [vmem:[%s2] sm:$0xf]
          %v2552 = vlaneseq
          %v2553 = vshrl.u32 %v2552, 7
          %v2554 = vsub.s32 0, %v2553
          %v2555 = vrot.slane %v2550, %v2554
          %v2556 = vlaneseq
          %v2557 = vshrl.u32 %v2556, 7
          %v2558 = vsub.s32 1, %v2557
          %v2559 = vrot.slane %v2550, %v2558
          %v2560 = vlaneseq
          %v2561 = vshrl.u32 %v2560, 7
          %v2562 = vsub.s32 2, %v2561
          %v2563 = vrot.slane %v2550, %v2562
          %v2564 = vlaneseq
          %v2565 = vshrl.u32 %v2564, 7
          %v2566 = vsub.s32 3, %v2565
          %v2567 = vrot.slane %v2550, %v2566
          %v2572 = vmul.f32 %v2546, %v2555
          %v2573 = vmul.f32 %v2547, %v2559
          %v2574 = vmul.f32 %v2548, %v2563
          %v2575 = vmul.f32 %v2549, %v2567
          %v2576 = vlaneseq
          %v2577 = vshrl.u32 %v2576, 7
          %v2578 = vsub.s32 0, %v2577
          %v2579 = vrot.slane %v2572, %v2578
          %v2580 = vlaneseq
          %v2581 = vshrl.u32 %v2580, 7
          %v2582 = vsub.s32 0, %v2581
          %v2583 = vrot.slane %v2573, %v2582
          %v2584 = vlaneseq
          %v2585 = vshrl.u32 %v2584, 7
          %v2586 = vsub.s32 0, %v2585
          %v2587 = vrot.slane %v2574, %v2586
          %v2588 = vlaneseq
          %v2589 = vshrl.u32 %v2588, 7
          %v2590 = vsub.s32 0, %v2589
          %v2591 = vrot.slane %v2575, %v2590
          %v2592 = vmul.f32 %v2470, %v2579
          %v2593 = vmul.f32 %v2471, %v2583
          %v2594 = vmul.f32 %v2472, %v2587
          %v2595 = vmul.f32 %v2473, %v2591
          %v2596 = vmul.f32 %v2474, %v2579
          %v2597 = vmul.f32 %v2475, %v2583
          %v2598 = vmul.f32 %v2476, %v2587
          %v2599 = vmul.f32 %v2477, %v2591
          %v2600 = vmul.f32 %v2478, %v2579
          %v2601 = vmul.f32 %v2479, %v2583
          %v2602 = vmul.f32 %v2480, %v2587
          %v2603 = vmul.f32 %v2481, %v2591
          %v2604 = vmul.f32 %v2482, %v2579
          %v2605 = vmul.f32 %v2483, %v2583
          %v2606 = vmul.f32 %v2484, %v2587
          %v2607 = vmul.f32 %v2485, %v2591
          %v2608 = vld [vmem:[%s3] sm:$0xf]
          %v2610 = vlaneseq
          %v2611 = vshrl.u32 %v2610, 7
          %v2612 = vsub.s32 0, %v2611
          %v2613 = vrot.slane %v2608, %v2612
          %v2614 = vlaneseq
          %v2615 = vshrl.u32 %v2614, 7
          %v2616 = vsub.s32 1, %v2615
          %v2617 = vrot.slane %v2608, %v2616
          %v2618 = vlaneseq
          %v2619 = vshrl.u32 %v2618, 7
          %v2620 = vsub.s32 2, %v2619
          %v2621 = vrot.slane %v2608, %v2620
          %v2622 = vlaneseq
          %v2623 = vshrl.u32 %v2622, 7
          %v2624 = vsub.s32 3, %v2623
          %v2625 = vrot.slane %v2608, %v2624
          %v2630 = vadd.f32 %v2592, %v2613
          %v2631 = vadd.f32 %v2593, %v2617
          %v2632 = vadd.f32 %v2594, %v2621
          %v2633 = vadd.f32 %v2595, %v2625
          %v2634 = vadd.f32 %v2596, %v2613
          %v2635 = vadd.f32 %v2597, %v2617
          %v2636 = vadd.f32 %v2598, %v2621
          %v2637 = vadd.f32 %v2599, %v2625
          %v2638 = vadd.f32 %v2600, %v2613
          %v2639 = vadd.f32 %v2601, %v2617
          %v2640 = vadd.f32 %v2602, %v2621
          %v2641 = vadd.f32 %v2603, %v2625
          %v2642 = vadd.f32 %v2604, %v2613
          %v2643 = vadd.f32 %v2605, %v2617
          %v2644 = vadd.f32 %v2606, %v2621
          %v2645 = vadd.f32 %v2607, %v2625
          %vm2646 = vcmp.gt.f32.partialorder %v2630, 0.0
          %vm2647 = vcmp.gt.f32.partialorder %v2631, 0.0
          %vm2648 = vcmp.gt.f32.partialorder %v2632, 0.0
          %vm2649 = vcmp.gt.f32.partialorder %v2633, 0.0
          %vm2650 = vcmp.gt.f32.partialorder %v2634, 0.0
          %vm2651 = vcmp.gt.f32.partialorder %v2635, 0.0
          %vm2652 = vcmp.gt.f32.partialorder %v2636, 0.0
          %vm2653 = vcmp.gt.f32.partialorder %v2637, 0.0
          %vm2654 = vcmp.gt.f32.partialorder %v2638, 0.0
          %vm2655 = vcmp.gt.f32.partialorder %v2639, 0.0
          %vm2656 = vcmp.gt.f32.partialorder %v2640, 0.0
          %vm2657 = vcmp.gt.f32.partialorder %v2641, 0.0
          %vm2658 = vcmp.gt.f32.partialorder %v2642, 0.0
          %vm2659 = vcmp.gt.f32.partialorder %v2643, 0.0
          %vm2660 = vcmp.gt.f32.partialorder %v2644, 0.0
          %vm2661 = vcmp.gt.f32.partialorder %v2645, 0.0
          %v2662 = vmul.f32 %v2630, 0.2
          %v2663 = vmul.f32 %v2631, 0.2
          %v2664 = vmul.f32 %v2632, 0.2
          %v2665 = vmul.f32 %v2633, 0.2
          %v2666 = vmul.f32 %v2634, 0.2
          %v2667 = vmul.f32 %v2635, 0.2
          %v2668 = vmul.f32 %v2636, 0.2
          %v2669 = vmul.f32 %v2637, 0.2
          %v2670 = vmul.f32 %v2638, 0.2
          %v2671 = vmul.f32 %v2639, 0.2
          %v2672 = vmul.f32 %v2640, 0.2
          %v2673 = vmul.f32 %v2641, 0.2
          %v2674 = vmul.f32 %v2642, 0.2
          %v2675 = vmul.f32 %v2643, 0.2
          %v2676 = vmul.f32 %v2644, 0.2
          %v2677 = vmul.f32 %v2645, 0.2
          %v2678 = vsel %vm2646, %v2630, %v2662
          %v2679 = vsel %vm2647, %v2631, %v2663
          %v2680 = vsel %vm2648, %v2632, %v2664
          %v2681 = vsel %vm2649, %v2633, %v2665
          %v2682 = vsel %vm2650, %v2634, %v2666
          %v2683 = vsel %vm2651, %v2635, %v2667
          %v2684 = vsel %vm2652, %v2636, %v2668
          %v2685 = vsel %vm2653, %v2637, %v2669
          %v2686 = vsel %vm2654, %v2638, %v2670
          %v2687 = vsel %vm2655, %v2639, %v2671
          %v2688 = vsel %vm2656, %v2640, %v2672
          %v2689 = vsel %vm2657, %v2641, %v2673
          %v2690 = vsel %vm2658, %v2642, %v2674
          %v2691 = vsel %vm2659, %v2643, %v2675
          %v2692 = vsel %vm2660, %v2644, %v2676
          %v2693 = vsel %vm2661, %v2645, %v2677
          %v2694 = vld [vmem:[%s4] sm:$0xff]
          %v2695 = vld [vmem:[%s4 + $0x8] sm:$0xff]
          %v2696 = vld [vmem:[%s4 + $0x10] sm:$0xff]
          %v2697 = vld [vmem:[%s4 + $0x18] sm:$0xff]
          %v2698 = vld [vmem:[%s4 + $0x20] sm:$0xff]
          %v2699 = vld [vmem:[%s4 + $0x28] sm:$0xff]
          %v2700 = vld [vmem:[%s4 + $0x30] sm:$0xff]
          %v2701 = vld [vmem:[%s4 + $0x38] sm:$0xff]
          %v2702 = vmul.f32 %v2678, %v2694
          %v2703 = vmul.f32 %v2679, %v2695
          %v2704 = vmul.f32 %v2680, %v2696
          %v2705 = vmul.f32 %v2681, %v2697
          %v2706 = vmul.f32 %v2682, %v2698
          %v2707 = vmul.f32 %v2683, %v2699
          %v2708 = vmul.f32 %v2684, %v2700
          %v2709 = vmul.f32 %v2685, %v2701
          %v2710 = vmul.f32 %v2686, %v2694
          %v2711 = vmul.f32 %v2687, %v2695
          %v2712 = vmul.f32 %v2688, %v2696
          %v2713 = vmul.f32 %v2689, %v2697
          %v2714 = vmul.f32 %v2690, %v2698
          %v2715 = vmul.f32 %v2691, %v2699
          %v2716 = vmul.f32 %v2692, %v2700
          %v2717 = vmul.f32 %v2693, %v2701
          %v2718 = vadd.f32 %v2702, %v2703
          %v2719 = vadd.f32 %v2718, %v2704
          %v2720 = vadd.f32 %v2719, %v2705
          %2721 = vadd.xlane.f32.xlu0 %v2720
          %v2722 = vpop.xlane.xlu0 %2721
          %v2723 = vadd.f32 %v2706, %v2707
          %v2724 = vadd.f32 %v2723, %v2708
          %v2725 = vadd.f32 %v2724, %v2709
          %2726 = vadd.xlane.f32.xlu0 %v2725
          %v2727 = vpop.xlane.xlu0 %2726
          %v2728 = vadd.f32 %v2710, %v2711
          %v2729 = vadd.f32 %v2728, %v2712
          %v2730 = vadd.f32 %v2729, %v2713
          %2731 = vadd.xlane.f32.xlu0 %v2730
          %v2732 = vpop.xlane.xlu0 %2731
          %v2733 = vadd.f32 %v2714, %v2715
          %v2734 = vadd.f32 %v2733, %v2716
          %v2735 = vadd.f32 %v2734, %v2717
          %2736 = vadd.xlane.f32.xlu0 %v2735
          %v2737 = vpop.xlane.xlu0 %2736
          %v2742 = vlaneseq
          %v2743 = vand.u32 %v2742, 127
          %v2744 = vlaneseq
          %v2745 = vshrl.u32 %v2744, 7
          %v2746 = vsub.s32 %v2743, %v2745
          %v2747 = vrot.slane %v2722, %v2746
          %v2748 = vadd.s32 %v2743, 4294967288
          %v2749 = vlaneseq
          %v2750 = vshrl.u32 %v2749, 7
          %v2751 = vsub.s32 %v2748, %v2750
          %v2752 = vrot.slane %v2727, %v2751
          %vm2753 = vcmask 130112
          %v2754 = vsel %vm2753, %v2752, %v2747
          %v2755 = vlaneseq
          %v2756 = vshrl.u32 %v2755, 7
          %v2757 = vsub.s32 %v2743, %v2756
          %v2758 = vrot.slane %v2732, %v2757
          %v2759 = vlaneseq
          %v2760 = vshrl.u32 %v2759, 7
          %v2761 = vsub.s32 %v2748, %v2760
          %v2762 = vrot.slane %v2737, %v2761
          %v2763 = vsel %vm2753, %v2762, %v2758
          %vm2764 = vcmask 1041409
          %v2765 = vsel %vm2764, %v2763, %v2754
          %vm2767 = vcmask 123904
          %v2768 = vsel %vm2767, %v2765, 0.0
          %2769 = vadd.xlane.f32.xlu0 %v2768
          %v2770 = vpop.xlane.xlu0 %2769
          %v2771 = vand.u32 2147483647, %v2770
          %v2772 = vsub.f32 0.0, %v2771
          %v2773 = vmul.f32 %v2772, 1.442695
          %v2774 = vpow.pop %v2773
          %vm2775 = vcmp.ge.f32.partialorder %v2770, 0.0
          %v2776 = vsel %vm2775, 1.0, %v2774
          %v2777 = vadd.f32 %v2774, 1.0
          %v2778 = vrcp.pop %v2777
          %v2779 = vmul.f32 %v2776, %v2778
          %vm2780 = vcmask 1024
          %2781 = vst.msk [vmem:[%s5] sm:$0x3] %vm2780, %v2779
        $region71: #{discriminator_forward.7} parent=58 // pred_fallthru
          _
        // Predicated region
        $region72: #{discriminator_forward.7} parent=58 // pred_check
          %p2782 = pneg %p144
        $region73: #{discriminator_forward.7} parent=58 // pred_check_branch
          %2784 = sbr.rel (%p2782) target = $region75
        $region74: #{discriminator_forward.7} parent=58 // pred_region
          _
        $region75: #{discriminator_forward.7} parent=58 // pred_fallthru
          _
        // Predicated region
        $region76: #{discriminator_forward.7} parent=58 // pred_check
          %p2785 = pneg %p144
        $region77: #{discriminator_forward.7} parent=58 // pred_check_branch
          %2787 = sbr.rel (%p2785) target = $region79
        $region78: #{discriminator_forward.7} parent=58 // pred_region
          _
        $region79: #{discriminator_forward.7} parent=58 // pred_fallthru
          _
      $region59: #{discriminator_forward.7} parent=5 // pred_fallthru
        _
      %p2788 = scmp.le.s32.totalorder 2, %s11
      // Predicated region
      $region80: #{discriminator_forward.7} parent=5 // pred_check
        %p2789 = pneg %p2788
      $region81: #{discriminator_forward.7} parent=5 // pred_check_branch
        %2791 = sbr.rel (%p2789) target = $region83
      $region82: #{discriminator_forward.7} parent=5 // pred_region
        %s2792 = ssub.s32 %s11, 2
      $region83: #{discriminator_forward.7} parent=5 // pred_fallthru
        _
    $region6: #{discriminator_forward.7} parent=1 // loop_footer
      %s15 = sadd.s32 1, %s11
    $region7: #{discriminator_forward.7} parent=1 // loop_footer_branch
      %10 = sbr.rel target = $region3
    $region8: #{discriminator_forward.7} parent=1 // loop_exit
      _

</llo_original>
